<compile_context>
chip_gen: v7x
topology: tpu7x:2x2x1
jax: 0.10.0
libtpu: 0.0.40
codegen_flags: <defaults>
</compile_context>

<pallas_src>
import functools

import jax
import jax.numpy as jnp
import numpy as np
from jax.experimental import pallas as pl
from jax.experimental.pallas import tpu as pltpu


def _round_up(v, m):
    return (v + m - 1) // m * m


# ------------------------------ fused kernel --------------------------------

def _basic_block_kernel(xph_ref, xs_ref, mask_ref, w1_ref, b1_ref,
                        w2_ref, b2_ref, *rest, taps1, taps2, m1, m2, has_proj):
    """Fused BasicBlock for one image.

    xph_ref : (n_phase, L1, Cin)  stride-phase, padded-flat input, bf16
    xs_ref  : (m2, Cin|Cp)        shortcut input rows (bf16 proj / f32 identity)
    mask_ref: (m1, 1) f32         1.0 at interior positions of conv1 output
    w1_ref  : (9, Cin, Cp) bf16   conv1 weights, BN1 scale folded
    b1_ref  : (1, Cp) f32         BN1 shift
    w2_ref  : (9, Cp, Cp) bf16    conv2 weights, BN2 scale folded
    b2_ref  : (1, Cp) f32         BN2 shift
    [ws_ref : (Cin, Cp) bf16, bs_ref : (1, Cp) f32]  projection shortcut
    out_ref : (m2, Cp) bf16       padded-flat block output
    y_ref   : (m1, Cp) bf16       VMEM scratch: conv1 output (padded-flat)
    """
    if has_proj:
        ws_ref, bs_ref, out_ref, y_ref = rest
    else:
        out_ref, y_ref = rest

    # ---- conv1 (3x3, stride s) + bn1 + ReLU -> VMEM scratch -----------------
    # TODO(synk): K-group taps / MRB accumulation for v6e/v7x MXU occupancy.
    acc = None
    for t, (ph, off) in enumerate(taps1):
        a = xph_ref[ph, pl.ds(off, m1), :]
        d = jnp.dot(a, w1_ref[t], preferred_element_type=jnp.float32)
        acc = d if acc is None else acc + d
    acc = jnp.maximum(acc + b1_ref[...], 0.0) * mask_ref[...]
    y_ref[...] = acc.astype(y_ref.dtype)

    # ---- conv2 (3x3, stride 1) + bn2 + shortcut + add + ReLU ----------------
    acc2 = None
    for t, off in enumerate(taps2):
        a = y_ref[pl.ds(off, m2), :]
        d = jnp.dot(a, w2_ref[t], preferred_element_type=jnp.float32)
        acc2 = d if acc2 is None else acc2 + d
    acc2 = acc2 + b2_ref[...]
    if has_proj:
        acc2 = acc2 + jnp.dot(xs_ref[...], ws_ref[...],
                              preferred_element_type=jnp.float32)
        acc2 = acc2 + bs_ref[...]
    else:
        acc2 = acc2 + xs_ref[...]          # f32 identity residual (VPU add)
    out_ref[...] = jnp.maximum(acc2, 0.0).astype(out_ref.dtype)


# ------------------------------ JAX wrapper ----------------------------------

def _fold_bn(bn_params, eps):
    gamma, beta, mean, var = bn_params
    scale = gamma / jnp.sqrt(var + eps)
    shift = beta - mean * scale
    return scale, shift


def basic_block_forward(x, params, stride, eps=1e-5,
                        compute_dtype=jnp.bfloat16):
    """x: (N, Cin, H, W) f32 NCHW. Returns (N, planes, Ho, Wo) f32."""
    N, Cin, H, W = x.shape
    planes = params["w1"].shape[0]
    s = int(stride)
    has_proj = (s != 1) or (Cin != planes)

    Ho = (H - 1) // s + 1
    Wo = (W - 1) // s + 1
    Hp, Wp = Ho + 2, Wo + 2                 # padded output grid (pitch = Wp)
    Mp = Hp * Wp
    m2 = _round_up(Mp, 8)                   # conv2 rows computed / stored
    m1 = _round_up(m2 + 2 * Wp + 2, 8)      # conv1 rows (covers conv2 taps)
    Cp = _round_up(planes, 128)             # lane-dense output channels
    G = 8                                   # flat pre-pad of phase buffers

    # conv1 taps: (phase index, row offset into the padded-flat phase buffer);
    # conv1 output row u corresponds to output pixel (u//Wp - 2, u%Wp - 2).
    taps1 = tuple(((dh % s) * s + (dw % s),
                   G - 2 + (dh // s) * Wp + (dw // s))
                  for dh in range(3) for dw in range(3))
    # conv2 taps: output row q reads conv1-scratch rows q + dh*Wp + dw.
    taps2 = tuple(dh * Wp + dw for dh in range(3) for dw in range(3))
    max_off1 = max(off for _, off in taps1)
    Rph = -(-(m1 + max_off1 - G) // Wp)     # rows per phase grid
    L1 = G + Rph * Wp                       # flat phase-buffer length
    n_ph = s * s

    # ---- channels-last, stride-phase, padded-flat input views ---------------
    x_nhwc = jnp.transpose(x, (0, 2, 3, 1))
    P_h, P_w = 2 * s + 1, 1
    pad_b = max(0, s * Rph - P_h - H)
    pad_r = max(0, s * Wp - P_w - W)
    xe = jnp.pad(x_nhwc, ((0, 0), (P_h, pad_b), (P_w, pad_r), (0, 0)))
    phases = []
    for a in range(s):
        for b in range(s):
            ph = xe[:, a:a + s * Rph:s, b:b + s * Wp:s, :]   # (N, Rph, Wp, C)
            phases.append(ph.reshape(N, Rph * Wp, Cin))
    xph = jnp.stack(phases, axis=1)                           # (N, s*s, *, C)
    xph = jnp.pad(xph, ((0, 0), (0, 0), (G, 0), (0, 0))).astype(compute_dtype)

    # ---- shortcut input: strided x on the padded output grid ----------------
    x_s = x_nhwc[:, ::s, ::s, :]                              # (N, Ho, Wo, C)
    xs = jnp.pad(x_s, ((0, 0), (1, 1), (1, 1), (0, 0)))       # (N, Hp, Wp, C)
    xs = xs.reshape(N, Mp, Cin)
    xs = jnp.pad(xs, ((0, 0), (0, m2 - Mp), (0, 0)))
    if has_proj:
        xs = xs.astype(compute_dtype)                         # matmul operand
    else:
        xs = jnp.pad(xs, ((0, 0), (0, 0), (0, Cp - Cin)))     # f32 VPU add
        xs = xs.astype(jnp.float32)

    # interior mask for conv1's padded-flat output (zeroes the border ring so
    # conv2's implicit padding is exact).  Kept as a tiny host-built input.
    u = np.arange(m1)
    r, c = u // Wp, u % Wp
    interior = (r >= 2) & (r <= Ho + 1) & (c >= 2) & (c <= Wo + 1)
    mask = jnp.asarray(interior.astype(np.float32).reshape(m1, 1))

    # ---- fold BN into the conv weights, pad output channels to Cp -----------
    s1, b1 = _fold_bn(params["bn1"], eps)
    w1 = jnp.transpose(params["w1"], (2, 3, 1, 0)) * s1       # (3,3,Cin,pl)
    w1 = jnp.pad(w1, ((0, 0), (0, 0), (0, 0), (0, Cp - planes)))
    w1 = w1.reshape(9, Cin, Cp).astype(compute_dtype)
    b1 = jnp.pad(b1, (0, Cp - planes)).reshape(1, Cp).astype(jnp.float32)

    s2, b2 = _fold_bn(params["bn2"], eps)
    w2 = jnp.transpose(params["w2"], (2, 3, 1, 0)) * s2       # (3,3,pl,pl)
    w2 = jnp.pad(w2, ((0, 0), (0, 0), (0, Cp - planes), (0, Cp - planes)))
    w2 = w2.reshape(9, Cp, Cp).astype(compute_dtype)
    b2 = jnp.pad(b2, (0, Cp - planes)).reshape(1, Cp).astype(jnp.float32)

    inputs = [xph, xs, mask, w1, b1, w2, b2]
    in_specs = [
        pl.BlockSpec((None, n_ph, L1, Cin), lambda n: (n, 0, 0, 0)),
        pl.BlockSpec((None, m2, xs.shape[-1]), lambda n: (n, 0, 0)),
        pl.BlockSpec((m1, 1), lambda n: (0, 0)),
        pl.BlockSpec((9, Cin, Cp), lambda n: (0, 0, 0)),
        pl.BlockSpec((1, Cp), lambda n: (0, 0)),
        pl.BlockSpec((9, Cp, Cp), lambda n: (0, 0, 0)),
        pl.BlockSpec((1, Cp), lambda n: (0, 0)),
    ]
    if has_proj:
        ss_, bs_ = _fold_bn(params["bns"], eps)
        ws = params["ws"].reshape(planes, Cin).T * ss_        # (Cin, planes)
        ws = jnp.pad(ws, ((0, 0), (0, Cp - planes))).astype(compute_dtype)
        bs = jnp.pad(bs_, (0, Cp - planes)).reshape(1, Cp).astype(jnp.float32)
        inputs += [ws, bs]
        in_specs += [pl.BlockSpec((Cin, Cp), lambda n: (0, 0)),
                     pl.BlockSpec((1, Cp), lambda n: (0, 0))]

    kernel = functools.partial(_basic_block_kernel, taps1=taps1, taps2=taps2,
                               m1=m1, m2=m2, has_proj=has_proj)
    out = pl.pallas_call(
        kernel,
        out_shape=jax.ShapeDtypeStruct((N, m2, Cp), compute_dtype),
        grid=(N,),
        in_specs=in_specs,
        out_specs=pl.BlockSpec((None, m2, Cp), lambda n: (n, 0, 0)),
        scratch_shapes=[pltpu.VMEM((m1, Cp), compute_dtype)],
        compiler_params=pltpu.CompilerParams(
            dimension_semantics=("parallel",)),
    )(*inputs)

    # ---- crop padded grid / channel padding, back to NCHW f32 ---------------
    out = out[:, :Mp, :planes].reshape(N, Hp, Wp, planes)
    out = out[:, 1:Ho + 1, 1:Wo + 1, :]
    return jnp.transpose(out, (0, 3, 1, 2)).astype(jnp.float32)


# ------------------------------ reference ------------------------------------

def _ref_basic_block(x, p, stride, eps=1e-5):
    def conv(x, w, s, pad):
        return jax.lax.conv_general_dilated(
            x, w, (s, s), ((pad, pad), (pad, pad)),
            dimension_numbers=("NCHW", "OIHW", "NCHW"))

    def bn(x, bn_p):
        gamma, beta, mean, var = bn_p
        sc = gamma / jnp.sqrt(var + eps)
        sh = beta - mean * sc
        return x * sc[None, :, None, None] + sh[None, :, None, None]

    out = jax.nn.relu(bn(conv(x, p["w1"], stride, 1), p["bn1"]))
    out = bn(conv(out, p["w2"], 1, 1), p["bn2"])
    sc = bn(conv(x, p["ws"], stride, 0), p["bns"]) if "ws" in p else x
    return jax.nn.relu(out + sc)


# ------------------------------ main ------------------------------------------

def _make_params(key, in_planes, planes, with_proj):
    ks = jax.random.split(key, 12)

    def bn(k0, k1, k2, k3, n):
        return (1.0 + 0.1 * jax.random.normal(k0, (n,), jnp.float32),
                0.1 * jax.random.normal(k1, (n,), jnp.float32),
                0.1 * jax.random.normal(k2, (n,), jnp.float32),
                1.0 + 0.1 * jax.random.uniform(k3, (n,), jnp.float32))

    p = {
        "w1": 0.1 * jax.random.normal(ks[0], (planes, in_planes, 3, 3),
                                      jnp.float32),
        "w2": 0.1 * jax.random.normal(ks[1], (planes, planes, 3, 3),
                                      jnp.float32),
        "bn1": bn(ks[2], ks[3], ks[4], ks[5], planes),
        "bn2": bn(ks[6], ks[7], ks[8], ks[9], planes),
    }
    if with_proj:
        p["ws"] = 0.1 * jax.random.normal(ks[10], (planes, in_planes, 1, 1),
                                          jnp.float32)
        p["bns"] = bn(ks[11], ks[2], ks[3], ks[4], planes)
    return p


if __name__ == "__main__":
    key = jax.random.PRNGKey(0)
    configs = [
        # (N, in_planes, planes, stride, H, W)
        (2, 4, 8, 1, 16, 16),    # projection shortcut (channel change)
        (2, 4, 8, 2, 16, 16),    # strided projection shortcut (4 phases)
        (2, 8, 8, 1, 16, 16),    # identity shortcut (f32 VPU residual)
    ]
    for (N, cin, planes, stride, H, W) in configs:
        kx, kp, key = jax.random.split(key, 3)
        with_proj = (stride != 1) or (cin != planes)
        params = _make_params(kp, cin, planes, with_proj)
        x = jax.random.normal(kx, (N, cin, H, W), jnp.float32)

        fwd = jax.jit(functools.partial(basic_block_forward, stride=stride))
        out = jax.block_until_ready(fwd(x, params))
        ref = jax.block_until_ready(_ref_basic_block(x, params, stride))
        # bf16 matmul operands / bf16 output => relaxed tolerance.
        np.testing.assert_allclose(np.asarray(out), np.asarray(ref),
                                   atol=5e-2, rtol=5e-2)

    print("KERNEL_OK")
</pallas_src>

<mosaic_0001>
module attributes {stable_mosaic.version = 11 : i64} {
  func.func @_basic_block_kernel(%arg0: i32, %arg1: memref<1x1x422x4xbf16, #tpu.memory_space<vmem>>, %arg2: memref<1x328x4xbf16, #tpu.memory_space<vmem>>, %arg3: memref<368x1xf32, #tpu.memory_space<vmem>>, %arg4: memref<9x4x128xbf16, #tpu.memory_space<vmem>>, %arg5: memref<1x128xf32, #tpu.memory_space<vmem>>, %arg6: memref<9x128x128xbf16, #tpu.memory_space<vmem>>, %arg7: memref<1x128xf32, #tpu.memory_space<vmem>>, %arg8: memref<4x128xbf16, #tpu.memory_space<vmem>>, %arg9: memref<1x128xf32, #tpu.memory_space<vmem>>, %arg10: memref<1x328x128xbf16, #tpu.memory_space<vmem>>, %arg11: memref<368x128xbf16, #tpu.memory_space<vmem>>) attributes {dimension_semantics = [#tpu.dimension_semantics<parallel>], iteration_bounds = array<i64: 2>, scalar_prefetch = 0 : i64, scratch_operands = 1 : i64, tpu.core_type = #tpu.core_type<tc>, window_params = [{transform_indices = @transform_0, window_bounds = array<i64: 1, 1, 422, 4>}, {transform_indices = @transform_1, window_bounds = array<i64: 1, 328, 4>}, {pipeline_mode = #tpu.pipeline_mode<synchronous>, transform_indices = @transform_2, window_bounds = array<i64: 368, 1>}, {pipeline_mode = #tpu.pipeline_mode<synchronous>, transform_indices = @transform_3, window_bounds = array<i64: 9, 4, 128>}, {pipeline_mode = #tpu.pipeline_mode<synchronous>, transform_indices = @transform_4, window_bounds = array<i64: 1, 128>}, {pipeline_mode = #tpu.pipeline_mode<synchronous>, transform_indices = @transform_5, window_bounds = array<i64: 9, 128, 128>}, {pipeline_mode = #tpu.pipeline_mode<synchronous>, transform_indices = @transform_6, window_bounds = array<i64: 1, 128>}, {pipeline_mode = #tpu.pipeline_mode<synchronous>, transform_indices = @transform_7, window_bounds = array<i64: 4, 128>}, {pipeline_mode = #tpu.pipeline_mode<synchronous>, transform_indices = @transform_8, window_bounds = array<i64: 1, 128>}, {transform_indices = @transform_9, window_bounds = array<i64: 1, 328, 128>}]} {
    %c0 = arith.constant 0 : index
    %c0_0 = arith.constant 0 : index
    %c6 = arith.constant 6 : index
    %c0_1 = arith.constant 0 : index
    %0 = vector.load %arg1[%c0, %c0_0, %c6, %c0_1] : memref<1x1x422x4xbf16, #tpu.memory_space<vmem>>, vector<1x1x368x4xbf16>
    %1 = vector.shape_cast %0 : vector<1x1x368x4xbf16> to vector<368x4xbf16>
    %c0_2 = arith.constant 0 : index
    %c0_3 = arith.constant 0 : index
    %c0_4 = arith.constant 0 : index
    %2 = vector.load %arg4[%c0_2, %c0_3, %c0_4] : memref<9x4x128xbf16, #tpu.memory_space<vmem>>, vector<1x4x128xbf16>
    %3 = vector.shape_cast %2 : vector<1x4x128xbf16> to vector<4x128xbf16>
    %cst = arith.constant dense<0.000000e+00> : vector<368x128xf32>
    %4 = tpu.matmul %1, %3, %cst {dimension_numbers = #tpu.dot_dimension_numbers<[1], [0], [0], [1], [0, 0, 1, 1], [], []>} : vector<368x4xbf16>, vector<4x128xbf16>, vector<368x128xf32> -> vector<368x128xf32>
    %c0_5 = arith.constant 0 : index
    %c0_6 = arith.constant 0 : index
    %c7 = arith.constant 7 : index
    %c0_7 = arith.constant 0 : index
    %5 = vector.load %arg1[%c0_5, %c0_6, %c7, %c0_7] : memref<1x1x422x4xbf16, #tpu.memory_space<vmem>>, vector<1x1x368x4xbf16>
    %6 = vector.shape_cast %5 : vector<1x1x368x4xbf16> to vector<368x4xbf16>
    %c1 = arith.constant 1 : index
    %c0_8 = arith.constant 0 : index
    %c0_9 = arith.constant 0 : index
    %7 = vector.load %arg4[%c1, %c0_8, %c0_9] : memref<9x4x128xbf16, #tpu.memory_space<vmem>>, vector<1x4x128xbf16>
    %8 = vector.shape_cast %7 : vector<1x4x128xbf16> to vector<4x128xbf16>
    %cst_10 = arith.constant dense<0.000000e+00> : vector<368x128xf32>
    %9 = tpu.matmul %6, %8, %cst_10 {dimension_numbers = #tpu.dot_dimension_numbers<[1], [0], [0], [1], [0, 0, 1, 1], [], []>} : vector<368x4xbf16>, vector<4x128xbf16>, vector<368x128xf32> -> vector<368x128xf32>
    %10 = arith.addf %4, %9 : vector<368x128xf32>
    %c0_11 = arith.constant 0 : index
    %c0_12 = arith.constant 0 : index
    %c8 = arith.constant 8 : index
    %c0_13 = arith.constant 0 : index
    %11 = vector.load %arg1[%c0_11, %c0_12, %c8, %c0_13] : memref<1x1x422x4xbf16, #tpu.memory_space<vmem>>, vector<1x1x368x4xbf16>
    %12 = vector.shape_cast %11 : vector<1x1x368x4xbf16> to vector<368x4xbf16>
    %c2 = arith.constant 2 : index
    %c0_14 = arith.constant 0 : index
    %c0_15 = arith.constant 0 : index
    %13 = vector.load %arg4[%c2, %c0_14, %c0_15] : memref<9x4x128xbf16, #tpu.memory_space<vmem>>, vector<1x4x128xbf16>
    %14 = vector.shape_cast %13 : vector<1x4x128xbf16> to vector<4x128xbf16>
    %cst_16 = arith.constant dense<0.000000e+00> : vector<368x128xf32>
    %15 = tpu.matmul %12, %14, %cst_16 {dimension_numbers = #tpu.dot_dimension_numbers<[1], [0], [0], [1], [0, 0, 1, 1], [], []>} : vector<368x4xbf16>, vector<4x128xbf16>, vector<368x128xf32> -> vector<368x128xf32>
    %16 = arith.addf %10, %15 : vector<368x128xf32>
    %c0_17 = arith.constant 0 : index
    %c0_18 = arith.constant 0 : index
    %c24 = arith.constant 24 : index
    %c0_19 = arith.constant 0 : index
    %17 = vector.load %arg1[%c0_17, %c0_18, %c24, %c0_19] : memref<1x1x422x4xbf16, #tpu.memory_space<vmem>>, vector<1x1x368x4xbf16>
    %18 = vector.shape_cast %17 : vector<1x1x368x4xbf16> to vector<368x4xbf16>
    %c3 = arith.constant 3 : index
    %c0_20 = arith.constant 0 : index
    %c0_21 = arith.constant 0 : index
    %19 = vector.load %arg4[%c3, %c0_20, %c0_21] : memref<9x4x128xbf16, #tpu.memory_space<vmem>>, vector<1x4x128xbf16>
    %20 = vector.shape_cast %19 : vector<1x4x128xbf16> to vector<4x128xbf16>
    %cst_22 = arith.constant dense<0.000000e+00> : vector<368x128xf32>
    %21 = tpu.matmul %18, %20, %cst_22 {dimension_numbers = #tpu.dot_dimension_numbers<[1], [0], [0], [1], [0, 0, 1, 1], [], []>} : vector<368x4xbf16>, vector<4x128xbf16>, vector<368x128xf32> -> vector<368x128xf32>
    %22 = arith.addf %16, %21 : vector<368x128xf32>
    %c0_23 = arith.constant 0 : index
    %c0_24 = arith.constant 0 : index
    %c25 = arith.constant 25 : index
    %c0_25 = arith.constant 0 : index
    %23 = vector.load %arg1[%c0_23, %c0_24, %c25, %c0_25] : memref<1x1x422x4xbf16, #tpu.memory_space<vmem>>, vector<1x1x368x4xbf16>
    %24 = vector.shape_cast %23 : vector<1x1x368x4xbf16> to vector<368x4xbf16>
    %c4 = arith.constant 4 : index
    %c0_26 = arith.constant 0 : index
    %c0_27 = arith.constant 0 : index
    %25 = vector.load %arg4[%c4, %c0_26, %c0_27] : memref<9x4x128xbf16, #tpu.memory_space<vmem>>, vector<1x4x128xbf16>
    %26 = vector.shape_cast %25 : vector<1x4x128xbf16> to vector<4x128xbf16>
    %cst_28 = arith.constant dense<0.000000e+00> : vector<368x128xf32>
    %27 = tpu.matmul %24, %26, %cst_28 {dimension_numbers = #tpu.dot_dimension_numbers<[1], [0], [0], [1], [0, 0, 1, 1], [], []>} : vector<368x4xbf16>, vector<4x128xbf16>, vector<368x128xf32> -> vector<368x128xf32>
    %28 = arith.addf %22, %27 : vector<368x128xf32>
    %c0_29 = arith.constant 0 : index
    %c0_30 = arith.constant 0 : index
    %c26 = arith.constant 26 : index
    %c0_31 = arith.constant 0 : index
    %29 = vector.load %arg1[%c0_29, %c0_30, %c26, %c0_31] : memref<1x1x422x4xbf16, #tpu.memory_space<vmem>>, vector<1x1x368x4xbf16>
    %30 = vector.shape_cast %29 : vector<1x1x368x4xbf16> to vector<368x4xbf16>
    %c5 = arith.constant 5 : index
    %c0_32 = arith.constant 0 : index
    %c0_33 = arith.constant 0 : index
    %31 = vector.load %arg4[%c5, %c0_32, %c0_33] : memref<9x4x128xbf16, #tpu.memory_space<vmem>>, vector<1x4x128xbf16>
    %32 = vector.shape_cast %31 : vector<1x4x128xbf16> to vector<4x128xbf16>
    %cst_34 = arith.constant dense<0.000000e+00> : vector<368x128xf32>
    %33 = tpu.matmul %30, %32, %cst_34 {dimension_numbers = #tpu.dot_dimension_numbers<[1], [0], [0], [1], [0, 0, 1, 1], [], []>} : vector<368x4xbf16>, vector<4x128xbf16>, vector<368x128xf32> -> vector<368x128xf32>
    %34 = arith.addf %28, %33 : vector<368x128xf32>
    %c0_35 = arith.constant 0 : index
    %c0_36 = arith.constant 0 : index
    %c42 = arith.constant 42 : index
    %c0_37 = arith.constant 0 : index
    %35 = vector.load %arg1[%c0_35, %c0_36, %c42, %c0_37] : memref<1x1x422x4xbf16, #tpu.memory_space<vmem>>, vector<1x1x368x4xbf16>
    %36 = vector.shape_cast %35 : vector<1x1x368x4xbf16> to vector<368x4xbf16>
    %c6_38 = arith.constant 6 : index
    %c0_39 = arith.constant 0 : index
    %c0_40 = arith.constant 0 : index
    %37 = vector.load %arg4[%c6_38, %c0_39, %c0_40] : memref<9x4x128xbf16, #tpu.memory_space<vmem>>, vector<1x4x128xbf16>
    %38 = vector.shape_cast %37 : vector<1x4x128xbf16> to vector<4x128xbf16>
    %cst_41 = arith.constant dense<0.000000e+00> : vector<368x128xf32>
    %39 = tpu.matmul %36, %38, %cst_41 {dimension_numbers = #tpu.dot_dimension_numbers<[1], [0], [0], [1], [0, 0, 1, 1], [], []>} : vector<368x4xbf16>, vector<4x128xbf16>, vector<368x128xf32> -> vector<368x128xf32>
    %40 = arith.addf %34, %39 : vector<368x128xf32>
    %c0_42 = arith.constant 0 : index
    %c0_43 = arith.constant 0 : index
    %c43 = arith.constant 43 : index
    %c0_44 = arith.constant 0 : index
    %41 = vector.load %arg1[%c0_42, %c0_43, %c43, %c0_44] : memref<1x1x422x4xbf16, #tpu.memory_space<vmem>>, vector<1x1x368x4xbf16>
    %42 = vector.shape_cast %41 : vector<1x1x368x4xbf16> to vector<368x4xbf16>
    %c7_45 = arith.constant 7 : index
    %c0_46 = arith.constant 0 : index
    %c0_47 = arith.constant 0 : index
    %43 = vector.load %arg4[%c7_45, %c0_46, %c0_47] : memref<9x4x128xbf16, #tpu.memory_space<vmem>>, vector<1x4x128xbf16>
    %44 = vector.shape_cast %43 : vector<1x4x128xbf16> to vector<4x128xbf16>
    %cst_48 = arith.constant dense<0.000000e+00> : vector<368x128xf32>
    %45 = tpu.matmul %42, %44, %cst_48 {dimension_numbers = #tpu.dot_dimension_numbers<[1], [0], [0], [1], [0, 0, 1, 1], [], []>} : vector<368x4xbf16>, vector<4x128xbf16>, vector<368x128xf32> -> vector<368x128xf32>
    %46 = arith.addf %40, %45 : vector<368x128xf32>
    %c0_49 = arith.constant 0 : index
    %c0_50 = arith.constant 0 : index
    %c44 = arith.constant 44 : index
    %c0_51 = arith.constant 0 : index
    %47 = vector.load %arg1[%c0_49, %c0_50, %c44, %c0_51] : memref<1x1x422x4xbf16, #tpu.memory_space<vmem>>, vector<1x1x368x4xbf16>
    %48 = vector.shape_cast %47 : vector<1x1x368x4xbf16> to vector<368x4xbf16>
    %c8_52 = arith.constant 8 : index
    %c0_53 = arith.constant 0 : index
    %c0_54 = arith.constant 0 : index
    %49 = vector.load %arg4[%c8_52, %c0_53, %c0_54] : memref<9x4x128xbf16, #tpu.memory_space<vmem>>, vector<1x4x128xbf16>
    %50 = vector.shape_cast %49 : vector<1x4x128xbf16> to vector<4x128xbf16>
    %cst_55 = arith.constant dense<0.000000e+00> : vector<368x128xf32>
    %51 = tpu.matmul %48, %50, %cst_55 {dimension_numbers = #tpu.dot_dimension_numbers<[1], [0], [0], [1], [0, 0, 1, 1], [], []>} : vector<368x4xbf16>, vector<4x128xbf16>, vector<368x128xf32> -> vector<368x128xf32>
    %52 = arith.addf %46, %51 : vector<368x128xf32>
    %c0_56 = arith.constant 0 : index
    %c0_57 = arith.constant 0 : index
    %53 = vector.load %arg5[%c0_56, %c0_57] : memref<1x128xf32, #tpu.memory_space<vmem>>, vector<1x128xf32>
    %54 = vector.broadcast %53 : vector<1x128xf32> to vector<368x128xf32>
    %55 = arith.addf %52, %54 : vector<368x128xf32>
    %cst_58 = arith.constant 0.000000e+00 : f32
    %56 = vector.broadcast %cst_58 : f32 to vector<368x128xf32>
    %57 = arith.maximumf %55, %56 : vector<368x128xf32>
    %c0_59 = arith.constant 0 : index
    %c0_60 = arith.constant 0 : index
    %58 = vector.load %arg3[%c0_59, %c0_60] : memref<368x1xf32, #tpu.memory_space<vmem>>, vector<368x1xf32>
    %59 = vector.broadcast %58 : vector<368x1xf32> to vector<368x128xf32>
    %60 = arith.mulf %57, %59 : vector<368x128xf32>
    %61 = arith.truncf %60 : vector<368x128xf32> to vector<368x128xbf16>
    %c0_61 = arith.constant 0 : index
    %c0_62 = arith.constant 0 : index
    %62 = vector.load %arg11[%c0_61, %c0_62] : memref<368x128xbf16, #tpu.memory_space<vmem>>, vector<368x128xbf16>
    tpu.vector_store %arg11[%c0_61, %c0_62], %61 {strides = array<i32>} : memref<368x128xbf16, #tpu.memory_space<vmem>>, vector<368x128xbf16>,
    %c0_63 = arith.constant 0 : index
    %c0_64 = arith.constant 0 : index
    %63 = vector.load %arg11[%c0_63, %c0_64] : memref<368x128xbf16, #tpu.memory_space<vmem>>, vector<328x128xbf16>
    %c0_65 = arith.constant 0 : index
    %c0_66 = arith.constant 0 : index
    %c0_67 = arith.constant 0 : index
    %64 = vector.load %arg6[%c0_65, %c0_66, %c0_67] : memref<9x128x128xbf16, #tpu.memory_space<vmem>>, vector<1x128x128xbf16>
    %65 = vector.shape_cast %64 : vector<1x128x128xbf16> to vector<128x128xbf16>
    %cst_68 = arith.constant dense<0.000000e+00> : vector<328x128xf32>
    %66 = tpu.matmul %63, %65, %cst_68 {dimension_numbers = #tpu.dot_dimension_numbers<[1], [0], [0], [1], [0, 0, 1, 1], [], []>} : vector<328x128xbf16>, vector<128x128xbf16>, vector<328x128xf32> -> vector<328x128xf32>
    %c1_69 = arith.constant 1 : index
    %c0_70 = arith.constant 0 : index
    %67 = vector.load %arg11[%c1_69, %c0_70] : memref<368x128xbf16, #tpu.memory_space<vmem>>, vector<328x128xbf16>
    %c1_71 = arith.constant 1 : index
    %c0_72 = arith.constant 0 : index
    %c0_73 = arith.constant 0 : index
    %68 = vector.load %arg6[%c1_71, %c0_72, %c0_73] : memref<9x128x128xbf16, #tpu.memory_space<vmem>>, vector<1x128x128xbf16>
    %69 = vector.shape_cast %68 : vector<1x128x128xbf16> to vector<128x128xbf16>
    %cst_74 = arith.constant dense<0.000000e+00> : vector<328x128xf32>
    %70 = tpu.matmul %67, %69, %cst_74 {dimension_numbers = #tpu.dot_dimension_numbers<[1], [0], [0], [1], [0, 0, 1, 1], [], []>} : vector<328x128xbf16>, vector<128x128xbf16>, vector<328x128xf32> -> vector<328x128xf32>
    %71 = arith.addf %66, %70 : vector<328x128xf32>
    %c2_75 = arith.constant 2 : index
    %c0_76 = arith.constant 0 : index
    %72 = vector.load %arg11[%c2_75, %c0_76] : memref<368x128xbf16, #tpu.memory_space<vmem>>, vector<328x128xbf16>
    %c2_77 = arith.constant 2 : index
    %c0_78 = arith.constant 0 : index
    %c0_79 = arith.constant 0 : index
    %73 = vector.load %arg6[%c2_77, %c0_78, %c0_79] : memref<9x128x128xbf16, #tpu.memory_space<vmem>>, vector<1x128x128xbf16>
    %74 = vector.shape_cast %73 : vector<1x128x128xbf16> to vector<128x128xbf16>
    %cst_80 = arith.constant dense<0.000000e+00> : vector<328x128xf32>
    %75 = tpu.matmul %72, %74, %cst_80 {dimension_numbers = #tpu.dot_dimension_numbers<[1], [0], [0], [1], [0, 0, 1, 1], [], []>} : vector<328x128xbf16>, vector<128x128xbf16>, vector<328x128xf32> -> vector<328x128xf32>
    %76 = arith.addf %71, %75 : vector<328x128xf32>
    %c18 = arith.constant 18 : index
    %c0_81 = arith.constant 0 : index
    %77 = vector.load %arg11[%c18, %c0_81] : memref<368x128xbf16, #tpu.memory_space<vmem>>, vector<328x128xbf16>
    %c3_82 = arith.constant 3 : index
    %c0_83 = arith.constant 0 : index
    %c0_84 = arith.constant 0 : index
    %78 = vector.load %arg6[%c3_82, %c0_83, %c0_84] : memref<9x128x128xbf16, #tpu.memory_space<vmem>>, vector<1x128x128xbf16>
    %79 = vector.shape_cast %78 : vector<1x128x128xbf16> to vector<128x128xbf16>
    %cst_85 = arith.constant dense<0.000000e+00> : vector<328x128xf32>
    %80 = tpu.matmul %77, %79, %cst_85 {dimension_numbers = #tpu.dot_dimension_numbers<[1], [0], [0], [1], [0, 0, 1, 1], [], []>} : vector<328x128xbf16>, vector<128x128xbf16>, vector<328x128xf32> -> vector<328x128xf32>
    %81 = arith.addf %76, %80 : vector<328x128xf32>
    %c19 = arith.constant 19 : index
    %c0_86 = arith.constant 0 : index
    %82 = vector.load %arg11[%c19, %c0_86] : memref<368x128xbf16, #tpu.memory_space<vmem>>, vector<328x128xbf16>
    %c4_87 = arith.constant 4 : index
    %c0_88 = arith.constant 0 : index
    %c0_89 = arith.constant 0 : index
    %83 = vector.load %arg6[%c4_87, %c0_88, %c0_89] : memref<9x128x128xbf16, #tpu.memory_space<vmem>>, vector<1x128x128xbf16>
    %84 = vector.shape_cast %83 : vector<1x128x128xbf16> to vector<128x128xbf16>
    %cst_90 = arith.constant dense<0.000000e+00> : vector<328x128xf32>
    %85 = tpu.matmul %82, %84, %cst_90 {dimension_numbers = #tpu.dot_dimension_numbers<[1], [0], [0], [1], [0, 0, 1, 1], [], []>} : vector<328x128xbf16>, vector<128x128xbf16>, vector<328x128xf32> -> vector<328x128xf32>
    %86 = arith.addf %81, %85 : vector<328x128xf32>
    %c20 = arith.constant 20 : index
    %c0_91 = arith.constant 0 : index
    %87 = vector.load %arg11[%c20, %c0_91] : memref<368x128xbf16, #tpu.memory_space<vmem>>, vector<328x128xbf16>
    %c5_92 = arith.constant 5 : index
    %c0_93 = arith.constant 0 : index
    %c0_94 = arith.constant 0 : index
    %88 = vector.load %arg6[%c5_92, %c0_93, %c0_94] : memref<9x128x128xbf16, #tpu.memory_space<vmem>>, vector<1x128x128xbf16>
    %89 = vector.shape_cast %88 : vector<1x128x128xbf16> to vector<128x128xbf16>
    %cst_95 = arith.constant dense<0.000000e+00> : vector<328x128xf32>
    %90 = tpu.matmul %87, %89, %cst_95 {dimension_numbers = #tpu.dot_dimension_numbers<[1], [0], [0], [1], [0, 0, 1, 1], [], []>} : vector<328x128xbf16>, vector<128x128xbf16>, vector<328x128xf32> -> vector<328x128xf32>
    %91 = arith.addf %86, %90 : vector<328x128xf32>
    %c36 = arith.constant 36 : index
    %c0_96 = arith.constant 0 : index
    %92 = vector.load %arg11[%c36, %c0_96] : memref<368x128xbf16, #tpu.memory_space<vmem>>, vector<328x128xbf16>
    %c6_97 = arith.constant 6 : index
    %c0_98 = arith.constant 0 : index
    %c0_99 = arith.constant 0 : index
    %93 = vector.load %arg6[%c6_97, %c0_98, %c0_99] : memref<9x128x128xbf16, #tpu.memory_space<vmem>>, vector<1x128x128xbf16>
    %94 = vector.shape_cast %93 : vector<1x128x128xbf16> to vector<128x128xbf16>
    %cst_100 = arith.constant dense<0.000000e+00> : vector<328x128xf32>
    %95 = tpu.matmul %92, %94, %cst_100 {dimension_numbers = #tpu.dot_dimension_numbers<[1], [0], [0], [1], [0, 0, 1, 1], [], []>} : vector<328x128xbf16>, vector<128x128xbf16>, vector<328x128xf32> -> vector<328x128xf32>
    %96 = arith.addf %91, %95 : vector<328x128xf32>
    %c37 = arith.constant 37 : index
    %c0_101 = arith.constant 0 : index
    %97 = vector.load %arg11[%c37, %c0_101] : memref<368x128xbf16, #tpu.memory_space<vmem>>, vector<328x128xbf16>
    %c7_102 = arith.constant 7 : index
    %c0_103 = arith.constant 0 : index
    %c0_104 = arith.constant 0 : index
    %98 = vector.load %arg6[%c7_102, %c0_103, %c0_104] : memref<9x128x128xbf16, #tpu.memory_space<vmem>>, vector<1x128x128xbf16>
    %99 = vector.shape_cast %98 : vector<1x128x128xbf16> to vector<128x128xbf16>
    %cst_105 = arith.constant dense<0.000000e+00> : vector<328x128xf32>
    %100 = tpu.matmul %97, %99, %cst_105 {dimension_numbers = #tpu.dot_dimension_numbers<[1], [0], [0], [1], [0, 0, 1, 1], [], []>} : vector<328x128xbf16>, vector<128x128xbf16>, vector<328x128xf32> -> vector<328x128xf32>
    %101 = arith.addf %96, %100 : vector<328x128xf32>
    %c38 = arith.constant 38 : index
    %c0_106 = arith.constant 0 : index
    %102 = vector.load %arg11[%c38, %c0_106] : memref<368x128xbf16, #tpu.memory_space<vmem>>, vector<328x128xbf16>
    %c8_107 = arith.constant 8 : index
    %c0_108 = arith.constant 0 : index
    %c0_109 = arith.constant 0 : index
    %103 = vector.load %arg6[%c8_107, %c0_108, %c0_109] : memref<9x128x128xbf16, #tpu.memory_space<vmem>>, vector<1x128x128xbf16>
    %104 = vector.shape_cast %103 : vector<1x128x128xbf16> to vector<128x128xbf16>
    %cst_110 = arith.constant dense<0.000000e+00> : vector<328x128xf32>
    %105 = tpu.matmul %102, %104, %cst_110 {dimension_numbers = #tpu.dot_dimension_numbers<[1], [0], [0], [1], [0, 0, 1, 1], [], []>} : vector<328x128xbf16>, vector<128x128xbf16>, vector<328x128xf32> -> vector<328x128xf32>
    %106 = arith.addf %101, %105 : vector<328x128xf32>
    %c0_111 = arith.constant 0 : index
    %c0_112 = arith.constant 0 : index
    %107 = vector.load %arg7[%c0_111, %c0_112] : memref<1x128xf32, #tpu.memory_space<vmem>>, vector<1x128xf32>
    %108 = vector.broadcast %107 : vector<1x128xf32> to vector<328x128xf32>
    %109 = arith.addf %106, %108 : vector<328x128xf32>
    %c0_113 = arith.constant 0 : index
    %c0_114 = arith.constant 0 : index
    %c0_115 = arith.constant 0 : index
    %110 = vector.load %arg2[%c0_113, %c0_114, %c0_115] : memref<1x328x4xbf16, #tpu.memory_space<vmem>>, vector<1x328x4xbf16>
    %111 = vector.shape_cast %110 : vector<1x328x4xbf16> to vector<328x4xbf16>
    %c0_116 = arith.constant 0 : index
    %c0_117 = arith.constant 0 : index
    %112 = vector.load %arg8[%c0_116, %c0_117] : memref<4x128xbf16, #tpu.memory_space<vmem>>, vector<4x128xbf16>
    %cst_118 = arith.constant dense<0.000000e+00> : vector<328x128xf32>
    %113 = tpu.matmul %111, %112, %cst_118 {dimension_numbers = #tpu.dot_dimension_numbers<[1], [0], [0], [1], [0, 0, 1, 1], [], []>} : vector<328x4xbf16>, vector<4x128xbf16>, vector<328x128xf32> -> vector<328x128xf32>
    %114 = arith.addf %109, %113 : vector<328x128xf32>
    %c0_119 = arith.constant 0 : index
    %c0_120 = arith.constant 0 : index
    %115 = vector.load %arg9[%c0_119, %c0_120] : memref<1x128xf32, #tpu.memory_space<vmem>>, vector<1x128xf32>
    %116 = vector.broadcast %115 : vector<1x128xf32> to vector<328x128xf32>
    %117 = arith.addf %114, %116 : vector<328x128xf32>
    %cst_121 = arith.constant 0.000000e+00 : f32
    %118 = vector.broadcast %cst_121 : f32 to vector<328x128xf32>
    %119 = arith.maximumf %117, %118 : vector<328x128xf32>
    %120 = arith.truncf %119 : vector<328x128xf32> to vector<328x128xbf16>
    %c0_122 = arith.constant 0 : index
    %c0_123 = arith.constant 0 : index
    %c0_124 = arith.constant 0 : index
    %121 = vector.load %arg10[%c0_122, %c0_123, %c0_124] : memref<1x328x128xbf16, #tpu.memory_space<vmem>>, vector<1x328x128xbf16>
    %122 = vector.shape_cast %121 : vector<1x328x128xbf16> to vector<328x128xbf16>
    %123 = vector.shape_cast %120 : vector<328x128xbf16> to vector<1x328x128xbf16>
    tpu.vector_store %arg10[%c0_122, %c0_123, %c0_124], %123 {strides = array<i32>} : memref<1x328x128xbf16, #tpu.memory_space<vmem>>, vector<1x328x128xbf16>,
    return
  }
  func.func @transform_0(%arg0: i32) -> (i32, i32, i32, i32) {
    %c0_i32 = arith.constant 0 : i32
    %c0_i32_0 = arith.constant 0 : i32
    %c0_i32_1 = arith.constant 0 : i32
    %c0_i32_2 = arith.constant 0 : i32
    return %arg0, %c0_i32, %c0_i32_0, %c0_i32_1 : i32, i32, i32, i32
  }
  func.func @transform_1(%arg0: i32) -> (i32, i32, i32) {
    %c0_i32 = arith.constant 0 : i32
    %c0_i32_0 = arith.constant 0 : i32
    %c0_i32_1 = arith.constant 0 : i32
    return %arg0, %c0_i32, %c0_i32_0 : i32, i32, i32
  }
  func.func @transform_2(%arg0: i32) -> (i32, i32) {
    %c0_i32 = arith.constant 0 : i32
    %c0_i32_0 = arith.constant 0 : i32
    %c0_i32_1 = arith.constant 0 : i32
    return %c0_i32, %c0_i32_0 : i32, i32
  }
  func.func @transform_3(%arg0: i32) -> (i32, i32, i32) {
    %c0_i32 = arith.constant 0 : i32
    %c0_i32_0 = arith.constant 0 : i32
    %c0_i32_1 = arith.constant 0 : i32
    %c0_i32_2 = arith.constant 0 : i32
    return %c0_i32, %c0_i32_0, %c0_i32_1 : i32, i32, i32
  }
  func.func @transform_4(%arg0: i32) -> (i32, i32) {
    %c0_i32 = arith.constant 0 : i32
    %c0_i32_0 = arith.constant 0 : i32
    %c0_i32_1 = arith.constant 0 : i32
    return %c0_i32, %c0_i32_0 : i32, i32
  }
  func.func @transform_5(%arg0: i32) -> (i32, i32, i32) {
    %c0_i32 = arith.constant 0 : i32
    %c0_i32_0 = arith.constant 0 : i32
    %c0_i32_1 = arith.constant 0 : i32
    %c0_i32_2 = arith.constant 0 : i32
    return %c0_i32, %c0_i32_0, %c0_i32_1 : i32, i32, i32
  }
  func.func @transform_6(%arg0: i32) -> (i32, i32) {
    %c0_i32 = arith.constant 0 : i32
    %c0_i32_0 = arith.constant 0 : i32
    %c0_i32_1 = arith.constant 0 : i32
    return %c0_i32, %c0_i32_0 : i32, i32
  }
  func.func @transform_7(%arg0: i32) -> (i32, i32) {
    %c0_i32 = arith.constant 0 : i32
    %c0_i32_0 = arith.constant 0 : i32
    %c0_i32_1 = arith.constant 0 : i32
    return %c0_i32, %c0_i32_0 : i32, i32
  }
  func.func @transform_8(%arg0: i32) -> (i32, i32) {
    %c0_i32 = arith.constant 0 : i32
    %c0_i32_0 = arith.constant 0 : i32
    %c0_i32_1 = arith.constant 0 : i32
    return %c0_i32, %c0_i32_0 : i32, i32
  }
  func.func @transform_9(%arg0: i32) -> (i32, i32, i32) {
    %c0_i32 = arith.constant 0 : i32
    %c0_i32_0 = arith.constant 0 : i32
    %c0_i32_1 = arith.constant 0 : i32
    return %arg0, %c0_i32, %c0_i32_0 : i32, i32, i32
  }
}

</mosaic_0001>

<llo_original>
// kernel: basic_block_forward.1
$region0: #{basic_block_forward.1}
  #allocation0 [shape = 'u32[]', space=smem, size = 0x4, offset = 0x4, fixed_abs, tag = 'smem constant byte address 0x4 - core index']
  #allocation1 [shape = 'u32[144,128]{1,0:T(1,128)}', space=vmem, size = 0x12000, scoped, tag = 'internal scratch']
  #allocation2 [shape = 'bf16[368,128]{1,0:T(16,128)(2,1)}', space=vmem, size = 0x17000, scoped, tag = 'scratch operand']
  %s0 = inlined_call_operand.vmem [shape: bf16[2,1,422,4], index: 0, kind: input, shape index: {}]
  %s1 = inlined_call_operand.vmem [shape: bf16[2,328,4], index: 1, kind: input, shape index: {}]
  %s2 = inlined_call_operand.vmem [shape: f32[368,1], index: 2, kind: input, shape index: {}]
  %s3 = inlined_call_operand.vmem [shape: bf16[9,4,128], index: 3, kind: input, shape index: {}]
  %s4 = inlined_call_operand.vmem [shape: f32[1,128], index: 4, kind: input, shape index: {}]
  %s5 = inlined_call_operand.vmem [shape: bf16[9,128,128], index: 5, kind: input, shape index: {}]
  %s6 = inlined_call_operand.vmem [shape: f32[1,128], index: 6, kind: input, shape index: {}]
  %s7 = inlined_call_operand.vmem [shape: bf16[4,128], index: 7, kind: input, shape index: {}]
  %s8 = inlined_call_operand.vmem [shape: f32[1,128], index: 8, kind: input, shape index: {}]
  %s9 = inlined_call_operand.vmem [shape: bf16[2,328,128], index: 9, kind: output, shape index: {}]
  %s10 = sld [smem:[#allocation0]]
  $region69: #{basic_block_forward.1} parent=0
    _
  %s12 = ssub.s32 1, %s10
  %s13 = scalar_select 0, %s12, %s10
  loop: start=0, step=1, limit=4
  $region2: #{basic_block_forward.1} parent=0 // loop_pre_header
    _
  $region3: #{basic_block_forward.1} parent=0 // loop_header
    %s15 = sphi 0, %s19
    %p16 = scmp.ge.s32.totalorder %s15, 4
    %s25 = sphi 0, %s27
    %s28 = sphi 0, %s25
    %s29 = sphi 0, %s28
    %s45 = sphi 0, %s29
    %s51 = sphi 0, %s53
    %s54 = sphi 0, %s51
    %s55 = sphi 0, %s54
    %s71 = sphi 0, %s55
    %s75 = sphi 0, %s75
    %s77 = sphi 0, %s75
    %s78 = sphi 0, %s77
    %s92 = sphi 0, %s78
    %s96 = sphi 0, %s96
    %s98 = sphi 0, %s96
    %s99 = sphi 0, %s98
    %s113 = sphi 0, %s99
    %s117 = sphi 0, %s117
    %s119 = sphi 0, %s117
    %s120 = sphi 0, %s119
    %s134 = sphi 0, %s120
    %s138 = sphi 0, %s138
    %s140 = sphi 0, %s138
    %s141 = sphi 0, %s140
    %s155 = sphi 0, %s141
    %s159 = sphi 0, %s159
    %s161 = sphi 0, %s159
    %s162 = sphi 0, %s161
    %s176 = sphi 0, %s162
    %s180 = sphi 0, %s180
    %s182 = sphi 0, %s180
    %s183 = sphi 0, %s182
    %s197 = sphi 0, %s183
    %s201 = sphi 0, %s201
    %s203 = sphi 0, %s201
    %s204 = sphi 0, %s203
    %s218 = sphi 0, %s204
    %s224 = sphi 0, %s226
    %s227 = sphi 0, %s224
    %s228 = sphi 0, %s227
    %s244 = sphi 0, %s228
  $region4: #{basic_block_forward.1} parent=0 // loop_header_branch
    %18 = sbr.rel (%p16) target = $region8
  $region5: #{basic_block_forward.1} parent=0 // loop_body
    %s20 = ssub.s32 %s15, 1
    %s21 = ssub.s32 %s15, 2
    %s22 = sadd.s32 %s15, 1
    %s23 = ssub.s32 %s15, %s22
    %p24 = scmp.eq.s32.totalorder %s23, 0
    %s26 = sadd.s32 %s25, 1
    %s27 = scalar_select %p24, %s25, %s26
    %p30 = pneg %p24
    %p31 = scmp.eq.s32.totalorder %s15, 1
    %p32 = por %p30, %p31
    %p33 = scmp.ne.s32.totalorder %s25, %s28
    %p34 = scmp.eq.s32.totalorder %s15, 0
    %p35 = por %p33, %p34
    %p36 = scmp.ne.s32.totalorder %s25, %s28
    %p37 = scmp.eq.s32.totalorder %s20, 1
    %p38 = por %p36, %p37
    %p39 = scmp.ne.s32.totalorder %s28, %s29
    %p40 = scmp.eq.s32.totalorder %s20, 0
    %p41 = por %p39, %p40
    %p42 = scmp.ne.s32.totalorder %s28, %s29
    %p43 = scmp.eq.s32.totalorder %s21, 1
    %p44 = por %p42, %p43
    %p46 = scmp.ne.s32.totalorder %s29, %s45
    %p47 = scmp.eq.s32.totalorder %s21, 0
    %p48 = por %p46, %p47
    %s49 = ssub.s32 %s15, %s22
    %p50 = scmp.eq.s32.totalorder %s49, 0
    %s52 = sadd.s32 %s51, 1
    %s53 = scalar_select %p50, %s51, %s52
    %p56 = pneg %p50
    %p57 = scmp.eq.s32.totalorder %s15, 1
    %p58 = por %p56, %p57
    %p59 = scmp.ne.s32.totalorder %s51, %s54
    %p60 = scmp.eq.s32.totalorder %s15, 0
    %p61 = por %p59, %p60
    %p62 = scmp.ne.s32.totalorder %s51, %s54
    %p63 = scmp.eq.s32.totalorder %s20, 1
    %p64 = por %p62, %p63
    %p65 = scmp.ne.s32.totalorder %s54, %s55
    %p66 = scmp.eq.s32.totalorder %s20, 0
    %p67 = por %p65, %p66
    %p68 = scmp.ne.s32.totalorder %s54, %s55
    %p69 = scmp.eq.s32.totalorder %s21, 1
    %p70 = por %p68, %p69
    %p72 = scmp.ne.s32.totalorder %s55, %s71
    %p73 = scmp.eq.s32.totalorder %s21, 0
    %p74 = por %p72, %p73
    %s76 = sadd.s32 %s75, 1
    %p79 = scmp.eq.s32.totalorder %s15, 1
    %p80 = scmp.ne.s32.totalorder %s75, %s77
    %p81 = scmp.eq.s32.totalorder %s15, 0
    %p82 = por %p80, %p81
    %p83 = scmp.ne.s32.totalorder %s75, %s77
    %p84 = scmp.eq.s32.totalorder %s20, 1
    %p85 = por %p83, %p84
    %p86 = scmp.ne.s32.totalorder %s77, %s78
    %p87 = scmp.eq.s32.totalorder %s20, 0
    %p88 = por %p86, %p87
    %p89 = scmp.ne.s32.totalorder %s77, %s78
    %p90 = scmp.eq.s32.totalorder %s21, 1
    %p91 = por %p89, %p90
    %p93 = scmp.ne.s32.totalorder %s78, %s92
    %p94 = scmp.eq.s32.totalorder %s21, 0
    %p95 = por %p93, %p94
    %s97 = sadd.s32 %s96, 1
    %p100 = scmp.eq.s32.totalorder %s15, 1
    %p101 = scmp.ne.s32.totalorder %s96, %s98
    %p102 = scmp.eq.s32.totalorder %s15, 0
    %p103 = por %p101, %p102
    %p104 = scmp.ne.s32.totalorder %s96, %s98
    %p105 = scmp.eq.s32.totalorder %s20, 1
    %p106 = por %p104, %p105
    %p107 = scmp.ne.s32.totalorder %s98, %s99
    %p108 = scmp.eq.s32.totalorder %s20, 0
    %p109 = por %p107, %p108
    %p110 = scmp.ne.s32.totalorder %s98, %s99
    %p111 = scmp.eq.s32.totalorder %s21, 1
    %p112 = por %p110, %p111
    %p114 = scmp.ne.s32.totalorder %s99, %s113
    %p115 = scmp.eq.s32.totalorder %s21, 0
    %p116 = por %p114, %p115
    %s118 = sadd.s32 %s117, 1
    %p121 = scmp.eq.s32.totalorder %s15, 1
    %p122 = scmp.ne.s32.totalorder %s117, %s119
    %p123 = scmp.eq.s32.totalorder %s15, 0
    %p124 = por %p122, %p123
    %p125 = scmp.ne.s32.totalorder %s117, %s119
    %p126 = scmp.eq.s32.totalorder %s20, 1
    %p127 = por %p125, %p126
    %p128 = scmp.ne.s32.totalorder %s119, %s120
    %p129 = scmp.eq.s32.totalorder %s20, 0
    %p130 = por %p128, %p129
    %p131 = scmp.ne.s32.totalorder %s119, %s120
    %p132 = scmp.eq.s32.totalorder %s21, 1
    %p133 = por %p131, %p132
    %p135 = scmp.ne.s32.totalorder %s120, %s134
    %p136 = scmp.eq.s32.totalorder %s21, 0
    %p137 = por %p135, %p136
    %s139 = sadd.s32 %s138, 1
    %p142 = scmp.eq.s32.totalorder %s15, 1
    %p143 = scmp.ne.s32.totalorder %s138, %s140
    %p144 = scmp.eq.s32.totalorder %s15, 0
    %p145 = por %p143, %p144
    %p146 = scmp.ne.s32.totalorder %s138, %s140
    %p147 = scmp.eq.s32.totalorder %s20, 1
    %p148 = por %p146, %p147
    %p149 = scmp.ne.s32.totalorder %s140, %s141
    %p150 = scmp.eq.s32.totalorder %s20, 0
    %p151 = por %p149, %p150
    %p152 = scmp.ne.s32.totalorder %s140, %s141
    %p153 = scmp.eq.s32.totalorder %s21, 1
    %p154 = por %p152, %p153
    %p156 = scmp.ne.s32.totalorder %s141, %s155
    %p157 = scmp.eq.s32.totalorder %s21, 0
    %p158 = por %p156, %p157
    %s160 = sadd.s32 %s159, 1
    %p163 = scmp.eq.s32.totalorder %s15, 1
    %p164 = scmp.ne.s32.totalorder %s159, %s161
    %p165 = scmp.eq.s32.totalorder %s15, 0
    %p166 = por %p164, %p165
    %p167 = scmp.ne.s32.totalorder %s159, %s161
    %p168 = scmp.eq.s32.totalorder %s20, 1
    %p169 = por %p167, %p168
    %p170 = scmp.ne.s32.totalorder %s161, %s162
    %p171 = scmp.eq.s32.totalorder %s20, 0
    %p172 = por %p170, %p171
    %p173 = scmp.ne.s32.totalorder %s161, %s162
    %p174 = scmp.eq.s32.totalorder %s21, 1
    %p175 = por %p173, %p174
    %p177 = scmp.ne.s32.totalorder %s162, %s176
    %p178 = scmp.eq.s32.totalorder %s21, 0
    %p179 = por %p177, %p178
    %s181 = sadd.s32 %s180, 1
    %p184 = scmp.eq.s32.totalorder %s15, 1
    %p185 = scmp.ne.s32.totalorder %s180, %s182
    %p186 = scmp.eq.s32.totalorder %s15, 0
    %p187 = por %p185, %p186
    %p188 = scmp.ne.s32.totalorder %s180, %s182
    %p189 = scmp.eq.s32.totalorder %s20, 1
    %p190 = por %p188, %p189
    %p191 = scmp.ne.s32.totalorder %s182, %s183
    %p192 = scmp.eq.s32.totalorder %s20, 0
    %p193 = por %p191, %p192
    %p194 = scmp.ne.s32.totalorder %s182, %s183
    %p195 = scmp.eq.s32.totalorder %s21, 1
    %p196 = por %p194, %p195
    %p198 = scmp.ne.s32.totalorder %s183, %s197
    %p199 = scmp.eq.s32.totalorder %s21, 0
    %p200 = por %p198, %p199
    %s202 = sadd.s32 %s201, 1
    %p205 = scmp.eq.s32.totalorder %s15, 1
    %p206 = scmp.ne.s32.totalorder %s201, %s203
    %p207 = scmp.eq.s32.totalorder %s15, 0
    %p208 = por %p206, %p207
    %p209 = scmp.ne.s32.totalorder %s201, %s203
    %p210 = scmp.eq.s32.totalorder %s20, 1
    %p211 = por %p209, %p210
    %p212 = scmp.ne.s32.totalorder %s203, %s204
    %p213 = scmp.eq.s32.totalorder %s20, 0
    %p214 = por %p212, %p213
    %p215 = scmp.ne.s32.totalorder %s203, %s204
    %p216 = scmp.eq.s32.totalorder %s21, 1
    %p217 = por %p215, %p216
    %p219 = scmp.ne.s32.totalorder %s204, %s218
    %p220 = scmp.eq.s32.totalorder %s21, 0
    %p221 = por %p219, %p220
    %s222 = ssub.s32 %s15, %s22
    %p223 = scmp.eq.s32.totalorder %s222, 0
    %s225 = sadd.s32 %s224, 1
    %s226 = scalar_select %p223, %s224, %s225
    %p229 = pneg %p223
    %p230 = scmp.eq.s32.totalorder %s15, 1
    %p231 = por %p229, %p230
    %p232 = scmp.ne.s32.totalorder %s224, %s227
    %p233 = scmp.eq.s32.totalorder %s15, 0
    %p234 = por %p232, %p233
    %p235 = scmp.ne.s32.totalorder %s224, %s227
    %p236 = scmp.eq.s32.totalorder %s20, 1
    %p237 = por %p235, %p236
    %p238 = scmp.ne.s32.totalorder %s227, %s228
    %p239 = scmp.eq.s32.totalorder %s20, 0
    %p240 = por %p238, %p239
    %p241 = scmp.ne.s32.totalorder %s227, %s228
    %p242 = scmp.eq.s32.totalorder %s21, 1
    %p243 = por %p241, %p242
    %p245 = scmp.ne.s32.totalorder %s228, %s244
    %p246 = scmp.eq.s32.totalorder %s21, 0
    %p247 = por %p245, %p246
    %p248 = scmp.le.s32.totalorder 1, %s15
    %p249 = scmp.lt.s32.totalorder %s15, 3
    %p250 = pnand %p248, %p249
    %p251 = pneg %p250
    // Predicated region
    $region9: #{basic_block_forward.1} parent=5 // pred_check
      _
    $region10: #{basic_block_forward.1} parent=5 // pred_check_branch
      %253 = sbr.rel (%p250) target = $region12
    $region11: #{basic_block_forward.1} parent=5 // pred_region
      %s254 = ssub.s32 %s15, 1
      // Predicated region
      $region13: #{basic_block_forward.1} parent=11 // pred_check
        %p255 = pneg %p88
      $region14: #{basic_block_forward.1} parent=11 // pred_check_branch
        %257 = sbr.rel (%p255) target = $region16
      $region15: #{basic_block_forward.1} parent=11 // pred_region
        _
      $region16: #{basic_block_forward.1} parent=11 // pred_fallthru
        _
      // Predicated region
      $region17: #{basic_block_forward.1} parent=11 // pred_check
        %p258 = pneg %p109
      $region18: #{basic_block_forward.1} parent=11 // pred_check_branch
        %260 = sbr.rel (%p258) target = $region20
      $region19: #{basic_block_forward.1} parent=11 // pred_region
        _
      $region20: #{basic_block_forward.1} parent=11 // pred_fallthru
        _
      // Predicated region
      $region21: #{basic_block_forward.1} parent=11 // pred_check
        %p261 = pneg %p130
      $region22: #{basic_block_forward.1} parent=11 // pred_check_branch
        %263 = sbr.rel (%p261) target = $region24
      $region23: #{basic_block_forward.1} parent=11 // pred_region
        _
      $region24: #{basic_block_forward.1} parent=11 // pred_fallthru
        _
      // Predicated region
      $region25: #{basic_block_forward.1} parent=11 // pred_check
        %p264 = pneg %p151
      $region26: #{basic_block_forward.1} parent=11 // pred_check_branch
        %266 = sbr.rel (%p264) target = $region28
      $region27: #{basic_block_forward.1} parent=11 // pred_region
        _
      $region28: #{basic_block_forward.1} parent=11 // pred_fallthru
        _
      // Predicated region
      $region29: #{basic_block_forward.1} parent=11 // pred_check
        %p267 = pneg %p172
      $region30: #{basic_block_forward.1} parent=11 // pred_check_branch
        %269 = sbr.rel (%p267) target = $region32
      $region31: #{basic_block_forward.1} parent=11 // pred_region
        _
      $region32: #{basic_block_forward.1} parent=11 // pred_fallthru
        _
      // Predicated region
      $region33: #{basic_block_forward.1} parent=11 // pred_check
        %p270 = pneg %p193
      $region34: #{basic_block_forward.1} parent=11 // pred_check_branch
        %272 = sbr.rel (%p270) target = $region36
      $region35: #{basic_block_forward.1} parent=11 // pred_region
        _
      $region36: #{basic_block_forward.1} parent=11 // pred_fallthru
        _
      // Predicated region
      $region37: #{basic_block_forward.1} parent=11 // pred_check
        %p273 = pneg %p214
      $region38: #{basic_block_forward.1} parent=11 // pred_check_branch
        %275 = sbr.rel (%p273) target = $region40
      $region39: #{basic_block_forward.1} parent=11 // pred_region
        _
      $region40: #{basic_block_forward.1} parent=11 // pred_fallthru
        _
    $region12: #{basic_block_forward.1} parent=5 // pred_fallthru
      _
    %p276 = scmp.lt.s32.totalorder %s15, 2
    // Predicated region
    $region41: #{basic_block_forward.1} parent=5 // pred_check
      %p277 = pneg %p276
    $region42: #{basic_block_forward.1} parent=5 // pred_check_branch
      %279 = sbr.rel (%p277) target = $region44
    $region43: #{basic_block_forward.1} parent=5 // pred_region
      // Predicated region
      $region45: #{basic_block_forward.1} parent=43 // pred_check
        %p280 = pneg %p35
      $region46: #{basic_block_forward.1} parent=43 // pred_check_branch
        %282 = sbr.rel (%p280) target = $region48
      $region47: #{basic_block_forward.1} parent=43 // pred_region
        %p283 = scmp.lt.s32.totalorder %s15, 1
        %s284 = scalar_select %p283, %s15, 1
        %s285 = smul.addr %s284, 53
        %s286 = smul.addr %s285, 4
        %s287 = scalar_lea.vmem %s0, %s286
      $region48: #{basic_block_forward.1} parent=43 // pred_fallthru
        _
      // Predicated region
      $region49: #{basic_block_forward.1} parent=43 // pred_check
        %p288 = pneg %p61
      $region50: #{basic_block_forward.1} parent=43 // pred_check_branch
        %290 = sbr.rel (%p288) target = $region52
      $region51: #{basic_block_forward.1} parent=43 // pred_region
        %p291 = scmp.lt.s32.totalorder %s15, 1
        %s292 = scalar_select %p291, %s15, 1
        %s293 = smul.addr %s292, 41
        %s294 = smul.addr %s293, 4
        %s295 = scalar_lea.vmem %s1, %s294
      $region52: #{basic_block_forward.1} parent=43 // pred_fallthru
        _
    $region44: #{basic_block_forward.1} parent=5 // pred_fallthru
      _
    %p296 = scmp.le.s32.totalorder 1, %s15
    %p297 = scmp.lt.s32.totalorder %s15, 3
    %p298 = pnand %p296, %p297
    %p299 = pneg %p298
    // Predicated region
    $region53: #{basic_block_forward.1} parent=5 // pred_check
      _
    $region54: #{basic_block_forward.1} parent=5 // pred_check_branch
      %301 = sbr.rel (%p298) target = $region56
    $region55: #{basic_block_forward.1} parent=5 // pred_region
      %s302 = ssub.s32 %s15, 1
      %p303 = scmp.lt.s32.totalorder %s20, 1
      %s304 = scalar_select %p303, %s20, 1
      %s305 = smul.addr %s304, 53
      %s306 = smul.addr %s305, 4
      %s307 = scalar_lea.vmem %s0, %s306
      %p308 = pneg %p41
      %p309 = pneg %p38
      %p310 = scmp.lt.s32.totalorder %s20, 1
      %s311 = scalar_select %p310, %s20, 1
      %s312 = smul.addr %s311, 41
      %s313 = smul.addr %s312, 4
      %s314 = scalar_lea.vmem %s1, %s313
      %p315 = pneg %p67
      %p316 = pneg %p64
      %p317 = pneg %p88
      %p318 = pneg %p85
      %p319 = pneg %p109
      %p320 = pneg %p106
      %p321 = pneg %p130
      %p322 = pneg %p127
      %p323 = pneg %p151
      %p324 = pneg %p148
      %p325 = pneg %p172
      %p326 = pneg %p169
      %p327 = pneg %p193
      %p328 = pneg %p190
      %p329 = pneg %p214
      %p330 = pneg %p211
      %p331 = pneg %p240
      %p332 = pneg %p237
      %p333 = scmp.lt.s32.totalorder %s20, 1
      %s334 = scalar_select %p333, %s20, 1
      %s335 = smul.addr %s334, 41
      %s336 = smul.addr %s335, 4
      %s337 = scalar_lea.vmem %s9, %s336
      %p338 = scmp.lt.s32.totalorder %s20, 1
      %s339 = scalar_select %p338, %s20, 1
      %s340 = smul.addr %s339, 53
      %s341 = smul.addr %s340, 4
      %s342 = scalar_lea.vmem %s0, %s341
      %p343 = scmp.lt.s32.totalorder %s20, 1
      %s344 = scalar_select %p343, %s20, 1
      %s345 = smul.addr %s344, 41
      %s346 = smul.addr %s345, 4
      %s347 = scalar_lea.vmem %s1, %s346
      %p348 = scmp.lt.s32.totalorder %s20, 1
      %s349 = scalar_select %p348, %s20, 1
      %s350 = smul.addr %s349, 41
      %s351 = smul.addr %s350, 4
      %s352 = scalar_lea.vmem %s9, %s351
      %v354 = vld [vmem:[%s342] sm:$0x8]
      %v355 = vld [vmem:[%s342 + $0x4] sm:$0xf]
      %v356 = vld [vmem:[%s342 + $0x8] sm:$0xf]
      %v357 = vld [vmem:[%s342 + $0xc] sm:$0xf]
      %v358 = vld [vmem:[%s342 + $0x10] sm:$0xf]
      %v359 = vld [vmem:[%s342 + $0x14] sm:$0xf]
      %v360 = vld [vmem:[%s342 + $0x18] sm:$0xf]
      %v361 = vld [vmem:[%s342 + $0x1c] sm:$0xf]
      %v362 = vld [vmem:[%s342 + $0x20] sm:$0xf]
      %v363 = vld [vmem:[%s342 + $0x24] sm:$0xf]
      %v364 = vld [vmem:[%s342 + $0x28] sm:$0xf]
      %v365 = vld [vmem:[%s342 + $0x2c] sm:$0xf]
      %v366 = vld [vmem:[%s342 + $0x30] sm:$0xf]
      %v367 = vld [vmem:[%s342 + $0x34] sm:$0xf]
      %v368 = vld [vmem:[%s342 + $0x38] sm:$0xf]
      %v369 = vld [vmem:[%s342 + $0x3c] sm:$0xf]
      %v370 = vld [vmem:[%s342 + $0x40] sm:$0xf]
      %v371 = vld [vmem:[%s342 + $0x44] sm:$0xf]
      %v372 = vld [vmem:[%s342 + $0x48] sm:$0xf]
      %v373 = vld [vmem:[%s342 + $0x4c] sm:$0xf]
      %v374 = vld [vmem:[%s342 + $0x50] sm:$0xf]
      %v375 = vld [vmem:[%s342 + $0x54] sm:$0xf]
      %v376 = vld [vmem:[%s342 + $0x58] sm:$0xf]
      %v377 = vld [vmem:[%s342 + $0x5c] sm:$0xf]
      %v378 = vld [vmem:[%s342 + $0x60] sm:$0xf]
      %v379 = vld [vmem:[%s342 + $0x64] sm:$0xf]
      %v380 = vld [vmem:[%s342 + $0x68] sm:$0xf]
      %v381 = vld [vmem:[%s342 + $0x6c] sm:$0xf]
      %v382 = vld [vmem:[%s342 + $0x70] sm:$0xf]
      %v383 = vld [vmem:[%s342 + $0x74] sm:$0xf]
      %v384 = vld [vmem:[%s342 + $0x78] sm:$0xf]
      %v385 = vld [vmem:[%s342 + $0x7c] sm:$0xf]
      %v386 = vld [vmem:[%s342 + $0x80] sm:$0xf]
      %v387 = vld [vmem:[%s342 + $0x84] sm:$0xf]
      %v388 = vld [vmem:[%s342 + $0x88] sm:$0xf]
      %v389 = vld [vmem:[%s342 + $0x8c] sm:$0xf]
      %v390 = vld [vmem:[%s342 + $0x90] sm:$0xf]
      %v391 = vld [vmem:[%s342 + $0x94] sm:$0xf]
      %v392 = vld [vmem:[%s342 + $0x98] sm:$0xf]
      %v393 = vld [vmem:[%s342 + $0x9c] sm:$0xf]
      %v394 = vld [vmem:[%s342 + $0xa0] sm:$0xf]
      %v395 = vld [vmem:[%s342 + $0xa4] sm:$0xf]
      %v396 = vld [vmem:[%s342 + $0xa8] sm:$0xf]
      %v397 = vld [vmem:[%s342 + $0xac] sm:$0xf]
      %v398 = vld [vmem:[%s342 + $0xb0] sm:$0xf]
      %v399 = vld [vmem:[%s342 + $0xb4] sm:$0xf]
      %v400 = vld [vmem:[%s342 + $0xb8] sm:$0x7]
      %v401 = vld [vmem:[%s3] sm:$0x3]
      %v402 = vld [vmem:[%s342 + $0xb8] sm:$0xf]
      %s403 = scalar_lea.vmem %s3, 2
      %v404 = vld [vmem:[%s403] sm:$0x3]
      %v452 = vunpack.c.l.b16 %v354
      %v453 = vunpack.c.l.b16 %v355
      %v454 = vunpack.c.l.b16 %v356
      %v455 = vunpack.c.l.b16 %v357
      %v456 = vunpack.c.l.b16 %v358
      %v457 = vunpack.c.l.b16 %v359
      %v458 = vunpack.c.l.b16 %v360
      %v459 = vunpack.c.l.b16 %v361
      %v460 = vunpack.c.l.b16 %v362
      %v461 = vunpack.c.l.b16 %v363
      %v462 = vunpack.c.l.b16 %v364
      %v463 = vunpack.c.l.b16 %v365
      %v464 = vunpack.c.l.b16 %v366
      %v465 = vunpack.c.l.b16 %v367
      %v466 = vunpack.c.l.b16 %v368
      %v467 = vunpack.c.l.b16 %v369
      %v468 = vunpack.c.l.b16 %v370
      %v469 = vunpack.c.l.b16 %v371
      %v470 = vunpack.c.l.b16 %v372
      %v471 = vunpack.c.l.b16 %v373
      %v472 = vunpack.c.l.b16 %v374
      %v473 = vunpack.c.l.b16 %v375
      %v474 = vunpack.c.l.b16 %v376
      %v475 = vunpack.c.l.b16 %v377
      %v476 = vunpack.c.l.b16 %v378
      %v477 = vunpack.c.l.b16 %v379
      %v478 = vunpack.c.l.b16 %v380
      %v479 = vunpack.c.l.b16 %v381
      %v480 = vunpack.c.l.b16 %v382
      %v481 = vunpack.c.l.b16 %v383
      %v482 = vunpack.c.l.b16 %v384
      %v483 = vunpack.c.l.b16 %v385
      %v484 = vunpack.c.l.b16 %v386
      %v485 = vunpack.c.l.b16 %v387
      %v486 = vunpack.c.l.b16 %v388
      %v487 = vunpack.c.l.b16 %v389
      %v488 = vunpack.c.l.b16 %v390
      %v489 = vunpack.c.l.b16 %v391
      %v490 = vunpack.c.l.b16 %v392
      %v491 = vunpack.c.l.b16 %v393
      %v492 = vunpack.c.l.b16 %v394
      %v493 = vunpack.c.l.b16 %v395
      %v494 = vunpack.c.l.b16 %v396
      %v495 = vunpack.c.l.b16 %v397
      %v496 = vunpack.c.l.b16 %v398
      %v497 = vunpack.c.l.b16 %v399
      %v498 = vunpack.c.l.b16 %v402
      %v499 = vpack.c.b16 %v453, %v452
      %v500 = vpack.c.b16 %v455, %v454
      %v501 = vpack.c.b16 %v457, %v456
      %v502 = vpack.c.b16 %v459, %v458
      %v503 = vpack.c.b16 %v461, %v460
      %v504 = vpack.c.b16 %v463, %v462
      %v505 = vpack.c.b16 %v465, %v464
      %v506 = vpack.c.b16 %v467, %v466
      %v507 = vpack.c.b16 %v469, %v468
      %v508 = vpack.c.b16 %v471, %v470
      %v509 = vpack.c.b16 %v473, %v472
      %v510 = vpack.c.b16 %v475, %v474
      %v511 = vpack.c.b16 %v477, %v476
      %v512 = vpack.c.b16 %v479, %v478
      %v513 = vpack.c.b16 %v481, %v480
      %v514 = vpack.c.b16 %v483, %v482
      %v515 = vpack.c.b16 %v485, %v484
      %v516 = vpack.c.b16 %v487, %v486
      %v517 = vpack.c.b16 %v489, %v488
      %v518 = vpack.c.b16 %v491, %v490
      %v519 = vpack.c.b16 %v493, %v492
      %v520 = vpack.c.b16 %v495, %v494
      %v521 = vpack.c.b16 %v497, %v496
      %v522 = vpack.c.b16 %v498, %v498
      %vm523 = vsmask.f32 4352
      %v525 = vshrl.u32 %v499, 16
      %v527 = vrot.slane %v525, 3
      %v528 = vshll.u32 %v499, 16
      %v530 = vrot.slane %v528, 4
      %v531 = vor.u32 %v527, %v530
      %v533 = vshrl.u32 %v500, 16
      %v535 = vrot.slane %v533, 3
      %v536 = vshll.u32 %v500, 16
      %v538 = vrot.slane %v536, 4
      %v539 = vor.u32 %v535, %v538
      %v540 = vsel %vm523, %v531, %v539
      %v542 = vshrl.u32 %v501, 16
      %v544 = vrot.slane %v542, 3
      %v545 = vshll.u32 %v501, 16
      %v547 = vrot.slane %v545, 4
      %v548 = vor.u32 %v544, %v547
      %v549 = vsel %vm523, %v539, %v548
      %v551 = vshrl.u32 %v502, 16
      %v553 = vrot.slane %v551, 3
      %v554 = vshll.u32 %v502, 16
      %v556 = vrot.slane %v554, 4
      %v557 = vor.u32 %v553, %v556
      %v558 = vsel %vm523, %v548, %v557
      %v560 = vshrl.u32 %v503, 16
      %v562 = vrot.slane %v560, 3
      %v563 = vshll.u32 %v503, 16
      %v565 = vrot.slane %v563, 4
      %v566 = vor.u32 %v562, %v565
      %v567 = vsel %vm523, %v557, %v566
      %v569 = vshrl.u32 %v504, 16
      %v571 = vrot.slane %v569, 3
      %v572 = vshll.u32 %v504, 16
      %v574 = vrot.slane %v572, 4
      %v575 = vor.u32 %v571, %v574
      %v576 = vsel %vm523, %v566, %v575
      %v578 = vshrl.u32 %v505, 16
      %v580 = vrot.slane %v578, 3
      %v581 = vshll.u32 %v505, 16
      %v583 = vrot.slane %v581, 4
      %v584 = vor.u32 %v580, %v583
      %v585 = vsel %vm523, %v575, %v584
      %v587 = vshrl.u32 %v506, 16
      %v589 = vrot.slane %v587, 3
      %v590 = vshll.u32 %v506, 16
      %v592 = vrot.slane %v590, 4
      %v593 = vor.u32 %v589, %v592
      %v594 = vsel %vm523, %v584, %v593
      %v596 = vshrl.u32 %v507, 16
      %v598 = vrot.slane %v596, 3
      %v599 = vshll.u32 %v507, 16
      %v601 = vrot.slane %v599, 4
      %v602 = vor.u32 %v598, %v601
      %v603 = vsel %vm523, %v593, %v602
      %v605 = vshrl.u32 %v508, 16
      %v607 = vrot.slane %v605, 3
      %v608 = vshll.u32 %v508, 16
      %v610 = vrot.slane %v608, 4
      %v611 = vor.u32 %v607, %v610
      %v612 = vsel %vm523, %v602, %v611
      %v614 = vshrl.u32 %v509, 16
      %v616 = vrot.slane %v614, 3
      %v617 = vshll.u32 %v509, 16
      %v619 = vrot.slane %v617, 4
      %v620 = vor.u32 %v616, %v619
      %v621 = vsel %vm523, %v611, %v620
      %v623 = vshrl.u32 %v510, 16
      %v625 = vrot.slane %v623, 3
      %v626 = vshll.u32 %v510, 16
      %v628 = vrot.slane %v626, 4
      %v629 = vor.u32 %v625, %v628
      %v630 = vsel %vm523, %v620, %v629
      %v632 = vshrl.u32 %v511, 16
      %v634 = vrot.slane %v632, 3
      %v635 = vshll.u32 %v511, 16
      %v637 = vrot.slane %v635, 4
      %v638 = vor.u32 %v634, %v637
      %v639 = vsel %vm523, %v629, %v638
      %v641 = vshrl.u32 %v512, 16
      %v643 = vrot.slane %v641, 3
      %v644 = vshll.u32 %v512, 16
      %v646 = vrot.slane %v644, 4
      %v647 = vor.u32 %v643, %v646
      %v648 = vsel %vm523, %v638, %v647
      %v650 = vshrl.u32 %v513, 16
      %v652 = vrot.slane %v650, 3
      %v653 = vshll.u32 %v513, 16
      %v655 = vrot.slane %v653, 4
      %v656 = vor.u32 %v652, %v655
      %v657 = vsel %vm523, %v647, %v656
      %v659 = vshrl.u32 %v514, 16
      %v661 = vrot.slane %v659, 3
      %v662 = vshll.u32 %v514, 16
      %v664 = vrot.slane %v662, 4
      %v665 = vor.u32 %v661, %v664
      %v666 = vsel %vm523, %v656, %v665
      %v668 = vshrl.u32 %v515, 16
      %v670 = vrot.slane %v668, 3
      %v671 = vshll.u32 %v515, 16
      %v673 = vrot.slane %v671, 4
      %v674 = vor.u32 %v670, %v673
      %v675 = vsel %vm523, %v665, %v674
      %v677 = vshrl.u32 %v516, 16
      %v679 = vrot.slane %v677, 3
      %v680 = vshll.u32 %v516, 16
      %v682 = vrot.slane %v680, 4
      %v683 = vor.u32 %v679, %v682
      %v684 = vsel %vm523, %v674, %v683
      %v686 = vshrl.u32 %v517, 16
      %v688 = vrot.slane %v686, 3
      %v689 = vshll.u32 %v517, 16
      %v691 = vrot.slane %v689, 4
      %v692 = vor.u32 %v688, %v691
      %v693 = vsel %vm523, %v683, %v692
      %v695 = vshrl.u32 %v518, 16
      %v697 = vrot.slane %v695, 3
      %v698 = vshll.u32 %v518, 16
      %v700 = vrot.slane %v698, 4
      %v701 = vor.u32 %v697, %v700
      %v702 = vsel %vm523, %v692, %v701
      %v704 = vshrl.u32 %v519, 16
      %v706 = vrot.slane %v704, 3
      %v707 = vshll.u32 %v519, 16
      %v709 = vrot.slane %v707, 4
      %v710 = vor.u32 %v706, %v709
      %v711 = vsel %vm523, %v701, %v710
      %v713 = vshrl.u32 %v520, 16
      %v715 = vrot.slane %v713, 3
      %v716 = vshll.u32 %v520, 16
      %v718 = vrot.slane %v716, 4
      %v719 = vor.u32 %v715, %v718
      %v720 = vsel %vm523, %v710, %v719
      %v722 = vshrl.u32 %v521, 16
      %v724 = vrot.slane %v722, 3
      %v725 = vshll.u32 %v521, 16
      %v727 = vrot.slane %v725, 4
      %v728 = vor.u32 %v724, %v727
      %v729 = vsel %vm523, %v719, %v728
      %v731 = vshrl.u32 %v522, 16
      %v733 = vrot.slane %v731, 3
      %v734 = vshll.u32 %v522, 16
      %v736 = vrot.slane %v734, 4
      %v737 = vor.u32 %v733, %v736
      %v738 = vsel %vm523, %v728, %v737
      %vm739 = vcmask 31744
      %v741 = vsel %vm739, %v540, 0
      %v744 = vsel %vm739, %v549, 0
      %v747 = vsel %vm739, %v558, 0
      %v750 = vsel %vm739, %v567, 0
      %v753 = vsel %vm739, %v576, 0
      %v756 = vsel %vm739, %v585, 0
      %v759 = vsel %vm739, %v594, 0
      %v762 = vsel %vm739, %v603, 0
      %v765 = vsel %vm739, %v612, 0
      %v768 = vsel %vm739, %v621, 0
      %v771 = vsel %vm739, %v630, 0
      %v774 = vsel %vm739, %v639, 0
      %v777 = vsel %vm739, %v648, 0
      %v780 = vsel %vm739, %v657, 0
      %v783 = vsel %vm739, %v666, 0
      %v786 = vsel %vm739, %v675, 0
      %v789 = vsel %vm739, %v684, 0
      %v792 = vsel %vm739, %v693, 0
      %v795 = vsel %vm739, %v702, 0
      %v798 = vsel %vm739, %v711, 0
      %v801 = vsel %vm739, %v720, 0
      %v804 = vsel %vm739, %v729, 0
      %v807 = vsel %vm739, %v738, 0
      %vm809 = vcmask 1041408
      %v811 = vsel %vm809, %v404, 0
      %813 = vmatprep.subr.bf16.mxu0 0
      %814 = vmatpush1.bf16.msra.mxu0 %v811
      %815 = vmatprep.subr.bf16.mxu0 0
      %816 = vmatpush1.bf16.msra.mxu0 0
      %817 = vmatprep.subr.bf16.mxu0 0
      %818 = vmatpush1.bf16.msra.mxu0 0
      %819 = vmatprep.subr.bf16.mxu0 0
      %820 = vmatpush1.bf16.msra.mxu0 0
      %821 = vmatprep.subr.bf16.mxu0 0
      %822 = vmatpush1.bf16.msra.mxu0 0
      %823 = vmatprep.subr.bf16.mxu0 0
      %824 = vmatpush1.bf16.msra.mxu0 0
      %825 = vmatprep.subr.bf16.mxu0 0
      %826 = vmatpush1.bf16.msra.mxu0 0
      %827 = vmatprep.subr.bf16.mxu0 0
      %828 = vmatpush1.bf16.msra.mxu0 0
      %829 = vmatprep.subr.bf16.mxu0 0
      %830 = vmatpush1.bf16.msra.mxu0 0
      %831 = vmatprep.subr.bf16.mxu0 0
      %832 = vmatpush1.bf16.msra.mxu0 0
      %833 = vmatprep.subr.bf16.mxu0 0
      %834 = vmatpush1.bf16.msra.mxu0 0
      %835 = vmatprep.subr.bf16.mxu0 0
      %836 = vmatpush1.bf16.msra.mxu0 0
      %837 = vmatprep.subr.bf16.mxu0 0
      %838 = vmatpush1.bf16.msra.mxu0 0
      %839 = vmatprep.subr.bf16.mxu0 0
      %840 = vmatpush1.bf16.msra.mxu0 0
      %841 = vmatprep.subr.bf16.mxu0 0
      %842 = vmatpush1.bf16.msra.mxu0 0
      %843 = vmatprep.subr.bf16.mxu0 0
      %844 = vmatpush1.bf16.msra.mxu0 0
      %845 = vmatprep.mubr.bf16.mxu0 0
      %846 = vmatmul.mubr.bf16.gmra.mrb[0].mxu0 %v741
      %v847 = vpop.f32.mrb[0].mxu0
      %v848 = vadd.f32 0.0, %v847
      %v849 = vpop.f32.mrb[0].mxu0
      %v850 = vpop.f32.mrb[0].mxu0
      %v851 = vadd.f32 0.0, %v850
      %v852 = vpop.f32.mrb[0].mxu0
      %853 = vmatprep.mubr.bf16.mxu0 0
      %854 = vmatmul.mubr.bf16.gmra.mrb[0].mxu0 %v744
      %v855 = vpop.f32.mrb[0].mxu0
      %v856 = vadd.f32 0.0, %v855
      %v857 = vpop.f32.mrb[0].mxu0
      %v858 = vpop.f32.mrb[0].mxu0
      %v859 = vadd.f32 0.0, %v858
      %v860 = vpop.f32.mrb[0].mxu0
      %861 = vmatprep.mubr.bf16.mxu0 0
      %862 = vmatmul.mubr.bf16.gmra.mrb[0].mxu0 %v747
      %v863 = vpop.f32.mrb[0].mxu0
      %v864 = vadd.f32 0.0, %v863
      %v865 = vpop.f32.mrb[0].mxu0
      %v866 = vpop.f32.mrb[0].mxu0
      %v867 = vadd.f32 0.0, %v866
      %v868 = vpop.f32.mrb[0].mxu0
      %869 = vmatprep.mubr.bf16.mxu0 0
      %870 = vmatmul.mubr.bf16.gmra.mrb[0].mxu0 %v750
      %v871 = vpop.f32.mrb[0].mxu0
      %v872 = vadd.f32 0.0, %v871
      %v873 = vpop.f32.mrb[0].mxu0
      %v874 = vpop.f32.mrb[0].mxu0
      %v875 = vadd.f32 0.0, %v874
      %v876 = vpop.f32.mrb[0].mxu0
      %877 = vmatprep.mubr.bf16.mxu0 0
      %878 = vmatmul.mubr.bf16.gmra.mrb[0].mxu0 %v753
      %v879 = vpop.f32.mrb[0].mxu0
      %v880 = vadd.f32 0.0, %v879
      %v881 = vpop.f32.mrb[0].mxu0
      %v882 = vpop.f32.mrb[0].mxu0
      %v883 = vadd.f32 0.0, %v882
      %v884 = vpop.f32.mrb[0].mxu0
      %885 = vmatprep.mubr.bf16.mxu0 0
      %886 = vmatmul.mubr.bf16.gmra.mrb[0].mxu0 %v756
      %v887 = vpop.f32.mrb[0].mxu0
      %v888 = vadd.f32 0.0, %v887
      %v889 = vpop.f32.mrb[0].mxu0
      %v890 = vpop.f32.mrb[0].mxu0
      %v891 = vadd.f32 0.0, %v890
      %v892 = vpop.f32.mrb[0].mxu0
      %893 = vmatprep.mubr.bf16.mxu0 0
      %894 = vmatmul.mubr.bf16.gmra.mrb[0].mxu0 %v759
      %v895 = vpop.f32.mrb[0].mxu0
      %v896 = vadd.f32 0.0, %v895
      %v897 = vpop.f32.mrb[0].mxu0
      %v898 = vpop.f32.mrb[0].mxu0
      %v899 = vadd.f32 0.0, %v898
      %v900 = vpop.f32.mrb[0].mxu0
      %901 = vmatprep.mubr.bf16.mxu0 0
      %902 = vmatmul.mubr.bf16.gmra.mrb[0].mxu0 %v762
      %v903 = vpop.f32.mrb[0].mxu0
      %v904 = vadd.f32 0.0, %v903
      %v905 = vpop.f32.mrb[0].mxu0
      %v906 = vpop.f32.mrb[0].mxu0
      %v907 = vadd.f32 0.0, %v906
      %v908 = vpop.f32.mrb[0].mxu0
      %909 = vmatprep.mubr.bf16.mxu0 0
      %910 = vmatmul.mubr.bf16.gmra.mrb[0].mxu0 %v765
      %v911 = vpop.f32.mrb[0].mxu0
      %v912 = vadd.f32 0.0, %v911
      %v913 = vpop.f32.mrb[0].mxu0
      %v914 = vpop.f32.mrb[0].mxu0
      %v915 = vadd.f32 0.0, %v914
      %v916 = vpop.f32.mrb[0].mxu0
      %917 = vmatprep.mubr.bf16.mxu0 0
      %918 = vmatmul.mubr.bf16.gmra.mrb[0].mxu0 %v768
      %v919 = vpop.f32.mrb[0].mxu0
      %v920 = vadd.f32 0.0, %v919
      %v921 = vpop.f32.mrb[0].mxu0
      %v922 = vpop.f32.mrb[0].mxu0
      %v923 = vadd.f32 0.0, %v922
      %v924 = vpop.f32.mrb[0].mxu0
      %925 = vmatprep.mubr.bf16.mxu0 0
      %926 = vmatmul.mubr.bf16.gmra.mrb[0].mxu0 %v771
      %v927 = vpop.f32.mrb[0].mxu0
      %v928 = vadd.f32 0.0, %v927
      %v929 = vpop.f32.mrb[0].mxu0
      %v930 = vpop.f32.mrb[0].mxu0
      %v931 = vadd.f32 0.0, %v930
      %v932 = vpop.f32.mrb[0].mxu0
      %933 = vmatprep.mubr.bf16.mxu0 0
      %934 = vmatmul.mubr.bf16.gmra.mrb[0].mxu0 %v774
      %v935 = vpop.f32.mrb[0].mxu0
      %v936 = vadd.f32 0.0, %v935
      %v937 = vpop.f32.mrb[0].mxu0
      %v938 = vpop.f32.mrb[0].mxu0
      %v939 = vadd.f32 0.0, %v938
      %v940 = vpop.f32.mrb[0].mxu0
      %941 = vmatprep.mubr.bf16.mxu0 0
      %942 = vmatmul.mubr.bf16.gmra.mrb[0].mxu0 %v777
      %v943 = vpop.f32.mrb[0].mxu0
      %v944 = vadd.f32 0.0, %v943
      %v945 = vpop.f32.mrb[0].mxu0
      %v946 = vpop.f32.mrb[0].mxu0
      %v947 = vadd.f32 0.0, %v946
      %v948 = vpop.f32.mrb[0].mxu0
      %949 = vmatprep.mubr.bf16.mxu0 0
      %950 = vmatmul.mubr.bf16.gmra.mrb[0].mxu0 %v780
      %v951 = vpop.f32.mrb[0].mxu0
      %v952 = vadd.f32 0.0, %v951
      %v953 = vpop.f32.mrb[0].mxu0
      %v954 = vpop.f32.mrb[0].mxu0
      %v955 = vadd.f32 0.0, %v954
      %v956 = vpop.f32.mrb[0].mxu0
      %957 = vmatprep.mubr.bf16.mxu0 0
      %958 = vmatmul.mubr.bf16.gmra.mrb[0].mxu0 %v783
      %v959 = vpop.f32.mrb[0].mxu0
      %v960 = vadd.f32 0.0, %v959
      %v961 = vpop.f32.mrb[0].mxu0
      %v962 = vpop.f32.mrb[0].mxu0
      %v963 = vadd.f32 0.0, %v962
      %v964 = vpop.f32.mrb[0].mxu0
      %965 = vmatprep.mubr.bf16.mxu0 0
      %966 = vmatmul.mubr.bf16.gmra.mrb[0].mxu0 %v786
      %v967 = vpop.f32.mrb[0].mxu0
      %v968 = vadd.f32 0.0, %v967
      %v969 = vpop.f32.mrb[0].mxu0
      %v970 = vpop.f32.mrb[0].mxu0
      %v971 = vadd.f32 0.0, %v970
      %v972 = vpop.f32.mrb[0].mxu0
      %973 = vmatprep.mubr.bf16.mxu0 0
      %974 = vmatmul.mubr.bf16.gmra.mrb[0].mxu0 %v789
      %v975 = vpop.f32.mrb[0].mxu0
      %v976 = vadd.f32 0.0, %v975
      %v977 = vpop.f32.mrb[0].mxu0
      %v978 = vpop.f32.mrb[0].mxu0
      %v979 = vadd.f32 0.0, %v978
      %v980 = vpop.f32.mrb[0].mxu0
      %981 = vmatprep.mubr.bf16.mxu0 0
      %982 = vmatmul.mubr.bf16.gmra.mrb[0].mxu0 %v792
      %v983 = vpop.f32.mrb[0].mxu0
      %v984 = vadd.f32 0.0, %v983
      %v985 = vpop.f32.mrb[0].mxu0
      %v986 = vpop.f32.mrb[0].mxu0
      %v987 = vadd.f32 0.0, %v986
      %v988 = vpop.f32.mrb[0].mxu0
      %989 = vmatprep.mubr.bf16.mxu0 0
      %990 = vmatmul.mubr.bf16.gmra.mrb[0].mxu0 %v795
      %v991 = vpop.f32.mrb[0].mxu0
      %v992 = vadd.f32 0.0, %v991
      %v993 = vpop.f32.mrb[0].mxu0
      %v994 = vpop.f32.mrb[0].mxu0
      %v995 = vadd.f32 0.0, %v994
      %v996 = vpop.f32.mrb[0].mxu0
      %997 = vmatprep.mubr.bf16.mxu0 0
      %998 = vmatmul.mubr.bf16.gmra.mrb[0].mxu0 %v798
      %v999 = vpop.f32.mrb[0].mxu0
      %v1000 = vadd.f32 0.0, %v999
      %v1001 = vpop.f32.mrb[0].mxu0
      %v1002 = vpop.f32.mrb[0].mxu0
      %v1003 = vadd.f32 0.0, %v1002
      %v1004 = vpop.f32.mrb[0].mxu0
      %1005 = vmatprep.mubr.bf16.mxu0 0
      %1006 = vmatmul.mubr.bf16.gmra.mrb[0].mxu0 %v801
      %v1007 = vpop.f32.mrb[0].mxu0
      %v1008 = vadd.f32 0.0, %v1007
      %v1009 = vpop.f32.mrb[0].mxu0
      %v1010 = vpop.f32.mrb[0].mxu0
      %v1011 = vadd.f32 0.0, %v1010
      %v1012 = vpop.f32.mrb[0].mxu0
      %1013 = vmatprep.mubr.bf16.mxu0 0
      %1014 = vmatmul.mubr.bf16.gmra.mrb[0].mxu0 %v804
      %v1015 = vpop.f32.mrb[0].mxu0
      %v1016 = vadd.f32 0.0, %v1015
      %v1017 = vpop.f32.mrb[0].mxu0
      %v1018 = vpop.f32.mrb[0].mxu0
      %v1019 = vadd.f32 0.0, %v1018
      %v1020 = vpop.f32.mrb[0].mxu0
      %1021 = vmatprep.mubr.bf16.mxu0 0
      %1022 = vmatmul.mubr.bf16.gmra.mrb[0].mxu0 %v807
      %v1023 = vpop.f32.mrb[0].mxu0
      %v1024 = vadd.f32 0.0, %v1023
      %v1025 = vpop.f32.mrb[0].mxu0
      %v1026 = vpop.f32.mrb[0].mxu0
      %v1027 = vadd.f32 0.0, %v1026
      %v1028 = vpop.f32.mrb[0].mxu0
      %1029 = vdwg.mxu0
      %v1031 = vunpack.c.l.b16 %v400
      %v1032 = vpack.c.b16 %v1031, %v1031
      %vm1033 = vcmask 1044480
      %v1034 = vrot.slane %v499, 3
      %v1035 = vrot.slane %v500, 3
      %v1036 = vsel %vm1033, %v1034, %v1035
      %v1037 = vrot.slane %v501, 3
      %v1038 = vsel %vm1033, %v1035, %v1037
      %v1039 = vrot.slane %v502, 3
      %v1040 = vsel %vm1033, %v1037, %v1039
      %v1041 = vrot.slane %v503, 3
      %v1042 = vsel %vm1033, %v1039, %v1041
      %v1043 = vrot.slane %v504, 3
      %v1044 = vsel %vm1033, %v1041, %v1043
      %v1045 = vrot.slane %v505, 3
      %v1046 = vsel %vm1033, %v1043, %v1045
      %v1047 = vrot.slane %v506, 3
      %v1048 = vsel %vm1033, %v1045, %v1047
      %v1049 = vrot.slane %v507, 3
      %v1050 = vsel %vm1033, %v1047, %v1049
      %v1051 = vrot.slane %v508, 3
      %v1052 = vsel %vm1033, %v1049, %v1051
      %v1053 = vrot.slane %v509, 3
      %v1054 = vsel %vm1033, %v1051, %v1053
      %v1055 = vrot.slane %v510, 3
      %v1056 = vsel %vm1033, %v1053, %v1055
      %v1057 = vrot.slane %v511, 3
      %v1058 = vsel %vm1033, %v1055, %v1057
      %v1059 = vrot.slane %v512, 3
      %v1060 = vsel %vm1033, %v1057, %v1059
      %v1061 = vrot.slane %v513, 3
      %v1062 = vsel %vm1033, %v1059, %v1061
      %v1063 = vrot.slane %v514, 3
      %v1064 = vsel %vm1033, %v1061, %v1063
      %v1065 = vrot.slane %v515, 3
      %v1066 = vsel %vm1033, %v1063, %v1065
      %v1067 = vrot.slane %v516, 3
      %v1068 = vsel %vm1033, %v1065, %v1067
      %v1069 = vrot.slane %v517, 3
      %v1070 = vsel %vm1033, %v1067, %v1069
      %v1071 = vrot.slane %v518, 3
      %v1072 = vsel %vm1033, %v1069, %v1071
      %v1073 = vrot.slane %v519, 3
      %v1074 = vsel %vm1033, %v1071, %v1073
      %v1075 = vrot.slane %v520, 3
      %v1076 = vsel %vm1033, %v1073, %v1075
      %v1077 = vrot.slane %v521, 3
      %v1078 = vsel %vm1033, %v1075, %v1077
      %v1079 = vrot.slane %v1032, 3
      %v1080 = vsel %vm1033, %v1077, %v1079
      %v1082 = vsel %vm739, %v1036, 0
      %v1085 = vsel %vm739, %v1038, 0
      %v1088 = vsel %vm739, %v1040, 0
      %v1091 = vsel %vm739, %v1042, 0
      %v1094 = vsel %vm739, %v1044, 0
      %v1097 = vsel %vm739, %v1046, 0
      %v1100 = vsel %vm739, %v1048, 0
      %v1103 = vsel %vm739, %v1050, 0
      %v1106 = vsel %vm739, %v1052, 0
      %v1109 = vsel %vm739, %v1054, 0
      %v1112 = vsel %vm739, %v1056, 0
      %v1115 = vsel %vm739, %v1058, 0
      %v1118 = vsel %vm739, %v1060, 0
      %v1121 = vsel %vm739, %v1062, 0
      %v1124 = vsel %vm739, %v1064, 0
      %v1127 = vsel %vm739, %v1066, 0
      %v1130 = vsel %vm739, %v1068, 0
      %v1133 = vsel %vm739, %v1070, 0
      %v1136 = vsel %vm739, %v1072, 0
      %v1139 = vsel %vm739, %v1074, 0
      %v1142 = vsel %vm739, %v1076, 0
      %v1145 = vsel %vm739, %v1078, 0
      %v1148 = vsel %vm739, %v1080, 0
      %v1151 = vsel %vm809, %v401, 0
      %1153 = vmatprep.subr.bf16.mxu0 0
      %1154 = vmatpush1.bf16.msra.mxu0 %v1151
      %1155 = vmatprep.subr.bf16.mxu0 0
      %1156 = vmatpush1.bf16.msra.mxu0 0
      %1157 = vmatprep.subr.bf16.mxu0 0
      %1158 = vmatpush1.bf16.msra.mxu0 0
      %1159 = vmatprep.subr.bf16.mxu0 0
      %1160 = vmatpush1.bf16.msra.mxu0 0
      %1161 = vmatprep.subr.bf16.mxu0 0
      %1162 = vmatpush1.bf16.msra.mxu0 0
      %1163 = vmatprep.subr.bf16.mxu0 0
      %1164 = vmatpush1.bf16.msra.mxu0 0
      %1165 = vmatprep.subr.bf16.mxu0 0
      %1166 = vmatpush1.bf16.msra.mxu0 0
      %1167 = vmatprep.subr.bf16.mxu0 0
      %1168 = vmatpush1.bf16.msra.mxu0 0
      %1169 = vmatprep.subr.bf16.mxu0 0
      %1170 = vmatpush1.bf16.msra.mxu0 0
      %1171 = vmatprep.subr.bf16.mxu0 0
      %1172 = vmatpush1.bf16.msra.mxu0 0
      %1173 = vmatprep.subr.bf16.mxu0 0
      %1174 = vmatpush1.bf16.msra.mxu0 0
      %1175 = vmatprep.subr.bf16.mxu0 0
      %1176 = vmatpush1.bf16.msra.mxu0 0
      %1177 = vmatprep.subr.bf16.mxu0 0
      %1178 = vmatpush1.bf16.msra.mxu0 0
      %1179 = vmatprep.subr.bf16.mxu0 0
      %1180 = vmatpush1.bf16.msra.mxu0 0
      %1181 = vmatprep.subr.bf16.mxu0 0
      %1182 = vmatpush1.bf16.msra.mxu0 0
      %1183 = vmatprep.subr.bf16.mxu0 0
      %1184 = vmatpush1.bf16.msra.mxu0 0
      %1185 = vmatprep.mubr.bf16.mxu0 0
      %1186 = vmatmul.mubr.bf16.gmra.mrb[0].mxu0 %v1082
      %v1187 = vpop.f32.mrb[0].mxu0
      %v1188 = vadd.f32 %v848, %v1187
      %v1189 = vpop.f32.mrb[0].mxu0
      %v1190 = vpop.f32.mrb[0].mxu0
      %v1191 = vadd.f32 %v851, %v1190
      %v1192 = vpop.f32.mrb[0].mxu0
      %1193 = vmatprep.mubr.bf16.mxu0 0
      %1194 = vmatmul.mubr.bf16.gmra.mrb[0].mxu0 %v1085
      %v1195 = vpop.f32.mrb[0].mxu0
      %v1196 = vadd.f32 %v856, %v1195
      %v1197 = vpop.f32.mrb[0].mxu0
      %v1198 = vpop.f32.mrb[0].mxu0
      %v1199 = vadd.f32 %v859, %v1198
      %v1200 = vpop.f32.mrb[0].mxu0
      %1201 = vmatprep.mubr.bf16.mxu0 0
      %1202 = vmatmul.mubr.bf16.gmra.mrb[0].mxu0 %v1088
      %v1203 = vpop.f32.mrb[0].mxu0
      %v1204 = vadd.f32 %v864, %v1203
      %v1205 = vpop.f32.mrb[0].mxu0
      %v1206 = vpop.f32.mrb[0].mxu0
      %v1207 = vadd.f32 %v867, %v1206
      %v1208 = vpop.f32.mrb[0].mxu0
      %1209 = vmatprep.mubr.bf16.mxu0 0
      %1210 = vmatmul.mubr.bf16.gmra.mrb[0].mxu0 %v1091
      %v1211 = vpop.f32.mrb[0].mxu0
      %v1212 = vadd.f32 %v872, %v1211
      %v1213 = vpop.f32.mrb[0].mxu0
      %v1214 = vpop.f32.mrb[0].mxu0
      %v1215 = vadd.f32 %v875, %v1214
      %v1216 = vpop.f32.mrb[0].mxu0
      %1217 = vmatprep.mubr.bf16.mxu0 0
      %1218 = vmatmul.mubr.bf16.gmra.mrb[0].mxu0 %v1094
      %v1219 = vpop.f32.mrb[0].mxu0
      %v1220 = vadd.f32 %v880, %v1219
      %v1221 = vpop.f32.mrb[0].mxu0
      %v1222 = vpop.f32.mrb[0].mxu0
      %v1223 = vadd.f32 %v883, %v1222
      %v1224 = vpop.f32.mrb[0].mxu0
      %1225 = vmatprep.mubr.bf16.mxu0 0
      %1226 = vmatmul.mubr.bf16.gmra.mrb[0].mxu0 %v1097
      %v1227 = vpop.f32.mrb[0].mxu0
      %v1228 = vadd.f32 %v888, %v1227
      %v1229 = vpop.f32.mrb[0].mxu0
      %v1230 = vpop.f32.mrb[0].mxu0
      %v1231 = vadd.f32 %v891, %v1230
      %v1232 = vpop.f32.mrb[0].mxu0
      %1233 = vmatprep.mubr.bf16.mxu0 0
      %1234 = vmatmul.mubr.bf16.gmra.mrb[0].mxu0 %v1100
      %v1235 = vpop.f32.mrb[0].mxu0
      %v1236 = vadd.f32 %v896, %v1235
      %v1237 = vpop.f32.mrb[0].mxu0
      %v1238 = vpop.f32.mrb[0].mxu0
      %v1239 = vadd.f32 %v899, %v1238
      %v1240 = vpop.f32.mrb[0].mxu0
      %1241 = vmatprep.mubr.bf16.mxu0 0
      %1242 = vmatmul.mubr.bf16.gmra.mrb[0].mxu0 %v1103
      %v1243 = vpop.f32.mrb[0].mxu0
      %v1244 = vadd.f32 %v904, %v1243
      %v1245 = vpop.f32.mrb[0].mxu0
      %v1246 = vpop.f32.mrb[0].mxu0
      %v1247 = vadd.f32 %v907, %v1246
      %v1248 = vpop.f32.mrb[0].mxu0
      %1249 = vmatprep.mubr.bf16.mxu0 0
      %1250 = vmatmul.mubr.bf16.gmra.mrb[0].mxu0 %v1106
      %v1251 = vpop.f32.mrb[0].mxu0
      %v1252 = vadd.f32 %v912, %v1251
      %v1253 = vpop.f32.mrb[0].mxu0
      %v1254 = vpop.f32.mrb[0].mxu0
      %v1255 = vadd.f32 %v915, %v1254
      %v1256 = vpop.f32.mrb[0].mxu0
      %1257 = vmatprep.mubr.bf16.mxu0 0
      %1258 = vmatmul.mubr.bf16.gmra.mrb[0].mxu0 %v1109
      %v1259 = vpop.f32.mrb[0].mxu0
      %v1260 = vadd.f32 %v920, %v1259
      %v1261 = vpop.f32.mrb[0].mxu0
      %v1262 = vpop.f32.mrb[0].mxu0
      %v1263 = vadd.f32 %v923, %v1262
      %v1264 = vpop.f32.mrb[0].mxu0
      %1265 = vmatprep.mubr.bf16.mxu0 0
      %1266 = vmatmul.mubr.bf16.gmra.mrb[0].mxu0 %v1112
      %v1267 = vpop.f32.mrb[0].mxu0
      %v1268 = vadd.f32 %v928, %v1267
      %v1269 = vpop.f32.mrb[0].mxu0
      %v1270 = vpop.f32.mrb[0].mxu0
      %v1271 = vadd.f32 %v931, %v1270
      %v1272 = vpop.f32.mrb[0].mxu0
      %1273 = vmatprep.mubr.bf16.mxu0 0
      %1274 = vmatmul.mubr.bf16.gmra.mrb[0].mxu0 %v1115
      %v1275 = vpop.f32.mrb[0].mxu0
      %v1276 = vadd.f32 %v936, %v1275
      %v1277 = vpop.f32.mrb[0].mxu0
      %v1278 = vpop.f32.mrb[0].mxu0
      %v1279 = vadd.f32 %v939, %v1278
      %v1280 = vpop.f32.mrb[0].mxu0
      %1281 = vmatprep.mubr.bf16.mxu0 0
      %1282 = vmatmul.mubr.bf16.gmra.mrb[0].mxu0 %v1118
      %v1283 = vpop.f32.mrb[0].mxu0
      %v1284 = vadd.f32 %v944, %v1283
      %v1285 = vpop.f32.mrb[0].mxu0
      %v1286 = vpop.f32.mrb[0].mxu0
      %v1287 = vadd.f32 %v947, %v1286
      %v1288 = vpop.f32.mrb[0].mxu0
      %1289 = vmatprep.mubr.bf16.mxu0 0
      %1290 = vmatmul.mubr.bf16.gmra.mrb[0].mxu0 %v1121
      %v1291 = vpop.f32.mrb[0].mxu0
      %v1292 = vadd.f32 %v952, %v1291
      %v1293 = vpop.f32.mrb[0].mxu0
      %v1294 = vpop.f32.mrb[0].mxu0
      %v1295 = vadd.f32 %v955, %v1294
      %v1296 = vpop.f32.mrb[0].mxu0
      %1297 = vmatprep.mubr.bf16.mxu0 0
      %1298 = vmatmul.mubr.bf16.gmra.mrb[0].mxu0 %v1124
      %v1299 = vpop.f32.mrb[0].mxu0
      %v1300 = vadd.f32 %v960, %v1299
      %v1301 = vpop.f32.mrb[0].mxu0
      %v1302 = vpop.f32.mrb[0].mxu0
      %v1303 = vadd.f32 %v963, %v1302
      %v1304 = vpop.f32.mrb[0].mxu0
      %1305 = vmatprep.mubr.bf16.mxu0 0
      %1306 = vmatmul.mubr.bf16.gmra.mrb[0].mxu0 %v1127
      %v1307 = vpop.f32.mrb[0].mxu0
      %v1308 = vadd.f32 %v968, %v1307
      %v1309 = vpop.f32.mrb[0].mxu0
      %v1310 = vpop.f32.mrb[0].mxu0
      %v1311 = vadd.f32 %v971, %v1310
      %v1312 = vpop.f32.mrb[0].mxu0
      %1313 = vmatprep.mubr.bf16.mxu0 0
      %1314 = vmatmul.mubr.bf16.gmra.mrb[0].mxu0 %v1130
      %v1315 = vpop.f32.mrb[0].mxu0
      %v1316 = vadd.f32 %v976, %v1315
      %v1317 = vpop.f32.mrb[0].mxu0
      %v1318 = vpop.f32.mrb[0].mxu0
      %v1319 = vadd.f32 %v979, %v1318
      %v1320 = vpop.f32.mrb[0].mxu0
      %1321 = vmatprep.mubr.bf16.mxu0 0
      %1322 = vmatmul.mubr.bf16.gmra.mrb[0].mxu0 %v1133
      %v1323 = vpop.f32.mrb[0].mxu0
      %v1324 = vadd.f32 %v984, %v1323
      %v1325 = vpop.f32.mrb[0].mxu0
      %v1326 = vpop.f32.mrb[0].mxu0
      %v1327 = vadd.f32 %v987, %v1326
      %v1328 = vpop.f32.mrb[0].mxu0
      %1329 = vmatprep.mubr.bf16.mxu0 0
      %1330 = vmatmul.mubr.bf16.gmra.mrb[0].mxu0 %v1136
      %v1331 = vpop.f32.mrb[0].mxu0
      %v1332 = vadd.f32 %v992, %v1331
      %v1333 = vpop.f32.mrb[0].mxu0
      %v1334 = vpop.f32.mrb[0].mxu0
      %v1335 = vadd.f32 %v995, %v1334
      %v1336 = vpop.f32.mrb[0].mxu0
      %1337 = vmatprep.mubr.bf16.mxu0 0
      %1338 = vmatmul.mubr.bf16.gmra.mrb[0].mxu0 %v1139
      %v1339 = vpop.f32.mrb[0].mxu0
      %v1340 = vadd.f32 %v1000, %v1339
      %v1341 = vpop.f32.mrb[0].mxu0
      %v1342 = vpop.f32.mrb[0].mxu0
      %v1343 = vadd.f32 %v1003, %v1342
      %v1344 = vpop.f32.mrb[0].mxu0
      %1345 = vmatprep.mubr.bf16.mxu0 0
      %1346 = vmatmul.mubr.bf16.gmra.mrb[0].mxu0 %v1142
      %v1347 = vpop.f32.mrb[0].mxu0
      %v1348 = vadd.f32 %v1008, %v1347
      %v1349 = vpop.f32.mrb[0].mxu0
      %v1350 = vpop.f32.mrb[0].mxu0
      %v1351 = vadd.f32 %v1011, %v1350
      %v1352 = vpop.f32.mrb[0].mxu0
      %1353 = vmatprep.mubr.bf16.mxu0 0
      %1354 = vmatmul.mubr.bf16.gmra.mrb[0].mxu0 %v1145
      %v1355 = vpop.f32.mrb[0].mxu0
      %v1356 = vadd.f32 %v1016, %v1355
      %v1357 = vpop.f32.mrb[0].mxu0
      %v1358 = vpop.f32.mrb[0].mxu0
      %v1359 = vadd.f32 %v1019, %v1358
      %v1360 = vpop.f32.mrb[0].mxu0
      %1361 = vmatprep.mubr.bf16.mxu0 0
      %1362 = vmatmul.mubr.bf16.gmra.mrb[0].mxu0 %v1148
      %v1363 = vpop.f32.mrb[0].mxu0
      %v1364 = vadd.f32 %v1024, %v1363
      %v1365 = vpop.f32.mrb[0].mxu0
      %v1366 = vpop.f32.mrb[0].mxu0
      %v1367 = vadd.f32 %v1027, %v1366
      %v1368 = vpop.f32.mrb[0].mxu0
      %1369 = vdwg.mxu0
      %s1370 = scalar_lea.vmem %s3, 4
      %v1371 = vld [vmem:[%s1370] sm:$0x3]
      %v1372 = vpack.c.b16 %v454, %v453
      %v1373 = vpack.c.b16 %v456, %v455
      %v1374 = vpack.c.b16 %v458, %v457
      %v1375 = vpack.c.b16 %v460, %v459
      %v1376 = vpack.c.b16 %v462, %v461
      %v1377 = vpack.c.b16 %v464, %v463
      %v1378 = vpack.c.b16 %v466, %v465
      %v1379 = vpack.c.b16 %v468, %v467
      %v1380 = vpack.c.b16 %v470, %v469
      %v1381 = vpack.c.b16 %v472, %v471
      %v1382 = vpack.c.b16 %v474, %v473
      %v1383 = vpack.c.b16 %v476, %v475
      %v1384 = vpack.c.b16 %v478, %v477
      %v1385 = vpack.c.b16 %v480, %v479
      %v1386 = vpack.c.b16 %v482, %v481
      %v1387 = vpack.c.b16 %v484, %v483
      %v1388 = vpack.c.b16 %v486, %v485
      %v1389 = vpack.c.b16 %v488, %v487
      %v1390 = vpack.c.b16 %v490, %v489
      %v1391 = vpack.c.b16 %v492, %v491
      %v1392 = vpack.c.b16 %v494, %v493
      %v1393 = vpack.c.b16 %v496, %v495
      %v1394 = vpack.c.b16 %v498, %v497
      %v1396 = vsel %vm739, %v1372, 0
      %v1399 = vsel %vm739, %v1373, 0
      %v1402 = vsel %vm739, %v1374, 0
      %v1405 = vsel %vm739, %v1375, 0
      %v1408 = vsel %vm739, %v1376, 0
      %v1411 = vsel %vm739, %v1377, 0
      %v1414 = vsel %vm739, %v1378, 0
      %v1417 = vsel %vm739, %v1379, 0
      %v1420 = vsel %vm739, %v1380, 0
      %v1423 = vsel %vm739, %v1381, 0
      %v1426 = vsel %vm739, %v1382, 0
      %v1429 = vsel %vm739, %v1383, 0
      %v1432 = vsel %vm739, %v1384, 0
      %v1435 = vsel %vm739, %v1385, 0
      %v1438 = vsel %vm739, %v1386, 0
      %v1441 = vsel %vm739, %v1387, 0
      %v1444 = vsel %vm739, %v1388, 0
      %v1447 = vsel %vm739, %v1389, 0
      %v1450 = vsel %vm739, %v1390, 0
      %v1453 = vsel %vm739, %v1391, 0
      %v1456 = vsel %vm739, %v1392, 0
      %v1459 = vsel %vm739, %v1393, 0
      %v1462 = vsel %vm739, %v1394, 0
      %v1465 = vsel %vm809, %v1371, 0
      %1467 = vmatprep.subr.bf16.mxu0 0
      %1468 = vmatpush1.bf16.msra.mxu0 %v1465
      %1469 = vmatprep.subr.bf16.mxu0 0
      %1470 = vmatpush1.bf16.msra.mxu0 0
      %1471 = vmatprep.subr.bf16.mxu0 0
      %1472 = vmatpush1.bf16.msra.mxu0 0
      %1473 = vmatprep.subr.bf16.mxu0 0
      %1474 = vmatpush1.bf16.msra.mxu0 0
      %1475 = vmatprep.subr.bf16.mxu0 0
      %1476 = vmatpush1.bf16.msra.mxu0 0
      %1477 = vmatprep.subr.bf16.mxu0 0
      %1478 = vmatpush1.bf16.msra.mxu0 0
      %1479 = vmatprep.subr.bf16.mxu0 0
      %1480 = vmatpush1.bf16.msra.mxu0 0
      %1481 = vmatprep.subr.bf16.mxu0 0
      %1482 = vmatpush1.bf16.msra.mxu0 0
      %1483 = vmatprep.subr.bf16.mxu0 0
      %1484 = vmatpush1.bf16.msra.mxu0 0
      %1485 = vmatprep.subr.bf16.mxu0 0
      %1486 = vmatpush1.bf16.msra.mxu0 0
      %1487 = vmatprep.subr.bf16.mxu0 0
      %1488 = vmatpush1.bf16.msra.mxu0 0
      %1489 = vmatprep.subr.bf16.mxu0 0
      %1490 = vmatpush1.bf16.msra.mxu0 0
      %1491 = vmatprep.subr.bf16.mxu0 0
      %1492 = vmatpush1.bf16.msra.mxu0 0
      %1493 = vmatprep.subr.bf16.mxu0 0
      %1494 = vmatpush1.bf16.msra.mxu0 0
      %1495 = vmatprep.subr.bf16.mxu0 0
      %1496 = vmatpush1.bf16.msra.mxu0 0
      %1497 = vmatprep.subr.bf16.mxu0 0
      %1498 = vmatpush1.bf16.msra.mxu0 0
      %1499 = vmatprep.mubr.bf16.mxu0 0
      %1500 = vmatmul.mubr.bf16.gmra.mrb[0].mxu0 %v1396
      %v1501 = vpop.f32.mrb[0].mxu0
      %v1502 = vadd.f32 0.0, %v1501
      %v1503 = vpop.f32.mrb[0].mxu0
      %v1504 = vpop.f32.mrb[0].mxu0
      %v1505 = vadd.f32 0.0, %v1504
      %v1506 = vpop.f32.mrb[0].mxu0
      %1507 = vmatprep.mubr.bf16.mxu0 0
      %1508 = vmatmul.mubr.bf16.gmra.mrb[0].mxu0 %v1399
      %v1509 = vpop.f32.mrb[0].mxu0
      %v1510 = vadd.f32 0.0, %v1509
      %v1511 = vpop.f32.mrb[0].mxu0
      %v1512 = vpop.f32.mrb[0].mxu0
      %v1513 = vadd.f32 0.0, %v1512
      %v1514 = vpop.f32.mrb[0].mxu0
      %1515 = vmatprep.mubr.bf16.mxu0 0
      %1516 = vmatmul.mubr.bf16.gmra.mrb[0].mxu0 %v1402
      %v1517 = vpop.f32.mrb[0].mxu0
      %v1518 = vadd.f32 0.0, %v1517
      %v1519 = vpop.f32.mrb[0].mxu0
      %v1520 = vpop.f32.mrb[0].mxu0
      %v1521 = vadd.f32 0.0, %v1520
      %v1522 = vpop.f32.mrb[0].mxu0
      %1523 = vmatprep.mubr.bf16.mxu0 0
      %1524 = vmatmul.mubr.bf16.gmra.mrb[0].mxu0 %v1405
      %v1525 = vpop.f32.mrb[0].mxu0
      %v1526 = vadd.f32 0.0, %v1525
      %v1527 = vpop.f32.mrb[0].mxu0
      %v1528 = vpop.f32.mrb[0].mxu0
      %v1529 = vadd.f32 0.0, %v1528
      %v1530 = vpop.f32.mrb[0].mxu0
      %1531 = vmatprep.mubr.bf16.mxu0 0
      %1532 = vmatmul.mubr.bf16.gmra.mrb[0].mxu0 %v1408
      %v1533 = vpop.f32.mrb[0].mxu0
      %v1534 = vadd.f32 0.0, %v1533
      %v1535 = vpop.f32.mrb[0].mxu0
      %v1536 = vpop.f32.mrb[0].mxu0
      %v1537 = vadd.f32 0.0, %v1536
      %v1538 = vpop.f32.mrb[0].mxu0
      %1539 = vmatprep.mubr.bf16.mxu0 0
      %1540 = vmatmul.mubr.bf16.gmra.mrb[0].mxu0 %v1411
      %v1541 = vpop.f32.mrb[0].mxu0
      %v1542 = vadd.f32 0.0, %v1541
      %v1543 = vpop.f32.mrb[0].mxu0
      %v1544 = vpop.f32.mrb[0].mxu0
      %v1545 = vadd.f32 0.0, %v1544
      %v1546 = vpop.f32.mrb[0].mxu0
      %1547 = vmatprep.mubr.bf16.mxu0 0
      %1548 = vmatmul.mubr.bf16.gmra.mrb[0].mxu0 %v1414
      %v1549 = vpop.f32.mrb[0].mxu0
      %v1550 = vadd.f32 0.0, %v1549
      %v1551 = vpop.f32.mrb[0].mxu0
      %v1552 = vpop.f32.mrb[0].mxu0
      %v1553 = vadd.f32 0.0, %v1552
      %v1554 = vpop.f32.mrb[0].mxu0
      %1555 = vmatprep.mubr.bf16.mxu0 0
      %1556 = vmatmul.mubr.bf16.gmra.mrb[0].mxu0 %v1417
      %v1557 = vpop.f32.mrb[0].mxu0
      %v1558 = vadd.f32 0.0, %v1557
      %v1559 = vpop.f32.mrb[0].mxu0
      %v1560 = vpop.f32.mrb[0].mxu0
      %v1561 = vadd.f32 0.0, %v1560
      %v1562 = vpop.f32.mrb[0].mxu0
      %1563 = vmatprep.mubr.bf16.mxu0 0
      %1564 = vmatmul.mubr.bf16.gmra.mrb[0].mxu0 %v1420
      %v1565 = vpop.f32.mrb[0].mxu0
      %v1566 = vadd.f32 0.0, %v1565
      %v1567 = vpop.f32.mrb[0].mxu0
      %v1568 = vpop.f32.mrb[0].mxu0
      %v1569 = vadd.f32 0.0, %v1568
      %v1570 = vpop.f32.mrb[0].mxu0
      %1571 = vmatprep.mubr.bf16.mxu0 0
      %1572 = vmatmul.mubr.bf16.gmra.mrb[0].mxu0 %v1423
      %v1573 = vpop.f32.mrb[0].mxu0
      %v1574 = vadd.f32 0.0, %v1573
      %v1575 = vpop.f32.mrb[0].mxu0
      %v1576 = vpop.f32.mrb[0].mxu0
      %v1577 = vadd.f32 0.0, %v1576
      %v1578 = vpop.f32.mrb[0].mxu0
      %1579 = vmatprep.mubr.bf16.mxu0 0
      %1580 = vmatmul.mubr.bf16.gmra.mrb[0].mxu0 %v1426
      %v1581 = vpop.f32.mrb[0].mxu0
      %v1582 = vadd.f32 0.0, %v1581
      %v1583 = vpop.f32.mrb[0].mxu0
      %v1584 = vpop.f32.mrb[0].mxu0
      %v1585 = vadd.f32 0.0, %v1584
      %v1586 = vpop.f32.mrb[0].mxu0
      %1587 = vmatprep.mubr.bf16.mxu0 0
      %1588 = vmatmul.mubr.bf16.gmra.mrb[0].mxu0 %v1429
      %v1589 = vpop.f32.mrb[0].mxu0
      %v1590 = vadd.f32 0.0, %v1589
      %v1591 = vpop.f32.mrb[0].mxu0
      %v1592 = vpop.f32.mrb[0].mxu0
      %v1593 = vadd.f32 0.0, %v1592
      %v1594 = vpop.f32.mrb[0].mxu0
      %1595 = vmatprep.mubr.bf16.mxu0 0
      %1596 = vmatmul.mubr.bf16.gmra.mrb[0].mxu0 %v1432
      %v1597 = vpop.f32.mrb[0].mxu0
      %v1598 = vadd.f32 0.0, %v1597
      %v1599 = vpop.f32.mrb[0].mxu0
      %v1600 = vpop.f32.mrb[0].mxu0
      %v1601 = vadd.f32 0.0, %v1600
      %v1602 = vpop.f32.mrb[0].mxu0
      %1603 = vmatprep.mubr.bf16.mxu0 0
      %1604 = vmatmul.mubr.bf16.gmra.mrb[0].mxu0 %v1435
      %v1605 = vpop.f32.mrb[0].mxu0
      %v1606 = vadd.f32 0.0, %v1605
      %v1607 = vpop.f32.mrb[0].mxu0
      %v1608 = vpop.f32.mrb[0].mxu0
      %v1609 = vadd.f32 0.0, %v1608
      %v1610 = vpop.f32.mrb[0].mxu0
      %1611 = vmatprep.mubr.bf16.mxu0 0
      %1612 = vmatmul.mubr.bf16.gmra.mrb[0].mxu0 %v1438
      %v1613 = vpop.f32.mrb[0].mxu0
      %v1614 = vadd.f32 0.0, %v1613
      %v1615 = vpop.f32.mrb[0].mxu0
      %v1616 = vpop.f32.mrb[0].mxu0
      %v1617 = vadd.f32 0.0, %v1616
      %v1618 = vpop.f32.mrb[0].mxu0
      %1619 = vmatprep.mubr.bf16.mxu0 0
      %1620 = vmatmul.mubr.bf16.gmra.mrb[0].mxu0 %v1441
      %v1621 = vpop.f32.mrb[0].mxu0
      %v1622 = vadd.f32 0.0, %v1621
      %v1623 = vpop.f32.mrb[0].mxu0
      %v1624 = vpop.f32.mrb[0].mxu0
      %v1625 = vadd.f32 0.0, %v1624
      %v1626 = vpop.f32.mrb[0].mxu0
      %1627 = vmatprep.mubr.bf16.mxu0 0
      %1628 = vmatmul.mubr.bf16.gmra.mrb[0].mxu0 %v1444
      %v1629 = vpop.f32.mrb[0].mxu0
      %v1630 = vadd.f32 0.0, %v1629
      %v1631 = vpop.f32.mrb[0].mxu0
      %v1632 = vpop.f32.mrb[0].mxu0
      %v1633 = vadd.f32 0.0, %v1632
      %v1634 = vpop.f32.mrb[0].mxu0
      %1635 = vmatprep.mubr.bf16.mxu0 0
      %1636 = vmatmul.mubr.bf16.gmra.mrb[0].mxu0 %v1447
      %v1637 = vpop.f32.mrb[0].mxu0
      %v1638 = vadd.f32 0.0, %v1637
      %v1639 = vpop.f32.mrb[0].mxu0
      %v1640 = vpop.f32.mrb[0].mxu0
      %v1641 = vadd.f32 0.0, %v1640
      %v1642 = vpop.f32.mrb[0].mxu0
      %1643 = vmatprep.mubr.bf16.mxu0 0
      %1644 = vmatmul.mubr.bf16.gmra.mrb[0].mxu0 %v1450
      %v1645 = vpop.f32.mrb[0].mxu0
      %v1646 = vadd.f32 0.0, %v1645
      %v1647 = vpop.f32.mrb[0].mxu0
      %v1648 = vpop.f32.mrb[0].mxu0
      %v1649 = vadd.f32 0.0, %v1648
      %v1650 = vpop.f32.mrb[0].mxu0
      %1651 = vmatprep.mubr.bf16.mxu0 0
      %1652 = vmatmul.mubr.bf16.gmra.mrb[0].mxu0 %v1453
      %v1653 = vpop.f32.mrb[0].mxu0
      %v1654 = vadd.f32 0.0, %v1653
      %v1655 = vpop.f32.mrb[0].mxu0
      %v1656 = vpop.f32.mrb[0].mxu0
      %v1657 = vadd.f32 0.0, %v1656
      %v1658 = vpop.f32.mrb[0].mxu0
      %1659 = vmatprep.mubr.bf16.mxu0 0
      %1660 = vmatmul.mubr.bf16.gmra.mrb[0].mxu0 %v1456
      %v1661 = vpop.f32.mrb[0].mxu0
      %v1662 = vadd.f32 0.0, %v1661
      %v1663 = vpop.f32.mrb[0].mxu0
      %v1664 = vpop.f32.mrb[0].mxu0
      %v1665 = vadd.f32 0.0, %v1664
      %v1666 = vpop.f32.mrb[0].mxu0
      %1667 = vmatprep.mubr.bf16.mxu0 0
      %1668 = vmatmul.mubr.bf16.gmra.mrb[0].mxu0 %v1459
      %v1669 = vpop.f32.mrb[0].mxu0
      %v1670 = vadd.f32 0.0, %v1669
      %v1671 = vpop.f32.mrb[0].mxu0
      %v1672 = vpop.f32.mrb[0].mxu0
      %v1673 = vadd.f32 0.0, %v1672
      %v1674 = vpop.f32.mrb[0].mxu0
      %1675 = vmatprep.mubr.bf16.mxu0 0
      %1676 = vmatmul.mubr.bf16.gmra.mrb[0].mxu0 %v1462
      %v1677 = vpop.f32.mrb[0].mxu0
      %v1678 = vadd.f32 0.0, %v1677
      %v1679 = vpop.f32.mrb[0].mxu0
      %v1680 = vpop.f32.mrb[0].mxu0
      %v1681 = vadd.f32 0.0, %v1680
      %v1682 = vpop.f32.mrb[0].mxu0
      %1683 = vdwg.mxu0
      %v1684 = vadd.f32 %v1188, %v1502
      %v1685 = vadd.f32 %v1191, %v1505
      %v1686 = vadd.f32 %v1196, %v1510
      %v1687 = vadd.f32 %v1199, %v1513
      %v1688 = vadd.f32 %v1204, %v1518
      %v1689 = vadd.f32 %v1207, %v1521
      %v1690 = vadd.f32 %v1212, %v1526
      %v1691 = vadd.f32 %v1215, %v1529
      %v1692 = vadd.f32 %v1220, %v1534
      %v1693 = vadd.f32 %v1223, %v1537
      %v1694 = vadd.f32 %v1228, %v1542
      %v1695 = vadd.f32 %v1231, %v1545
      %v1696 = vadd.f32 %v1236, %v1550
      %v1697 = vadd.f32 %v1239, %v1553
      %v1698 = vadd.f32 %v1244, %v1558
      %v1699 = vadd.f32 %v1247, %v1561
      %v1700 = vadd.f32 %v1252, %v1566
      %v1701 = vadd.f32 %v1255, %v1569
      %v1702 = vadd.f32 %v1260, %v1574
      %v1703 = vadd.f32 %v1263, %v1577
      %v1704 = vadd.f32 %v1268, %v1582
      %v1705 = vadd.f32 %v1271, %v1585
      %v1706 = vadd.f32 %v1276, %v1590
      %v1707 = vadd.f32 %v1279, %v1593
      %v1708 = vadd.f32 %v1284, %v1598
      %v1709 = vadd.f32 %v1287, %v1601
      %v1710 = vadd.f32 %v1292, %v1606
      %v1711 = vadd.f32 %v1295, %v1609
      %v1712 = vadd.f32 %v1300, %v1614
      %v1713 = vadd.f32 %v1303, %v1617
      %v1714 = vadd.f32 %v1308, %v1622
      %v1715 = vadd.f32 %v1311, %v1625
      %v1716 = vadd.f32 %v1316, %v1630
      %v1717 = vadd.f32 %v1319, %v1633
      %v1718 = vadd.f32 %v1324, %v1638
      %v1719 = vadd.f32 %v1327, %v1641
      %v1720 = vadd.f32 %v1332, %v1646
      %v1721 = vadd.f32 %v1335, %v1649
      %v1722 = vadd.f32 %v1340, %v1654
      %v1723 = vadd.f32 %v1343, %v1657
      %v1724 = vadd.f32 %v1348, %v1662
      %v1725 = vadd.f32 %v1351, %v1665
      %v1726 = vadd.f32 %v1356, %v1670
      %v1727 = vadd.f32 %v1359, %v1673
      %v1728 = vadd.f32 %v1364, %v1678
      %v1729 = vadd.f32 %v1367, %v1681
      %v1730 = vld [vmem:[%s342 + $0xc] sm:$0xf]
      %v1731 = vld [vmem:[%s342 + $0x10] sm:$0xf]
      %v1732 = vld [vmem:[%s342 + $0x14] sm:$0xf]
      %v1733 = vld [vmem:[%s342 + $0x18] sm:$0xf]
      %v1734 = vld [vmem:[%s342 + $0x1c] sm:$0xf]
      %v1735 = vld [vmem:[%s342 + $0x20] sm:$0xf]
      %v1736 = vld [vmem:[%s342 + $0x24] sm:$0xf]
      %v1737 = vld [vmem:[%s342 + $0x28] sm:$0xf]
      %v1738 = vld [vmem:[%s342 + $0x2c] sm:$0xf]
      %v1739 = vld [vmem:[%s342 + $0x30] sm:$0xf]
      %v1740 = vld [vmem:[%s342 + $0x34] sm:$0xf]
      %v1741 = vld [vmem:[%s342 + $0x38] sm:$0xf]
      %v1742 = vld [vmem:[%s342 + $0x3c] sm:$0xf]
      %v1743 = vld [vmem:[%s342 + $0x40] sm:$0xf]
      %v1744 = vld [vmem:[%s342 + $0x44] sm:$0xf]
      %v1745 = vld [vmem:[%s342 + $0x48] sm:$0xf]
      %v1746 = vld [vmem:[%s342 + $0x4c] sm:$0xf]
      %v1747 = vld [vmem:[%s342 + $0x50] sm:$0xf]
      %v1748 = vld [vmem:[%s342 + $0x54] sm:$0xf]
      %v1749 = vld [vmem:[%s342 + $0x58] sm:$0xf]
      %v1750 = vld [vmem:[%s342 + $0x5c] sm:$0xf]
      %v1751 = vld [vmem:[%s342 + $0x60] sm:$0xf]
      %v1752 = vld [vmem:[%s342 + $0x64] sm:$0xf]
      %v1753 = vld [vmem:[%s342 + $0x68] sm:$0xf]
      %v1754 = vld [vmem:[%s342 + $0x6c] sm:$0xf]
      %v1755 = vld [vmem:[%s342 + $0x70] sm:$0xf]
      %v1756 = vld [vmem:[%s342 + $0x74] sm:$0xf]
      %v1757 = vld [vmem:[%s342 + $0x78] sm:$0xf]
      %v1758 = vld [vmem:[%s342 + $0x7c] sm:$0xf]
      %v1759 = vld [vmem:[%s342 + $0x80] sm:$0xf]
      %v1760 = vld [vmem:[%s342 + $0x84] sm:$0xf]
      %v1761 = vld [vmem:[%s342 + $0x88] sm:$0xf]
      %v1762 = vld [vmem:[%s342 + $0x8c] sm:$0xf]
      %v1763 = vld [vmem:[%s342 + $0x90] sm:$0xf]
      %v1764 = vld [vmem:[%s342 + $0x94] sm:$0xf]
      %v1765 = vld [vmem:[%s342 + $0x98] sm:$0xf]
      %v1766 = vld [vmem:[%s342 + $0x9c] sm:$0xf]
      %v1767 = vld [vmem:[%s342 + $0xa0] sm:$0xf]
      %v1768 = vld [vmem:[%s342 + $0xa4] sm:$0xf]
      %v1769 = vld [vmem:[%s342 + $0xa8] sm:$0xf]
      %v1770 = vld [vmem:[%s342 + $0xac] sm:$0xf]
      %v1771 = vld [vmem:[%s342 + $0xb0] sm:$0xf]
      %v1772 = vld [vmem:[%s342 + $0xb4] sm:$0xf]
      %v1773 = vld [vmem:[%s342 + $0xb8] sm:$0xf]
      %v1774 = vld [vmem:[%s342 + $0xbc] sm:$0xf]
      %v1775 = vld [vmem:[%s342 + $0xc0] sm:$0xf]
      %s1776 = scalar_lea.vmem %s3, 6
      %v1777 = vld [vmem:[%s1776] sm:$0x3]
      %v1824 = vunpack.c.l.b16 %v1730
      %v1825 = vunpack.c.l.b16 %v1731
      %v1826 = vunpack.c.l.b16 %v1732
      %v1827 = vunpack.c.l.b16 %v1733
      %v1828 = vunpack.c.l.b16 %v1734
      %v1829 = vunpack.c.l.b16 %v1735
      %v1830 = vunpack.c.l.b16 %v1736
      %v1831 = vunpack.c.l.b16 %v1737
      %v1832 = vunpack.c.l.b16 %v1738
      %v1833 = vunpack.c.l.b16 %v1739
      %v1834 = vunpack.c.l.b16 %v1740
      %v1835 = vunpack.c.l.b16 %v1741
      %v1836 = vunpack.c.l.b16 %v1742
      %v1837 = vunpack.c.l.b16 %v1743
      %v1838 = vunpack.c.l.b16 %v1744
      %v1839 = vunpack.c.l.b16 %v1745
      %v1840 = vunpack.c.l.b16 %v1746
      %v1841 = vunpack.c.l.b16 %v1747
      %v1842 = vunpack.c.l.b16 %v1748
      %v1843 = vunpack.c.l.b16 %v1749
      %v1844 = vunpack.c.l.b16 %v1750
      %v1845 = vunpack.c.l.b16 %v1751
      %v1846 = vunpack.c.l.b16 %v1752
      %v1847 = vunpack.c.l.b16 %v1753
      %v1848 = vunpack.c.l.b16 %v1754
      %v1849 = vunpack.c.l.b16 %v1755
      %v1850 = vunpack.c.l.b16 %v1756
      %v1851 = vunpack.c.l.b16 %v1757
      %v1852 = vunpack.c.l.b16 %v1758
      %v1853 = vunpack.c.l.b16 %v1759
      %v1854 = vunpack.c.l.b16 %v1760
      %v1855 = vunpack.c.l.b16 %v1761
      %v1856 = vunpack.c.l.b16 %v1762
      %v1857 = vunpack.c.l.b16 %v1763
      %v1858 = vunpack.c.l.b16 %v1764
      %v1859 = vunpack.c.l.b16 %v1765
      %v1860 = vunpack.c.l.b16 %v1766
      %v1861 = vunpack.c.l.b16 %v1767
      %v1862 = vunpack.c.l.b16 %v1768
      %v1863 = vunpack.c.l.b16 %v1769
      %v1864 = vunpack.c.l.b16 %v1770
      %v1865 = vunpack.c.l.b16 %v1771
      %v1866 = vunpack.c.l.b16 %v1772
      %v1867 = vunpack.c.l.b16 %v1773
      %v1868 = vunpack.c.l.b16 %v1774
      %v1869 = vunpack.c.l.b16 %v1775
      %v1870 = vpack.c.b16 %v1825, %v1824
      %v1871 = vpack.c.b16 %v1827, %v1826
      %v1872 = vpack.c.b16 %v1829, %v1828
      %v1873 = vpack.c.b16 %v1831, %v1830
      %v1874 = vpack.c.b16 %v1833, %v1832
      %v1875 = vpack.c.b16 %v1835, %v1834
      %v1876 = vpack.c.b16 %v1837, %v1836
      %v1877 = vpack.c.b16 %v1839, %v1838
      %v1878 = vpack.c.b16 %v1841, %v1840
      %v1879 = vpack.c.b16 %v1843, %v1842
      %v1880 = vpack.c.b16 %v1845, %v1844
      %v1881 = vpack.c.b16 %v1847, %v1846
      %v1882 = vpack.c.b16 %v1849, %v1848
      %v1883 = vpack.c.b16 %v1851, %v1850
      %v1884 = vpack.c.b16 %v1853, %v1852
      %v1885 = vpack.c.b16 %v1855, %v1854
      %v1886 = vpack.c.b16 %v1857, %v1856
      %v1887 = vpack.c.b16 %v1859, %v1858
      %v1888 = vpack.c.b16 %v1861, %v1860
      %v1889 = vpack.c.b16 %v1863, %v1862
      %v1890 = vpack.c.b16 %v1865, %v1864
      %v1891 = vpack.c.b16 %v1867, %v1866
      %v1892 = vpack.c.b16 %v1869, %v1868
      %v1894 = vsel %vm739, %v1870, 0
      %v1897 = vsel %vm739, %v1871, 0
      %v1900 = vsel %vm739, %v1872, 0
      %v1903 = vsel %vm739, %v1873, 0
      %v1906 = vsel %vm739, %v1874, 0
      %v1909 = vsel %vm739, %v1875, 0
      %v1912 = vsel %vm739, %v1876, 0
      %v1915 = vsel %vm739, %v1877, 0
      %v1918 = vsel %vm739, %v1878, 0
      %v1921 = vsel %vm739, %v1879, 0
      %v1924 = vsel %vm739, %v1880, 0
      %v1927 = vsel %vm739, %v1881, 0
      %v1930 = vsel %vm739, %v1882, 0
      %v1933 = vsel %vm739, %v1883, 0
      %v1936 = vsel %vm739, %v1884, 0
      %v1939 = vsel %vm739, %v1885, 0
      %v1942 = vsel %vm739, %v1886, 0
      %v1945 = vsel %vm739, %v1887, 0
      %v1948 = vsel %vm739, %v1888, 0
      %v1951 = vsel %vm739, %v1889, 0
      %v1954 = vsel %vm739, %v1890, 0
      %v1957 = vsel %vm739, %v1891, 0
      %v1960 = vsel %vm739, %v1892, 0
      %v1963 = vsel %vm809, %v1777, 0
      %1965 = vmatprep.subr.bf16.mxu0 0
      %1966 = vmatpush1.bf16.msra.mxu0 %v1963
      %1967 = vmatprep.subr.bf16.mxu0 0
      %1968 = vmatpush1.bf16.msra.mxu0 0
      %1969 = vmatprep.subr.bf16.mxu0 0
      %1970 = vmatpush1.bf16.msra.mxu0 0
      %1971 = vmatprep.subr.bf16.mxu0 0
      %1972 = vmatpush1.bf16.msra.mxu0 0
      %1973 = vmatprep.subr.bf16.mxu0 0
      %1974 = vmatpush1.bf16.msra.mxu0 0
      %1975 = vmatprep.subr.bf16.mxu0 0
      %1976 = vmatpush1.bf16.msra.mxu0 0
      %1977 = vmatprep.subr.bf16.mxu0 0
      %1978 = vmatpush1.bf16.msra.mxu0 0
      %1979 = vmatprep.subr.bf16.mxu0 0
      %1980 = vmatpush1.bf16.msra.mxu0 0
      %1981 = vmatprep.subr.bf16.mxu0 0
      %1982 = vmatpush1.bf16.msra.mxu0 0
      %1983 = vmatprep.subr.bf16.mxu0 0
      %1984 = vmatpush1.bf16.msra.mxu0 0
      %1985 = vmatprep.subr.bf16.mxu0 0
      %1986 = vmatpush1.bf16.msra.mxu0 0
      %1987 = vmatprep.subr.bf16.mxu0 0
      %1988 = vmatpush1.bf16.msra.mxu0 0
      %1989 = vmatprep.subr.bf16.mxu0 0
      %1990 = vmatpush1.bf16.msra.mxu0 0
      %1991 = vmatprep.subr.bf16.mxu0 0
      %1992 = vmatpush1.bf16.msra.mxu0 0
      %1993 = vmatprep.subr.bf16.mxu0 0
      %1994 = vmatpush1.bf16.msra.mxu0 0
      %1995 = vmatprep.subr.bf16.mxu0 0
      %1996 = vmatpush1.bf16.msra.mxu0 0
      %1997 = vmatprep.mubr.bf16.mxu0 0
      %1998 = vmatmul.mubr.bf16.gmra.mrb[0].mxu0 %v1894
      %v1999 = vpop.f32.mrb[0].mxu0
      %v2000 = vadd.f32 0.0, %v1999
      %v2001 = vpop.f32.mrb[0].mxu0
      %v2002 = vpop.f32.mrb[0].mxu0
      %v2003 = vadd.f32 0.0, %v2002
      %v2004 = vpop.f32.mrb[0].mxu0
      %2005 = vmatprep.mubr.bf16.mxu0 0
      %2006 = vmatmul.mubr.bf16.gmra.mrb[0].mxu0 %v1897
      %v2007 = vpop.f32.mrb[0].mxu0
      %v2008 = vadd.f32 0.0, %v2007
      %v2009 = vpop.f32.mrb[0].mxu0
      %v2010 = vpop.f32.mrb[0].mxu0
      %v2011 = vadd.f32 0.0, %v2010
      %v2012 = vpop.f32.mrb[0].mxu0
      %2013 = vmatprep.mubr.bf16.mxu0 0
      %2014 = vmatmul.mubr.bf16.gmra.mrb[0].mxu0 %v1900
      %v2015 = vpop.f32.mrb[0].mxu0
      %v2016 = vadd.f32 0.0, %v2015
      %v2017 = vpop.f32.mrb[0].mxu0
      %v2018 = vpop.f32.mrb[0].mxu0
      %v2019 = vadd.f32 0.0, %v2018
      %v2020 = vpop.f32.mrb[0].mxu0
      %2021 = vmatprep.mubr.bf16.mxu0 0
      %2022 = vmatmul.mubr.bf16.gmra.mrb[0].mxu0 %v1903
      %v2023 = vpop.f32.mrb[0].mxu0
      %v2024 = vadd.f32 0.0, %v2023
      %v2025 = vpop.f32.mrb[0].mxu0
      %v2026 = vpop.f32.mrb[0].mxu0
      %v2027 = vadd.f32 0.0, %v2026
      %v2028 = vpop.f32.mrb[0].mxu0
      %2029 = vmatprep.mubr.bf16.mxu0 0
      %2030 = vmatmul.mubr.bf16.gmra.mrb[0].mxu0 %v1906
      %v2031 = vpop.f32.mrb[0].mxu0
      %v2032 = vadd.f32 0.0, %v2031
      %v2033 = vpop.f32.mrb[0].mxu0
      %v2034 = vpop.f32.mrb[0].mxu0
      %v2035 = vadd.f32 0.0, %v2034
      %v2036 = vpop.f32.mrb[0].mxu0
      %2037 = vmatprep.mubr.bf16.mxu0 0
      %2038 = vmatmul.mubr.bf16.gmra.mrb[0].mxu0 %v1909
      %v2039 = vpop.f32.mrb[0].mxu0
      %v2040 = vadd.f32 0.0, %v2039
      %v2041 = vpop.f32.mrb[0].mxu0
      %v2042 = vpop.f32.mrb[0].mxu0
      %v2043 = vadd.f32 0.0, %v2042
      %v2044 = vpop.f32.mrb[0].mxu0
      %2045 = vmatprep.mubr.bf16.mxu0 0
      %2046 = vmatmul.mubr.bf16.gmra.mrb[0].mxu0 %v1912
      %v2047 = vpop.f32.mrb[0].mxu0
      %v2048 = vadd.f32 0.0, %v2047
      %v2049 = vpop.f32.mrb[0].mxu0
      %v2050 = vpop.f32.mrb[0].mxu0
      %v2051 = vadd.f32 0.0, %v2050
      %v2052 = vpop.f32.mrb[0].mxu0
      %2053 = vmatprep.mubr.bf16.mxu0 0
      %2054 = vmatmul.mubr.bf16.gmra.mrb[0].mxu0 %v1915
      %v2055 = vpop.f32.mrb[0].mxu0
      %v2056 = vadd.f32 0.0, %v2055
      %v2057 = vpop.f32.mrb[0].mxu0
      %v2058 = vpop.f32.mrb[0].mxu0
      %v2059 = vadd.f32 0.0, %v2058
      %v2060 = vpop.f32.mrb[0].mxu0
      %2061 = vmatprep.mubr.bf16.mxu0 0
      %2062 = vmatmul.mubr.bf16.gmra.mrb[0].mxu0 %v1918
      %v2063 = vpop.f32.mrb[0].mxu0
      %v2064 = vadd.f32 0.0, %v2063
      %v2065 = vpop.f32.mrb[0].mxu0
      %v2066 = vpop.f32.mrb[0].mxu0
      %v2067 = vadd.f32 0.0, %v2066
      %v2068 = vpop.f32.mrb[0].mxu0
      %2069 = vmatprep.mubr.bf16.mxu0 0
      %2070 = vmatmul.mubr.bf16.gmra.mrb[0].mxu0 %v1921
      %v2071 = vpop.f32.mrb[0].mxu0
      %v2072 = vadd.f32 0.0, %v2071
      %v2073 = vpop.f32.mrb[0].mxu0
      %v2074 = vpop.f32.mrb[0].mxu0
      %v2075 = vadd.f32 0.0, %v2074
      %v2076 = vpop.f32.mrb[0].mxu0
      %2077 = vmatprep.mubr.bf16.mxu0 0
      %2078 = vmatmul.mubr.bf16.gmra.mrb[0].mxu0 %v1924
      %v2079 = vpop.f32.mrb[0].mxu0
      %v2080 = vadd.f32 0.0, %v2079
      %v2081 = vpop.f32.mrb[0].mxu0
      %v2082 = vpop.f32.mrb[0].mxu0
      %v2083 = vadd.f32 0.0, %v2082
      %v2084 = vpop.f32.mrb[0].mxu0
      %2085 = vmatprep.mubr.bf16.mxu0 0
      %2086 = vmatmul.mubr.bf16.gmra.mrb[0].mxu0 %v1927
      %v2087 = vpop.f32.mrb[0].mxu0
      %v2088 = vadd.f32 0.0, %v2087
      %v2089 = vpop.f32.mrb[0].mxu0
      %v2090 = vpop.f32.mrb[0].mxu0
      %v2091 = vadd.f32 0.0, %v2090
      %v2092 = vpop.f32.mrb[0].mxu0
      %2093 = vmatprep.mubr.bf16.mxu0 0
      %2094 = vmatmul.mubr.bf16.gmra.mrb[0].mxu0 %v1930
      %v2095 = vpop.f32.mrb[0].mxu0
      %v2096 = vadd.f32 0.0, %v2095
      %v2097 = vpop.f32.mrb[0].mxu0
      %v2098 = vpop.f32.mrb[0].mxu0
      %v2099 = vadd.f32 0.0, %v2098
      %v2100 = vpop.f32.mrb[0].mxu0
      %2101 = vmatprep.mubr.bf16.mxu0 0
      %2102 = vmatmul.mubr.bf16.gmra.mrb[0].mxu0 %v1933
      %v2103 = vpop.f32.mrb[0].mxu0
      %v2104 = vadd.f32 0.0, %v2103
      %v2105 = vpop.f32.mrb[0].mxu0
      %v2106 = vpop.f32.mrb[0].mxu0
      %v2107 = vadd.f32 0.0, %v2106
      %v2108 = vpop.f32.mrb[0].mxu0
      %2109 = vmatprep.mubr.bf16.mxu0 0
      %2110 = vmatmul.mubr.bf16.gmra.mrb[0].mxu0 %v1936
      %v2111 = vpop.f32.mrb[0].mxu0
      %v2112 = vadd.f32 0.0, %v2111
      %v2113 = vpop.f32.mrb[0].mxu0
      %v2114 = vpop.f32.mrb[0].mxu0
      %v2115 = vadd.f32 0.0, %v2114
      %v2116 = vpop.f32.mrb[0].mxu0
      %2117 = vmatprep.mubr.bf16.mxu0 0
      %2118 = vmatmul.mubr.bf16.gmra.mrb[0].mxu0 %v1939
      %v2119 = vpop.f32.mrb[0].mxu0
      %v2120 = vadd.f32 0.0, %v2119
      %v2121 = vpop.f32.mrb[0].mxu0
      %v2122 = vpop.f32.mrb[0].mxu0
      %v2123 = vadd.f32 0.0, %v2122
      %v2124 = vpop.f32.mrb[0].mxu0
      %2125 = vmatprep.mubr.bf16.mxu0 0
      %2126 = vmatmul.mubr.bf16.gmra.mrb[0].mxu0 %v1942
      %v2127 = vpop.f32.mrb[0].mxu0
      %v2128 = vadd.f32 0.0, %v2127
      %v2129 = vpop.f32.mrb[0].mxu0
      %v2130 = vpop.f32.mrb[0].mxu0
      %v2131 = vadd.f32 0.0, %v2130
      %v2132 = vpop.f32.mrb[0].mxu0
      %2133 = vmatprep.mubr.bf16.mxu0 0
      %2134 = vmatmul.mubr.bf16.gmra.mrb[0].mxu0 %v1945
      %v2135 = vpop.f32.mrb[0].mxu0
      %v2136 = vadd.f32 0.0, %v2135
      %v2137 = vpop.f32.mrb[0].mxu0
      %v2138 = vpop.f32.mrb[0].mxu0
      %v2139 = vadd.f32 0.0, %v2138
      %v2140 = vpop.f32.mrb[0].mxu0
      %2141 = vmatprep.mubr.bf16.mxu0 0
      %2142 = vmatmul.mubr.bf16.gmra.mrb[0].mxu0 %v1948
      %v2143 = vpop.f32.mrb[0].mxu0
      %v2144 = vadd.f32 0.0, %v2143
      %v2145 = vpop.f32.mrb[0].mxu0
      %v2146 = vpop.f32.mrb[0].mxu0
      %v2147 = vadd.f32 0.0, %v2146
      %v2148 = vpop.f32.mrb[0].mxu0
      %2149 = vmatprep.mubr.bf16.mxu0 0
      %2150 = vmatmul.mubr.bf16.gmra.mrb[0].mxu0 %v1951
      %v2151 = vpop.f32.mrb[0].mxu0
      %v2152 = vadd.f32 0.0, %v2151
      %v2153 = vpop.f32.mrb[0].mxu0
      %v2154 = vpop.f32.mrb[0].mxu0
      %v2155 = vadd.f32 0.0, %v2154
      %v2156 = vpop.f32.mrb[0].mxu0
      %2157 = vmatprep.mubr.bf16.mxu0 0
      %2158 = vmatmul.mubr.bf16.gmra.mrb[0].mxu0 %v1954
      %v2159 = vpop.f32.mrb[0].mxu0
      %v2160 = vadd.f32 0.0, %v2159
      %v2161 = vpop.f32.mrb[0].mxu0
      %v2162 = vpop.f32.mrb[0].mxu0
      %v2163 = vadd.f32 0.0, %v2162
      %v2164 = vpop.f32.mrb[0].mxu0
      %2165 = vmatprep.mubr.bf16.mxu0 0
      %2166 = vmatmul.mubr.bf16.gmra.mrb[0].mxu0 %v1957
      %v2167 = vpop.f32.mrb[0].mxu0
      %v2168 = vadd.f32 0.0, %v2167
      %v2169 = vpop.f32.mrb[0].mxu0
      %v2170 = vpop.f32.mrb[0].mxu0
      %v2171 = vadd.f32 0.0, %v2170
      %v2172 = vpop.f32.mrb[0].mxu0
      %2173 = vmatprep.mubr.bf16.mxu0 0
      %2174 = vmatmul.mubr.bf16.gmra.mrb[0].mxu0 %v1960
      %v2175 = vpop.f32.mrb[0].mxu0
      %v2176 = vadd.f32 0.0, %v2175
      %v2177 = vpop.f32.mrb[0].mxu0
      %v2178 = vpop.f32.mrb[0].mxu0
      %v2179 = vadd.f32 0.0, %v2178
      %v2180 = vpop.f32.mrb[0].mxu0
      %2181 = vdwg.mxu0
      %v2182 = vadd.f32 %v1684, %v2000
      %v2183 = vadd.f32 %v1685, %v2003
      %v2184 = vadd.f32 %v1686, %v2008
      %v2185 = vadd.f32 %v1687, %v2011
      %v2186 = vadd.f32 %v1688, %v2016
      %v2187 = vadd.f32 %v1689, %v2019
      %v2188 = vadd.f32 %v1690, %v2024
      %v2189 = vadd.f32 %v1691, %v2027
      %v2190 = vadd.f32 %v1692, %v2032
      %v2191 = vadd.f32 %v1693, %v2035
      %v2192 = vadd.f32 %v1694, %v2040
      %v2193 = vadd.f32 %v1695, %v2043
      %v2194 = vadd.f32 %v1696, %v2048
      %v2195 = vadd.f32 %v1697, %v2051
      %v2196 = vadd.f32 %v1698, %v2056
      %v2197 = vadd.f32 %v1699, %v2059
      %v2198 = vadd.f32 %v1700, %v2064
      %v2199 = vadd.f32 %v1701, %v2067
      %v2200 = vadd.f32 %v1702, %v2072
      %v2201 = vadd.f32 %v1703, %v2075
      %v2202 = vadd.f32 %v1704, %v2080
      %v2203 = vadd.f32 %v1705, %v2083
      %v2204 = vadd.f32 %v1706, %v2088
      %v2205 = vadd.f32 %v1707, %v2091
      %v2206 = vadd.f32 %v1708, %v2096
      %v2207 = vadd.f32 %v1709, %v2099
      %v2208 = vadd.f32 %v1710, %v2104
      %v2209 = vadd.f32 %v1711, %v2107
      %v2210 = vadd.f32 %v1712, %v2112
      %v2211 = vadd.f32 %v1713, %v2115
      %v2212 = vadd.f32 %v1714, %v2120
      %v2213 = vadd.f32 %v1715, %v2123
      %v2214 = vadd.f32 %v1716, %v2128
      %v2215 = vadd.f32 %v1717, %v2131
      %v2216 = vadd.f32 %v1718, %v2136
      %v2217 = vadd.f32 %v1719, %v2139
      %v2218 = vadd.f32 %v1720, %v2144
      %v2219 = vadd.f32 %v1721, %v2147
      %v2220 = vadd.f32 %v1722, %v2152
      %v2221 = vadd.f32 %v1723, %v2155
      %v2222 = vadd.f32 %v1724, %v2160
      %v2223 = vadd.f32 %v1725, %v2163
      %v2224 = vadd.f32 %v1726, %v2168
      %v2225 = vadd.f32 %v1727, %v2171
      %v2226 = vadd.f32 %v1728, %v2176
      %v2227 = vadd.f32 %v1729, %v2179
      %v2228 = vld [vmem:[%s342 + $0xc] sm:$0xf]
      %v2229 = vld [vmem:[%s342 + $0x10] sm:$0xf]
      %v2230 = vld [vmem:[%s342 + $0x14] sm:$0xf]
      %v2231 = vld [vmem:[%s342 + $0x18] sm:$0xf]
      %v2232 = vld [vmem:[%s342 + $0x1c] sm:$0xf]
      %v2233 = vld [vmem:[%s342 + $0x20] sm:$0xf]
      %v2234 = vld [vmem:[%s342 + $0x24] sm:$0xf]
      %v2235 = vld [vmem:[%s342 + $0x28] sm:$0xf]
      %v2236 = vld [vmem:[%s342 + $0x2c] sm:$0xf]
      %v2237 = vld [vmem:[%s342 + $0x30] sm:$0xf]
      %v2238 = vld [vmem:[%s342 + $0x34] sm:$0xf]
      %v2239 = vld [vmem:[%s342 + $0x38] sm:$0xf]
      %v2240 = vld [vmem:[%s342 + $0x3c] sm:$0xf]
      %v2241 = vld [vmem:[%s342 + $0x40] sm:$0xf]
      %v2242 = vld [vmem:[%s342 + $0x44] sm:$0xf]
      %v2243 = vld [vmem:[%s342 + $0x48] sm:$0xf]
      %v2244 = vld [vmem:[%s342 + $0x4c] sm:$0xf]
      %v2245 = vld [vmem:[%s342 + $0x50] sm:$0xf]
      %v2246 = vld [vmem:[%s342 + $0x54] sm:$0xf]
      %v2247 = vld [vmem:[%s342 + $0x58] sm:$0xf]
      %v2248 = vld [vmem:[%s342 + $0x5c] sm:$0xf]
      %v2249 = vld [vmem:[%s342 + $0x60] sm:$0xf]
      %v2250 = vld [vmem:[%s342 + $0x64] sm:$0xf]
      %v2251 = vld [vmem:[%s342 + $0x68] sm:$0xf]
      %v2252 = vld [vmem:[%s342 + $0x6c] sm:$0xf]
      %v2253 = vld [vmem:[%s342 + $0x70] sm:$0xf]
      %v2254 = vld [vmem:[%s342 + $0x74] sm:$0xf]
      %v2255 = vld [vmem:[%s342 + $0x78] sm:$0xf]
      %v2256 = vld [vmem:[%s342 + $0x7c] sm:$0xf]
      %v2257 = vld [vmem:[%s342 + $0x80] sm:$0xf]
      %v2258 = vld [vmem:[%s342 + $0x84] sm:$0xf]
      %v2259 = vld [vmem:[%s342 + $0x88] sm:$0xf]
      %v2260 = vld [vmem:[%s342 + $0x8c] sm:$0xf]
      %v2261 = vld [vmem:[%s342 + $0x90] sm:$0xf]
      %v2262 = vld [vmem:[%s342 + $0x94] sm:$0xf]
      %v2263 = vld [vmem:[%s342 + $0x98] sm:$0xf]
      %v2264 = vld [vmem:[%s342 + $0x9c] sm:$0xf]
      %v2265 = vld [vmem:[%s342 + $0xa0] sm:$0xf]
      %v2266 = vld [vmem:[%s342 + $0xa4] sm:$0xf]
      %v2267 = vld [vmem:[%s342 + $0xa8] sm:$0xf]
      %v2268 = vld [vmem:[%s342 + $0xac] sm:$0xf]
      %v2269 = vld [vmem:[%s342 + $0xb0] sm:$0xf]
      %v2270 = vld [vmem:[%s342 + $0xb4] sm:$0xf]
      %v2271 = vld [vmem:[%s342 + $0xb8] sm:$0xf]
      %v2272 = vld [vmem:[%s342 + $0xbc] sm:$0xf]
      %v2273 = vld [vmem:[%s342 + $0xc0] sm:$0xf]
      %v2274 = vld [vmem:[%s342 + $0xc4] sm:$0x1]
      %s2275 = scalar_lea.vmem %s3, 8
      %v2276 = vld [vmem:[%s2275] sm:$0x3]
      %v2324 = vunpack.c.l.b16 %v2228
      %v2325 = vunpack.c.l.b16 %v2229
      %v2326 = vunpack.c.l.b16 %v2230
      %v2327 = vunpack.c.l.b16 %v2231
      %v2328 = vunpack.c.l.b16 %v2232
      %v2329 = vunpack.c.l.b16 %v2233
      %v2330 = vunpack.c.l.b16 %v2234
      %v2331 = vunpack.c.l.b16 %v2235
      %v2332 = vunpack.c.l.b16 %v2236
      %v2333 = vunpack.c.l.b16 %v2237
      %v2334 = vunpack.c.l.b16 %v2238
      %v2335 = vunpack.c.l.b16 %v2239
      %v2336 = vunpack.c.l.b16 %v2240
      %v2337 = vunpack.c.l.b16 %v2241
      %v2338 = vunpack.c.l.b16 %v2242
      %v2339 = vunpack.c.l.b16 %v2243
      %v2340 = vunpack.c.l.b16 %v2244
      %v2341 = vunpack.c.l.b16 %v2245
      %v2342 = vunpack.c.l.b16 %v2246
      %v2343 = vunpack.c.l.b16 %v2247
      %v2344 = vunpack.c.l.b16 %v2248
      %v2345 = vunpack.c.l.b16 %v2249
      %v2346 = vunpack.c.l.b16 %v2250
      %v2347 = vunpack.c.l.b16 %v2251
      %v2348 = vunpack.c.l.b16 %v2252
      %v2349 = vunpack.c.l.b16 %v2253
      %v2350 = vunpack.c.l.b16 %v2254
      %v2351 = vunpack.c.l.b16 %v2255
      %v2352 = vunpack.c.l.b16 %v2256
      %v2353 = vunpack.c.l.b16 %v2257
      %v2354 = vunpack.c.l.b16 %v2258
      %v2355 = vunpack.c.l.b16 %v2259
      %v2356 = vunpack.c.l.b16 %v2260
      %v2357 = vunpack.c.l.b16 %v2261
      %v2358 = vunpack.c.l.b16 %v2262
      %v2359 = vunpack.c.l.b16 %v2263
      %v2360 = vunpack.c.l.b16 %v2264
      %v2361 = vunpack.c.l.b16 %v2265
      %v2362 = vunpack.c.l.b16 %v2266
      %v2363 = vunpack.c.l.b16 %v2267
      %v2364 = vunpack.c.l.b16 %v2268
      %v2365 = vunpack.c.l.b16 %v2269
      %v2366 = vunpack.c.l.b16 %v2270
      %v2367 = vunpack.c.l.b16 %v2271
      %v2368 = vunpack.c.l.b16 %v2272
      %v2369 = vunpack.c.l.b16 %v2273
      %v2370 = vunpack.c.l.b16 %v2274
      %v2371 = vpack.c.b16 %v2325, %v2324
      %v2372 = vpack.c.b16 %v2327, %v2326
      %v2373 = vpack.c.b16 %v2329, %v2328
      %v2374 = vpack.c.b16 %v2331, %v2330
      %v2375 = vpack.c.b16 %v2333, %v2332
      %v2376 = vpack.c.b16 %v2335, %v2334
      %v2377 = vpack.c.b16 %v2337, %v2336
      %v2378 = vpack.c.b16 %v2339, %v2338
      %v2379 = vpack.c.b16 %v2341, %v2340
      %v2380 = vpack.c.b16 %v2343, %v2342
      %v2381 = vpack.c.b16 %v2345, %v2344
      %v2382 = vpack.c.b16 %v2347, %v2346
      %v2383 = vpack.c.b16 %v2349, %v2348
      %v2384 = vpack.c.b16 %v2351, %v2350
      %v2385 = vpack.c.b16 %v2353, %v2352
      %v2386 = vpack.c.b16 %v2355, %v2354
      %v2387 = vpack.c.b16 %v2357, %v2356
      %v2388 = vpack.c.b16 %v2359, %v2358
      %v2389 = vpack.c.b16 %v2361, %v2360
      %v2390 = vpack.c.b16 %v2363, %v2362
      %v2391 = vpack.c.b16 %v2365, %v2364
      %v2392 = vpack.c.b16 %v2367, %v2366
      %v2393 = vpack.c.b16 %v2369, %v2368
      %v2394 = vpack.c.b16 %v2370, %v2370
      %vm2395 = vsmask.f32 7424
      %v2397 = vshrl.u32 %v2371, 16
      %v2399 = vshll.u32 %v2371, 16
      %v2401 = vrot.slane %v2399, 1
      %v2402 = vor.u32 %v2397, %v2401
      %v2404 = vshll.u32 %v2372, 16
      %v2406 = vrot.slane %v2404, 1
      %v2407 = vsel %vm2395, %v2402, %v2406
      %v2408 = vshrl.u32 %v2372, 16
      %v2410 = vor.u32 %v2408, %v2406
      %v2412 = vshll.u32 %v2373, 16
      %v2414 = vrot.slane %v2412, 1
      %v2415 = vsel %vm2395, %v2410, %v2414
      %v2416 = vshrl.u32 %v2373, 16
      %v2418 = vor.u32 %v2416, %v2414
      %v2420 = vshll.u32 %v2374, 16
      %v2422 = vrot.slane %v2420, 1
      %v2423 = vsel %vm2395, %v2418, %v2422
      %v2424 = vshrl.u32 %v2374, 16
      %v2426 = vor.u32 %v2424, %v2422
      %v2428 = vshll.u32 %v2375, 16
      %v2430 = vrot.slane %v2428, 1
      %v2431 = vsel %vm2395, %v2426, %v2430
      %v2432 = vshrl.u32 %v2375, 16
      %v2434 = vor.u32 %v2432, %v2430
      %v2436 = vshll.u32 %v2376, 16
      %v2438 = vrot.slane %v2436, 1
      %v2439 = vsel %vm2395, %v2434, %v2438
      %v2440 = vshrl.u32 %v2376, 16
      %v2442 = vor.u32 %v2440, %v2438
      %v2444 = vshll.u32 %v2377, 16
      %v2446 = vrot.slane %v2444, 1
      %v2447 = vsel %vm2395, %v2442, %v2446
      %v2448 = vshrl.u32 %v2377, 16
      %v2450 = vor.u32 %v2448, %v2446
      %v2452 = vshll.u32 %v2378, 16
      %v2454 = vrot.slane %v2452, 1
      %v2455 = vsel %vm2395, %v2450, %v2454
      %v2456 = vshrl.u32 %v2378, 16
      %v2458 = vor.u32 %v2456, %v2454
      %v2460 = vshll.u32 %v2379, 16
      %v2462 = vrot.slane %v2460, 1
      %v2463 = vsel %vm2395, %v2458, %v2462
      %v2464 = vshrl.u32 %v2379, 16
      %v2466 = vor.u32 %v2464, %v2462
      %v2468 = vshll.u32 %v2380, 16
      %v2470 = vrot.slane %v2468, 1
      %v2471 = vsel %vm2395, %v2466, %v2470
      %v2472 = vshrl.u32 %v2380, 16
      %v2474 = vor.u32 %v2472, %v2470
      %v2476 = vshll.u32 %v2381, 16
      %v2478 = vrot.slane %v2476, 1
      %v2479 = vsel %vm2395, %v2474, %v2478
      %v2480 = vshrl.u32 %v2381, 16
      %v2482 = vor.u32 %v2480, %v2478
      %v2484 = vshll.u32 %v2382, 16
      %v2486 = vrot.slane %v2484, 1
      %v2487 = vsel %vm2395, %v2482, %v2486
      %v2488 = vshrl.u32 %v2382, 16
      %v2490 = vor.u32 %v2488, %v2486
      %v2492 = vshll.u32 %v2383, 16
      %v2494 = vrot.slane %v2492, 1
      %v2495 = vsel %vm2395, %v2490, %v2494
      %v2496 = vshrl.u32 %v2383, 16
      %v2498 = vor.u32 %v2496, %v2494
      %v2500 = vshll.u32 %v2384, 16
      %v2502 = vrot.slane %v2500, 1
      %v2503 = vsel %vm2395, %v2498, %v2502
      %v2504 = vshrl.u32 %v2384, 16
      %v2506 = vor.u32 %v2504, %v2502
      %v2508 = vshll.u32 %v2385, 16
      %v2510 = vrot.slane %v2508, 1
      %v2511 = vsel %vm2395, %v2506, %v2510
      %v2512 = vshrl.u32 %v2385, 16
      %v2514 = vor.u32 %v2512, %v2510
      %v2516 = vshll.u32 %v2386, 16
      %v2518 = vrot.slane %v2516, 1
      %v2519 = vsel %vm2395, %v2514, %v2518
      %v2520 = vshrl.u32 %v2386, 16
      %v2522 = vor.u32 %v2520, %v2518
      %v2524 = vshll.u32 %v2387, 16
      %v2526 = vrot.slane %v2524, 1
      %v2527 = vsel %vm2395, %v2522, %v2526
      %v2528 = vshrl.u32 %v2387, 16
      %v2530 = vor.u32 %v2528, %v2526
      %v2532 = vshll.u32 %v2388, 16
      %v2534 = vrot.slane %v2532, 1
      %v2535 = vsel %vm2395, %v2530, %v2534
      %v2536 = vshrl.u32 %v2388, 16
      %v2538 = vor.u32 %v2536, %v2534
      %v2540 = vshll.u32 %v2389, 16
      %v2542 = vrot.slane %v2540, 1
      %v2543 = vsel %vm2395, %v2538, %v2542
      %v2544 = vshrl.u32 %v2389, 16
      %v2546 = vor.u32 %v2544, %v2542
      %v2548 = vshll.u32 %v2390, 16
      %v2550 = vrot.slane %v2548, 1
      %v2551 = vsel %vm2395, %v2546, %v2550
      %v2552 = vshrl.u32 %v2390, 16
      %v2554 = vor.u32 %v2552, %v2550
      %v2556 = vshll.u32 %v2391, 16
      %v2558 = vrot.slane %v2556, 1
      %v2559 = vsel %vm2395, %v2554, %v2558
      %v2560 = vshrl.u32 %v2391, 16
      %v2562 = vor.u32 %v2560, %v2558
      %v2564 = vshll.u32 %v2392, 16
      %v2566 = vrot.slane %v2564, 1
      %v2567 = vsel %vm2395, %v2562, %v2566
      %v2568 = vshrl.u32 %v2392, 16
      %v2570 = vor.u32 %v2568, %v2566
      %v2572 = vshll.u32 %v2393, 16
      %v2574 = vrot.slane %v2572, 1
      %v2575 = vsel %vm2395, %v2570, %v2574
      %v2576 = vshrl.u32 %v2393, 16
      %v2578 = vor.u32 %v2576, %v2574
      %v2580 = vshll.u32 %v2394, 16
      %v2582 = vrot.slane %v2580, 1
      %v2583 = vsel %vm2395, %v2578, %v2582
      %v2585 = vsel %vm739, %v2407, 0
      %v2588 = vsel %vm739, %v2415, 0
      %v2591 = vsel %vm739, %v2423, 0
      %v2594 = vsel %vm739, %v2431, 0
      %v2597 = vsel %vm739, %v2439, 0
      %v2600 = vsel %vm739, %v2447, 0
      %v2603 = vsel %vm739, %v2455, 0
      %v2606 = vsel %vm739, %v2463, 0
      %v2609 = vsel %vm739, %v2471, 0
      %v2612 = vsel %vm739, %v2479, 0
      %v2615 = vsel %vm739, %v2487, 0
      %v2618 = vsel %vm739, %v2495, 0
      %v2621 = vsel %vm739, %v2503, 0
      %v2624 = vsel %vm739, %v2511, 0
      %v2627 = vsel %vm739, %v2519, 0
      %v2630 = vsel %vm739, %v2527, 0
      %v2633 = vsel %vm739, %v2535, 0
      %v2636 = vsel %vm739, %v2543, 0
      %v2639 = vsel %vm739, %v2551, 0
      %v2642 = vsel %vm739, %v2559, 0
      %v2645 = vsel %vm739, %v2567, 0
      %v2648 = vsel %vm739, %v2575, 0
      %v2651 = vsel %vm739, %v2583, 0
      %v2654 = vsel %vm809, %v2276, 0
      %2656 = vmatprep.subr.bf16.mxu0 0
      %2657 = vmatpush1.bf16.msra.mxu0 %v2654
      %2658 = vmatprep.subr.bf16.mxu0 0
      %2659 = vmatpush1.bf16.msra.mxu0 0
      %2660 = vmatprep.subr.bf16.mxu0 0
      %2661 = vmatpush1.bf16.msra.mxu0 0
      %2662 = vmatprep.subr.bf16.mxu0 0
      %2663 = vmatpush1.bf16.msra.mxu0 0
      %2664 = vmatprep.subr.bf16.mxu0 0
      %2665 = vmatpush1.bf16.msra.mxu0 0
      %2666 = vmatprep.subr.bf16.mxu0 0
      %2667 = vmatpush1.bf16.msra.mxu0 0
      %2668 = vmatprep.subr.bf16.mxu0 0
      %2669 = vmatpush1.bf16.msra.mxu0 0
      %2670 = vmatprep.subr.bf16.mxu0 0
      %2671 = vmatpush1.bf16.msra.mxu0 0
      %2672 = vmatprep.subr.bf16.mxu0 0
      %2673 = vmatpush1.bf16.msra.mxu0 0
      %2674 = vmatprep.subr.bf16.mxu0 0
      %2675 = vmatpush1.bf16.msra.mxu0 0
      %2676 = vmatprep.subr.bf16.mxu0 0
      %2677 = vmatpush1.bf16.msra.mxu0 0
      %2678 = vmatprep.subr.bf16.mxu0 0
      %2679 = vmatpush1.bf16.msra.mxu0 0
      %2680 = vmatprep.subr.bf16.mxu0 0
      %2681 = vmatpush1.bf16.msra.mxu0 0
      %2682 = vmatprep.subr.bf16.mxu0 0
      %2683 = vmatpush1.bf16.msra.mxu0 0
      %2684 = vmatprep.subr.bf16.mxu0 0
      %2685 = vmatpush1.bf16.msra.mxu0 0
      %2686 = vmatprep.subr.bf16.mxu0 0
      %2687 = vmatpush1.bf16.msra.mxu0 0
      %2688 = vmatprep.mubr.bf16.mxu0 0
      %2689 = vmatmul.mubr.bf16.gmra.mrb[0].mxu0 %v2585
      %v2690 = vpop.f32.mrb[0].mxu0
      %v2691 = vadd.f32 0.0, %v2690
      %v2692 = vpop.f32.mrb[0].mxu0
      %v2693 = vpop.f32.mrb[0].mxu0
      %v2694 = vadd.f32 0.0, %v2693
      %v2695 = vpop.f32.mrb[0].mxu0
      %2696 = vmatprep.mubr.bf16.mxu0 0
      %2697 = vmatmul.mubr.bf16.gmra.mrb[0].mxu0 %v2588
      %v2698 = vpop.f32.mrb[0].mxu0
      %v2699 = vadd.f32 0.0, %v2698
      %v2700 = vpop.f32.mrb[0].mxu0
      %v2701 = vpop.f32.mrb[0].mxu0
      %v2702 = vadd.f32 0.0, %v2701
      %v2703 = vpop.f32.mrb[0].mxu0
      %2704 = vmatprep.mubr.bf16.mxu0 0
      %2705 = vmatmul.mubr.bf16.gmra.mrb[0].mxu0 %v2591
      %v2706 = vpop.f32.mrb[0].mxu0
      %v2707 = vadd.f32 0.0, %v2706
      %v2708 = vpop.f32.mrb[0].mxu0
      %v2709 = vpop.f32.mrb[0].mxu0
      %v2710 = vadd.f32 0.0, %v2709
      %v2711 = vpop.f32.mrb[0].mxu0
      %2712 = vmatprep.mubr.bf16.mxu0 0
      %2713 = vmatmul.mubr.bf16.gmra.mrb[0].mxu0 %v2594
      %v2714 = vpop.f32.mrb[0].mxu0
      %v2715 = vadd.f32 0.0, %v2714
      %v2716 = vpop.f32.mrb[0].mxu0
      %v2717 = vpop.f32.mrb[0].mxu0
      %v2718 = vadd.f32 0.0, %v2717
      %v2719 = vpop.f32.mrb[0].mxu0
      %2720 = vmatprep.mubr.bf16.mxu0 0
      %2721 = vmatmul.mubr.bf16.gmra.mrb[0].mxu0 %v2597
      %v2722 = vpop.f32.mrb[0].mxu0
      %v2723 = vadd.f32 0.0, %v2722
      %v2724 = vpop.f32.mrb[0].mxu0
      %v2725 = vpop.f32.mrb[0].mxu0
      %v2726 = vadd.f32 0.0, %v2725
      %v2727 = vpop.f32.mrb[0].mxu0
      %2728 = vmatprep.mubr.bf16.mxu0 0
      %2729 = vmatmul.mubr.bf16.gmra.mrb[0].mxu0 %v2600
      %v2730 = vpop.f32.mrb[0].mxu0
      %v2731 = vadd.f32 0.0, %v2730
      %v2732 = vpop.f32.mrb[0].mxu0
      %v2733 = vpop.f32.mrb[0].mxu0
      %v2734 = vadd.f32 0.0, %v2733
      %v2735 = vpop.f32.mrb[0].mxu0
      %2736 = vmatprep.mubr.bf16.mxu0 0
      %2737 = vmatmul.mubr.bf16.gmra.mrb[0].mxu0 %v2603
      %v2738 = vpop.f32.mrb[0].mxu0
      %v2739 = vadd.f32 0.0, %v2738
      %v2740 = vpop.f32.mrb[0].mxu0
      %v2741 = vpop.f32.mrb[0].mxu0
      %v2742 = vadd.f32 0.0, %v2741
      %v2743 = vpop.f32.mrb[0].mxu0
      %2744 = vmatprep.mubr.bf16.mxu0 0
      %2745 = vmatmul.mubr.bf16.gmra.mrb[0].mxu0 %v2606
      %v2746 = vpop.f32.mrb[0].mxu0
      %v2747 = vadd.f32 0.0, %v2746
      %v2748 = vpop.f32.mrb[0].mxu0
      %v2749 = vpop.f32.mrb[0].mxu0
      %v2750 = vadd.f32 0.0, %v2749
      %v2751 = vpop.f32.mrb[0].mxu0
      %2752 = vmatprep.mubr.bf16.mxu0 0
      %2753 = vmatmul.mubr.bf16.gmra.mrb[0].mxu0 %v2609
      %v2754 = vpop.f32.mrb[0].mxu0
      %v2755 = vadd.f32 0.0, %v2754
      %v2756 = vpop.f32.mrb[0].mxu0
      %v2757 = vpop.f32.mrb[0].mxu0
      %v2758 = vadd.f32 0.0, %v2757
      %v2759 = vpop.f32.mrb[0].mxu0
      %2760 = vmatprep.mubr.bf16.mxu0 0
      %2761 = vmatmul.mubr.bf16.gmra.mrb[0].mxu0 %v2612
      %v2762 = vpop.f32.mrb[0].mxu0
      %v2763 = vadd.f32 0.0, %v2762
      %v2764 = vpop.f32.mrb[0].mxu0
      %v2765 = vpop.f32.mrb[0].mxu0
      %v2766 = vadd.f32 0.0, %v2765
      %v2767 = vpop.f32.mrb[0].mxu0
      %2768 = vmatprep.mubr.bf16.mxu0 0
      %2769 = vmatmul.mubr.bf16.gmra.mrb[0].mxu0 %v2615
      %v2770 = vpop.f32.mrb[0].mxu0
      %v2771 = vadd.f32 0.0, %v2770
      %v2772 = vpop.f32.mrb[0].mxu0
      %v2773 = vpop.f32.mrb[0].mxu0
      %v2774 = vadd.f32 0.0, %v2773
      %v2775 = vpop.f32.mrb[0].mxu0
      %2776 = vmatprep.mubr.bf16.mxu0 0
      %2777 = vmatmul.mubr.bf16.gmra.mrb[0].mxu0 %v2618
      %v2778 = vpop.f32.mrb[0].mxu0
      %v2779 = vadd.f32 0.0, %v2778
      %v2780 = vpop.f32.mrb[0].mxu0
      %v2781 = vpop.f32.mrb[0].mxu0
      %v2782 = vadd.f32 0.0, %v2781
      %v2783 = vpop.f32.mrb[0].mxu0
      %2784 = vmatprep.mubr.bf16.mxu0 0
      %2785 = vmatmul.mubr.bf16.gmra.mrb[0].mxu0 %v2621
      %v2786 = vpop.f32.mrb[0].mxu0
      %v2787 = vadd.f32 0.0, %v2786
      %v2788 = vpop.f32.mrb[0].mxu0
      %v2789 = vpop.f32.mrb[0].mxu0
      %v2790 = vadd.f32 0.0, %v2789
      %v2791 = vpop.f32.mrb[0].mxu0
      %2792 = vmatprep.mubr.bf16.mxu0 0
      %2793 = vmatmul.mubr.bf16.gmra.mrb[0].mxu0 %v2624
      %v2794 = vpop.f32.mrb[0].mxu0
      %v2795 = vadd.f32 0.0, %v2794
      %v2796 = vpop.f32.mrb[0].mxu0
      %v2797 = vpop.f32.mrb[0].mxu0
      %v2798 = vadd.f32 0.0, %v2797
      %v2799 = vpop.f32.mrb[0].mxu0
      %2800 = vmatprep.mubr.bf16.mxu0 0
      %2801 = vmatmul.mubr.bf16.gmra.mrb[0].mxu0 %v2627
      %v2802 = vpop.f32.mrb[0].mxu0
      %v2803 = vadd.f32 0.0, %v2802
      %v2804 = vpop.f32.mrb[0].mxu0
      %v2805 = vpop.f32.mrb[0].mxu0
      %v2806 = vadd.f32 0.0, %v2805
      %v2807 = vpop.f32.mrb[0].mxu0
      %2808 = vmatprep.mubr.bf16.mxu0 0
      %2809 = vmatmul.mubr.bf16.gmra.mrb[0].mxu0 %v2630
      %v2810 = vpop.f32.mrb[0].mxu0
      %v2811 = vadd.f32 0.0, %v2810
      %v2812 = vpop.f32.mrb[0].mxu0
      %v2813 = vpop.f32.mrb[0].mxu0
      %v2814 = vadd.f32 0.0, %v2813
      %v2815 = vpop.f32.mrb[0].mxu0
      %2816 = vmatprep.mubr.bf16.mxu0 0
      %2817 = vmatmul.mubr.bf16.gmra.mrb[0].mxu0 %v2633
      %v2818 = vpop.f32.mrb[0].mxu0
      %v2819 = vadd.f32 0.0, %v2818
      %v2820 = vpop.f32.mrb[0].mxu0
      %v2821 = vpop.f32.mrb[0].mxu0
      %v2822 = vadd.f32 0.0, %v2821
      %v2823 = vpop.f32.mrb[0].mxu0
      %2824 = vmatprep.mubr.bf16.mxu0 0
      %2825 = vmatmul.mubr.bf16.gmra.mrb[0].mxu0 %v2636
      %v2826 = vpop.f32.mrb[0].mxu0
      %v2827 = vadd.f32 0.0, %v2826
      %v2828 = vpop.f32.mrb[0].mxu0
      %v2829 = vpop.f32.mrb[0].mxu0
      %v2830 = vadd.f32 0.0, %v2829
      %v2831 = vpop.f32.mrb[0].mxu0
      %2832 = vmatprep.mubr.bf16.mxu0 0
      %2833 = vmatmul.mubr.bf16.gmra.mrb[0].mxu0 %v2639
      %v2834 = vpop.f32.mrb[0].mxu0
      %v2835 = vadd.f32 0.0, %v2834
      %v2836 = vpop.f32.mrb[0].mxu0
      %v2837 = vpop.f32.mrb[0].mxu0
      %v2838 = vadd.f32 0.0, %v2837
      %v2839 = vpop.f32.mrb[0].mxu0
      %2840 = vmatprep.mubr.bf16.mxu0 0
      %2841 = vmatmul.mubr.bf16.gmra.mrb[0].mxu0 %v2642
      %v2842 = vpop.f32.mrb[0].mxu0
      %v2843 = vadd.f32 0.0, %v2842
      %v2844 = vpop.f32.mrb[0].mxu0
      %v2845 = vpop.f32.mrb[0].mxu0
      %v2846 = vadd.f32 0.0, %v2845
      %v2847 = vpop.f32.mrb[0].mxu0
      %2848 = vmatprep.mubr.bf16.mxu0 0
      %2849 = vmatmul.mubr.bf16.gmra.mrb[0].mxu0 %v2645
      %v2850 = vpop.f32.mrb[0].mxu0
      %v2851 = vadd.f32 0.0, %v2850
      %v2852 = vpop.f32.mrb[0].mxu0
      %v2853 = vpop.f32.mrb[0].mxu0
      %v2854 = vadd.f32 0.0, %v2853
      %v2855 = vpop.f32.mrb[0].mxu0
      %2856 = vmatprep.mubr.bf16.mxu0 0
      %2857 = vmatmul.mubr.bf16.gmra.mrb[0].mxu0 %v2648
      %v2858 = vpop.f32.mrb[0].mxu0
      %v2859 = vadd.f32 0.0, %v2858
      %v2860 = vpop.f32.mrb[0].mxu0
      %v2861 = vpop.f32.mrb[0].mxu0
      %v2862 = vadd.f32 0.0, %v2861
      %v2863 = vpop.f32.mrb[0].mxu0
      %2864 = vmatprep.mubr.bf16.mxu0 0
      %2865 = vmatmul.mubr.bf16.gmra.mrb[0].mxu0 %v2651
      %v2866 = vpop.f32.mrb[0].mxu0
      %v2867 = vadd.f32 0.0, %v2866
      %v2868 = vpop.f32.mrb[0].mxu0
      %v2869 = vpop.f32.mrb[0].mxu0
      %v2870 = vadd.f32 0.0, %v2869
      %v2871 = vpop.f32.mrb[0].mxu0
      %2872 = vdwg.mxu0
      %v2873 = vadd.f32 %v2182, %v2691
      %v2874 = vadd.f32 %v2183, %v2694
      %v2875 = vadd.f32 %v2184, %v2699
      %v2876 = vadd.f32 %v2185, %v2702
      %v2877 = vadd.f32 %v2186, %v2707
      %v2878 = vadd.f32 %v2187, %v2710
      %v2879 = vadd.f32 %v2188, %v2715
      %v2880 = vadd.f32 %v2189, %v2718
      %v2881 = vadd.f32 %v2190, %v2723
      %v2882 = vadd.f32 %v2191, %v2726
      %v2883 = vadd.f32 %v2192, %v2731
      %v2884 = vadd.f32 %v2193, %v2734
      %v2885 = vadd.f32 %v2194, %v2739
      %v2886 = vadd.f32 %v2195, %v2742
      %v2887 = vadd.f32 %v2196, %v2747
      %v2888 = vadd.f32 %v2197, %v2750
      %v2889 = vadd.f32 %v2198, %v2755
      %v2890 = vadd.f32 %v2199, %v2758
      %v2891 = vadd.f32 %v2200, %v2763
      %v2892 = vadd.f32 %v2201, %v2766
      %v2893 = vadd.f32 %v2202, %v2771
      %v2894 = vadd.f32 %v2203, %v2774
      %v2895 = vadd.f32 %v2204, %v2779
      %v2896 = vadd.f32 %v2205, %v2782
      %v2897 = vadd.f32 %v2206, %v2787
      %v2898 = vadd.f32 %v2207, %v2790
      %v2899 = vadd.f32 %v2208, %v2795
      %v2900 = vadd.f32 %v2209, %v2798
      %v2901 = vadd.f32 %v2210, %v2803
      %v2902 = vadd.f32 %v2211, %v2806
      %v2903 = vadd.f32 %v2212, %v2811
      %v2904 = vadd.f32 %v2213, %v2814
      %v2905 = vadd.f32 %v2214, %v2819
      %v2906 = vadd.f32 %v2215, %v2822
      %v2907 = vadd.f32 %v2216, %v2827
      %v2908 = vadd.f32 %v2217, %v2830
      %v2909 = vadd.f32 %v2218, %v2835
      %v2910 = vadd.f32 %v2219, %v2838
      %v2911 = vadd.f32 %v2220, %v2843
      %v2912 = vadd.f32 %v2221, %v2846
      %v2913 = vadd.f32 %v2222, %v2851
      %v2914 = vadd.f32 %v2223, %v2854
      %v2915 = vadd.f32 %v2224, %v2859
      %v2916 = vadd.f32 %v2225, %v2862
      %v2917 = vadd.f32 %v2226, %v2867
      %v2918 = vadd.f32 %v2227, %v2870
      %v2919 = vld [vmem:[%s342 + $0xc] sm:$0xe]
      %s2920 = scalar_lea.vmem %s3, 10
      %v2921 = vld [vmem:[%s2920] sm:$0x3]
      %v2923 = vunpack.c.l.b16 %v2919
      %v2924 = vpack.c.b16 %v2325, %v2923
      %vm2925 = vcmask 1046528
      %v2926 = vrot.slane %v2924, 1
      %v2927 = vrot.slane %v2372, 1
      %v2928 = vsel %vm2925, %v2926, %v2927
      %v2929 = vrot.slane %v2373, 1
      %v2930 = vsel %vm2925, %v2927, %v2929
      %v2931 = vrot.slane %v2374, 1
      %v2932 = vsel %vm2925, %v2929, %v2931
      %v2933 = vrot.slane %v2375, 1
      %v2934 = vsel %vm2925, %v2931, %v2933
      %v2935 = vrot.slane %v2376, 1
      %v2936 = vsel %vm2925, %v2933, %v2935
      %v2937 = vrot.slane %v2377, 1
      %v2938 = vsel %vm2925, %v2935, %v2937
      %v2939 = vrot.slane %v2378, 1
      %v2940 = vsel %vm2925, %v2937, %v2939
      %v2941 = vrot.slane %v2379, 1
      %v2942 = vsel %vm2925, %v2939, %v2941
      %v2943 = vrot.slane %v2380, 1
      %v2944 = vsel %vm2925, %v2941, %v2943
      %v2945 = vrot.slane %v2381, 1
      %v2946 = vsel %vm2925, %v2943, %v2945
      %v2947 = vrot.slane %v2382, 1
      %v2948 = vsel %vm2925, %v2945, %v2947
      %v2949 = vrot.slane %v2383, 1
      %v2950 = vsel %vm2925, %v2947, %v2949
      %v2951 = vrot.slane %v2384, 1
      %v2952 = vsel %vm2925, %v2949, %v2951
      %v2953 = vrot.slane %v2385, 1
      %v2954 = vsel %vm2925, %v2951, %v2953
      %v2955 = vrot.slane %v2386, 1
      %v2956 = vsel %vm2925, %v2953, %v2955
      %v2957 = vrot.slane %v2387, 1
      %v2958 = vsel %vm2925, %v2955, %v2957
      %v2959 = vrot.slane %v2388, 1
      %v2960 = vsel %vm2925, %v2957, %v2959
      %v2961 = vrot.slane %v2389, 1
      %v2962 = vsel %vm2925, %v2959, %v2961
      %v2963 = vrot.slane %v2390, 1
      %v2964 = vsel %vm2925, %v2961, %v2963
      %v2965 = vrot.slane %v2391, 1
      %v2966 = vsel %vm2925, %v2963, %v2965
      %v2967 = vrot.slane %v2392, 1
      %v2968 = vsel %vm2925, %v2965, %v2967
      %v2969 = vrot.slane %v2393, 1
      %v2970 = vsel %vm2925, %v2967, %v2969
      %v2971 = vrot.slane %v2394, 1
      %v2972 = vsel %vm2925, %v2969, %v2971
      %v2974 = vsel %vm739, %v2928, 0
      %v2977 = vsel %vm739, %v2930, 0
      %v2980 = vsel %vm739, %v2932, 0
      %v2983 = vsel %vm739, %v2934, 0
      %v2986 = vsel %vm739, %v2936, 0
      %v2989 = vsel %vm739, %v2938, 0
      %v2992 = vsel %vm739, %v2940, 0
      %v2995 = vsel %vm739, %v2942, 0
      %v2998 = vsel %vm739, %v2944, 0
      %v3001 = vsel %vm739, %v2946, 0
      %v3004 = vsel %vm739, %v2948, 0
      %v3007 = vsel %vm739, %v2950, 0
      %v3010 = vsel %vm739, %v2952, 0
      %v3013 = vsel %vm739, %v2954, 0
      %v3016 = vsel %vm739, %v2956, 0
      %v3019 = vsel %vm739, %v2958, 0
      %v3022 = vsel %vm739, %v2960, 0
      %v3025 = vsel %vm739, %v2962, 0
      %v3028 = vsel %vm739, %v2964, 0
      %v3031 = vsel %vm739, %v2966, 0
      %v3034 = vsel %vm739, %v2968, 0
      %v3037 = vsel %vm739, %v2970, 0
      %v3040 = vsel %vm739, %v2972, 0
      %v3043 = vsel %vm809, %v2921, 0
      %3045 = vmatprep.subr.bf16.mxu0 0
      %3046 = vmatpush1.bf16.msra.mxu0 %v3043
      %3047 = vmatprep.subr.bf16.mxu0 0
      %3048 = vmatpush1.bf16.msra.mxu0 0
      %3049 = vmatprep.subr.bf16.mxu0 0
      %3050 = vmatpush1.bf16.msra.mxu0 0
      %3051 = vmatprep.subr.bf16.mxu0 0
      %3052 = vmatpush1.bf16.msra.mxu0 0
      %3053 = vmatprep.subr.bf16.mxu0 0
      %3054 = vmatpush1.bf16.msra.mxu0 0
      %3055 = vmatprep.subr.bf16.mxu0 0
      %3056 = vmatpush1.bf16.msra.mxu0 0
      %3057 = vmatprep.subr.bf16.mxu0 0
      %3058 = vmatpush1.bf16.msra.mxu0 0
      %3059 = vmatprep.subr.bf16.mxu0 0
      %3060 = vmatpush1.bf16.msra.mxu0 0
      %3061 = vmatprep.subr.bf16.mxu0 0
      %3062 = vmatpush1.bf16.msra.mxu0 0
      %3063 = vmatprep.subr.bf16.mxu0 0
      %3064 = vmatpush1.bf16.msra.mxu0 0
      %3065 = vmatprep.subr.bf16.mxu0 0
      %3066 = vmatpush1.bf16.msra.mxu0 0
      %3067 = vmatprep.subr.bf16.mxu0 0
      %3068 = vmatpush1.bf16.msra.mxu0 0
      %3069 = vmatprep.subr.bf16.mxu0 0
      %3070 = vmatpush1.bf16.msra.mxu0 0
      %3071 = vmatprep.subr.bf16.mxu0 0
      %3072 = vmatpush1.bf16.msra.mxu0 0
      %3073 = vmatprep.subr.bf16.mxu0 0
      %3074 = vmatpush1.bf16.msra.mxu0 0
      %3075 = vmatprep.subr.bf16.mxu0 0
      %3076 = vmatpush1.bf16.msra.mxu0 0
      %3077 = vmatprep.mubr.bf16.mxu0 0
      %3078 = vmatmul.mubr.bf16.gmra.mrb[0].mxu0 %v2974
      %v3079 = vpop.f32.mrb[0].mxu0
      %v3080 = vadd.f32 0.0, %v3079
      %v3081 = vpop.f32.mrb[0].mxu0
      %v3082 = vpop.f32.mrb[0].mxu0
      %v3083 = vadd.f32 0.0, %v3082
      %v3084 = vpop.f32.mrb[0].mxu0
      %3085 = vmatprep.mubr.bf16.mxu0 0
      %3086 = vmatmul.mubr.bf16.gmra.mrb[0].mxu0 %v2977
      %v3087 = vpop.f32.mrb[0].mxu0
      %v3088 = vadd.f32 0.0, %v3087
      %v3089 = vpop.f32.mrb[0].mxu0
      %v3090 = vpop.f32.mrb[0].mxu0
      %v3091 = vadd.f32 0.0, %v3090
      %v3092 = vpop.f32.mrb[0].mxu0
      %3093 = vmatprep.mubr.bf16.mxu0 0
      %3094 = vmatmul.mubr.bf16.gmra.mrb[0].mxu0 %v2980
      %v3095 = vpop.f32.mrb[0].mxu0
      %v3096 = vadd.f32 0.0, %v3095
      %v3097 = vpop.f32.mrb[0].mxu0
      %v3098 = vpop.f32.mrb[0].mxu0
      %v3099 = vadd.f32 0.0, %v3098
      %v3100 = vpop.f32.mrb[0].mxu0
      %3101 = vmatprep.mubr.bf16.mxu0 0
      %3102 = vmatmul.mubr.bf16.gmra.mrb[0].mxu0 %v2983
      %v3103 = vpop.f32.mrb[0].mxu0
      %v3104 = vadd.f32 0.0, %v3103
      %v3105 = vpop.f32.mrb[0].mxu0
      %v3106 = vpop.f32.mrb[0].mxu0
      %v3107 = vadd.f32 0.0, %v3106
      %v3108 = vpop.f32.mrb[0].mxu0
      %3109 = vmatprep.mubr.bf16.mxu0 0
      %3110 = vmatmul.mubr.bf16.gmra.mrb[0].mxu0 %v2986
      %v3111 = vpop.f32.mrb[0].mxu0
      %v3112 = vadd.f32 0.0, %v3111
      %v3113 = vpop.f32.mrb[0].mxu0
      %v3114 = vpop.f32.mrb[0].mxu0
      %v3115 = vadd.f32 0.0, %v3114
      %v3116 = vpop.f32.mrb[0].mxu0
      %3117 = vmatprep.mubr.bf16.mxu0 0
      %3118 = vmatmul.mubr.bf16.gmra.mrb[0].mxu0 %v2989
      %v3119 = vpop.f32.mrb[0].mxu0
      %v3120 = vadd.f32 0.0, %v3119
      %v3121 = vpop.f32.mrb[0].mxu0
      %v3122 = vpop.f32.mrb[0].mxu0
      %v3123 = vadd.f32 0.0, %v3122
      %v3124 = vpop.f32.mrb[0].mxu0
      %3125 = vmatprep.mubr.bf16.mxu0 0
      %3126 = vmatmul.mubr.bf16.gmra.mrb[0].mxu0 %v2992
      %v3127 = vpop.f32.mrb[0].mxu0
      %v3128 = vadd.f32 0.0, %v3127
      %v3129 = vpop.f32.mrb[0].mxu0
      %v3130 = vpop.f32.mrb[0].mxu0
      %v3131 = vadd.f32 0.0, %v3130
      %v3132 = vpop.f32.mrb[0].mxu0
      %3133 = vmatprep.mubr.bf16.mxu0 0
      %3134 = vmatmul.mubr.bf16.gmra.mrb[0].mxu0 %v2995
      %v3135 = vpop.f32.mrb[0].mxu0
      %v3136 = vadd.f32 0.0, %v3135
      %v3137 = vpop.f32.mrb[0].mxu0
      %v3138 = vpop.f32.mrb[0].mxu0
      %v3139 = vadd.f32 0.0, %v3138
      %v3140 = vpop.f32.mrb[0].mxu0
      %3141 = vmatprep.mubr.bf16.mxu0 0
      %3142 = vmatmul.mubr.bf16.gmra.mrb[0].mxu0 %v2998
      %v3143 = vpop.f32.mrb[0].mxu0
      %v3144 = vadd.f32 0.0, %v3143
      %v3145 = vpop.f32.mrb[0].mxu0
      %v3146 = vpop.f32.mrb[0].mxu0
      %v3147 = vadd.f32 0.0, %v3146
      %v3148 = vpop.f32.mrb[0].mxu0
      %3149 = vmatprep.mubr.bf16.mxu0 0
      %3150 = vmatmul.mubr.bf16.gmra.mrb[0].mxu0 %v3001
      %v3151 = vpop.f32.mrb[0].mxu0
      %v3152 = vadd.f32 0.0, %v3151
      %v3153 = vpop.f32.mrb[0].mxu0
      %v3154 = vpop.f32.mrb[0].mxu0
      %v3155 = vadd.f32 0.0, %v3154
      %v3156 = vpop.f32.mrb[0].mxu0
      %3157 = vmatprep.mubr.bf16.mxu0 0
      %3158 = vmatmul.mubr.bf16.gmra.mrb[0].mxu0 %v3004
      %v3159 = vpop.f32.mrb[0].mxu0
      %v3160 = vadd.f32 0.0, %v3159
      %v3161 = vpop.f32.mrb[0].mxu0
      %v3162 = vpop.f32.mrb[0].mxu0
      %v3163 = vadd.f32 0.0, %v3162
      %v3164 = vpop.f32.mrb[0].mxu0
      %3165 = vmatprep.mubr.bf16.mxu0 0
      %3166 = vmatmul.mubr.bf16.gmra.mrb[0].mxu0 %v3007
      %v3167 = vpop.f32.mrb[0].mxu0
      %v3168 = vadd.f32 0.0, %v3167
      %v3169 = vpop.f32.mrb[0].mxu0
      %v3170 = vpop.f32.mrb[0].mxu0
      %v3171 = vadd.f32 0.0, %v3170
      %v3172 = vpop.f32.mrb[0].mxu0
      %3173 = vmatprep.mubr.bf16.mxu0 0
      %3174 = vmatmul.mubr.bf16.gmra.mrb[0].mxu0 %v3010
      %v3175 = vpop.f32.mrb[0].mxu0
      %v3176 = vadd.f32 0.0, %v3175
      %v3177 = vpop.f32.mrb[0].mxu0
      %v3178 = vpop.f32.mrb[0].mxu0
      %v3179 = vadd.f32 0.0, %v3178
      %v3180 = vpop.f32.mrb[0].mxu0
      %3181 = vmatprep.mubr.bf16.mxu0 0
      %3182 = vmatmul.mubr.bf16.gmra.mrb[0].mxu0 %v3013
      %v3183 = vpop.f32.mrb[0].mxu0
      %v3184 = vadd.f32 0.0, %v3183
      %v3185 = vpop.f32.mrb[0].mxu0
      %v3186 = vpop.f32.mrb[0].mxu0
      %v3187 = vadd.f32 0.0, %v3186
      %v3188 = vpop.f32.mrb[0].mxu0
      %3189 = vmatprep.mubr.bf16.mxu0 0
      %3190 = vmatmul.mubr.bf16.gmra.mrb[0].mxu0 %v3016
      %v3191 = vpop.f32.mrb[0].mxu0
      %v3192 = vadd.f32 0.0, %v3191
      %v3193 = vpop.f32.mrb[0].mxu0
      %v3194 = vpop.f32.mrb[0].mxu0
      %v3195 = vadd.f32 0.0, %v3194
      %v3196 = vpop.f32.mrb[0].mxu0
      %3197 = vmatprep.mubr.bf16.mxu0 0
      %3198 = vmatmul.mubr.bf16.gmra.mrb[0].mxu0 %v3019
      %v3199 = vpop.f32.mrb[0].mxu0
      %v3200 = vadd.f32 0.0, %v3199
      %v3201 = vpop.f32.mrb[0].mxu0
      %v3202 = vpop.f32.mrb[0].mxu0
      %v3203 = vadd.f32 0.0, %v3202
      %v3204 = vpop.f32.mrb[0].mxu0
      %3205 = vmatprep.mubr.bf16.mxu0 0
      %3206 = vmatmul.mubr.bf16.gmra.mrb[0].mxu0 %v3022
      %v3207 = vpop.f32.mrb[0].mxu0
      %v3208 = vadd.f32 0.0, %v3207
      %v3209 = vpop.f32.mrb[0].mxu0
      %v3210 = vpop.f32.mrb[0].mxu0
      %v3211 = vadd.f32 0.0, %v3210
      %v3212 = vpop.f32.mrb[0].mxu0
      %3213 = vmatprep.mubr.bf16.mxu0 0
      %3214 = vmatmul.mubr.bf16.gmra.mrb[0].mxu0 %v3025
      %v3215 = vpop.f32.mrb[0].mxu0
      %v3216 = vadd.f32 0.0, %v3215
      %v3217 = vpop.f32.mrb[0].mxu0
      %v3218 = vpop.f32.mrb[0].mxu0
      %v3219 = vadd.f32 0.0, %v3218
      %v3220 = vpop.f32.mrb[0].mxu0
      %3221 = vmatprep.mubr.bf16.mxu0 0
      %3222 = vmatmul.mubr.bf16.gmra.mrb[0].mxu0 %v3028
      %v3223 = vpop.f32.mrb[0].mxu0
      %v3224 = vadd.f32 0.0, %v3223
      %v3225 = vpop.f32.mrb[0].mxu0
      %v3226 = vpop.f32.mrb[0].mxu0
      %v3227 = vadd.f32 0.0, %v3226
      %v3228 = vpop.f32.mrb[0].mxu0
      %3229 = vmatprep.mubr.bf16.mxu0 0
      %3230 = vmatmul.mubr.bf16.gmra.mrb[0].mxu0 %v3031
      %v3231 = vpop.f32.mrb[0].mxu0
      %v3232 = vadd.f32 0.0, %v3231
      %v3233 = vpop.f32.mrb[0].mxu0
      %v3234 = vpop.f32.mrb[0].mxu0
      %v3235 = vadd.f32 0.0, %v3234
      %v3236 = vpop.f32.mrb[0].mxu0
      %3237 = vmatprep.mubr.bf16.mxu0 0
      %3238 = vmatmul.mubr.bf16.gmra.mrb[0].mxu0 %v3034
      %v3239 = vpop.f32.mrb[0].mxu0
      %v3240 = vadd.f32 0.0, %v3239
      %v3241 = vpop.f32.mrb[0].mxu0
      %v3242 = vpop.f32.mrb[0].mxu0
      %v3243 = vadd.f32 0.0, %v3242
      %v3244 = vpop.f32.mrb[0].mxu0
      %3245 = vmatprep.mubr.bf16.mxu0 0
      %3246 = vmatmul.mubr.bf16.gmra.mrb[0].mxu0 %v3037
      %v3247 = vpop.f32.mrb[0].mxu0
      %v3248 = vadd.f32 0.0, %v3247
      %v3249 = vpop.f32.mrb[0].mxu0
      %v3250 = vpop.f32.mrb[0].mxu0
      %v3251 = vadd.f32 0.0, %v3250
      %v3252 = vpop.f32.mrb[0].mxu0
      %3253 = vmatprep.mubr.bf16.mxu0 0
      %3254 = vmatmul.mubr.bf16.gmra.mrb[0].mxu0 %v3040
      %v3255 = vpop.f32.mrb[0].mxu0
      %v3256 = vadd.f32 0.0, %v3255
      %v3257 = vpop.f32.mrb[0].mxu0
      %v3258 = vpop.f32.mrb[0].mxu0
      %v3259 = vadd.f32 0.0, %v3258
      %v3260 = vpop.f32.mrb[0].mxu0
      %3261 = vdwg.mxu0
      %v3262 = vadd.f32 %v2873, %v3080
      %v3263 = vadd.f32 %v2874, %v3083
      %v3264 = vadd.f32 %v2875, %v3088
      %v3265 = vadd.f32 %v2876, %v3091
      %v3266 = vadd.f32 %v2877, %v3096
      %v3267 = vadd.f32 %v2878, %v3099
      %v3268 = vadd.f32 %v2879, %v3104
      %v3269 = vadd.f32 %v2880, %v3107
      %v3270 = vadd.f32 %v2881, %v3112
      %v3271 = vadd.f32 %v2882, %v3115
      %v3272 = vadd.f32 %v2883, %v3120
      %v3273 = vadd.f32 %v2884, %v3123
      %v3274 = vadd.f32 %v2885, %v3128
      %v3275 = vadd.f32 %v2886, %v3131
      %v3276 = vadd.f32 %v2887, %v3136
      %v3277 = vadd.f32 %v2888, %v3139
      %v3278 = vadd.f32 %v2889, %v3144
      %v3279 = vadd.f32 %v2890, %v3147
      %v3280 = vadd.f32 %v2891, %v3152
      %v3281 = vadd.f32 %v2892, %v3155
      %v3282 = vadd.f32 %v2893, %v3160
      %v3283 = vadd.f32 %v2894, %v3163
      %v3284 = vadd.f32 %v2895, %v3168
      %v3285 = vadd.f32 %v2896, %v3171
      %v3286 = vadd.f32 %v2897, %v3176
      %v3287 = vadd.f32 %v2898, %v3179
      %v3288 = vadd.f32 %v2899, %v3184
      %v3289 = vadd.f32 %v2900, %v3187
      %v3290 = vadd.f32 %v2901, %v3192
      %v3291 = vadd.f32 %v2902, %v3195
      %v3292 = vadd.f32 %v2903, %v3200
      %v3293 = vadd.f32 %v2904, %v3203
      %v3294 = vadd.f32 %v2905, %v3208
      %v3295 = vadd.f32 %v2906, %v3211
      %v3296 = vadd.f32 %v2907, %v3216
      %v3297 = vadd.f32 %v2908, %v3219
      %v3298 = vadd.f32 %v2909, %v3224
      %v3299 = vadd.f32 %v2910, %v3227
      %v3300 = vadd.f32 %v2911, %v3232
      %v3301 = vadd.f32 %v2912, %v3235
      %v3302 = vadd.f32 %v2913, %v3240
      %v3303 = vadd.f32 %v2914, %v3243
      %v3304 = vadd.f32 %v2915, %v3248
      %v3305 = vadd.f32 %v2916, %v3251
      %v3306 = vadd.f32 %v2917, %v3256
      %v3307 = vadd.f32 %v2918, %v3259
      %v3308 = vld [vmem:[%s342 + $0x14] sm:$0xe]
      %v3309 = vld [vmem:[%s342 + $0x18] sm:$0xf]
      %v3310 = vld [vmem:[%s342 + $0x1c] sm:$0xf]
      %v3311 = vld [vmem:[%s342 + $0x20] sm:$0xf]
      %v3312 = vld [vmem:[%s342 + $0x24] sm:$0xf]
      %v3313 = vld [vmem:[%s342 + $0x28] sm:$0xf]
      %v3314 = vld [vmem:[%s342 + $0x2c] sm:$0xf]
      %v3315 = vld [vmem:[%s342 + $0x30] sm:$0xf]
      %v3316 = vld [vmem:[%s342 + $0x34] sm:$0xf]
      %v3317 = vld [vmem:[%s342 + $0x38] sm:$0xf]
      %v3318 = vld [vmem:[%s342 + $0x3c] sm:$0xf]
      %v3319 = vld [vmem:[%s342 + $0x40] sm:$0xf]
      %v3320 = vld [vmem:[%s342 + $0x44] sm:$0xf]
      %v3321 = vld [vmem:[%s342 + $0x48] sm:$0xf]
      %v3322 = vld [vmem:[%s342 + $0x4c] sm:$0xf]
      %v3323 = vld [vmem:[%s342 + $0x50] sm:$0xf]
      %v3324 = vld [vmem:[%s342 + $0x54] sm:$0xf]
      %v3325 = vld [vmem:[%s342 + $0x58] sm:$0xf]
      %v3326 = vld [vmem:[%s342 + $0x5c] sm:$0xf]
      %v3327 = vld [vmem:[%s342 + $0x60] sm:$0xf]
      %v3328 = vld [vmem:[%s342 + $0x64] sm:$0xf]
      %v3329 = vld [vmem:[%s342 + $0x68] sm:$0xf]
      %v3330 = vld [vmem:[%s342 + $0x6c] sm:$0xf]
      %v3331 = vld [vmem:[%s342 + $0x70] sm:$0xf]
      %v3332 = vld [vmem:[%s342 + $0x74] sm:$0xf]
      %v3333 = vld [vmem:[%s342 + $0x78] sm:$0xf]
      %v3334 = vld [vmem:[%s342 + $0x7c] sm:$0xf]
      %v3335 = vld [vmem:[%s342 + $0x80] sm:$0xf]
      %v3336 = vld [vmem:[%s342 + $0x84] sm:$0xf]
      %v3337 = vld [vmem:[%s342 + $0x88] sm:$0xf]
      %v3338 = vld [vmem:[%s342 + $0x8c] sm:$0xf]
      %v3339 = vld [vmem:[%s342 + $0x90] sm:$0xf]
      %v3340 = vld [vmem:[%s342 + $0x94] sm:$0xf]
      %v3341 = vld [vmem:[%s342 + $0x98] sm:$0xf]
      %v3342 = vld [vmem:[%s342 + $0x9c] sm:$0xf]
      %v3343 = vld [vmem:[%s342 + $0xa0] sm:$0xf]
      %v3344 = vld [vmem:[%s342 + $0xa4] sm:$0xf]
      %v3345 = vld [vmem:[%s342 + $0xa8] sm:$0xf]
      %v3346 = vld [vmem:[%s342 + $0xac] sm:$0xf]
      %v3347 = vld [vmem:[%s342 + $0xb0] sm:$0xf]
      %v3348 = vld [vmem:[%s342 + $0xb4] sm:$0xf]
      %v3349 = vld [vmem:[%s342 + $0xb8] sm:$0xf]
      %v3350 = vld [vmem:[%s342 + $0xbc] sm:$0xf]
      %v3351 = vld [vmem:[%s342 + $0xc0] sm:$0xf]
      %v3352 = vld [vmem:[%s342 + $0xc4] sm:$0xf]
      %v3353 = vld [vmem:[%s342 + $0xc8] sm:$0xf]
      %v3354 = vld [vmem:[%s342 + $0xcc] sm:$0x1]
      %s3355 = scalar_lea.vmem %s3, 12
      %v3356 = vld [vmem:[%s3355] sm:$0x3]
      %v3404 = vunpack.c.l.b16 %v3308
      %v3405 = vunpack.c.l.b16 %v3309
      %v3406 = vunpack.c.l.b16 %v3310
      %v3407 = vunpack.c.l.b16 %v3311
      %v3408 = vunpack.c.l.b16 %v3312
      %v3409 = vunpack.c.l.b16 %v3313
      %v3410 = vunpack.c.l.b16 %v3314
      %v3411 = vunpack.c.l.b16 %v3315
      %v3412 = vunpack.c.l.b16 %v3316
      %v3413 = vunpack.c.l.b16 %v3317
      %v3414 = vunpack.c.l.b16 %v3318
      %v3415 = vunpack.c.l.b16 %v3319
      %v3416 = vunpack.c.l.b16 %v3320
      %v3417 = vunpack.c.l.b16 %v3321
      %v3418 = vunpack.c.l.b16 %v3322
      %v3419 = vunpack.c.l.b16 %v3323
      %v3420 = vunpack.c.l.b16 %v3324
      %v3421 = vunpack.c.l.b16 %v3325
      %v3422 = vunpack.c.l.b16 %v3326
      %v3423 = vunpack.c.l.b16 %v3327
      %v3424 = vunpack.c.l.b16 %v3328
      %v3425 = vunpack.c.l.b16 %v3329
      %v3426 = vunpack.c.l.b16 %v3330
      %v3427 = vunpack.c.l.b16 %v3331
      %v3428 = vunpack.c.l.b16 %v3332
      %v3429 = vunpack.c.l.b16 %v3333
      %v3430 = vunpack.c.l.b16 %v3334
      %v3431 = vunpack.c.l.b16 %v3335
      %v3432 = vunpack.c.l.b16 %v3336
      %v3433 = vunpack.c.l.b16 %v3337
      %v3434 = vunpack.c.l.b16 %v3338
      %v3435 = vunpack.c.l.b16 %v3339
      %v3436 = vunpack.c.l.b16 %v3340
      %v3437 = vunpack.c.l.b16 %v3341
      %v3438 = vunpack.c.l.b16 %v3342
      %v3439 = vunpack.c.l.b16 %v3343
      %v3440 = vunpack.c.l.b16 %v3344
      %v3441 = vunpack.c.l.b16 %v3345
      %v3442 = vunpack.c.l.b16 %v3346
      %v3443 = vunpack.c.l.b16 %v3347
      %v3444 = vunpack.c.l.b16 %v3348
      %v3445 = vunpack.c.l.b16 %v3349
      %v3446 = vunpack.c.l.b16 %v3350
      %v3447 = vunpack.c.l.b16 %v3351
      %v3448 = vunpack.c.l.b16 %v3352
      %v3449 = vunpack.c.l.b16 %v3353
      %v3450 = vunpack.c.l.b16 %v3354
      %v3451 = vpack.c.b16 %v3405, %v3404
      %v3452 = vpack.c.b16 %v3407, %v3406
      %v3453 = vpack.c.b16 %v3409, %v3408
      %v3454 = vpack.c.b16 %v3411, %v3410
      %v3455 = vpack.c.b16 %v3413, %v3412
      %v3456 = vpack.c.b16 %v3415, %v3414
      %v3457 = vpack.c.b16 %v3417, %v3416
      %v3458 = vpack.c.b16 %v3419, %v3418
      %v3459 = vpack.c.b16 %v3421, %v3420
      %v3460 = vpack.c.b16 %v3423, %v3422
      %v3461 = vpack.c.b16 %v3425, %v3424
      %v3462 = vpack.c.b16 %v3427, %v3426
      %v3463 = vpack.c.b16 %v3429, %v3428
      %v3464 = vpack.c.b16 %v3431, %v3430
      %v3465 = vpack.c.b16 %v3433, %v3432
      %v3466 = vpack.c.b16 %v3435, %v3434
      %v3467 = vpack.c.b16 %v3437, %v3436
      %v3468 = vpack.c.b16 %v3439, %v3438
      %v3469 = vpack.c.b16 %v3441, %v3440
      %v3470 = vpack.c.b16 %v3443, %v3442
      %v3471 = vpack.c.b16 %v3445, %v3444
      %v3472 = vpack.c.b16 %v3447, %v3446
      %v3473 = vpack.c.b16 %v3449, %v3448
      %v3474 = vpack.c.b16 %v3450, %v3450
      %v3475 = vrot.slane %v3451, 1
      %v3476 = vrot.slane %v3452, 1
      %v3477 = vsel %vm2925, %v3475, %v3476
      %v3478 = vrot.slane %v3453, 1
      %v3479 = vsel %vm2925, %v3476, %v3478
      %v3480 = vrot.slane %v3454, 1
      %v3481 = vsel %vm2925, %v3478, %v3480
      %v3482 = vrot.slane %v3455, 1
      %v3483 = vsel %vm2925, %v3480, %v3482
      %v3484 = vrot.slane %v3456, 1
      %v3485 = vsel %vm2925, %v3482, %v3484
      %v3486 = vrot.slane %v3457, 1
      %v3487 = vsel %vm2925, %v3484, %v3486
      %v3488 = vrot.slane %v3458, 1
      %v3489 = vsel %vm2925, %v3486, %v3488
      %v3490 = vrot.slane %v3459, 1
      %v3491 = vsel %vm2925, %v3488, %v3490
      %v3492 = vrot.slane %v3460, 1
      %v3493 = vsel %vm2925, %v3490, %v3492
      %v3494 = vrot.slane %v3461, 1
      %v3495 = vsel %vm2925, %v3492, %v3494
      %v3496 = vrot.slane %v3462, 1
      %v3497 = vsel %vm2925, %v3494, %v3496
      %v3498 = vrot.slane %v3463, 1
      %v3499 = vsel %vm2925, %v3496, %v3498
      %v3500 = vrot.slane %v3464, 1
      %v3501 = vsel %vm2925, %v3498, %v3500
      %v3502 = vrot.slane %v3465, 1
      %v3503 = vsel %vm2925, %v3500, %v3502
      %v3504 = vrot.slane %v3466, 1
      %v3505 = vsel %vm2925, %v3502, %v3504
      %v3506 = vrot.slane %v3467, 1
      %v3507 = vsel %vm2925, %v3504, %v3506
      %v3508 = vrot.slane %v3468, 1
      %v3509 = vsel %vm2925, %v3506, %v3508
      %v3510 = vrot.slane %v3469, 1
      %v3511 = vsel %vm2925, %v3508, %v3510
      %v3512 = vrot.slane %v3470, 1
      %v3513 = vsel %vm2925, %v3510, %v3512
      %v3514 = vrot.slane %v3471, 1
      %v3515 = vsel %vm2925, %v3512, %v3514
      %v3516 = vrot.slane %v3472, 1
      %v3517 = vsel %vm2925, %v3514, %v3516
      %v3518 = vrot.slane %v3473, 1
      %v3519 = vsel %vm2925, %v3516, %v3518
      %v3520 = vrot.slane %v3474, 1
      %v3521 = vsel %vm2925, %v3518, %v3520
      %v3523 = vsel %vm739, %v3477, 0
      %v3526 = vsel %vm739, %v3479, 0
      %v3529 = vsel %vm739, %v3481, 0
      %v3532 = vsel %vm739, %v3483, 0
      %v3535 = vsel %vm739, %v3485, 0
      %v3538 = vsel %vm739, %v3487, 0
      %v3541 = vsel %vm739, %v3489, 0
      %v3544 = vsel %vm739, %v3491, 0
      %v3547 = vsel %vm739, %v3493, 0
      %v3550 = vsel %vm739, %v3495, 0
      %v3553 = vsel %vm739, %v3497, 0
      %v3556 = vsel %vm739, %v3499, 0
      %v3559 = vsel %vm739, %v3501, 0
      %v3562 = vsel %vm739, %v3503, 0
      %v3565 = vsel %vm739, %v3505, 0
      %v3568 = vsel %vm739, %v3507, 0
      %v3571 = vsel %vm739, %v3509, 0
      %v3574 = vsel %vm739, %v3511, 0
      %v3577 = vsel %vm739, %v3513, 0
      %v3580 = vsel %vm739, %v3515, 0
      %v3583 = vsel %vm739, %v3517, 0
      %v3586 = vsel %vm739, %v3519, 0
      %v3589 = vsel %vm739, %v3521, 0
      %v3592 = vsel %vm809, %v3356, 0
      %3594 = vmatprep.subr.bf16.mxu0 0
      %3595 = vmatpush1.bf16.msra.mxu0 %v3592
      %3596 = vmatprep.subr.bf16.mxu0 0
      %3597 = vmatpush1.bf16.msra.mxu0 0
      %3598 = vmatprep.subr.bf16.mxu0 0
      %3599 = vmatpush1.bf16.msra.mxu0 0
      %3600 = vmatprep.subr.bf16.mxu0 0
      %3601 = vmatpush1.bf16.msra.mxu0 0
      %3602 = vmatprep.subr.bf16.mxu0 0
      %3603 = vmatpush1.bf16.msra.mxu0 0
      %3604 = vmatprep.subr.bf16.mxu0 0
      %3605 = vmatpush1.bf16.msra.mxu0 0
      %3606 = vmatprep.subr.bf16.mxu0 0
      %3607 = vmatpush1.bf16.msra.mxu0 0
      %3608 = vmatprep.subr.bf16.mxu0 0
      %3609 = vmatpush1.bf16.msra.mxu0 0
      %3610 = vmatprep.subr.bf16.mxu0 0
      %3611 = vmatpush1.bf16.msra.mxu0 0
      %3612 = vmatprep.subr.bf16.mxu0 0
      %3613 = vmatpush1.bf16.msra.mxu0 0
      %3614 = vmatprep.subr.bf16.mxu0 0
      %3615 = vmatpush1.bf16.msra.mxu0 0
      %3616 = vmatprep.subr.bf16.mxu0 0
      %3617 = vmatpush1.bf16.msra.mxu0 0
      %3618 = vmatprep.subr.bf16.mxu0 0
      %3619 = vmatpush1.bf16.msra.mxu0 0
      %3620 = vmatprep.subr.bf16.mxu0 0
      %3621 = vmatpush1.bf16.msra.mxu0 0
      %3622 = vmatprep.subr.bf16.mxu0 0
      %3623 = vmatpush1.bf16.msra.mxu0 0
      %3624 = vmatprep.subr.bf16.mxu0 0
      %3625 = vmatpush1.bf16.msra.mxu0 0
      %3626 = vmatprep.mubr.bf16.mxu0 0
      %3627 = vmatmul.mubr.bf16.gmra.mrb[0].mxu0 %v3523
      %v3628 = vpop.f32.mrb[0].mxu0
      %v3629 = vadd.f32 0.0, %v3628
      %v3630 = vpop.f32.mrb[0].mxu0
      %v3631 = vpop.f32.mrb[0].mxu0
      %v3632 = vadd.f32 0.0, %v3631
      %v3633 = vpop.f32.mrb[0].mxu0
      %3634 = vmatprep.mubr.bf16.mxu0 0
      %3635 = vmatmul.mubr.bf16.gmra.mrb[0].mxu0 %v3526
      %v3636 = vpop.f32.mrb[0].mxu0
      %v3637 = vadd.f32 0.0, %v3636
      %v3638 = vpop.f32.mrb[0].mxu0
      %v3639 = vpop.f32.mrb[0].mxu0
      %v3640 = vadd.f32 0.0, %v3639
      %v3641 = vpop.f32.mrb[0].mxu0
      %3642 = vmatprep.mubr.bf16.mxu0 0
      %3643 = vmatmul.mubr.bf16.gmra.mrb[0].mxu0 %v3529
      %v3644 = vpop.f32.mrb[0].mxu0
      %v3645 = vadd.f32 0.0, %v3644
      %v3646 = vpop.f32.mrb[0].mxu0
      %v3647 = vpop.f32.mrb[0].mxu0
      %v3648 = vadd.f32 0.0, %v3647
      %v3649 = vpop.f32.mrb[0].mxu0
      %3650 = vmatprep.mubr.bf16.mxu0 0
      %3651 = vmatmul.mubr.bf16.gmra.mrb[0].mxu0 %v3532
      %v3652 = vpop.f32.mrb[0].mxu0
      %v3653 = vadd.f32 0.0, %v3652
      %v3654 = vpop.f32.mrb[0].mxu0
      %v3655 = vpop.f32.mrb[0].mxu0
      %v3656 = vadd.f32 0.0, %v3655
      %v3657 = vpop.f32.mrb[0].mxu0
      %3658 = vmatprep.mubr.bf16.mxu0 0
      %3659 = vmatmul.mubr.bf16.gmra.mrb[0].mxu0 %v3535
      %v3660 = vpop.f32.mrb[0].mxu0
      %v3661 = vadd.f32 0.0, %v3660
      %v3662 = vpop.f32.mrb[0].mxu0
      %v3663 = vpop.f32.mrb[0].mxu0
      %v3664 = vadd.f32 0.0, %v3663
      %v3665 = vpop.f32.mrb[0].mxu0
      %3666 = vmatprep.mubr.bf16.mxu0 0
      %3667 = vmatmul.mubr.bf16.gmra.mrb[0].mxu0 %v3538
      %v3668 = vpop.f32.mrb[0].mxu0
      %v3669 = vadd.f32 0.0, %v3668
      %v3670 = vpop.f32.mrb[0].mxu0
      %v3671 = vpop.f32.mrb[0].mxu0
      %v3672 = vadd.f32 0.0, %v3671
      %v3673 = vpop.f32.mrb[0].mxu0
      %3674 = vmatprep.mubr.bf16.mxu0 0
      %3675 = vmatmul.mubr.bf16.gmra.mrb[0].mxu0 %v3541
      %v3676 = vpop.f32.mrb[0].mxu0
      %v3677 = vadd.f32 0.0, %v3676
      %v3678 = vpop.f32.mrb[0].mxu0
      %v3679 = vpop.f32.mrb[0].mxu0
      %v3680 = vadd.f32 0.0, %v3679
      %v3681 = vpop.f32.mrb[0].mxu0
      %3682 = vmatprep.mubr.bf16.mxu0 0
      %3683 = vmatmul.mubr.bf16.gmra.mrb[0].mxu0 %v3544
      %v3684 = vpop.f32.mrb[0].mxu0
      %v3685 = vadd.f32 0.0, %v3684
      %v3686 = vpop.f32.mrb[0].mxu0
      %v3687 = vpop.f32.mrb[0].mxu0
      %v3688 = vadd.f32 0.0, %v3687
      %v3689 = vpop.f32.mrb[0].mxu0
      %3690 = vmatprep.mubr.bf16.mxu0 0
      %3691 = vmatmul.mubr.bf16.gmra.mrb[0].mxu0 %v3547
      %v3692 = vpop.f32.mrb[0].mxu0
      %v3693 = vadd.f32 0.0, %v3692
      %v3694 = vpop.f32.mrb[0].mxu0
      %v3695 = vpop.f32.mrb[0].mxu0
      %v3696 = vadd.f32 0.0, %v3695
      %v3697 = vpop.f32.mrb[0].mxu0
      %3698 = vmatprep.mubr.bf16.mxu0 0
      %3699 = vmatmul.mubr.bf16.gmra.mrb[0].mxu0 %v3550
      %v3700 = vpop.f32.mrb[0].mxu0
      %v3701 = vadd.f32 0.0, %v3700
      %v3702 = vpop.f32.mrb[0].mxu0
      %v3703 = vpop.f32.mrb[0].mxu0
      %v3704 = vadd.f32 0.0, %v3703
      %v3705 = vpop.f32.mrb[0].mxu0
      %3706 = vmatprep.mubr.bf16.mxu0 0
      %3707 = vmatmul.mubr.bf16.gmra.mrb[0].mxu0 %v3553
      %v3708 = vpop.f32.mrb[0].mxu0
      %v3709 = vadd.f32 0.0, %v3708
      %v3710 = vpop.f32.mrb[0].mxu0
      %v3711 = vpop.f32.mrb[0].mxu0
      %v3712 = vadd.f32 0.0, %v3711
      %v3713 = vpop.f32.mrb[0].mxu0
      %3714 = vmatprep.mubr.bf16.mxu0 0
      %3715 = vmatmul.mubr.bf16.gmra.mrb[0].mxu0 %v3556
      %v3716 = vpop.f32.mrb[0].mxu0
      %v3717 = vadd.f32 0.0, %v3716
      %v3718 = vpop.f32.mrb[0].mxu0
      %v3719 = vpop.f32.mrb[0].mxu0
      %v3720 = vadd.f32 0.0, %v3719
      %v3721 = vpop.f32.mrb[0].mxu0
      %3722 = vmatprep.mubr.bf16.mxu0 0
      %3723 = vmatmul.mubr.bf16.gmra.mrb[0].mxu0 %v3559
      %v3724 = vpop.f32.mrb[0].mxu0
      %v3725 = vadd.f32 0.0, %v3724
      %v3726 = vpop.f32.mrb[0].mxu0
      %v3727 = vpop.f32.mrb[0].mxu0
      %v3728 = vadd.f32 0.0, %v3727
      %v3729 = vpop.f32.mrb[0].mxu0
      %3730 = vmatprep.mubr.bf16.mxu0 0
      %3731 = vmatmul.mubr.bf16.gmra.mrb[0].mxu0 %v3562
      %v3732 = vpop.f32.mrb[0].mxu0
      %v3733 = vadd.f32 0.0, %v3732
      %v3734 = vpop.f32.mrb[0].mxu0
      %v3735 = vpop.f32.mrb[0].mxu0
      %v3736 = vadd.f32 0.0, %v3735
      %v3737 = vpop.f32.mrb[0].mxu0
      %3738 = vmatprep.mubr.bf16.mxu0 0
      %3739 = vmatmul.mubr.bf16.gmra.mrb[0].mxu0 %v3565
      %v3740 = vpop.f32.mrb[0].mxu0
      %v3741 = vadd.f32 0.0, %v3740
      %v3742 = vpop.f32.mrb[0].mxu0
      %v3743 = vpop.f32.mrb[0].mxu0
      %v3744 = vadd.f32 0.0, %v3743
      %v3745 = vpop.f32.mrb[0].mxu0
      %3746 = vmatprep.mubr.bf16.mxu0 0
      %3747 = vmatmul.mubr.bf16.gmra.mrb[0].mxu0 %v3568
      %v3748 = vpop.f32.mrb[0].mxu0
      %v3749 = vadd.f32 0.0, %v3748
      %v3750 = vpop.f32.mrb[0].mxu0
      %v3751 = vpop.f32.mrb[0].mxu0
      %v3752 = vadd.f32 0.0, %v3751
      %v3753 = vpop.f32.mrb[0].mxu0
      %3754 = vmatprep.mubr.bf16.mxu0 0
      %3755 = vmatmul.mubr.bf16.gmra.mrb[0].mxu0 %v3571
      %v3756 = vpop.f32.mrb[0].mxu0
      %v3757 = vadd.f32 0.0, %v3756
      %v3758 = vpop.f32.mrb[0].mxu0
      %v3759 = vpop.f32.mrb[0].mxu0
      %v3760 = vadd.f32 0.0, %v3759
      %v3761 = vpop.f32.mrb[0].mxu0
      %3762 = vmatprep.mubr.bf16.mxu0 0
      %3763 = vmatmul.mubr.bf16.gmra.mrb[0].mxu0 %v3574
      %v3764 = vpop.f32.mrb[0].mxu0
      %v3765 = vadd.f32 0.0, %v3764
      %v3766 = vpop.f32.mrb[0].mxu0
      %v3767 = vpop.f32.mrb[0].mxu0
      %v3768 = vadd.f32 0.0, %v3767
      %v3769 = vpop.f32.mrb[0].mxu0
      %3770 = vmatprep.mubr.bf16.mxu0 0
      %3771 = vmatmul.mubr.bf16.gmra.mrb[0].mxu0 %v3577
      %v3772 = vpop.f32.mrb[0].mxu0
      %v3773 = vadd.f32 0.0, %v3772
      %v3774 = vpop.f32.mrb[0].mxu0
      %v3775 = vpop.f32.mrb[0].mxu0
      %v3776 = vadd.f32 0.0, %v3775
      %v3777 = vpop.f32.mrb[0].mxu0
      %3778 = vmatprep.mubr.bf16.mxu0 0
      %3779 = vmatmul.mubr.bf16.gmra.mrb[0].mxu0 %v3580
      %v3780 = vpop.f32.mrb[0].mxu0
      %v3781 = vadd.f32 0.0, %v3780
      %v3782 = vpop.f32.mrb[0].mxu0
      %v3783 = vpop.f32.mrb[0].mxu0
      %v3784 = vadd.f32 0.0, %v3783
      %v3785 = vpop.f32.mrb[0].mxu0
      %3786 = vmatprep.mubr.bf16.mxu0 0
      %3787 = vmatmul.mubr.bf16.gmra.mrb[0].mxu0 %v3583
      %v3788 = vpop.f32.mrb[0].mxu0
      %v3789 = vadd.f32 0.0, %v3788
      %v3790 = vpop.f32.mrb[0].mxu0
      %v3791 = vpop.f32.mrb[0].mxu0
      %v3792 = vadd.f32 0.0, %v3791
      %v3793 = vpop.f32.mrb[0].mxu0
      %3794 = vmatprep.mubr.bf16.mxu0 0
      %3795 = vmatmul.mubr.bf16.gmra.mrb[0].mxu0 %v3586
      %v3796 = vpop.f32.mrb[0].mxu0
      %v3797 = vadd.f32 0.0, %v3796
      %v3798 = vpop.f32.mrb[0].mxu0
      %v3799 = vpop.f32.mrb[0].mxu0
      %v3800 = vadd.f32 0.0, %v3799
      %v3801 = vpop.f32.mrb[0].mxu0
      %3802 = vmatprep.mubr.bf16.mxu0 0
      %3803 = vmatmul.mubr.bf16.gmra.mrb[0].mxu0 %v3589
      %v3804 = vpop.f32.mrb[0].mxu0
      %v3805 = vadd.f32 0.0, %v3804
      %v3806 = vpop.f32.mrb[0].mxu0
      %v3807 = vpop.f32.mrb[0].mxu0
      %v3808 = vadd.f32 0.0, %v3807
      %v3809 = vpop.f32.mrb[0].mxu0
      %3810 = vdwg.mxu0
      %v3811 = vadd.f32 %v3262, %v3629
      %v3812 = vadd.f32 %v3263, %v3632
      %v3813 = vadd.f32 %v3264, %v3637
      %v3814 = vadd.f32 %v3265, %v3640
      %v3815 = vadd.f32 %v3266, %v3645
      %v3816 = vadd.f32 %v3267, %v3648
      %v3817 = vadd.f32 %v3268, %v3653
      %v3818 = vadd.f32 %v3269, %v3656
      %v3819 = vadd.f32 %v3270, %v3661
      %v3820 = vadd.f32 %v3271, %v3664
      %v3821 = vadd.f32 %v3272, %v3669
      %v3822 = vadd.f32 %v3273, %v3672
      %v3823 = vadd.f32 %v3274, %v3677
      %v3824 = vadd.f32 %v3275, %v3680
      %v3825 = vadd.f32 %v3276, %v3685
      %v3826 = vadd.f32 %v3277, %v3688
      %v3827 = vadd.f32 %v3278, %v3693
      %v3828 = vadd.f32 %v3279, %v3696
      %v3829 = vadd.f32 %v3280, %v3701
      %v3830 = vadd.f32 %v3281, %v3704
      %v3831 = vadd.f32 %v3282, %v3709
      %v3832 = vadd.f32 %v3283, %v3712
      %v3833 = vadd.f32 %v3284, %v3717
      %v3834 = vadd.f32 %v3285, %v3720
      %v3835 = vadd.f32 %v3286, %v3725
      %v3836 = vadd.f32 %v3287, %v3728
      %v3837 = vadd.f32 %v3288, %v3733
      %v3838 = vadd.f32 %v3289, %v3736
      %v3839 = vadd.f32 %v3290, %v3741
      %v3840 = vadd.f32 %v3291, %v3744
      %v3841 = vadd.f32 %v3292, %v3749
      %v3842 = vadd.f32 %v3293, %v3752
      %v3843 = vadd.f32 %v3294, %v3757
      %v3844 = vadd.f32 %v3295, %v3760
      %v3845 = vadd.f32 %v3296, %v3765
      %v3846 = vadd.f32 %v3297, %v3768
      %v3847 = vadd.f32 %v3298, %v3773
      %v3848 = vadd.f32 %v3299, %v3776
      %v3849 = vadd.f32 %v3300, %v3781
      %v3850 = vadd.f32 %v3301, %v3784
      %v3851 = vadd.f32 %v3302, %v3789
      %v3852 = vadd.f32 %v3303, %v3792
      %v3853 = vadd.f32 %v3304, %v3797
      %v3854 = vadd.f32 %v3305, %v3800
      %v3855 = vadd.f32 %v3306, %v3805
      %v3856 = vadd.f32 %v3307, %v3808
      %v3857 = vld [vmem:[%s342 + $0xcc] sm:$0x3]
      %s3858 = scalar_lea.vmem %s3, 14
      %v3859 = vld [vmem:[%s3858] sm:$0x3]
      %v3861 = vunpack.c.l.b16 %v3857
      %v3862 = vpack.c.b16 %v3861, %v3861
      %vm3863 = vsmask.f32 6400
      %v3865 = vshrl.u32 %v3451, 16
      %v3867 = vrot.slane %v3865, 1
      %v3868 = vshll.u32 %v3451, 16
      %v3870 = vrot.slane %v3868, 2
      %v3871 = vor.u32 %v3867, %v3870
      %v3873 = vshrl.u32 %v3452, 16
      %v3875 = vrot.slane %v3873, 1
      %v3876 = vshll.u32 %v3452, 16
      %v3878 = vrot.slane %v3876, 2
      %v3879 = vor.u32 %v3875, %v3878
      %v3880 = vsel %vm3863, %v3871, %v3879
      %v3882 = vshrl.u32 %v3453, 16
      %v3884 = vrot.slane %v3882, 1
      %v3885 = vshll.u32 %v3453, 16
      %v3887 = vrot.slane %v3885, 2
      %v3888 = vor.u32 %v3884, %v3887
      %v3889 = vsel %vm3863, %v3879, %v3888
      %v3891 = vshrl.u32 %v3454, 16
      %v3893 = vrot.slane %v3891, 1
      %v3894 = vshll.u32 %v3454, 16
      %v3896 = vrot.slane %v3894, 2
      %v3897 = vor.u32 %v3893, %v3896
      %v3898 = vsel %vm3863, %v3888, %v3897
      %v3900 = vshrl.u32 %v3455, 16
      %v3902 = vrot.slane %v3900, 1
      %v3903 = vshll.u32 %v3455, 16
      %v3905 = vrot.slane %v3903, 2
      %v3906 = vor.u32 %v3902, %v3905
      %v3907 = vsel %vm3863, %v3897, %v3906
      %v3909 = vshrl.u32 %v3456, 16
      %v3911 = vrot.slane %v3909, 1
      %v3912 = vshll.u32 %v3456, 16
      %v3914 = vrot.slane %v3912, 2
      %v3915 = vor.u32 %v3911, %v3914
      %v3916 = vsel %vm3863, %v3906, %v3915
      %v3918 = vshrl.u32 %v3457, 16
      %v3920 = vrot.slane %v3918, 1
      %v3921 = vshll.u32 %v3457, 16
      %v3923 = vrot.slane %v3921, 2
      %v3924 = vor.u32 %v3920, %v3923
      %v3925 = vsel %vm3863, %v3915, %v3924
      %v3927 = vshrl.u32 %v3458, 16
      %v3929 = vrot.slane %v3927, 1
      %v3930 = vshll.u32 %v3458, 16
      %v3932 = vrot.slane %v3930, 2
      %v3933 = vor.u32 %v3929, %v3932
      %v3934 = vsel %vm3863, %v3924, %v3933
      %v3936 = vshrl.u32 %v3459, 16
      %v3938 = vrot.slane %v3936, 1
      %v3939 = vshll.u32 %v3459, 16
      %v3941 = vrot.slane %v3939, 2
      %v3942 = vor.u32 %v3938, %v3941
      %v3943 = vsel %vm3863, %v3933, %v3942
      %v3945 = vshrl.u32 %v3460, 16
      %v3947 = vrot.slane %v3945, 1
      %v3948 = vshll.u32 %v3460, 16
      %v3950 = vrot.slane %v3948, 2
      %v3951 = vor.u32 %v3947, %v3950
      %v3952 = vsel %vm3863, %v3942, %v3951
      %v3954 = vshrl.u32 %v3461, 16
      %v3956 = vrot.slane %v3954, 1
      %v3957 = vshll.u32 %v3461, 16
      %v3959 = vrot.slane %v3957, 2
      %v3960 = vor.u32 %v3956, %v3959
      %v3961 = vsel %vm3863, %v3951, %v3960
      %v3963 = vshrl.u32 %v3462, 16
      %v3965 = vrot.slane %v3963, 1
      %v3966 = vshll.u32 %v3462, 16
      %v3968 = vrot.slane %v3966, 2
      %v3969 = vor.u32 %v3965, %v3968
      %v3970 = vsel %vm3863, %v3960, %v3969
      %v3972 = vshrl.u32 %v3463, 16
      %v3974 = vrot.slane %v3972, 1
      %v3975 = vshll.u32 %v3463, 16
      %v3977 = vrot.slane %v3975, 2
      %v3978 = vor.u32 %v3974, %v3977
      %v3979 = vsel %vm3863, %v3969, %v3978
      %v3981 = vshrl.u32 %v3464, 16
      %v3983 = vrot.slane %v3981, 1
      %v3984 = vshll.u32 %v3464, 16
      %v3986 = vrot.slane %v3984, 2
      %v3987 = vor.u32 %v3983, %v3986
      %v3988 = vsel %vm3863, %v3978, %v3987
      %v3990 = vshrl.u32 %v3465, 16
      %v3992 = vrot.slane %v3990, 1
      %v3993 = vshll.u32 %v3465, 16
      %v3995 = vrot.slane %v3993, 2
      %v3996 = vor.u32 %v3992, %v3995
      %v3997 = vsel %vm3863, %v3987, %v3996
      %v3999 = vshrl.u32 %v3466, 16
      %v4001 = vrot.slane %v3999, 1
      %v4002 = vshll.u32 %v3466, 16
      %v4004 = vrot.slane %v4002, 2
      %v4005 = vor.u32 %v4001, %v4004
      %v4006 = vsel %vm3863, %v3996, %v4005
      %v4008 = vshrl.u32 %v3467, 16
      %v4010 = vrot.slane %v4008, 1
      %v4011 = vshll.u32 %v3467, 16
      %v4013 = vrot.slane %v4011, 2
      %v4014 = vor.u32 %v4010, %v4013
      %v4015 = vsel %vm3863, %v4005, %v4014
      %v4017 = vshrl.u32 %v3468, 16
      %v4019 = vrot.slane %v4017, 1
      %v4020 = vshll.u32 %v3468, 16
      %v4022 = vrot.slane %v4020, 2
      %v4023 = vor.u32 %v4019, %v4022
      %v4024 = vsel %vm3863, %v4014, %v4023
      %v4026 = vshrl.u32 %v3469, 16
      %v4028 = vrot.slane %v4026, 1
      %v4029 = vshll.u32 %v3469, 16
      %v4031 = vrot.slane %v4029, 2
      %v4032 = vor.u32 %v4028, %v4031
      %v4033 = vsel %vm3863, %v4023, %v4032
      %v4035 = vshrl.u32 %v3470, 16
      %v4037 = vrot.slane %v4035, 1
      %v4038 = vshll.u32 %v3470, 16
      %v4040 = vrot.slane %v4038, 2
      %v4041 = vor.u32 %v4037, %v4040
      %v4042 = vsel %vm3863, %v4032, %v4041
      %v4044 = vshrl.u32 %v3471, 16
      %v4046 = vrot.slane %v4044, 1
      %v4047 = vshll.u32 %v3471, 16
      %v4049 = vrot.slane %v4047, 2
      %v4050 = vor.u32 %v4046, %v4049
      %v4051 = vsel %vm3863, %v4041, %v4050
      %v4053 = vshrl.u32 %v3472, 16
      %v4055 = vrot.slane %v4053, 1
      %v4056 = vshll.u32 %v3472, 16
      %v4058 = vrot.slane %v4056, 2
      %v4059 = vor.u32 %v4055, %v4058
      %v4060 = vsel %vm3863, %v4050, %v4059
      %v4062 = vshrl.u32 %v3473, 16
      %v4064 = vrot.slane %v4062, 1
      %v4065 = vshll.u32 %v3473, 16
      %v4067 = vrot.slane %v4065, 2
      %v4068 = vor.u32 %v4064, %v4067
      %v4069 = vsel %vm3863, %v4059, %v4068
      %v4071 = vshrl.u32 %v3862, 16
      %v4073 = vrot.slane %v4071, 1
      %v4074 = vshll.u32 %v3862, 16
      %v4076 = vrot.slane %v4074, 2
      %v4077 = vor.u32 %v4073, %v4076
      %v4078 = vsel %vm3863, %v4068, %v4077
      %v4080 = vsel %vm739, %v3880, 0
      %v4083 = vsel %vm739, %v3889, 0
      %v4086 = vsel %vm739, %v3898, 0
      %v4089 = vsel %vm739, %v3907, 0
      %v4092 = vsel %vm739, %v3916, 0
      %v4095 = vsel %vm739, %v3925, 0
      %v4098 = vsel %vm739, %v3934, 0
      %v4101 = vsel %vm739, %v3943, 0
      %v4104 = vsel %vm739, %v3952, 0
      %v4107 = vsel %vm739, %v3961, 0
      %v4110 = vsel %vm739, %v3970, 0
      %v4113 = vsel %vm739, %v3979, 0
      %v4116 = vsel %vm739, %v3988, 0
      %v4119 = vsel %vm739, %v3997, 0
      %v4122 = vsel %vm739, %v4006, 0
      %v4125 = vsel %vm739, %v4015, 0
      %v4128 = vsel %vm739, %v4024, 0
      %v4131 = vsel %vm739, %v4033, 0
      %v4134 = vsel %vm739, %v4042, 0
      %v4137 = vsel %vm739, %v4051, 0
      %v4140 = vsel %vm739, %v4060, 0
      %v4143 = vsel %vm739, %v4069, 0
      %v4146 = vsel %vm739, %v4078, 0
      %v4149 = vsel %vm809, %v3859, 0
      %4151 = vmatprep.subr.bf16.mxu0 0
      %4152 = vmatpush1.bf16.msra.mxu0 %v4149
      %4153 = vmatprep.subr.bf16.mxu0 0
      %4154 = vmatpush1.bf16.msra.mxu0 0
      %4155 = vmatprep.subr.bf16.mxu0 0
      %4156 = vmatpush1.bf16.msra.mxu0 0
      %4157 = vmatprep.subr.bf16.mxu0 0
      %4158 = vmatpush1.bf16.msra.mxu0 0
      %4159 = vmatprep.subr.bf16.mxu0 0
      %4160 = vmatpush1.bf16.msra.mxu0 0
      %4161 = vmatprep.subr.bf16.mxu0 0
      %4162 = vmatpush1.bf16.msra.mxu0 0
      %4163 = vmatprep.subr.bf16.mxu0 0
      %4164 = vmatpush1.bf16.msra.mxu0 0
      %4165 = vmatprep.subr.bf16.mxu0 0
      %4166 = vmatpush1.bf16.msra.mxu0 0
      %4167 = vmatprep.subr.bf16.mxu0 0
      %4168 = vmatpush1.bf16.msra.mxu0 0
      %4169 = vmatprep.subr.bf16.mxu0 0
      %4170 = vmatpush1.bf16.msra.mxu0 0
      %4171 = vmatprep.subr.bf16.mxu0 0
      %4172 = vmatpush1.bf16.msra.mxu0 0
      %4173 = vmatprep.subr.bf16.mxu0 0
      %4174 = vmatpush1.bf16.msra.mxu0 0
      %4175 = vmatprep.subr.bf16.mxu0 0
      %4176 = vmatpush1.bf16.msra.mxu0 0
      %4177 = vmatprep.subr.bf16.mxu0 0
      %4178 = vmatpush1.bf16.msra.mxu0 0
      %4179 = vmatprep.subr.bf16.mxu0 0
      %4180 = vmatpush1.bf16.msra.mxu0 0
      %4181 = vmatprep.subr.bf16.mxu0 0
      %4182 = vmatpush1.bf16.msra.mxu0 0
      %4183 = vmatprep.mubr.bf16.mxu0 0
      %4184 = vmatmul.mubr.bf16.gmra.mrb[0].mxu0 %v4080
      %v4185 = vpop.f32.mrb[0].mxu0
      %v4186 = vadd.f32 0.0, %v4185
      %v4187 = vpop.f32.mrb[0].mxu0
      %v4188 = vpop.f32.mrb[0].mxu0
      %v4189 = vadd.f32 0.0, %v4188
      %v4190 = vpop.f32.mrb[0].mxu0
      %4191 = vmatprep.mubr.bf16.mxu0 0
      %4192 = vmatmul.mubr.bf16.gmra.mrb[0].mxu0 %v4083
      %v4193 = vpop.f32.mrb[0].mxu0
      %v4194 = vadd.f32 0.0, %v4193
      %v4195 = vpop.f32.mrb[0].mxu0
      %v4196 = vpop.f32.mrb[0].mxu0
      %v4197 = vadd.f32 0.0, %v4196
      %v4198 = vpop.f32.mrb[0].mxu0
      %4199 = vmatprep.mubr.bf16.mxu0 0
      %4200 = vmatmul.mubr.bf16.gmra.mrb[0].mxu0 %v4086
      %v4201 = vpop.f32.mrb[0].mxu0
      %v4202 = vadd.f32 0.0, %v4201
      %v4203 = vpop.f32.mrb[0].mxu0
      %v4204 = vpop.f32.mrb[0].mxu0
      %v4205 = vadd.f32 0.0, %v4204
      %v4206 = vpop.f32.mrb[0].mxu0
      %4207 = vmatprep.mubr.bf16.mxu0 0
      %4208 = vmatmul.mubr.bf16.gmra.mrb[0].mxu0 %v4089
      %v4209 = vpop.f32.mrb[0].mxu0
      %v4210 = vadd.f32 0.0, %v4209
      %v4211 = vpop.f32.mrb[0].mxu0
      %v4212 = vpop.f32.mrb[0].mxu0
      %v4213 = vadd.f32 0.0, %v4212
      %v4214 = vpop.f32.mrb[0].mxu0
      %4215 = vmatprep.mubr.bf16.mxu0 0
      %4216 = vmatmul.mubr.bf16.gmra.mrb[0].mxu0 %v4092
      %v4217 = vpop.f32.mrb[0].mxu0
      %v4218 = vadd.f32 0.0, %v4217
      %v4219 = vpop.f32.mrb[0].mxu0
      %v4220 = vpop.f32.mrb[0].mxu0
      %v4221 = vadd.f32 0.0, %v4220
      %v4222 = vpop.f32.mrb[0].mxu0
      %4223 = vmatprep.mubr.bf16.mxu0 0
      %4224 = vmatmul.mubr.bf16.gmra.mrb[0].mxu0 %v4095
      %v4225 = vpop.f32.mrb[0].mxu0
      %v4226 = vadd.f32 0.0, %v4225
      %v4227 = vpop.f32.mrb[0].mxu0
      %v4228 = vpop.f32.mrb[0].mxu0
      %v4229 = vadd.f32 0.0, %v4228
      %v4230 = vpop.f32.mrb[0].mxu0
      %4231 = vmatprep.mubr.bf16.mxu0 0
      %4232 = vmatmul.mubr.bf16.gmra.mrb[0].mxu0 %v4098
      %v4233 = vpop.f32.mrb[0].mxu0
      %v4234 = vadd.f32 0.0, %v4233
      %v4235 = vpop.f32.mrb[0].mxu0
      %v4236 = vpop.f32.mrb[0].mxu0
      %v4237 = vadd.f32 0.0, %v4236
      %v4238 = vpop.f32.mrb[0].mxu0
      %4239 = vmatprep.mubr.bf16.mxu0 0
      %4240 = vmatmul.mubr.bf16.gmra.mrb[0].mxu0 %v4101
      %v4241 = vpop.f32.mrb[0].mxu0
      %v4242 = vadd.f32 0.0, %v4241
      %v4243 = vpop.f32.mrb[0].mxu0
      %v4244 = vpop.f32.mrb[0].mxu0
      %v4245 = vadd.f32 0.0, %v4244
      %v4246 = vpop.f32.mrb[0].mxu0
      %4247 = vmatprep.mubr.bf16.mxu0 0
      %4248 = vmatmul.mubr.bf16.gmra.mrb[0].mxu0 %v4104
      %v4249 = vpop.f32.mrb[0].mxu0
      %v4250 = vadd.f32 0.0, %v4249
      %v4251 = vpop.f32.mrb[0].mxu0
      %v4252 = vpop.f32.mrb[0].mxu0
      %v4253 = vadd.f32 0.0, %v4252
      %v4254 = vpop.f32.mrb[0].mxu0
      %4255 = vmatprep.mubr.bf16.mxu0 0
      %4256 = vmatmul.mubr.bf16.gmra.mrb[0].mxu0 %v4107
      %v4257 = vpop.f32.mrb[0].mxu0
      %v4258 = vadd.f32 0.0, %v4257
      %v4259 = vpop.f32.mrb[0].mxu0
      %v4260 = vpop.f32.mrb[0].mxu0
      %v4261 = vadd.f32 0.0, %v4260
      %v4262 = vpop.f32.mrb[0].mxu0
      %4263 = vmatprep.mubr.bf16.mxu0 0
      %4264 = vmatmul.mubr.bf16.gmra.mrb[0].mxu0 %v4110
      %v4265 = vpop.f32.mrb[0].mxu0
      %v4266 = vadd.f32 0.0, %v4265
      %v4267 = vpop.f32.mrb[0].mxu0
      %v4268 = vpop.f32.mrb[0].mxu0
      %v4269 = vadd.f32 0.0, %v4268
      %v4270 = vpop.f32.mrb[0].mxu0
      %4271 = vmatprep.mubr.bf16.mxu0 0
      %4272 = vmatmul.mubr.bf16.gmra.mrb[0].mxu0 %v4113
      %v4273 = vpop.f32.mrb[0].mxu0
      %v4274 = vadd.f32 0.0, %v4273
      %v4275 = vpop.f32.mrb[0].mxu0
      %v4276 = vpop.f32.mrb[0].mxu0
      %v4277 = vadd.f32 0.0, %v4276
      %v4278 = vpop.f32.mrb[0].mxu0
      %4279 = vmatprep.mubr.bf16.mxu0 0
      %4280 = vmatmul.mubr.bf16.gmra.mrb[0].mxu0 %v4116
      %v4281 = vpop.f32.mrb[0].mxu0
      %v4282 = vadd.f32 0.0, %v4281
      %v4283 = vpop.f32.mrb[0].mxu0
      %v4284 = vpop.f32.mrb[0].mxu0
      %v4285 = vadd.f32 0.0, %v4284
      %v4286 = vpop.f32.mrb[0].mxu0
      %4287 = vmatprep.mubr.bf16.mxu0 0
      %4288 = vmatmul.mubr.bf16.gmra.mrb[0].mxu0 %v4119
      %v4289 = vpop.f32.mrb[0].mxu0
      %v4290 = vadd.f32 0.0, %v4289
      %v4291 = vpop.f32.mrb[0].mxu0
      %v4292 = vpop.f32.mrb[0].mxu0
      %v4293 = vadd.f32 0.0, %v4292
      %v4294 = vpop.f32.mrb[0].mxu0
      %4295 = vmatprep.mubr.bf16.mxu0 0
      %4296 = vmatmul.mubr.bf16.gmra.mrb[0].mxu0 %v4122
      %v4297 = vpop.f32.mrb[0].mxu0
      %v4298 = vadd.f32 0.0, %v4297
      %v4299 = vpop.f32.mrb[0].mxu0
      %v4300 = vpop.f32.mrb[0].mxu0
      %v4301 = vadd.f32 0.0, %v4300
      %v4302 = vpop.f32.mrb[0].mxu0
      %4303 = vmatprep.mubr.bf16.mxu0 0
      %4304 = vmatmul.mubr.bf16.gmra.mrb[0].mxu0 %v4125
      %v4305 = vpop.f32.mrb[0].mxu0
      %v4306 = vadd.f32 0.0, %v4305
      %v4307 = vpop.f32.mrb[0].mxu0
      %v4308 = vpop.f32.mrb[0].mxu0
      %v4309 = vadd.f32 0.0, %v4308
      %v4310 = vpop.f32.mrb[0].mxu0
      %4311 = vmatprep.mubr.bf16.mxu0 0
      %4312 = vmatmul.mubr.bf16.gmra.mrb[0].mxu0 %v4128
      %v4313 = vpop.f32.mrb[0].mxu0
      %v4314 = vadd.f32 0.0, %v4313
      %v4315 = vpop.f32.mrb[0].mxu0
      %v4316 = vpop.f32.mrb[0].mxu0
      %v4317 = vadd.f32 0.0, %v4316
      %v4318 = vpop.f32.mrb[0].mxu0
      %4319 = vmatprep.mubr.bf16.mxu0 0
      %4320 = vmatmul.mubr.bf16.gmra.mrb[0].mxu0 %v4131
      %v4321 = vpop.f32.mrb[0].mxu0
      %v4322 = vadd.f32 0.0, %v4321
      %v4323 = vpop.f32.mrb[0].mxu0
      %v4324 = vpop.f32.mrb[0].mxu0
      %v4325 = vadd.f32 0.0, %v4324
      %v4326 = vpop.f32.mrb[0].mxu0
      %4327 = vmatprep.mubr.bf16.mxu0 0
      %4328 = vmatmul.mubr.bf16.gmra.mrb[0].mxu0 %v4134
      %v4329 = vpop.f32.mrb[0].mxu0
      %v4330 = vadd.f32 0.0, %v4329
      %v4331 = vpop.f32.mrb[0].mxu0
      %v4332 = vpop.f32.mrb[0].mxu0
      %v4333 = vadd.f32 0.0, %v4332
      %v4334 = vpop.f32.mrb[0].mxu0
      %4335 = vmatprep.mubr.bf16.mxu0 0
      %4336 = vmatmul.mubr.bf16.gmra.mrb[0].mxu0 %v4137
      %v4337 = vpop.f32.mrb[0].mxu0
      %v4338 = vadd.f32 0.0, %v4337
      %v4339 = vpop.f32.mrb[0].mxu0
      %v4340 = vpop.f32.mrb[0].mxu0
      %v4341 = vadd.f32 0.0, %v4340
      %v4342 = vpop.f32.mrb[0].mxu0
      %4343 = vmatprep.mubr.bf16.mxu0 0
      %4344 = vmatmul.mubr.bf16.gmra.mrb[0].mxu0 %v4140
      %v4345 = vpop.f32.mrb[0].mxu0
      %v4346 = vadd.f32 0.0, %v4345
      %v4347 = vpop.f32.mrb[0].mxu0
      %v4348 = vpop.f32.mrb[0].mxu0
      %v4349 = vadd.f32 0.0, %v4348
      %v4350 = vpop.f32.mrb[0].mxu0
      %4351 = vmatprep.mubr.bf16.mxu0 0
      %4352 = vmatmul.mubr.bf16.gmra.mrb[0].mxu0 %v4143
      %v4353 = vpop.f32.mrb[0].mxu0
      %v4354 = vadd.f32 0.0, %v4353
      %v4355 = vpop.f32.mrb[0].mxu0
      %v4356 = vpop.f32.mrb[0].mxu0
      %v4357 = vadd.f32 0.0, %v4356
      %v4358 = vpop.f32.mrb[0].mxu0
      %4359 = vmatprep.mubr.bf16.mxu0 0
      %4360 = vmatmul.mubr.bf16.gmra.mrb[0].mxu0 %v4146
      %v4361 = vpop.f32.mrb[0].mxu0
      %v4362 = vadd.f32 0.0, %v4361
      %v4363 = vpop.f32.mrb[0].mxu0
      %v4364 = vpop.f32.mrb[0].mxu0
      %v4365 = vadd.f32 0.0, %v4364
      %v4366 = vpop.f32.mrb[0].mxu0
      %4367 = vdwg.mxu0
      %v4368 = vadd.f32 %v3811, %v4186
      %v4369 = vadd.f32 %v3812, %v4189
      %v4370 = vadd.f32 %v3813, %v4194
      %v4371 = vadd.f32 %v3814, %v4197
      %v4372 = vadd.f32 %v3815, %v4202
      %v4373 = vadd.f32 %v3816, %v4205
      %v4374 = vadd.f32 %v3817, %v4210
      %v4375 = vadd.f32 %v3818, %v4213
      %v4376 = vadd.f32 %v3819, %v4218
      %v4377 = vadd.f32 %v3820, %v4221
      %v4378 = vadd.f32 %v3821, %v4226
      %v4379 = vadd.f32 %v3822, %v4229
      %v4380 = vadd.f32 %v3823, %v4234
      %v4381 = vadd.f32 %v3824, %v4237
      %v4382 = vadd.f32 %v3825, %v4242
      %v4383 = vadd.f32 %v3826, %v4245
      %v4384 = vadd.f32 %v3827, %v4250
      %v4385 = vadd.f32 %v3828, %v4253
      %v4386 = vadd.f32 %v3829, %v4258
      %v4387 = vadd.f32 %v3830, %v4261
      %v4388 = vadd.f32 %v3831, %v4266
      %v4389 = vadd.f32 %v3832, %v4269
      %v4390 = vadd.f32 %v3833, %v4274
      %v4391 = vadd.f32 %v3834, %v4277
      %v4392 = vadd.f32 %v3835, %v4282
      %v4393 = vadd.f32 %v3836, %v4285
      %v4394 = vadd.f32 %v3837, %v4290
      %v4395 = vadd.f32 %v3838, %v4293
      %v4396 = vadd.f32 %v3839, %v4298
      %v4397 = vadd.f32 %v3840, %v4301
      %v4398 = vadd.f32 %v3841, %v4306
      %v4399 = vadd.f32 %v3842, %v4309
      %v4400 = vadd.f32 %v3843, %v4314
      %v4401 = vadd.f32 %v3844, %v4317
      %v4402 = vadd.f32 %v3845, %v4322
      %v4403 = vadd.f32 %v3846, %v4325
      %v4404 = vadd.f32 %v3847, %v4330
      %v4405 = vadd.f32 %v3848, %v4333
      %v4406 = vadd.f32 %v3849, %v4338
      %v4407 = vadd.f32 %v3850, %v4341
      %v4408 = vadd.f32 %v3851, %v4346
      %v4409 = vadd.f32 %v3852, %v4349
      %v4410 = vadd.f32 %v3853, %v4354
      %v4411 = vadd.f32 %v3854, %v4357
      %v4412 = vadd.f32 %v3855, %v4362
      %v4413 = vadd.f32 %v3856, %v4365
      %v4414 = vld [vmem:[%s342 + $0x14] sm:$0xc]
      %s4415 = scalar_lea.vmem %s3, 16
      %v4416 = vld [vmem:[%s4415] sm:$0x3]
      %v4418 = vunpack.c.l.b16 %v4414
      %v4419 = vpack.c.b16 %v3405, %v4418
      %vm4420 = vcmask 1045504
      %v4421 = vrot.slane %v4419, 2
      %v4422 = vrot.slane %v3452, 2
      %v4423 = vsel %vm4420, %v4421, %v4422
      %v4424 = vrot.slane %v3453, 2
      %v4425 = vsel %vm4420, %v4422, %v4424
      %v4426 = vrot.slane %v3454, 2
      %v4427 = vsel %vm4420, %v4424, %v4426
      %v4428 = vrot.slane %v3455, 2
      %v4429 = vsel %vm4420, %v4426, %v4428
      %v4430 = vrot.slane %v3456, 2
      %v4431 = vsel %vm4420, %v4428, %v4430
      %v4432 = vrot.slane %v3457, 2
      %v4433 = vsel %vm4420, %v4430, %v4432
      %v4434 = vrot.slane %v3458, 2
      %v4435 = vsel %vm4420, %v4432, %v4434
      %v4436 = vrot.slane %v3459, 2
      %v4437 = vsel %vm4420, %v4434, %v4436
      %v4438 = vrot.slane %v3460, 2
      %v4439 = vsel %vm4420, %v4436, %v4438
      %v4440 = vrot.slane %v3461, 2
      %v4441 = vsel %vm4420, %v4438, %v4440
      %v4442 = vrot.slane %v3462, 2
      %v4443 = vsel %vm4420, %v4440, %v4442
      %v4444 = vrot.slane %v3463, 2
      %v4445 = vsel %vm4420, %v4442, %v4444
      %v4446 = vrot.slane %v3464, 2
      %v4447 = vsel %vm4420, %v4444, %v4446
      %v4448 = vrot.slane %v3465, 2
      %v4449 = vsel %vm4420, %v4446, %v4448
      %v4450 = vrot.slane %v3466, 2
      %v4451 = vsel %vm4420, %v4448, %v4450
      %v4452 = vrot.slane %v3467, 2
      %v4453 = vsel %vm4420, %v4450, %v4452
      %v4454 = vrot.slane %v3468, 2
      %v4455 = vsel %vm4420, %v4452, %v4454
      %v4456 = vrot.slane %v3469, 2
      %v4457 = vsel %vm4420, %v4454, %v4456
      %v4458 = vrot.slane %v3470, 2
      %v4459 = vsel %vm4420, %v4456, %v4458
      %v4460 = vrot.slane %v3471, 2
      %v4461 = vsel %vm4420, %v4458, %v4460
      %v4462 = vrot.slane %v3472, 2
      %v4463 = vsel %vm4420, %v4460, %v4462
      %v4464 = vrot.slane %v3473, 2
      %v4465 = vsel %vm4420, %v4462, %v4464
      %v4466 = vrot.slane %v3862, 2
      %v4467 = vsel %vm4420, %v4464, %v4466
      %v4469 = vsel %vm739, %v4423, 0
      %v4472 = vsel %vm739, %v4425, 0
      %v4475 = vsel %vm739, %v4427, 0
      %v4478 = vsel %vm739, %v4429, 0
      %v4481 = vsel %vm739, %v4431, 0
      %v4484 = vsel %vm739, %v4433, 0
      %v4487 = vsel %vm739, %v4435, 0
      %v4490 = vsel %vm739, %v4437, 0
      %v4493 = vsel %vm739, %v4439, 0
      %v4496 = vsel %vm739, %v4441, 0
      %v4499 = vsel %vm739, %v4443, 0
      %v4502 = vsel %vm739, %v4445, 0
      %v4505 = vsel %vm739, %v4447, 0
      %v4508 = vsel %vm739, %v4449, 0
      %v4511 = vsel %vm739, %v4451, 0
      %v4514 = vsel %vm739, %v4453, 0
      %v4517 = vsel %vm739, %v4455, 0
      %v4520 = vsel %vm739, %v4457, 0
      %v4523 = vsel %vm739, %v4459, 0
      %v4526 = vsel %vm739, %v4461, 0
      %v4529 = vsel %vm739, %v4463, 0
      %v4532 = vsel %vm739, %v4465, 0
      %v4535 = vsel %vm739, %v4467, 0
      %v4538 = vsel %vm809, %v4416, 0
      %4540 = vmatprep.subr.bf16.mxu0 0
      %4541 = vmatpush1.bf16.msra.mxu0 %v4538
      %4542 = vmatprep.subr.bf16.mxu0 0
      %4543 = vmatpush1.bf16.msra.mxu0 0
      %4544 = vmatprep.subr.bf16.mxu0 0
      %4545 = vmatpush1.bf16.msra.mxu0 0
      %4546 = vmatprep.subr.bf16.mxu0 0
      %4547 = vmatpush1.bf16.msra.mxu0 0
      %4548 = vmatprep.subr.bf16.mxu0 0
      %4549 = vmatpush1.bf16.msra.mxu0 0
      %4550 = vmatprep.subr.bf16.mxu0 0
      %4551 = vmatpush1.bf16.msra.mxu0 0
      %4552 = vmatprep.subr.bf16.mxu0 0
      %4553 = vmatpush1.bf16.msra.mxu0 0
      %4554 = vmatprep.subr.bf16.mxu0 0
      %4555 = vmatpush1.bf16.msra.mxu0 0
      %4556 = vmatprep.subr.bf16.mxu0 0
      %4557 = vmatpush1.bf16.msra.mxu0 0
      %4558 = vmatprep.subr.bf16.mxu0 0
      %4559 = vmatpush1.bf16.msra.mxu0 0
      %4560 = vmatprep.subr.bf16.mxu0 0
      %4561 = vmatpush1.bf16.msra.mxu0 0
      %4562 = vmatprep.subr.bf16.mxu0 0
      %4563 = vmatpush1.bf16.msra.mxu0 0
      %4564 = vmatprep.subr.bf16.mxu0 0
      %4565 = vmatpush1.bf16.msra.mxu0 0
      %4566 = vmatprep.subr.bf16.mxu0 0
      %4567 = vmatpush1.bf16.msra.mxu0 0
      %4568 = vmatprep.subr.bf16.mxu0 0
      %4569 = vmatpush1.bf16.msra.mxu0 0
      %4570 = vmatprep.subr.bf16.mxu0 0
      %4571 = vmatpush1.bf16.msra.mxu0 0
      %4572 = vmatprep.mubr.bf16.mxu0 0
      %4573 = vmatmul.mubr.bf16.gmra.mrb[0].mxu0 %v4469
      %v4574 = vpop.f32.mrb[0].mxu0
      %v4575 = vadd.f32 0.0, %v4574
      %v4576 = vpop.f32.mrb[0].mxu0
      %v4577 = vpop.f32.mrb[0].mxu0
      %v4578 = vadd.f32 0.0, %v4577
      %v4579 = vpop.f32.mrb[0].mxu0
      %4580 = vmatprep.mubr.bf16.mxu0 0
      %4581 = vmatmul.mubr.bf16.gmra.mrb[0].mxu0 %v4472
      %v4582 = vpop.f32.mrb[0].mxu0
      %v4583 = vadd.f32 0.0, %v4582
      %v4584 = vpop.f32.mrb[0].mxu0
      %v4585 = vpop.f32.mrb[0].mxu0
      %v4586 = vadd.f32 0.0, %v4585
      %v4587 = vpop.f32.mrb[0].mxu0
      %4588 = vmatprep.mubr.bf16.mxu0 0
      %4589 = vmatmul.mubr.bf16.gmra.mrb[0].mxu0 %v4475
      %v4590 = vpop.f32.mrb[0].mxu0
      %v4591 = vadd.f32 0.0, %v4590
      %v4592 = vpop.f32.mrb[0].mxu0
      %v4593 = vpop.f32.mrb[0].mxu0
      %v4594 = vadd.f32 0.0, %v4593
      %v4595 = vpop.f32.mrb[0].mxu0
      %4596 = vmatprep.mubr.bf16.mxu0 0
      %4597 = vmatmul.mubr.bf16.gmra.mrb[0].mxu0 %v4478
      %v4598 = vpop.f32.mrb[0].mxu0
      %v4599 = vadd.f32 0.0, %v4598
      %v4600 = vpop.f32.mrb[0].mxu0
      %v4601 = vpop.f32.mrb[0].mxu0
      %v4602 = vadd.f32 0.0, %v4601
      %v4603 = vpop.f32.mrb[0].mxu0
      %4604 = vmatprep.mubr.bf16.mxu0 0
      %4605 = vmatmul.mubr.bf16.gmra.mrb[0].mxu0 %v4481
      %v4606 = vpop.f32.mrb[0].mxu0
      %v4607 = vadd.f32 0.0, %v4606
      %v4608 = vpop.f32.mrb[0].mxu0
      %v4609 = vpop.f32.mrb[0].mxu0
      %v4610 = vadd.f32 0.0, %v4609
      %v4611 = vpop.f32.mrb[0].mxu0
      %4612 = vmatprep.mubr.bf16.mxu0 0
      %4613 = vmatmul.mubr.bf16.gmra.mrb[0].mxu0 %v4484
      %v4614 = vpop.f32.mrb[0].mxu0
      %v4615 = vadd.f32 0.0, %v4614
      %v4616 = vpop.f32.mrb[0].mxu0
      %v4617 = vpop.f32.mrb[0].mxu0
      %v4618 = vadd.f32 0.0, %v4617
      %v4619 = vpop.f32.mrb[0].mxu0
      %4620 = vmatprep.mubr.bf16.mxu0 0
      %4621 = vmatmul.mubr.bf16.gmra.mrb[0].mxu0 %v4487
      %v4622 = vpop.f32.mrb[0].mxu0
      %v4623 = vadd.f32 0.0, %v4622
      %v4624 = vpop.f32.mrb[0].mxu0
      %v4625 = vpop.f32.mrb[0].mxu0
      %v4626 = vadd.f32 0.0, %v4625
      %v4627 = vpop.f32.mrb[0].mxu0
      %4628 = vmatprep.mubr.bf16.mxu0 0
      %4629 = vmatmul.mubr.bf16.gmra.mrb[0].mxu0 %v4490
      %v4630 = vpop.f32.mrb[0].mxu0
      %v4631 = vadd.f32 0.0, %v4630
      %v4632 = vpop.f32.mrb[0].mxu0
      %v4633 = vpop.f32.mrb[0].mxu0
      %v4634 = vadd.f32 0.0, %v4633
      %v4635 = vpop.f32.mrb[0].mxu0
      %4636 = vmatprep.mubr.bf16.mxu0 0
      %4637 = vmatmul.mubr.bf16.gmra.mrb[0].mxu0 %v4493
      %v4638 = vpop.f32.mrb[0].mxu0
      %v4639 = vadd.f32 0.0, %v4638
      %v4640 = vpop.f32.mrb[0].mxu0
      %v4641 = vpop.f32.mrb[0].mxu0
      %v4642 = vadd.f32 0.0, %v4641
      %v4643 = vpop.f32.mrb[0].mxu0
      %4644 = vmatprep.mubr.bf16.mxu0 0
      %4645 = vmatmul.mubr.bf16.gmra.mrb[0].mxu0 %v4496
      %v4646 = vpop.f32.mrb[0].mxu0
      %v4647 = vadd.f32 0.0, %v4646
      %v4648 = vpop.f32.mrb[0].mxu0
      %v4649 = vpop.f32.mrb[0].mxu0
      %v4650 = vadd.f32 0.0, %v4649
      %v4651 = vpop.f32.mrb[0].mxu0
      %4652 = vmatprep.mubr.bf16.mxu0 0
      %4653 = vmatmul.mubr.bf16.gmra.mrb[0].mxu0 %v4499
      %v4654 = vpop.f32.mrb[0].mxu0
      %v4655 = vadd.f32 0.0, %v4654
      %v4656 = vpop.f32.mrb[0].mxu0
      %v4657 = vpop.f32.mrb[0].mxu0
      %v4658 = vadd.f32 0.0, %v4657
      %v4659 = vpop.f32.mrb[0].mxu0
      %4660 = vmatprep.mubr.bf16.mxu0 0
      %4661 = vmatmul.mubr.bf16.gmra.mrb[0].mxu0 %v4502
      %v4662 = vpop.f32.mrb[0].mxu0
      %v4663 = vadd.f32 0.0, %v4662
      %v4664 = vpop.f32.mrb[0].mxu0
      %v4665 = vpop.f32.mrb[0].mxu0
      %v4666 = vadd.f32 0.0, %v4665
      %v4667 = vpop.f32.mrb[0].mxu0
      %4668 = vmatprep.mubr.bf16.mxu0 0
      %4669 = vmatmul.mubr.bf16.gmra.mrb[0].mxu0 %v4505
      %v4670 = vpop.f32.mrb[0].mxu0
      %v4671 = vadd.f32 0.0, %v4670
      %v4672 = vpop.f32.mrb[0].mxu0
      %v4673 = vpop.f32.mrb[0].mxu0
      %v4674 = vadd.f32 0.0, %v4673
      %v4675 = vpop.f32.mrb[0].mxu0
      %4676 = vmatprep.mubr.bf16.mxu0 0
      %4677 = vmatmul.mubr.bf16.gmra.mrb[0].mxu0 %v4508
      %v4678 = vpop.f32.mrb[0].mxu0
      %v4679 = vadd.f32 0.0, %v4678
      %v4680 = vpop.f32.mrb[0].mxu0
      %v4681 = vpop.f32.mrb[0].mxu0
      %v4682 = vadd.f32 0.0, %v4681
      %v4683 = vpop.f32.mrb[0].mxu0
      %4684 = vmatprep.mubr.bf16.mxu0 0
      %4685 = vmatmul.mubr.bf16.gmra.mrb[0].mxu0 %v4511
      %v4686 = vpop.f32.mrb[0].mxu0
      %v4687 = vadd.f32 0.0, %v4686
      %v4688 = vpop.f32.mrb[0].mxu0
      %v4689 = vpop.f32.mrb[0].mxu0
      %v4690 = vadd.f32 0.0, %v4689
      %v4691 = vpop.f32.mrb[0].mxu0
      %4692 = vmatprep.mubr.bf16.mxu0 0
      %4693 = vmatmul.mubr.bf16.gmra.mrb[0].mxu0 %v4514
      %v4694 = vpop.f32.mrb[0].mxu0
      %v4695 = vadd.f32 0.0, %v4694
      %v4696 = vpop.f32.mrb[0].mxu0
      %v4697 = vpop.f32.mrb[0].mxu0
      %v4698 = vadd.f32 0.0, %v4697
      %v4699 = vpop.f32.mrb[0].mxu0
      %4700 = vmatprep.mubr.bf16.mxu0 0
      %4701 = vmatmul.mubr.bf16.gmra.mrb[0].mxu0 %v4517
      %v4702 = vpop.f32.mrb[0].mxu0
      %v4703 = vadd.f32 0.0, %v4702
      %v4704 = vpop.f32.mrb[0].mxu0
      %v4705 = vpop.f32.mrb[0].mxu0
      %v4706 = vadd.f32 0.0, %v4705
      %v4707 = vpop.f32.mrb[0].mxu0
      %4708 = vmatprep.mubr.bf16.mxu0 0
      %4709 = vmatmul.mubr.bf16.gmra.mrb[0].mxu0 %v4520
      %v4710 = vpop.f32.mrb[0].mxu0
      %v4711 = vadd.f32 0.0, %v4710
      %v4712 = vpop.f32.mrb[0].mxu0
      %v4713 = vpop.f32.mrb[0].mxu0
      %v4714 = vadd.f32 0.0, %v4713
      %v4715 = vpop.f32.mrb[0].mxu0
      %4716 = vmatprep.mubr.bf16.mxu0 0
      %4717 = vmatmul.mubr.bf16.gmra.mrb[0].mxu0 %v4523
      %v4718 = vpop.f32.mrb[0].mxu0
      %v4719 = vadd.f32 0.0, %v4718
      %v4720 = vpop.f32.mrb[0].mxu0
      %v4721 = vpop.f32.mrb[0].mxu0
      %v4722 = vadd.f32 0.0, %v4721
      %v4723 = vpop.f32.mrb[0].mxu0
      %4724 = vmatprep.mubr.bf16.mxu0 0
      %4725 = vmatmul.mubr.bf16.gmra.mrb[0].mxu0 %v4526
      %v4726 = vpop.f32.mrb[0].mxu0
      %v4727 = vadd.f32 0.0, %v4726
      %v4728 = vpop.f32.mrb[0].mxu0
      %v4729 = vpop.f32.mrb[0].mxu0
      %v4730 = vadd.f32 0.0, %v4729
      %v4731 = vpop.f32.mrb[0].mxu0
      %4732 = vmatprep.mubr.bf16.mxu0 0
      %4733 = vmatmul.mubr.bf16.gmra.mrb[0].mxu0 %v4529
      %v4734 = vpop.f32.mrb[0].mxu0
      %v4735 = vadd.f32 0.0, %v4734
      %v4736 = vpop.f32.mrb[0].mxu0
      %v4737 = vpop.f32.mrb[0].mxu0
      %v4738 = vadd.f32 0.0, %v4737
      %v4739 = vpop.f32.mrb[0].mxu0
      %4740 = vmatprep.mubr.bf16.mxu0 0
      %4741 = vmatmul.mubr.bf16.gmra.mrb[0].mxu0 %v4532
      %v4742 = vpop.f32.mrb[0].mxu0
      %v4743 = vadd.f32 0.0, %v4742
      %v4744 = vpop.f32.mrb[0].mxu0
      %v4745 = vpop.f32.mrb[0].mxu0
      %v4746 = vadd.f32 0.0, %v4745
      %v4747 = vpop.f32.mrb[0].mxu0
      %4748 = vmatprep.mubr.bf16.mxu0 0
      %4749 = vmatmul.mubr.bf16.gmra.mrb[0].mxu0 %v4535
      %v4750 = vpop.f32.mrb[0].mxu0
      %v4751 = vadd.f32 0.0, %v4750
      %v4752 = vpop.f32.mrb[0].mxu0
      %v4753 = vpop.f32.mrb[0].mxu0
      %v4754 = vadd.f32 0.0, %v4753
      %v4755 = vpop.f32.mrb[0].mxu0
      %4756 = vdwg.mxu0
      %v4757 = vadd.f32 %v4368, %v4575
      %v4758 = vadd.f32 %v4369, %v4578
      %v4759 = vadd.f32 %v4370, %v4583
      %v4760 = vadd.f32 %v4371, %v4586
      %v4761 = vadd.f32 %v4372, %v4591
      %v4762 = vadd.f32 %v4373, %v4594
      %v4763 = vadd.f32 %v4374, %v4599
      %v4764 = vadd.f32 %v4375, %v4602
      %v4765 = vadd.f32 %v4376, %v4607
      %v4766 = vadd.f32 %v4377, %v4610
      %v4767 = vadd.f32 %v4378, %v4615
      %v4768 = vadd.f32 %v4379, %v4618
      %v4769 = vadd.f32 %v4380, %v4623
      %v4770 = vadd.f32 %v4381, %v4626
      %v4771 = vadd.f32 %v4382, %v4631
      %v4772 = vadd.f32 %v4383, %v4634
      %v4773 = vadd.f32 %v4384, %v4639
      %v4774 = vadd.f32 %v4385, %v4642
      %v4775 = vadd.f32 %v4386, %v4647
      %v4776 = vadd.f32 %v4387, %v4650
      %v4777 = vadd.f32 %v4388, %v4655
      %v4778 = vadd.f32 %v4389, %v4658
      %v4779 = vadd.f32 %v4390, %v4663
      %v4780 = vadd.f32 %v4391, %v4666
      %v4781 = vadd.f32 %v4392, %v4671
      %v4782 = vadd.f32 %v4393, %v4674
      %v4783 = vadd.f32 %v4394, %v4679
      %v4784 = vadd.f32 %v4395, %v4682
      %v4785 = vadd.f32 %v4396, %v4687
      %v4786 = vadd.f32 %v4397, %v4690
      %v4787 = vadd.f32 %v4398, %v4695
      %v4788 = vadd.f32 %v4399, %v4698
      %v4789 = vadd.f32 %v4400, %v4703
      %v4790 = vadd.f32 %v4401, %v4706
      %v4791 = vadd.f32 %v4402, %v4711
      %v4792 = vadd.f32 %v4403, %v4714
      %v4793 = vadd.f32 %v4404, %v4719
      %v4794 = vadd.f32 %v4405, %v4722
      %v4795 = vadd.f32 %v4406, %v4727
      %v4796 = vadd.f32 %v4407, %v4730
      %v4797 = vadd.f32 %v4408, %v4735
      %v4798 = vadd.f32 %v4409, %v4738
      %v4799 = vadd.f32 %v4410, %v4743
      %v4800 = vadd.f32 %v4411, %v4746
      %v4801 = vadd.f32 %v4412, %v4751
      %v4802 = vadd.f32 %v4413, %v4754
      %v4803 = vld [vmem:[%s4] sm:$0x1]
      %v4805 = vlaneseq
      %v4806 = vshrl.u32 %v4805, 7
      %v4807 = vsub.s32 0, %v4806
      %v4808 = vrot.slane %v4803, %v4807
      %v4810 = vadd.f32 %v4757, %v4808
      %v4811 = vadd.f32 %v4758, %v4808
      %v4812 = vadd.f32 %v4759, %v4808
      %v4813 = vadd.f32 %v4760, %v4808
      %v4814 = vadd.f32 %v4761, %v4808
      %v4815 = vadd.f32 %v4762, %v4808
      %v4816 = vadd.f32 %v4763, %v4808
      %v4817 = vadd.f32 %v4764, %v4808
      %v4818 = vadd.f32 %v4765, %v4808
      %v4819 = vadd.f32 %v4766, %v4808
      %v4820 = vadd.f32 %v4767, %v4808
      %v4821 = vadd.f32 %v4768, %v4808
      %v4822 = vadd.f32 %v4769, %v4808
      %v4823 = vadd.f32 %v4770, %v4808
      %v4824 = vadd.f32 %v4771, %v4808
      %v4825 = vadd.f32 %v4772, %v4808
      %v4826 = vadd.f32 %v4773, %v4808
      %v4827 = vadd.f32 %v4774, %v4808
      %v4828 = vadd.f32 %v4775, %v4808
      %v4829 = vadd.f32 %v4776, %v4808
      %v4830 = vadd.f32 %v4777, %v4808
      %v4831 = vadd.f32 %v4778, %v4808
      %v4832 = vadd.f32 %v4779, %v4808
      %v4833 = vadd.f32 %v4780, %v4808
      %v4834 = vadd.f32 %v4781, %v4808
      %v4835 = vadd.f32 %v4782, %v4808
      %v4836 = vadd.f32 %v4783, %v4808
      %v4837 = vadd.f32 %v4784, %v4808
      %v4838 = vadd.f32 %v4785, %v4808
      %v4839 = vadd.f32 %v4786, %v4808
      %v4840 = vadd.f32 %v4787, %v4808
      %v4841 = vadd.f32 %v4788, %v4808
      %v4842 = vadd.f32 %v4789, %v4808
      %v4843 = vadd.f32 %v4790, %v4808
      %v4844 = vadd.f32 %v4791, %v4808
      %v4845 = vadd.f32 %v4792, %v4808
      %v4846 = vadd.f32 %v4793, %v4808
      %v4847 = vadd.f32 %v4794, %v4808
      %v4848 = vadd.f32 %v4795, %v4808
      %v4849 = vadd.f32 %v4796, %v4808
      %v4850 = vadd.f32 %v4797, %v4808
      %v4851 = vadd.f32 %v4798, %v4808
      %v4852 = vadd.f32 %v4799, %v4808
      %v4853 = vadd.f32 %v4800, %v4808
      %v4854 = vadd.f32 %v4801, %v4808
      %v4855 = vadd.f32 %v4802, %v4808
      %v4856 = vmax.f32 %v4810, 0.0
      %v4857 = vmax.f32 %v4811, 0.0
      %v4858 = vmax.f32 %v4812, 0.0
      %v4859 = vmax.f32 %v4813, 0.0
      %v4860 = vmax.f32 %v4814, 0.0
      %v4861 = vmax.f32 %v4815, 0.0
      %v4862 = vmax.f32 %v4816, 0.0
      %v4863 = vmax.f32 %v4817, 0.0
      %v4864 = vmax.f32 %v4818, 0.0
      %v4865 = vmax.f32 %v4819, 0.0
      %v4866 = vmax.f32 %v4820, 0.0
      %v4867 = vmax.f32 %v4821, 0.0
      %v4868 = vmax.f32 %v4822, 0.0
      %v4869 = vmax.f32 %v4823, 0.0
      %v4870 = vmax.f32 %v4824, 0.0
      %v4871 = vmax.f32 %v4825, 0.0
      %v4872 = vmax.f32 %v4826, 0.0
      %v4873 = vmax.f32 %v4827, 0.0
      %v4874 = vmax.f32 %v4828, 0.0
      %v4875 = vmax.f32 %v4829, 0.0
      %v4876 = vmax.f32 %v4830, 0.0
      %v4877 = vmax.f32 %v4831, 0.0
      %v4878 = vmax.f32 %v4832, 0.0
      %v4879 = vmax.f32 %v4833, 0.0
      %v4880 = vmax.f32 %v4834, 0.0
      %v4881 = vmax.f32 %v4835, 0.0
      %v4882 = vmax.f32 %v4836, 0.0
      %v4883 = vmax.f32 %v4837, 0.0
      %v4884 = vmax.f32 %v4838, 0.0
      %v4885 = vmax.f32 %v4839, 0.0
      %v4886 = vmax.f32 %v4840, 0.0
      %v4887 = vmax.f32 %v4841, 0.0
      %v4888 = vmax.f32 %v4842, 0.0
      %v4889 = vmax.f32 %v4843, 0.0
      %v4890 = vmax.f32 %v4844, 0.0
      %v4891 = vmax.f32 %v4845, 0.0
      %v4892 = vmax.f32 %v4846, 0.0
      %v4893 = vmax.f32 %v4847, 0.0
      %v4894 = vmax.f32 %v4848, 0.0
      %v4895 = vmax.f32 %v4849, 0.0
      %v4896 = vmax.f32 %v4850, 0.0
      %v4897 = vmax.f32 %v4851, 0.0
      %v4898 = vmax.f32 %v4852, 0.0
      %v4899 = vmax.f32 %v4853, 0.0
      %v4900 = vmax.f32 %v4854, 0.0
      %v4901 = vmax.f32 %v4855, 0.0
      %v4902 = vld [vmem:[%s2] sm:$0xff]
      %v4903 = vld [vmem:[%s2 + $0x8] sm:$0xff]
      %v4904 = vld [vmem:[%s2 + $0x10] sm:$0xff]
      %v4905 = vld [vmem:[%s2 + $0x18] sm:$0xff]
      %v4906 = vld [vmem:[%s2 + $0x20] sm:$0xff]
      %v4907 = vld [vmem:[%s2 + $0x28] sm:$0xff]
      %v4908 = vld [vmem:[%s2 + $0x30] sm:$0xff]
      %v4909 = vld [vmem:[%s2 + $0x38] sm:$0xff]
      %v4910 = vld [vmem:[%s2 + $0x40] sm:$0xff]
      %v4911 = vld [vmem:[%s2 + $0x48] sm:$0xff]
      %v4912 = vld [vmem:[%s2 + $0x50] sm:$0xff]
      %v4913 = vld [vmem:[%s2 + $0x58] sm:$0xff]
      %v4914 = vld [vmem:[%s2 + $0x60] sm:$0xff]
      %v4915 = vld [vmem:[%s2 + $0x68] sm:$0xff]
      %v4916 = vld [vmem:[%s2 + $0x70] sm:$0xff]
      %v4917 = vld [vmem:[%s2 + $0x78] sm:$0xff]
      %v4918 = vld [vmem:[%s2 + $0x80] sm:$0xff]
      %v4919 = vld [vmem:[%s2 + $0x88] sm:$0xff]
      %v4920 = vld [vmem:[%s2 + $0x90] sm:$0xff]
      %v4921 = vld [vmem:[%s2 + $0x98] sm:$0xff]
      %v4922 = vld [vmem:[%s2 + $0xa0] sm:$0xff]
      %v4923 = vld [vmem:[%s2 + $0xa8] sm:$0xff]
      %v4924 = vld [vmem:[%s2 + $0xb0] sm:$0xff]
      %v4925 = vld [vmem:[%s2 + $0xb8] sm:$0xff]
      %v4926 = vld [vmem:[%s2 + $0xc0] sm:$0xff]
      %v4927 = vld [vmem:[%s2 + $0xc8] sm:$0xff]
      %v4928 = vld [vmem:[%s2 + $0xd0] sm:$0xff]
      %v4929 = vld [vmem:[%s2 + $0xd8] sm:$0xff]
      %v4930 = vld [vmem:[%s2 + $0xe0] sm:$0xff]
      %v4931 = vld [vmem:[%s2 + $0xe8] sm:$0xff]
      %v4932 = vld [vmem:[%s2 + $0xf0] sm:$0xff]
      %v4933 = vld [vmem:[%s2 + $0xf8] sm:$0xff]
      %v4934 = vld [vmem:[%s2 + $0x100] sm:$0xff]
      %v4935 = vld [vmem:[%s2 + $0x108] sm:$0xff]
      %v4936 = vld [vmem:[%s2 + $0x110] sm:$0xff]
      %v4937 = vld [vmem:[%s2 + $0x118] sm:$0xff]
      %v4938 = vld [vmem:[%s2 + $0x120] sm:$0xff]
      %v4939 = vld [vmem:[%s2 + $0x128] sm:$0xff]
      %v4940 = vld [vmem:[%s2 + $0x130] sm:$0xff]
      %v4941 = vld [vmem:[%s2 + $0x138] sm:$0xff]
      %v4942 = vld [vmem:[%s2 + $0x140] sm:$0xff]
      %v4943 = vld [vmem:[%s2 + $0x148] sm:$0xff]
      %v4944 = vld [vmem:[%s2 + $0x150] sm:$0xff]
      %v4945 = vld [vmem:[%s2 + $0x158] sm:$0xff]
      %v4946 = vld [vmem:[%s2 + $0x160] sm:$0xff]
      %v4947 = vld [vmem:[%s2 + $0x168] sm:$0xff]
      %4949 = vset.pattern.permute.xlu0 0
      %4950 = vperm.xlu0 %4949, %v4902
      %v4951 = vpop.permute.xlu0 %4950
      %4954 = vset.pattern.permute.xlu0 0
      %4955 = vperm.xlu0 %4954, %v4903
      %v4956 = vpop.permute.xlu0 %4955
      %4959 = vset.pattern.permute.xlu0 0
      %4960 = vperm.xlu0 %4959, %v4904
      %v4961 = vpop.permute.xlu0 %4960
      %4964 = vset.pattern.permute.xlu0 0
      %4965 = vperm.xlu0 %4964, %v4905
      %v4966 = vpop.permute.xlu0 %4965
      %4969 = vset.pattern.permute.xlu0 0
      %4970 = vperm.xlu0 %4969, %v4906
      %v4971 = vpop.permute.xlu0 %4970
      %4974 = vset.pattern.permute.xlu0 0
      %4975 = vperm.xlu0 %4974, %v4907
      %v4976 = vpop.permute.xlu0 %4975
      %4979 = vset.pattern.permute.xlu0 0
      %4980 = vperm.xlu0 %4979, %v4908
      %v4981 = vpop.permute.xlu0 %4980
      %4984 = vset.pattern.permute.xlu0 0
      %4985 = vperm.xlu0 %4984, %v4909
      %v4986 = vpop.permute.xlu0 %4985
      %4989 = vset.pattern.permute.xlu0 0
      %4990 = vperm.xlu0 %4989, %v4910
      %v4991 = vpop.permute.xlu0 %4990
      %4994 = vset.pattern.permute.xlu0 0
      %4995 = vperm.xlu0 %4994, %v4911
      %v4996 = vpop.permute.xlu0 %4995
      %4999 = vset.pattern.permute.xlu0 0
      %5000 = vperm.xlu0 %4999, %v4912
      %v5001 = vpop.permute.xlu0 %5000
      %5004 = vset.pattern.permute.xlu0 0
      %5005 = vperm.xlu0 %5004, %v4913
      %v5006 = vpop.permute.xlu0 %5005
      %5009 = vset.pattern.permute.xlu0 0
      %5010 = vperm.xlu0 %5009, %v4914
      %v5011 = vpop.permute.xlu0 %5010
      %5014 = vset.pattern.permute.xlu0 0
      %5015 = vperm.xlu0 %5014, %v4915
      %v5016 = vpop.permute.xlu0 %5015
      %5019 = vset.pattern.permute.xlu0 0
      %5020 = vperm.xlu0 %5019, %v4916
      %v5021 = vpop.permute.xlu0 %5020
      %5024 = vset.pattern.permute.xlu0 0
      %5025 = vperm.xlu0 %5024, %v4917
      %v5026 = vpop.permute.xlu0 %5025
      %5029 = vset.pattern.permute.xlu0 0
      %5030 = vperm.xlu0 %5029, %v4918
      %v5031 = vpop.permute.xlu0 %5030
      %5034 = vset.pattern.permute.xlu0 0
      %5035 = vperm.xlu0 %5034, %v4919
      %v5036 = vpop.permute.xlu0 %5035
      %5039 = vset.pattern.permute.xlu0 0
      %5040 = vperm.xlu0 %5039, %v4920
      %v5041 = vpop.permute.xlu0 %5040
      %5044 = vset.pattern.permute.xlu0 0
      %5045 = vperm.xlu0 %5044, %v4921
      %v5046 = vpop.permute.xlu0 %5045
      %5049 = vset.pattern.permute.xlu0 0
      %5050 = vperm.xlu0 %5049, %v4922
      %v5051 = vpop.permute.xlu0 %5050
      %5054 = vset.pattern.permute.xlu0 0
      %5055 = vperm.xlu0 %5054, %v4923
      %v5056 = vpop.permute.xlu0 %5055
      %5059 = vset.pattern.permute.xlu0 0
      %5060 = vperm.xlu0 %5059, %v4924
      %v5061 = vpop.permute.xlu0 %5060
      %5064 = vset.pattern.permute.xlu0 0
      %5065 = vperm.xlu0 %5064, %v4925
      %v5066 = vpop.permute.xlu0 %5065
      %5069 = vset.pattern.permute.xlu0 0
      %5070 = vperm.xlu0 %5069, %v4926
      %v5071 = vpop.permute.xlu0 %5070
      %5074 = vset.pattern.permute.xlu0 0
      %5075 = vperm.xlu0 %5074, %v4927
      %v5076 = vpop.permute.xlu0 %5075
      %5079 = vset.pattern.permute.xlu0 0
      %5080 = vperm.xlu0 %5079, %v4928
      %v5081 = vpop.permute.xlu0 %5080
      %5084 = vset.pattern.permute.xlu0 0
      %5085 = vperm.xlu0 %5084, %v4929
      %v5086 = vpop.permute.xlu0 %5085
      %5089 = vset.pattern.permute.xlu0 0
      %5090 = vperm.xlu0 %5089, %v4930
      %v5091 = vpop.permute.xlu0 %5090
      %5094 = vset.pattern.permute.xlu0 0
      %5095 = vperm.xlu0 %5094, %v4931
      %v5096 = vpop.permute.xlu0 %5095
      %5099 = vset.pattern.permute.xlu0 0
      %5100 = vperm.xlu0 %5099, %v4932
      %v5101 = vpop.permute.xlu0 %5100
      %5104 = vset.pattern.permute.xlu0 0
      %5105 = vperm.xlu0 %5104, %v4933
      %v5106 = vpop.permute.xlu0 %5105
      %5109 = vset.pattern.permute.xlu0 0
      %5110 = vperm.xlu0 %5109, %v4934
      %v5111 = vpop.permute.xlu0 %5110
      %5114 = vset.pattern.permute.xlu0 0
      %5115 = vperm.xlu0 %5114, %v4935
      %v5116 = vpop.permute.xlu0 %5115
      %5119 = vset.pattern.permute.xlu0 0
      %5120 = vperm.xlu0 %5119, %v4936
      %v5121 = vpop.permute.xlu0 %5120
      %5124 = vset.pattern.permute.xlu0 0
      %5125 = vperm.xlu0 %5124, %v4937
      %v5126 = vpop.permute.xlu0 %5125
      %5129 = vset.pattern.permute.xlu0 0
      %5130 = vperm.xlu0 %5129, %v4938
      %v5131 = vpop.permute.xlu0 %5130
      %5134 = vset.pattern.permute.xlu0 0
      %5135 = vperm.xlu0 %5134, %v4939
      %v5136 = vpop.permute.xlu0 %5135
      %5139 = vset.pattern.permute.xlu0 0
      %5140 = vperm.xlu0 %5139, %v4940
      %v5141 = vpop.permute.xlu0 %5140
      %5144 = vset.pattern.permute.xlu0 0
      %5145 = vperm.xlu0 %5144, %v4941
      %v5146 = vpop.permute.xlu0 %5145
      %5149 = vset.pattern.permute.xlu0 0
      %5150 = vperm.xlu0 %5149, %v4942
      %v5151 = vpop.permute.xlu0 %5150
      %5154 = vset.pattern.permute.xlu0 0
      %5155 = vperm.xlu0 %5154, %v4943
      %v5156 = vpop.permute.xlu0 %5155
      %5159 = vset.pattern.permute.xlu0 0
      %5160 = vperm.xlu0 %5159, %v4944
      %v5161 = vpop.permute.xlu0 %5160
      %5164 = vset.pattern.permute.xlu0 0
      %5165 = vperm.xlu0 %5164, %v4945
      %v5166 = vpop.permute.xlu0 %5165
      %5169 = vset.pattern.permute.xlu0 0
      %5170 = vperm.xlu0 %5169, %v4946
      %v5171 = vpop.permute.xlu0 %5170
      %5174 = vset.pattern.permute.xlu0 0
      %5175 = vperm.xlu0 %5174, %v4947
      %v5176 = vpop.permute.xlu0 %5175
      %v5178 = vmul.f32 %v4856, %v4951
      %v5179 = vmul.f32 %v4857, %v4956
      %v5180 = vmul.f32 %v4858, %v4961
      %v5181 = vmul.f32 %v4859, %v4966
      %v5182 = vmul.f32 %v4860, %v4971
      %v5183 = vmul.f32 %v4861, %v4976
      %v5184 = vmul.f32 %v4862, %v4981
      %v5185 = vmul.f32 %v4863, %v4986
      %v5186 = vmul.f32 %v4864, %v4991
      %v5187 = vmul.f32 %v4865, %v4996
      %v5188 = vmul.f32 %v4866, %v5001
      %v5189 = vmul.f32 %v4867, %v5006
      %v5190 = vmul.f32 %v4868, %v5011
      %v5191 = vmul.f32 %v4869, %v5016
      %v5192 = vmul.f32 %v4870, %v5021
      %v5193 = vmul.f32 %v4871, %v5026
      %v5194 = vmul.f32 %v4872, %v5031
      %v5195 = vmul.f32 %v4873, %v5036
      %v5196 = vmul.f32 %v4874, %v5041
      %v5197 = vmul.f32 %v4875, %v5046
      %v5198 = vmul.f32 %v4876, %v5051
      %v5199 = vmul.f32 %v4877, %v5056
      %v5200 = vmul.f32 %v4878, %v5061
      %v5201 = vmul.f32 %v4879, %v5066
      %v5202 = vmul.f32 %v4880, %v5071
      %v5203 = vmul.f32 %v4881, %v5076
      %v5204 = vmul.f32 %v4882, %v5081
      %v5205 = vmul.f32 %v4883, %v5086
      %v5206 = vmul.f32 %v4884, %v5091
      %v5207 = vmul.f32 %v4885, %v5096
      %v5208 = vmul.f32 %v4886, %v5101
      %v5209 = vmul.f32 %v4887, %v5106
      %v5210 = vmul.f32 %v4888, %v5111
      %v5211 = vmul.f32 %v4889, %v5116
      %v5212 = vmul.f32 %v4890, %v5121
      %v5213 = vmul.f32 %v4891, %v5126
      %v5214 = vmul.f32 %v4892, %v5131
      %v5215 = vmul.f32 %v4893, %v5136
      %v5216 = vmul.f32 %v4894, %v5141
      %v5217 = vmul.f32 %v4895, %v5146
      %v5218 = vmul.f32 %v4896, %v5151
      %v5219 = vmul.f32 %v4897, %v5156
      %v5220 = vmul.f32 %v4898, %v5161
      %v5221 = vmul.f32 %v4899, %v5166
      %v5222 = vmul.f32 %v4900, %v5171
      %v5223 = vmul.f32 %v4901, %v5176
      %v5224 = vpack.c.bf16 %v5179, %v5178
      %v5225 = vpack.c.bf16 %v5181, %v5180
      %v5226 = vpack.c.bf16 %v5183, %v5182
      %v5227 = vpack.c.bf16 %v5185, %v5184
      %v5228 = vpack.c.bf16 %v5187, %v5186
      %v5229 = vpack.c.bf16 %v5189, %v5188
      %v5230 = vpack.c.bf16 %v5191, %v5190
      %v5231 = vpack.c.bf16 %v5193, %v5192
      %v5232 = vpack.c.bf16 %v5195, %v5194
      %v5233 = vpack.c.bf16 %v5197, %v5196
      %v5234 = vpack.c.bf16 %v5199, %v5198
      %v5235 = vpack.c.bf16 %v5201, %v5200
      %v5236 = vpack.c.bf16 %v5203, %v5202
      %v5237 = vpack.c.bf16 %v5205, %v5204
      %v5238 = vpack.c.bf16 %v5207, %v5206
      %v5239 = vpack.c.bf16 %v5209, %v5208
      %v5240 = vpack.c.bf16 %v5211, %v5210
      %v5241 = vpack.c.bf16 %v5213, %v5212
      %v5242 = vpack.c.bf16 %v5215, %v5214
      %v5243 = vpack.c.bf16 %v5217, %v5216
      %v5244 = vpack.c.bf16 %v5219, %v5218
      %v5245 = vpack.c.bf16 %v5221, %v5220
      %v5246 = vpack.c.bf16 %v5223, %v5222
      %5247 = vst [vmem:[#allocation2] sm:$0xff] %v5224
      %5248 = vst [vmem:[#allocation2 + $0x8] sm:$0xff] %v5225
      %5249 = vst [vmem:[#allocation2 + $0x10] sm:$0xff] %v5226
      %5250 = vst [vmem:[#allocation2 + $0x18] sm:$0xff] %v5227
      %5251 = vst [vmem:[#allocation2 + $0x20] sm:$0xff] %v5228
      %5252 = vst [vmem:[#allocation2 + $0x28] sm:$0xff] %v5229
      %5253 = vst [vmem:[#allocation2 + $0x30] sm:$0xff] %v5230
      %5254 = vst [vmem:[#allocation2 + $0x38] sm:$0xff] %v5231
      %5255 = vst [vmem:[#allocation2 + $0x40] sm:$0xff] %v5232
      %5256 = vst [vmem:[#allocation2 + $0x48] sm:$0xff] %v5233
      %5257 = vst [vmem:[#allocation2 + $0x50] sm:$0xff] %v5234
      %5258 = vst [vmem:[#allocation2 + $0x58] sm:$0xff] %v5235
      %5259 = vst [vmem:[#allocation2 + $0x60] sm:$0xff] %v5236
      %5260 = vst [vmem:[#allocation2 + $0x68] sm:$0xff] %v5237
      %5261 = vst [vmem:[#allocation2 + $0x70] sm:$0xff] %v5238
      %5262 = vst [vmem:[#allocation2 + $0x78] sm:$0xff] %v5239
      %5263 = vst [vmem:[#allocation2 + $0x80] sm:$0xff] %v5240
      %5264 = vst [vmem:[#allocation2 + $0x88] sm:$0xff] %v5241
      %5265 = vst [vmem:[#allocation2 + $0x90] sm:$0xff] %v5242
      %5266 = vst [vmem:[#allocation2 + $0x98] sm:$0xff] %v5243
      %5267 = vst [vmem:[#allocation2 + $0xa0] sm:$0xff] %v5244
      %5268 = vst [vmem:[#allocation2 + $0xa8] sm:$0xff] %v5245
      %5269 = vst [vmem:[#allocation2 + $0xb0] sm:$0xff] %v5246
      %v5270 = vld [vmem:[#allocation2] sm:$0xff]
      %v5271 = vld [vmem:[#allocation2 + $0x8] sm:$0xff]
      %v5272 = vld [vmem:[#allocation2 + $0x10] sm:$0xff]
      %v5273 = vld [vmem:[#allocation2 + $0x18] sm:$0xff]
      %v5274 = vld [vmem:[#allocation2 + $0x20] sm:$0xff]
      %v5275 = vld [vmem:[#allocation2 + $0x28] sm:$0xff]
      %v5276 = vld [vmem:[#allocation2 + $0x30] sm:$0xff]
      %v5277 = vld [vmem:[#allocation2 + $0x38] sm:$0xff]
      %v5278 = vld [vmem:[#allocation2 + $0x40] sm:$0xff]
      %v5279 = vld [vmem:[#allocation2 + $0x48] sm:$0xff]
      %v5280 = vld [vmem:[#allocation2 + $0x50] sm:$0xff]
      %v5281 = vld [vmem:[#allocation2 + $0x58] sm:$0xff]
      %v5282 = vld [vmem:[#allocation2 + $0x60] sm:$0xff]
      %v5283 = vld [vmem:[#allocation2 + $0x68] sm:$0xff]
      %v5284 = vld [vmem:[#allocation2 + $0x70] sm:$0xff]
      %v5285 = vld [vmem:[#allocation2 + $0x78] sm:$0xff]
      %v5286 = vld [vmem:[#allocation2 + $0x80] sm:$0xff]
      %v5287 = vld [vmem:[#allocation2 + $0x88] sm:$0xff]
      %v5288 = vld [vmem:[#allocation2 + $0x90] sm:$0xff]
      %v5289 = vld [vmem:[#allocation2 + $0x98] sm:$0xff]
      %v5290 = vld [vmem:[#allocation2 + $0xa0] sm:$0xf]
      %v5291 = vld [vmem:[%s5] sm:$0xf]
      %v5292 = vld [vmem:[%s5 + $0x4] sm:$0xf]
      %v5293 = vld [vmem:[%s5 + $0x8] sm:$0xf]
      %v5294 = vld [vmem:[%s5 + $0xc] sm:$0xf]
      %v5295 = vld [vmem:[%s5 + $0x10] sm:$0xf]
      %v5296 = vld [vmem:[%s5 + $0x14] sm:$0xf]
      %v5297 = vld [vmem:[%s5 + $0x18] sm:$0xf]
      %v5298 = vld [vmem:[%s5 + $0x1c] sm:$0xf]
      %v5299 = vld [vmem:[%s5 + $0x20] sm:$0xf]
      %v5300 = vld [vmem:[%s5 + $0x24] sm:$0xf]
      %v5301 = vld [vmem:[%s5 + $0x28] sm:$0xf]
      %v5302 = vld [vmem:[%s5 + $0x2c] sm:$0xf]
      %v5303 = vld [vmem:[%s5 + $0x30] sm:$0xf]
      %v5304 = vld [vmem:[%s5 + $0x34] sm:$0xf]
      %v5305 = vld [vmem:[%s5 + $0x38] sm:$0xf]
      %v5306 = vld [vmem:[%s5 + $0x3c] sm:$0xf]
      %v5307 = vld [vmem:[#allocation2 + $0xa0] sm:$0x1f]
      %s5308 = scalar_lea.vmem %s5, 64
      %v5309 = vld [vmem:[%s5308] sm:$0xf]
      %v5310 = vld [vmem:[%s5308 + $0x4] sm:$0xf]
      %v5311 = vld [vmem:[%s5308 + $0x8] sm:$0xf]
      %v5312 = vld [vmem:[%s5308 + $0xc] sm:$0xf]
      %v5313 = vld [vmem:[%s5308 + $0x10] sm:$0xf]
      %v5314 = vld [vmem:[%s5308 + $0x14] sm:$0xf]
      %v5315 = vld [vmem:[%s5308 + $0x18] sm:$0xf]
      %v5316 = vld [vmem:[%s5308 + $0x1c] sm:$0xf]
      %v5317 = vld [vmem:[%s5308 + $0x20] sm:$0xf]
      %v5318 = vld [vmem:[%s5308 + $0x24] sm:$0xf]
      %v5319 = vld [vmem:[%s5308 + $0x28] sm:$0xf]
      %v5320 = vld [vmem:[%s5308 + $0x2c] sm:$0xf]
      %v5321 = vld [vmem:[%s5308 + $0x30] sm:$0xf]
      %v5322 = vld [vmem:[%s5308 + $0x34] sm:$0xf]
      %v5323 = vld [vmem:[%s5308 + $0x38] sm:$0xf]
      %v5324 = vld [vmem:[%s5308 + $0x3c] sm:$0xf]
      %v5326 = vshrl.u32 %v5270, 16
      %v5328 = vshll.u32 %v5270, 16
      %v5330 = vrot.slane %v5328, 1
      %v5331 = vor.u32 %v5326, %v5330
      %v5333 = vshll.u32 %v5271, 16
      %v5335 = vrot.slane %v5333, 1
      %v5336 = vsel %vm2395, %v5331, %v5335
      %v5337 = vshrl.u32 %v5271, 16
      %v5339 = vor.u32 %v5337, %v5335
      %v5341 = vshll.u32 %v5272, 16
      %v5343 = vrot.slane %v5341, 1
      %v5344 = vsel %vm2395, %v5339, %v5343
      %v5345 = vshrl.u32 %v5272, 16
      %v5347 = vor.u32 %v5345, %v5343
      %v5349 = vshll.u32 %v5273, 16
      %v5351 = vrot.slane %v5349, 1
      %v5352 = vsel %vm2395, %v5347, %v5351
      %v5353 = vshrl.u32 %v5273, 16
      %v5355 = vor.u32 %v5353, %v5351
      %v5357 = vshll.u32 %v5274, 16
      %v5359 = vrot.slane %v5357, 1
      %v5360 = vsel %vm2395, %v5355, %v5359
      %v5361 = vshrl.u32 %v5274, 16
      %v5363 = vor.u32 %v5361, %v5359
      %v5365 = vshll.u32 %v5275, 16
      %v5367 = vrot.slane %v5365, 1
      %v5368 = vsel %vm2395, %v5363, %v5367
      %v5369 = vshrl.u32 %v5275, 16
      %v5371 = vor.u32 %v5369, %v5367
      %v5373 = vshll.u32 %v5276, 16
      %v5375 = vrot.slane %v5373, 1
      %v5376 = vsel %vm2395, %v5371, %v5375
      %v5377 = vshrl.u32 %v5276, 16
      %v5379 = vor.u32 %v5377, %v5375
      %v5381 = vshll.u32 %v5277, 16
      %v5383 = vrot.slane %v5381, 1
      %v5384 = vsel %vm2395, %v5379, %v5383
      %v5385 = vshrl.u32 %v5277, 16
      %v5387 = vor.u32 %v5385, %v5383
      %v5389 = vshll.u32 %v5278, 16
      %v5391 = vrot.slane %v5389, 1
      %v5392 = vsel %vm2395, %v5387, %v5391
      %v5393 = vshrl.u32 %v5278, 16
      %v5395 = vor.u32 %v5393, %v5391
      %v5397 = vshll.u32 %v5279, 16
      %v5399 = vrot.slane %v5397, 1
      %v5400 = vsel %vm2395, %v5395, %v5399
      %v5401 = vshrl.u32 %v5279, 16
      %v5403 = vor.u32 %v5401, %v5399
      %v5405 = vshll.u32 %v5280, 16
      %v5407 = vrot.slane %v5405, 1
      %v5408 = vsel %vm2395, %v5403, %v5407
      %v5409 = vshrl.u32 %v5280, 16
      %v5411 = vor.u32 %v5409, %v5407
      %v5413 = vshll.u32 %v5281, 16
      %v5415 = vrot.slane %v5413, 1
      %v5416 = vsel %vm2395, %v5411, %v5415
      %v5417 = vshrl.u32 %v5281, 16
      %v5419 = vor.u32 %v5417, %v5415
      %v5421 = vshll.u32 %v5282, 16
      %v5423 = vrot.slane %v5421, 1
      %v5424 = vsel %vm2395, %v5419, %v5423
      %v5425 = vshrl.u32 %v5282, 16
      %v5427 = vor.u32 %v5425, %v5423
      %v5429 = vshll.u32 %v5283, 16
      %v5431 = vrot.slane %v5429, 1
      %v5432 = vsel %vm2395, %v5427, %v5431
      %v5433 = vshrl.u32 %v5283, 16
      %v5435 = vor.u32 %v5433, %v5431
      %v5437 = vshll.u32 %v5284, 16
      %v5439 = vrot.slane %v5437, 1
      %v5440 = vsel %vm2395, %v5435, %v5439
      %v5441 = vshrl.u32 %v5284, 16
      %v5443 = vor.u32 %v5441, %v5439
      %v5445 = vshll.u32 %v5285, 16
      %v5447 = vrot.slane %v5445, 1
      %v5448 = vsel %vm2395, %v5443, %v5447
      %v5449 = vshrl.u32 %v5285, 16
      %v5451 = vor.u32 %v5449, %v5447
      %v5453 = vshll.u32 %v5286, 16
      %v5455 = vrot.slane %v5453, 1
      %v5456 = vsel %vm2395, %v5451, %v5455
      %v5457 = vshrl.u32 %v5286, 16
      %v5459 = vor.u32 %v5457, %v5455
      %v5461 = vshll.u32 %v5287, 16
      %v5463 = vrot.slane %v5461, 1
      %v5464 = vsel %vm2395, %v5459, %v5463
      %v5465 = vshrl.u32 %v5287, 16
      %v5467 = vor.u32 %v5465, %v5463
      %v5469 = vshll.u32 %v5288, 16
      %v5471 = vrot.slane %v5469, 1
      %v5472 = vsel %vm2395, %v5467, %v5471
      %v5473 = vshrl.u32 %v5288, 16
      %v5475 = vor.u32 %v5473, %v5471
      %v5477 = vshll.u32 %v5289, 16
      %v5479 = vrot.slane %v5477, 1
      %v5480 = vsel %vm2395, %v5475, %v5479
      %v5481 = vshrl.u32 %v5289, 16
      %v5483 = vor.u32 %v5481, %v5479
      %v5485 = vshll.u32 %v5307, 16
      %v5487 = vrot.slane %v5485, 1
      %v5488 = vsel %vm2395, %v5483, %v5487
      %v5489 = vshrl.u32 %v5307, 16
      %v5491 = vor.u32 %v5489, %v5487
      %v5529 = vunpack.c.l.b16 %v5309
      %v5530 = vunpack.c.l.b16 %v5310
      %v5531 = vunpack.c.l.b16 %v5311
      %v5532 = vunpack.c.l.b16 %v5312
      %v5533 = vunpack.c.l.b16 %v5313
      %v5534 = vunpack.c.l.b16 %v5314
      %v5535 = vunpack.c.l.b16 %v5315
      %v5536 = vunpack.c.l.b16 %v5316
      %v5537 = vunpack.c.l.b16 %v5317
      %v5538 = vunpack.c.l.b16 %v5318
      %v5539 = vunpack.c.l.b16 %v5319
      %v5540 = vunpack.c.l.b16 %v5320
      %v5541 = vunpack.c.l.b16 %v5321
      %v5542 = vunpack.c.l.b16 %v5322
      %v5543 = vunpack.c.l.b16 %v5323
      %v5544 = vunpack.c.l.b16 %v5324
      %v5545 = vpack.c.b16 %v5530, %v5529
      %v5546 = vpack.c.b16 %v5532, %v5531
      %v5547 = vpack.c.b16 %v5534, %v5533
      %v5548 = vpack.c.b16 %v5536, %v5535
      %v5549 = vpack.c.b16 %v5538, %v5537
      %v5550 = vpack.c.b16 %v5540, %v5539
      %v5551 = vpack.c.b16 %v5542, %v5541
      %v5552 = vpack.c.b16 %v5544, %v5543
      %5561 = vmatprep.subr.bf16.mxu0 0
      %5562 = vmatpush1.bf16.msra.mxu0 %v5545
      %5563 = vmatprep.subr.bf16.mxu0 0
      %5564 = vmatpush1.bf16.msra.mxu0 %v5546
      %5565 = vmatprep.subr.bf16.mxu0 0
      %5566 = vmatpush1.bf16.msra.mxu0 %v5547
      %5567 = vmatprep.subr.bf16.mxu0 0
      %5568 = vmatpush1.bf16.msra.mxu0 %v5548
      %5569 = vmatprep.subr.bf16.mxu0 0
      %5570 = vmatpush1.bf16.msra.mxu0 %v5549
      %5571 = vmatprep.subr.bf16.mxu0 0
      %5572 = vmatpush1.bf16.msra.mxu0 %v5550
      %5573 = vmatprep.subr.bf16.mxu0 0
      %5574 = vmatpush1.bf16.msra.mxu0 %v5551
      %5575 = vmatprep.subr.bf16.mxu0 0
      %5576 = vmatpush1.bf16.msra.mxu0 %v5552
      %5577 = vmatprep.subr.bf16.mxu0 0
      %5578 = vmatpush1.bf16.msra.mxu0 0
      %5579 = vmatprep.subr.bf16.mxu0 0
      %5580 = vmatpush1.bf16.msra.mxu0 0
      %5581 = vmatprep.subr.bf16.mxu0 0
      %5582 = vmatpush1.bf16.msra.mxu0 0
      %5583 = vmatprep.subr.bf16.mxu0 0
      %5584 = vmatpush1.bf16.msra.mxu0 0
      %5585 = vmatprep.subr.bf16.mxu0 0
      %5586 = vmatpush1.bf16.msra.mxu0 0
      %5587 = vmatprep.subr.bf16.mxu0 0
      %5588 = vmatpush1.bf16.msra.mxu0 0
      %5589 = vmatprep.subr.bf16.mxu0 0
      %5590 = vmatpush1.bf16.msra.mxu0 0
      %5591 = vmatprep.subr.bf16.mxu0 0
      %5592 = vmatpush1.bf16.msra.mxu0 0
      %5593 = vmatprep.mubr.bf16.mxu0 0
      %5594 = vmatmul.mubr.bf16.gmra.mrb[0].mxu0 %v5336
      %v5595 = vpop.f32.mrb[0].mxu0
      %v5596 = vadd.f32 0.0, %v5595
      %v5597 = vpop.f32.mrb[0].mxu0
      %v5598 = vpop.f32.mrb[0].mxu0
      %v5599 = vadd.f32 0.0, %v5598
      %v5600 = vpop.f32.mrb[0].mxu0
      %5601 = vmatprep.mubr.bf16.mxu0 0
      %5602 = vmatmul.mubr.bf16.gmra.mrb[0].mxu0 %v5344
      %v5603 = vpop.f32.mrb[0].mxu0
      %v5604 = vadd.f32 0.0, %v5603
      %v5605 = vpop.f32.mrb[0].mxu0
      %v5606 = vpop.f32.mrb[0].mxu0
      %v5607 = vadd.f32 0.0, %v5606
      %v5608 = vpop.f32.mrb[0].mxu0
      %5609 = vmatprep.mubr.bf16.mxu0 0
      %5610 = vmatmul.mubr.bf16.gmra.mrb[0].mxu0 %v5352
      %v5611 = vpop.f32.mrb[0].mxu0
      %v5612 = vadd.f32 0.0, %v5611
      %v5613 = vpop.f32.mrb[0].mxu0
      %v5614 = vpop.f32.mrb[0].mxu0
      %v5615 = vadd.f32 0.0, %v5614
      %v5616 = vpop.f32.mrb[0].mxu0
      %5617 = vmatprep.mubr.bf16.mxu0 0
      %5618 = vmatmul.mubr.bf16.gmra.mrb[0].mxu0 %v5360
      %v5619 = vpop.f32.mrb[0].mxu0
      %v5620 = vadd.f32 0.0, %v5619
      %v5621 = vpop.f32.mrb[0].mxu0
      %v5622 = vpop.f32.mrb[0].mxu0
      %v5623 = vadd.f32 0.0, %v5622
      %v5624 = vpop.f32.mrb[0].mxu0
      %5625 = vmatprep.mubr.bf16.mxu0 0
      %5626 = vmatmul.mubr.bf16.gmra.mrb[0].mxu0 %v5368
      %v5627 = vpop.f32.mrb[0].mxu0
      %v5628 = vadd.f32 0.0, %v5627
      %v5629 = vpop.f32.mrb[0].mxu0
      %v5630 = vpop.f32.mrb[0].mxu0
      %v5631 = vadd.f32 0.0, %v5630
      %v5632 = vpop.f32.mrb[0].mxu0
      %5633 = vmatprep.mubr.bf16.mxu0 0
      %5634 = vmatmul.mubr.bf16.gmra.mrb[0].mxu0 %v5376
      %v5635 = vpop.f32.mrb[0].mxu0
      %v5636 = vadd.f32 0.0, %v5635
      %v5637 = vpop.f32.mrb[0].mxu0
      %v5638 = vpop.f32.mrb[0].mxu0
      %v5639 = vadd.f32 0.0, %v5638
      %v5640 = vpop.f32.mrb[0].mxu0
      %5641 = vmatprep.mubr.bf16.mxu0 0
      %5642 = vmatmul.mubr.bf16.gmra.mrb[0].mxu0 %v5384
      %v5643 = vpop.f32.mrb[0].mxu0
      %v5644 = vadd.f32 0.0, %v5643
      %v5645 = vpop.f32.mrb[0].mxu0
      %v5646 = vpop.f32.mrb[0].mxu0
      %v5647 = vadd.f32 0.0, %v5646
      %v5648 = vpop.f32.mrb[0].mxu0
      %5649 = vmatprep.mubr.bf16.mxu0 0
      %5650 = vmatmul.mubr.bf16.gmra.mrb[0].mxu0 %v5392
      %v5651 = vpop.f32.mrb[0].mxu0
      %v5652 = vadd.f32 0.0, %v5651
      %v5653 = vpop.f32.mrb[0].mxu0
      %v5654 = vpop.f32.mrb[0].mxu0
      %v5655 = vadd.f32 0.0, %v5654
      %v5656 = vpop.f32.mrb[0].mxu0
      %5657 = vmatprep.mubr.bf16.mxu0 0
      %5658 = vmatmul.mubr.bf16.gmra.mrb[0].mxu0 %v5400
      %v5659 = vpop.f32.mrb[0].mxu0
      %v5660 = vadd.f32 0.0, %v5659
      %v5661 = vpop.f32.mrb[0].mxu0
      %v5662 = vpop.f32.mrb[0].mxu0
      %v5663 = vadd.f32 0.0, %v5662
      %v5664 = vpop.f32.mrb[0].mxu0
      %5665 = vmatprep.mubr.bf16.mxu0 0
      %5666 = vmatmul.mubr.bf16.gmra.mrb[0].mxu0 %v5408
      %v5667 = vpop.f32.mrb[0].mxu0
      %v5668 = vadd.f32 0.0, %v5667
      %v5669 = vpop.f32.mrb[0].mxu0
      %v5670 = vpop.f32.mrb[0].mxu0
      %v5671 = vadd.f32 0.0, %v5670
      %v5672 = vpop.f32.mrb[0].mxu0
      %5673 = vmatprep.mubr.bf16.mxu0 0
      %5674 = vmatmul.mubr.bf16.gmra.mrb[0].mxu0 %v5416
      %v5675 = vpop.f32.mrb[0].mxu0
      %v5676 = vadd.f32 0.0, %v5675
      %v5677 = vpop.f32.mrb[0].mxu0
      %v5678 = vpop.f32.mrb[0].mxu0
      %v5679 = vadd.f32 0.0, %v5678
      %v5680 = vpop.f32.mrb[0].mxu0
      %5681 = vmatprep.mubr.bf16.mxu0 0
      %5682 = vmatmul.mubr.bf16.gmra.mrb[0].mxu0 %v5424
      %v5683 = vpop.f32.mrb[0].mxu0
      %v5684 = vadd.f32 0.0, %v5683
      %v5685 = vpop.f32.mrb[0].mxu0
      %v5686 = vpop.f32.mrb[0].mxu0
      %v5687 = vadd.f32 0.0, %v5686
      %v5688 = vpop.f32.mrb[0].mxu0
      %5689 = vmatprep.mubr.bf16.mxu0 0
      %5690 = vmatmul.mubr.bf16.gmra.mrb[0].mxu0 %v5432
      %v5691 = vpop.f32.mrb[0].mxu0
      %v5692 = vadd.f32 0.0, %v5691
      %v5693 = vpop.f32.mrb[0].mxu0
      %v5694 = vpop.f32.mrb[0].mxu0
      %v5695 = vadd.f32 0.0, %v5694
      %v5696 = vpop.f32.mrb[0].mxu0
      %5697 = vmatprep.mubr.bf16.mxu0 0
      %5698 = vmatmul.mubr.bf16.gmra.mrb[0].mxu0 %v5440
      %v5699 = vpop.f32.mrb[0].mxu0
      %v5700 = vadd.f32 0.0, %v5699
      %v5701 = vpop.f32.mrb[0].mxu0
      %v5702 = vpop.f32.mrb[0].mxu0
      %v5703 = vadd.f32 0.0, %v5702
      %v5704 = vpop.f32.mrb[0].mxu0
      %5705 = vmatprep.mubr.bf16.mxu0 0
      %5706 = vmatmul.mubr.bf16.gmra.mrb[0].mxu0 %v5448
      %v5707 = vpop.f32.mrb[0].mxu0
      %v5708 = vadd.f32 0.0, %v5707
      %v5709 = vpop.f32.mrb[0].mxu0
      %v5710 = vpop.f32.mrb[0].mxu0
      %v5711 = vadd.f32 0.0, %v5710
      %v5712 = vpop.f32.mrb[0].mxu0
      %5713 = vmatprep.mubr.bf16.mxu0 0
      %5714 = vmatmul.mubr.bf16.gmra.mrb[0].mxu0 %v5456
      %v5715 = vpop.f32.mrb[0].mxu0
      %v5716 = vadd.f32 0.0, %v5715
      %v5717 = vpop.f32.mrb[0].mxu0
      %v5718 = vpop.f32.mrb[0].mxu0
      %v5719 = vadd.f32 0.0, %v5718
      %v5720 = vpop.f32.mrb[0].mxu0
      %5721 = vmatprep.mubr.bf16.mxu0 0
      %5722 = vmatmul.mubr.bf16.gmra.mrb[0].mxu0 %v5464
      %v5723 = vpop.f32.mrb[0].mxu0
      %v5724 = vadd.f32 0.0, %v5723
      %v5725 = vpop.f32.mrb[0].mxu0
      %v5726 = vpop.f32.mrb[0].mxu0
      %v5727 = vadd.f32 0.0, %v5726
      %v5728 = vpop.f32.mrb[0].mxu0
      %5729 = vmatprep.mubr.bf16.mxu0 0
      %5730 = vmatmul.mubr.bf16.gmra.mrb[0].mxu0 %v5472
      %v5731 = vpop.f32.mrb[0].mxu0
      %v5732 = vadd.f32 0.0, %v5731
      %v5733 = vpop.f32.mrb[0].mxu0
      %v5734 = vpop.f32.mrb[0].mxu0
      %v5735 = vadd.f32 0.0, %v5734
      %v5736 = vpop.f32.mrb[0].mxu0
      %5737 = vmatprep.mubr.bf16.mxu0 0
      %5738 = vmatmul.mubr.bf16.gmra.mrb[0].mxu0 %v5480
      %v5739 = vpop.f32.mrb[0].mxu0
      %v5740 = vadd.f32 0.0, %v5739
      %v5741 = vpop.f32.mrb[0].mxu0
      %v5742 = vpop.f32.mrb[0].mxu0
      %v5743 = vadd.f32 0.0, %v5742
      %v5744 = vpop.f32.mrb[0].mxu0
      %5745 = vmatprep.mubr.bf16.mxu0 0
      %5746 = vmatmul.mubr.bf16.gmra.mrb[0].mxu0 %v5488
      %v5747 = vpop.f32.mrb[0].mxu0
      %v5748 = vadd.f32 0.0, %v5747
      %v5749 = vpop.f32.mrb[0].mxu0
      %v5750 = vpop.f32.mrb[0].mxu0
      %v5751 = vadd.f32 0.0, %v5750
      %v5752 = vpop.f32.mrb[0].mxu0
      %5753 = vmatprep.mubr.bf16.mxu0 0
      %5754 = vmatmul.mubr.bf16.gmra.mrb[0].mxu0 %v5491
      %v5755 = vpop.f32.mrb[0].mxu0
      %v5756 = vadd.f32 0.0, %v5755
      %v5757 = vpop.f32.mrb[0].mxu0
      %v5758 = vpop.f32.mrb[0].mxu0
      %v5759 = vpop.f32.mrb[0].mxu0
      %5760 = vdwg.mxu0
      %v5777 = vunpack.c.l.b16 %v5291
      %v5778 = vunpack.c.l.b16 %v5292
      %v5779 = vunpack.c.l.b16 %v5293
      %v5780 = vunpack.c.l.b16 %v5294
      %v5781 = vunpack.c.l.b16 %v5295
      %v5782 = vunpack.c.l.b16 %v5296
      %v5783 = vunpack.c.l.b16 %v5297
      %v5784 = vunpack.c.l.b16 %v5298
      %v5785 = vunpack.c.l.b16 %v5299
      %v5786 = vunpack.c.l.b16 %v5300
      %v5787 = vunpack.c.l.b16 %v5301
      %v5788 = vunpack.c.l.b16 %v5302
      %v5789 = vunpack.c.l.b16 %v5303
      %v5790 = vunpack.c.l.b16 %v5304
      %v5791 = vunpack.c.l.b16 %v5305
      %v5792 = vunpack.c.l.b16 %v5306
      %v5793 = vpack.c.b16 %v5778, %v5777
      %v5794 = vpack.c.b16 %v5780, %v5779
      %v5795 = vpack.c.b16 %v5782, %v5781
      %v5796 = vpack.c.b16 %v5784, %v5783
      %v5797 = vpack.c.b16 %v5786, %v5785
      %v5798 = vpack.c.b16 %v5788, %v5787
      %v5799 = vpack.c.b16 %v5790, %v5789
      %v5800 = vpack.c.b16 %v5792, %v5791
      %5809 = vmatprep.subr.bf16.mxu0 0
      %5810 = vmatpush1.bf16.msra.mxu0 %v5793
      %5811 = vmatprep.subr.bf16.mxu0 0
      %5812 = vmatpush1.bf16.msra.mxu0 %v5794
      %5813 = vmatprep.subr.bf16.mxu0 0
      %5814 = vmatpush1.bf16.msra.mxu0 %v5795
      %5815 = vmatprep.subr.bf16.mxu0 0
      %5816 = vmatpush1.bf16.msra.mxu0 %v5796
      %5817 = vmatprep.subr.bf16.mxu0 0
      %5818 = vmatpush1.bf16.msra.mxu0 %v5797
      %5819 = vmatprep.subr.bf16.mxu0 0
      %5820 = vmatpush1.bf16.msra.mxu0 %v5798
      %5821 = vmatprep.subr.bf16.mxu0 0
      %5822 = vmatpush1.bf16.msra.mxu0 %v5799
      %5823 = vmatprep.subr.bf16.mxu0 0
      %5824 = vmatpush1.bf16.msra.mxu0 %v5800
      %5825 = vmatprep.subr.bf16.mxu0 0
      %5826 = vmatpush1.bf16.msra.mxu0 0
      %5827 = vmatprep.subr.bf16.mxu0 0
      %5828 = vmatpush1.bf16.msra.mxu0 0
      %5829 = vmatprep.subr.bf16.mxu0 0
      %5830 = vmatpush1.bf16.msra.mxu0 0
      %5831 = vmatprep.subr.bf16.mxu0 0
      %5832 = vmatpush1.bf16.msra.mxu0 0
      %5833 = vmatprep.subr.bf16.mxu0 0
      %5834 = vmatpush1.bf16.msra.mxu0 0
      %5835 = vmatprep.subr.bf16.mxu0 0
      %5836 = vmatpush1.bf16.msra.mxu0 0
      %5837 = vmatprep.subr.bf16.mxu0 0
      %5838 = vmatpush1.bf16.msra.mxu0 0
      %5839 = vmatprep.subr.bf16.mxu0 0
      %5840 = vmatpush1.bf16.msra.mxu0 0
      %5841 = vmatprep.mubr.bf16.mxu0 0
      %5842 = vmatmul.mubr.bf16.gmra.mrb[0].mxu0 %v5270
      %v5843 = vpop.f32.mrb[0].mxu0
      %v5844 = vadd.f32 %v5596, %v5843
      %v5845 = vpop.f32.mrb[0].mxu0
      %v5846 = vpop.f32.mrb[0].mxu0
      %v5847 = vadd.f32 %v5599, %v5846
      %v5848 = vpop.f32.mrb[0].mxu0
      %5849 = vmatprep.mubr.bf16.mxu0 0
      %5850 = vmatmul.mubr.bf16.gmra.mrb[0].mxu0 %v5271
      %v5851 = vpop.f32.mrb[0].mxu0
      %v5852 = vadd.f32 %v5604, %v5851
      %v5853 = vpop.f32.mrb[0].mxu0
      %v5854 = vpop.f32.mrb[0].mxu0
      %v5855 = vadd.f32 %v5607, %v5854
      %v5856 = vpop.f32.mrb[0].mxu0
      %5857 = vmatprep.mubr.bf16.mxu0 0
      %5858 = vmatmul.mubr.bf16.gmra.mrb[0].mxu0 %v5272
      %v5859 = vpop.f32.mrb[0].mxu0
      %v5860 = vadd.f32 %v5612, %v5859
      %v5861 = vpop.f32.mrb[0].mxu0
      %v5862 = vpop.f32.mrb[0].mxu0
      %v5863 = vadd.f32 %v5615, %v5862
      %v5864 = vpop.f32.mrb[0].mxu0
      %5865 = vmatprep.mubr.bf16.mxu0 0
      %5866 = vmatmul.mubr.bf16.gmra.mrb[0].mxu0 %v5273
      %v5867 = vpop.f32.mrb[0].mxu0
      %v5868 = vadd.f32 %v5620, %v5867
      %v5869 = vpop.f32.mrb[0].mxu0
      %v5870 = vpop.f32.mrb[0].mxu0
      %v5871 = vadd.f32 %v5623, %v5870
      %v5872 = vpop.f32.mrb[0].mxu0
      %5873 = vmatprep.mubr.bf16.mxu0 0
      %5874 = vmatmul.mubr.bf16.gmra.mrb[0].mxu0 %v5274
      %v5875 = vpop.f32.mrb[0].mxu0
      %v5876 = vadd.f32 %v5628, %v5875
      %v5877 = vpop.f32.mrb[0].mxu0
      %v5878 = vpop.f32.mrb[0].mxu0
      %v5879 = vadd.f32 %v5631, %v5878
      %v5880 = vpop.f32.mrb[0].mxu0
      %5881 = vmatprep.mubr.bf16.mxu0 0
      %5882 = vmatmul.mubr.bf16.gmra.mrb[0].mxu0 %v5275
      %v5883 = vpop.f32.mrb[0].mxu0
      %v5884 = vadd.f32 %v5636, %v5883
      %v5885 = vpop.f32.mrb[0].mxu0
      %v5886 = vpop.f32.mrb[0].mxu0
      %v5887 = vadd.f32 %v5639, %v5886
      %v5888 = vpop.f32.mrb[0].mxu0
      %5889 = vmatprep.mubr.bf16.mxu0 0
      %5890 = vmatmul.mubr.bf16.gmra.mrb[0].mxu0 %v5276
      %v5891 = vpop.f32.mrb[0].mxu0
      %v5892 = vadd.f32 %v5644, %v5891
      %v5893 = vpop.f32.mrb[0].mxu0
      %v5894 = vpop.f32.mrb[0].mxu0
      %v5895 = vadd.f32 %v5647, %v5894
      %v5896 = vpop.f32.mrb[0].mxu0
      %5897 = vmatprep.mubr.bf16.mxu0 0
      %5898 = vmatmul.mubr.bf16.gmra.mrb[0].mxu0 %v5277
      %v5899 = vpop.f32.mrb[0].mxu0
      %v5900 = vadd.f32 %v5652, %v5899
      %v5901 = vpop.f32.mrb[0].mxu0
      %v5902 = vpop.f32.mrb[0].mxu0
      %v5903 = vadd.f32 %v5655, %v5902
      %v5904 = vpop.f32.mrb[0].mxu0
      %5905 = vmatprep.mubr.bf16.mxu0 0
      %5906 = vmatmul.mubr.bf16.gmra.mrb[0].mxu0 %v5278
      %v5907 = vpop.f32.mrb[0].mxu0
      %v5908 = vadd.f32 %v5660, %v5907
      %v5909 = vpop.f32.mrb[0].mxu0
      %v5910 = vpop.f32.mrb[0].mxu0
      %v5911 = vadd.f32 %v5663, %v5910
      %v5912 = vpop.f32.mrb[0].mxu0
      %5913 = vmatprep.mubr.bf16.mxu0 0
      %5914 = vmatmul.mubr.bf16.gmra.mrb[0].mxu0 %v5279
      %v5915 = vpop.f32.mrb[0].mxu0
      %v5916 = vadd.f32 %v5668, %v5915
      %v5917 = vpop.f32.mrb[0].mxu0
      %v5918 = vpop.f32.mrb[0].mxu0
      %v5919 = vadd.f32 %v5671, %v5918
      %v5920 = vpop.f32.mrb[0].mxu0
      %5921 = vmatprep.mubr.bf16.mxu0 0
      %5922 = vmatmul.mubr.bf16.gmra.mrb[0].mxu0 %v5280
      %v5923 = vpop.f32.mrb[0].mxu0
      %v5924 = vadd.f32 %v5676, %v5923
      %v5925 = vpop.f32.mrb[0].mxu0
      %v5926 = vpop.f32.mrb[0].mxu0
      %v5927 = vadd.f32 %v5679, %v5926
      %v5928 = vpop.f32.mrb[0].mxu0
      %5929 = vmatprep.mubr.bf16.mxu0 0
      %5930 = vmatmul.mubr.bf16.gmra.mrb[0].mxu0 %v5281
      %v5931 = vpop.f32.mrb[0].mxu0
      %v5932 = vadd.f32 %v5684, %v5931
      %v5933 = vpop.f32.mrb[0].mxu0
      %v5934 = vpop.f32.mrb[0].mxu0
      %v5935 = vadd.f32 %v5687, %v5934
      %v5936 = vpop.f32.mrb[0].mxu0
      %5937 = vmatprep.mubr.bf16.mxu0 0
      %5938 = vmatmul.mubr.bf16.gmra.mrb[0].mxu0 %v5282
      %v5939 = vpop.f32.mrb[0].mxu0
      %v5940 = vadd.f32 %v5692, %v5939
      %v5941 = vpop.f32.mrb[0].mxu0
      %v5942 = vpop.f32.mrb[0].mxu0
      %v5943 = vadd.f32 %v5695, %v5942
      %v5944 = vpop.f32.mrb[0].mxu0
      %5945 = vmatprep.mubr.bf16.mxu0 0
      %5946 = vmatmul.mubr.bf16.gmra.mrb[0].mxu0 %v5283
      %v5947 = vpop.f32.mrb[0].mxu0
      %v5948 = vadd.f32 %v5700, %v5947
      %v5949 = vpop.f32.mrb[0].mxu0
      %v5950 = vpop.f32.mrb[0].mxu0
      %v5951 = vadd.f32 %v5703, %v5950
      %v5952 = vpop.f32.mrb[0].mxu0
      %5953 = vmatprep.mubr.bf16.mxu0 0
      %5954 = vmatmul.mubr.bf16.gmra.mrb[0].mxu0 %v5284
      %v5955 = vpop.f32.mrb[0].mxu0
      %v5956 = vadd.f32 %v5708, %v5955
      %v5957 = vpop.f32.mrb[0].mxu0
      %v5958 = vpop.f32.mrb[0].mxu0
      %v5959 = vadd.f32 %v5711, %v5958
      %v5960 = vpop.f32.mrb[0].mxu0
      %5961 = vmatprep.mubr.bf16.mxu0 0
      %5962 = vmatmul.mubr.bf16.gmra.mrb[0].mxu0 %v5285
      %v5963 = vpop.f32.mrb[0].mxu0
      %v5964 = vadd.f32 %v5716, %v5963
      %v5965 = vpop.f32.mrb[0].mxu0
      %v5966 = vpop.f32.mrb[0].mxu0
      %v5967 = vadd.f32 %v5719, %v5966
      %v5968 = vpop.f32.mrb[0].mxu0
      %5969 = vmatprep.mubr.bf16.mxu0 0
      %5970 = vmatmul.mubr.bf16.gmra.mrb[0].mxu0 %v5286
      %v5971 = vpop.f32.mrb[0].mxu0
      %v5972 = vadd.f32 %v5724, %v5971
      %v5973 = vpop.f32.mrb[0].mxu0
      %v5974 = vpop.f32.mrb[0].mxu0
      %v5975 = vadd.f32 %v5727, %v5974
      %v5976 = vpop.f32.mrb[0].mxu0
      %5977 = vmatprep.mubr.bf16.mxu0 0
      %5978 = vmatmul.mubr.bf16.gmra.mrb[0].mxu0 %v5287
      %v5979 = vpop.f32.mrb[0].mxu0
      %v5980 = vadd.f32 %v5732, %v5979
      %v5981 = vpop.f32.mrb[0].mxu0
      %v5982 = vpop.f32.mrb[0].mxu0
      %v5983 = vadd.f32 %v5735, %v5982
      %v5984 = vpop.f32.mrb[0].mxu0
      %5985 = vmatprep.mubr.bf16.mxu0 0
      %5986 = vmatmul.mubr.bf16.gmra.mrb[0].mxu0 %v5288
      %v5987 = vpop.f32.mrb[0].mxu0
      %v5988 = vadd.f32 %v5740, %v5987
      %v5989 = vpop.f32.mrb[0].mxu0
      %v5990 = vpop.f32.mrb[0].mxu0
      %v5991 = vadd.f32 %v5743, %v5990
      %v5992 = vpop.f32.mrb[0].mxu0
      %5993 = vmatprep.mubr.bf16.mxu0 0
      %5994 = vmatmul.mubr.bf16.gmra.mrb[0].mxu0 %v5289
      %v5995 = vpop.f32.mrb[0].mxu0
      %v5996 = vadd.f32 %v5748, %v5995
      %v5997 = vpop.f32.mrb[0].mxu0
      %v5998 = vpop.f32.mrb[0].mxu0
      %v5999 = vadd.f32 %v5751, %v5998
      %v6000 = vpop.f32.mrb[0].mxu0
      %6001 = vmatprep.mubr.bf16.mxu0 0
      %6002 = vmatmul.mubr.bf16.gmra.mrb[0].mxu0 %v5290
      %v6003 = vpop.f32.mrb[0].mxu0
      %v6004 = vadd.f32 %v5756, %v6003
      %v6005 = vpop.f32.mrb[0].mxu0
      %v6006 = vpop.f32.mrb[0].mxu0
      %v6007 = vpop.f32.mrb[0].mxu0
      %6008 = vdwg.mxu0
      %v6009 = vld [vmem:[#allocation2] sm:$0xfe]
      %s6010 = scalar_lea.vmem %s5, 128
      %v6011 = vld [vmem:[%s6010] sm:$0xf]
      %v6012 = vld [vmem:[%s6010 + $0x4] sm:$0xf]
      %v6013 = vld [vmem:[%s6010 + $0x8] sm:$0xf]
      %v6014 = vld [vmem:[%s6010 + $0xc] sm:$0xf]
      %v6015 = vld [vmem:[%s6010 + $0x10] sm:$0xf]
      %v6016 = vld [vmem:[%s6010 + $0x14] sm:$0xf]
      %v6017 = vld [vmem:[%s6010 + $0x18] sm:$0xf]
      %v6018 = vld [vmem:[%s6010 + $0x1c] sm:$0xf]
      %v6019 = vld [vmem:[%s6010 + $0x20] sm:$0xf]
      %v6020 = vld [vmem:[%s6010 + $0x24] sm:$0xf]
      %v6021 = vld [vmem:[%s6010 + $0x28] sm:$0xf]
      %v6022 = vld [vmem:[%s6010 + $0x2c] sm:$0xf]
      %v6023 = vld [vmem:[%s6010 + $0x30] sm:$0xf]
      %v6024 = vld [vmem:[%s6010 + $0x34] sm:$0xf]
      %v6025 = vld [vmem:[%s6010 + $0x38] sm:$0xf]
      %v6026 = vld [vmem:[%s6010 + $0x3c] sm:$0xf]
      %v6048 = vrot.slane %v6009, 1
      %v6049 = vrot.slane %v5271, 1
      %v6050 = vsel %vm2925, %v6048, %v6049
      %v6051 = vrot.slane %v5272, 1
      %v6052 = vsel %vm2925, %v6049, %v6051
      %v6053 = vrot.slane %v5273, 1
      %v6054 = vsel %vm2925, %v6051, %v6053
      %v6055 = vrot.slane %v5274, 1
      %v6056 = vsel %vm2925, %v6053, %v6055
      %v6057 = vrot.slane %v5275, 1
      %v6058 = vsel %vm2925, %v6055, %v6057
      %v6059 = vrot.slane %v5276, 1
      %v6060 = vsel %vm2925, %v6057, %v6059
      %v6061 = vrot.slane %v5277, 1
      %v6062 = vsel %vm2925, %v6059, %v6061
      %v6063 = vrot.slane %v5278, 1
      %v6064 = vsel %vm2925, %v6061, %v6063
      %v6065 = vrot.slane %v5279, 1
      %v6066 = vsel %vm2925, %v6063, %v6065
      %v6067 = vrot.slane %v5280, 1
      %v6068 = vsel %vm2925, %v6065, %v6067
      %v6069 = vrot.slane %v5281, 1
      %v6070 = vsel %vm2925, %v6067, %v6069
      %v6071 = vrot.slane %v5282, 1
      %v6072 = vsel %vm2925, %v6069, %v6071
      %v6073 = vrot.slane %v5283, 1
      %v6074 = vsel %vm2925, %v6071, %v6073
      %v6075 = vrot.slane %v5284, 1
      %v6076 = vsel %vm2925, %v6073, %v6075
      %v6077 = vrot.slane %v5285, 1
      %v6078 = vsel %vm2925, %v6075, %v6077
      %v6079 = vrot.slane %v5286, 1
      %v6080 = vsel %vm2925, %v6077, %v6079
      %v6081 = vrot.slane %v5287, 1
      %v6082 = vsel %vm2925, %v6079, %v6081
      %v6083 = vrot.slane %v5288, 1
      %v6084 = vsel %vm2925, %v6081, %v6083
      %v6085 = vrot.slane %v5289, 1
      %v6086 = vsel %vm2925, %v6083, %v6085
      %v6087 = vrot.slane %v5307, 1
      %v6088 = vsel %vm2925, %v6085, %v6087
      %v6126 = vunpack.c.l.b16 %v6011
      %v6127 = vunpack.c.l.b16 %v6012
      %v6128 = vunpack.c.l.b16 %v6013
      %v6129 = vunpack.c.l.b16 %v6014
      %v6130 = vunpack.c.l.b16 %v6015
      %v6131 = vunpack.c.l.b16 %v6016
      %v6132 = vunpack.c.l.b16 %v6017
      %v6133 = vunpack.c.l.b16 %v6018
      %v6134 = vunpack.c.l.b16 %v6019
      %v6135 = vunpack.c.l.b16 %v6020
      %v6136 = vunpack.c.l.b16 %v6021
      %v6137 = vunpack.c.l.b16 %v6022
      %v6138 = vunpack.c.l.b16 %v6023
      %v6139 = vunpack.c.l.b16 %v6024
      %v6140 = vunpack.c.l.b16 %v6025
      %v6141 = vunpack.c.l.b16 %v6026
      %v6142 = vpack.c.b16 %v6127, %v6126
      %v6143 = vpack.c.b16 %v6129, %v6128
      %v6144 = vpack.c.b16 %v6131, %v6130
      %v6145 = vpack.c.b16 %v6133, %v6132
      %v6146 = vpack.c.b16 %v6135, %v6134
      %v6147 = vpack.c.b16 %v6137, %v6136
      %v6148 = vpack.c.b16 %v6139, %v6138
      %v6149 = vpack.c.b16 %v6141, %v6140
      %6158 = vmatprep.subr.bf16.mxu0 0
      %6159 = vmatpush1.bf16.msra.mxu0 %v6142
      %6160 = vmatprep.subr.bf16.mxu0 0
      %6161 = vmatpush1.bf16.msra.mxu0 %v6143
      %6162 = vmatprep.subr.bf16.mxu0 0
      %6163 = vmatpush1.bf16.msra.mxu0 %v6144
      %6164 = vmatprep.subr.bf16.mxu0 0
      %6165 = vmatpush1.bf16.msra.mxu0 %v6145
      %6166 = vmatprep.subr.bf16.mxu0 0
      %6167 = vmatpush1.bf16.msra.mxu0 %v6146
      %6168 = vmatprep.subr.bf16.mxu0 0
      %6169 = vmatpush1.bf16.msra.mxu0 %v6147
      %6170 = vmatprep.subr.bf16.mxu0 0
      %6171 = vmatpush1.bf16.msra.mxu0 %v6148
      %6172 = vmatprep.subr.bf16.mxu0 0
      %6173 = vmatpush1.bf16.msra.mxu0 %v6149
      %6174 = vmatprep.subr.bf16.mxu0 0
      %6175 = vmatpush1.bf16.msra.mxu0 0
      %6176 = vmatprep.subr.bf16.mxu0 0
      %6177 = vmatpush1.bf16.msra.mxu0 0
      %6178 = vmatprep.subr.bf16.mxu0 0
      %6179 = vmatpush1.bf16.msra.mxu0 0
      %6180 = vmatprep.subr.bf16.mxu0 0
      %6181 = vmatpush1.bf16.msra.mxu0 0
      %6182 = vmatprep.subr.bf16.mxu0 0
      %6183 = vmatpush1.bf16.msra.mxu0 0
      %6184 = vmatprep.subr.bf16.mxu0 0
      %6185 = vmatpush1.bf16.msra.mxu0 0
      %6186 = vmatprep.subr.bf16.mxu0 0
      %6187 = vmatpush1.bf16.msra.mxu0 0
      %6188 = vmatprep.subr.bf16.mxu0 0
      %6189 = vmatpush1.bf16.msra.mxu0 0
      %6190 = vmatprep.mubr.bf16.mxu0 0
      %6191 = vmatmul.mubr.bf16.gmra.mrb[0].mxu0 %v6050
      %v6192 = vpop.f32.mrb[0].mxu0
      %v6193 = vadd.f32 0.0, %v6192
      %v6194 = vpop.f32.mrb[0].mxu0
      %v6195 = vpop.f32.mrb[0].mxu0
      %v6196 = vadd.f32 0.0, %v6195
      %v6197 = vpop.f32.mrb[0].mxu0
      %6198 = vmatprep.mubr.bf16.mxu0 0
      %6199 = vmatmul.mubr.bf16.gmra.mrb[0].mxu0 %v6052
      %v6200 = vpop.f32.mrb[0].mxu0
      %v6201 = vadd.f32 0.0, %v6200
      %v6202 = vpop.f32.mrb[0].mxu0
      %v6203 = vpop.f32.mrb[0].mxu0
      %v6204 = vadd.f32 0.0, %v6203
      %v6205 = vpop.f32.mrb[0].mxu0
      %6206 = vmatprep.mubr.bf16.mxu0 0
      %6207 = vmatmul.mubr.bf16.gmra.mrb[0].mxu0 %v6054
      %v6208 = vpop.f32.mrb[0].mxu0
      %v6209 = vadd.f32 0.0, %v6208
      %v6210 = vpop.f32.mrb[0].mxu0
      %v6211 = vpop.f32.mrb[0].mxu0
      %v6212 = vadd.f32 0.0, %v6211
      %v6213 = vpop.f32.mrb[0].mxu0
      %6214 = vmatprep.mubr.bf16.mxu0 0
      %6215 = vmatmul.mubr.bf16.gmra.mrb[0].mxu0 %v6056
      %v6216 = vpop.f32.mrb[0].mxu0
      %v6217 = vadd.f32 0.0, %v6216
      %v6218 = vpop.f32.mrb[0].mxu0
      %v6219 = vpop.f32.mrb[0].mxu0
      %v6220 = vadd.f32 0.0, %v6219
      %v6221 = vpop.f32.mrb[0].mxu0
      %6222 = vmatprep.mubr.bf16.mxu0 0
      %6223 = vmatmul.mubr.bf16.gmra.mrb[0].mxu0 %v6058
      %v6224 = vpop.f32.mrb[0].mxu0
      %v6225 = vadd.f32 0.0, %v6224
      %v6226 = vpop.f32.mrb[0].mxu0
      %v6227 = vpop.f32.mrb[0].mxu0
      %v6228 = vadd.f32 0.0, %v6227
      %v6229 = vpop.f32.mrb[0].mxu0
      %6230 = vmatprep.mubr.bf16.mxu0 0
      %6231 = vmatmul.mubr.bf16.gmra.mrb[0].mxu0 %v6060
      %v6232 = vpop.f32.mrb[0].mxu0
      %v6233 = vadd.f32 0.0, %v6232
      %v6234 = vpop.f32.mrb[0].mxu0
      %v6235 = vpop.f32.mrb[0].mxu0
      %v6236 = vadd.f32 0.0, %v6235
      %v6237 = vpop.f32.mrb[0].mxu0
      %6238 = vmatprep.mubr.bf16.mxu0 0
      %6239 = vmatmul.mubr.bf16.gmra.mrb[0].mxu0 %v6062
      %v6240 = vpop.f32.mrb[0].mxu0
      %v6241 = vadd.f32 0.0, %v6240
      %v6242 = vpop.f32.mrb[0].mxu0
      %v6243 = vpop.f32.mrb[0].mxu0
      %v6244 = vadd.f32 0.0, %v6243
      %v6245 = vpop.f32.mrb[0].mxu0
      %6246 = vmatprep.mubr.bf16.mxu0 0
      %6247 = vmatmul.mubr.bf16.gmra.mrb[0].mxu0 %v6064
      %v6248 = vpop.f32.mrb[0].mxu0
      %v6249 = vadd.f32 0.0, %v6248
      %v6250 = vpop.f32.mrb[0].mxu0
      %v6251 = vpop.f32.mrb[0].mxu0
      %v6252 = vadd.f32 0.0, %v6251
      %v6253 = vpop.f32.mrb[0].mxu0
      %6254 = vmatprep.mubr.bf16.mxu0 0
      %6255 = vmatmul.mubr.bf16.gmra.mrb[0].mxu0 %v6066
      %v6256 = vpop.f32.mrb[0].mxu0
      %v6257 = vadd.f32 0.0, %v6256
      %v6258 = vpop.f32.mrb[0].mxu0
      %v6259 = vpop.f32.mrb[0].mxu0
      %v6260 = vadd.f32 0.0, %v6259
      %v6261 = vpop.f32.mrb[0].mxu0
      %6262 = vmatprep.mubr.bf16.mxu0 0
      %6263 = vmatmul.mubr.bf16.gmra.mrb[0].mxu0 %v6068
      %v6264 = vpop.f32.mrb[0].mxu0
      %v6265 = vadd.f32 0.0, %v6264
      %v6266 = vpop.f32.mrb[0].mxu0
      %v6267 = vpop.f32.mrb[0].mxu0
      %v6268 = vadd.f32 0.0, %v6267
      %v6269 = vpop.f32.mrb[0].mxu0
      %6270 = vmatprep.mubr.bf16.mxu0 0
      %6271 = vmatmul.mubr.bf16.gmra.mrb[0].mxu0 %v6070
      %v6272 = vpop.f32.mrb[0].mxu0
      %v6273 = vadd.f32 0.0, %v6272
      %v6274 = vpop.f32.mrb[0].mxu0
      %v6275 = vpop.f32.mrb[0].mxu0
      %v6276 = vadd.f32 0.0, %v6275
      %v6277 = vpop.f32.mrb[0].mxu0
      %6278 = vmatprep.mubr.bf16.mxu0 0
      %6279 = vmatmul.mubr.bf16.gmra.mrb[0].mxu0 %v6072
      %v6280 = vpop.f32.mrb[0].mxu0
      %v6281 = vadd.f32 0.0, %v6280
      %v6282 = vpop.f32.mrb[0].mxu0
      %v6283 = vpop.f32.mrb[0].mxu0
      %v6284 = vadd.f32 0.0, %v6283
      %v6285 = vpop.f32.mrb[0].mxu0
      %6286 = vmatprep.mubr.bf16.mxu0 0
      %6287 = vmatmul.mubr.bf16.gmra.mrb[0].mxu0 %v6074
      %v6288 = vpop.f32.mrb[0].mxu0
      %v6289 = vadd.f32 0.0, %v6288
      %v6290 = vpop.f32.mrb[0].mxu0
      %v6291 = vpop.f32.mrb[0].mxu0
      %v6292 = vadd.f32 0.0, %v6291
      %v6293 = vpop.f32.mrb[0].mxu0
      %6294 = vmatprep.mubr.bf16.mxu0 0
      %6295 = vmatmul.mubr.bf16.gmra.mrb[0].mxu0 %v6076
      %v6296 = vpop.f32.mrb[0].mxu0
      %v6297 = vadd.f32 0.0, %v6296
      %v6298 = vpop.f32.mrb[0].mxu0
      %v6299 = vpop.f32.mrb[0].mxu0
      %v6300 = vadd.f32 0.0, %v6299
      %v6301 = vpop.f32.mrb[0].mxu0
      %6302 = vmatprep.mubr.bf16.mxu0 0
      %6303 = vmatmul.mubr.bf16.gmra.mrb[0].mxu0 %v6078
      %v6304 = vpop.f32.mrb[0].mxu0
      %v6305 = vadd.f32 0.0, %v6304
      %v6306 = vpop.f32.mrb[0].mxu0
      %v6307 = vpop.f32.mrb[0].mxu0
      %v6308 = vadd.f32 0.0, %v6307
      %v6309 = vpop.f32.mrb[0].mxu0
      %6310 = vmatprep.mubr.bf16.mxu0 0
      %6311 = vmatmul.mubr.bf16.gmra.mrb[0].mxu0 %v6080
      %v6312 = vpop.f32.mrb[0].mxu0
      %v6313 = vadd.f32 0.0, %v6312
      %v6314 = vpop.f32.mrb[0].mxu0
      %v6315 = vpop.f32.mrb[0].mxu0
      %v6316 = vadd.f32 0.0, %v6315
      %v6317 = vpop.f32.mrb[0].mxu0
      %6318 = vmatprep.mubr.bf16.mxu0 0
      %6319 = vmatmul.mubr.bf16.gmra.mrb[0].mxu0 %v6082
      %v6320 = vpop.f32.mrb[0].mxu0
      %v6321 = vadd.f32 0.0, %v6320
      %v6322 = vpop.f32.mrb[0].mxu0
      %v6323 = vpop.f32.mrb[0].mxu0
      %v6324 = vadd.f32 0.0, %v6323
      %v6325 = vpop.f32.mrb[0].mxu0
      %6326 = vmatprep.mubr.bf16.mxu0 0
      %6327 = vmatmul.mubr.bf16.gmra.mrb[0].mxu0 %v6084
      %v6328 = vpop.f32.mrb[0].mxu0
      %v6329 = vadd.f32 0.0, %v6328
      %v6330 = vpop.f32.mrb[0].mxu0
      %v6331 = vpop.f32.mrb[0].mxu0
      %v6332 = vadd.f32 0.0, %v6331
      %v6333 = vpop.f32.mrb[0].mxu0
      %6334 = vmatprep.mubr.bf16.mxu0 0
      %6335 = vmatmul.mubr.bf16.gmra.mrb[0].mxu0 %v6086
      %v6336 = vpop.f32.mrb[0].mxu0
      %v6337 = vadd.f32 0.0, %v6336
      %v6338 = vpop.f32.mrb[0].mxu0
      %v6339 = vpop.f32.mrb[0].mxu0
      %v6340 = vadd.f32 0.0, %v6339
      %v6341 = vpop.f32.mrb[0].mxu0
      %6342 = vmatprep.mubr.bf16.mxu0 0
      %6343 = vmatmul.mubr.bf16.gmra.mrb[0].mxu0 %v6088
      %v6344 = vpop.f32.mrb[0].mxu0
      %v6345 = vadd.f32 0.0, %v6344
      %v6346 = vpop.f32.mrb[0].mxu0
      %v6347 = vpop.f32.mrb[0].mxu0
      %v6348 = vadd.f32 0.0, %v6347
      %v6349 = vpop.f32.mrb[0].mxu0
      %6350 = vmatprep.mubr.bf16.mxu0 0
      %6351 = vmatmul.mubr.bf16.gmra.mrb[0].mxu0 %v6087
      %v6352 = vpop.f32.mrb[0].mxu0
      %v6353 = vadd.f32 0.0, %v6352
      %v6354 = vpop.f32.mrb[0].mxu0
      %v6355 = vpop.f32.mrb[0].mxu0
      %v6356 = vpop.f32.mrb[0].mxu0
      %6357 = vdwg.mxu0
      %v6358 = vadd.f32 %v5844, %v6193
      %v6359 = vadd.f32 %v5847, %v6196
      %v6360 = vadd.f32 %v5852, %v6201
      %v6361 = vadd.f32 %v5855, %v6204
      %v6362 = vadd.f32 %v5860, %v6209
      %v6363 = vadd.f32 %v5863, %v6212
      %v6364 = vadd.f32 %v5868, %v6217
      %v6365 = vadd.f32 %v5871, %v6220
      %v6366 = vadd.f32 %v5876, %v6225
      %v6367 = vadd.f32 %v5879, %v6228
      %v6368 = vadd.f32 %v5884, %v6233
      %v6369 = vadd.f32 %v5887, %v6236
      %v6370 = vadd.f32 %v5892, %v6241
      %v6371 = vadd.f32 %v5895, %v6244
      %v6372 = vadd.f32 %v5900, %v6249
      %v6373 = vadd.f32 %v5903, %v6252
      %v6374 = vadd.f32 %v5908, %v6257
      %v6375 = vadd.f32 %v5911, %v6260
      %v6376 = vadd.f32 %v5916, %v6265
      %v6377 = vadd.f32 %v5919, %v6268
      %v6378 = vadd.f32 %v5924, %v6273
      %v6379 = vadd.f32 %v5927, %v6276
      %v6380 = vadd.f32 %v5932, %v6281
      %v6381 = vadd.f32 %v5935, %v6284
      %v6382 = vadd.f32 %v5940, %v6289
      %v6383 = vadd.f32 %v5943, %v6292
      %v6384 = vadd.f32 %v5948, %v6297
      %v6385 = vadd.f32 %v5951, %v6300
      %v6386 = vadd.f32 %v5956, %v6305
      %v6387 = vadd.f32 %v5959, %v6308
      %v6388 = vadd.f32 %v5964, %v6313
      %v6389 = vadd.f32 %v5967, %v6316
      %v6390 = vadd.f32 %v5972, %v6321
      %v6391 = vadd.f32 %v5975, %v6324
      %v6392 = vadd.f32 %v5980, %v6329
      %v6393 = vadd.f32 %v5983, %v6332
      %v6394 = vadd.f32 %v5988, %v6337
      %v6395 = vadd.f32 %v5991, %v6340
      %v6396 = vadd.f32 %v5996, %v6345
      %v6397 = vadd.f32 %v5999, %v6348
      %v6398 = vadd.f32 %v6004, %v6353
      %v6399 = vld [vmem:[#allocation2 + $0x8] sm:$0xfe]
      %v6400 = vld [vmem:[#allocation2 + $0x10] sm:$0xff]
      %v6401 = vld [vmem:[#allocation2 + $0x18] sm:$0xff]
      %v6402 = vld [vmem:[#allocation2 + $0x20] sm:$0xff]
      %v6403 = vld [vmem:[#allocation2 + $0x28] sm:$0xff]
      %v6404 = vld [vmem:[#allocation2 + $0x30] sm:$0xff]
      %v6405 = vld [vmem:[#allocation2 + $0x38] sm:$0xff]
      %v6406 = vld [vmem:[#allocation2 + $0x40] sm:$0xff]
      %v6407 = vld [vmem:[#allocation2 + $0x48] sm:$0xff]
      %v6408 = vld [vmem:[#allocation2 + $0x50] sm:$0xff]
      %v6409 = vld [vmem:[#allocation2 + $0x58] sm:$0xff]
      %v6410 = vld [vmem:[#allocation2 + $0x60] sm:$0xff]
      %v6411 = vld [vmem:[#allocation2 + $0x68] sm:$0xff]
      %v6412 = vld [vmem:[#allocation2 + $0x70] sm:$0xff]
      %v6413 = vld [vmem:[#allocation2 + $0x78] sm:$0xff]
      %v6414 = vld [vmem:[#allocation2 + $0x80] sm:$0xff]
      %v6415 = vld [vmem:[#allocation2 + $0x88] sm:$0xff]
      %v6416 = vld [vmem:[#allocation2 + $0x90] sm:$0xff]
      %v6417 = vld [vmem:[#allocation2 + $0x98] sm:$0xff]
      %v6418 = vld [vmem:[#allocation2 + $0xa0] sm:$0xff]
      %v6419 = vld [vmem:[#allocation2 + $0xa8] sm:$0x1f]
      %s6420 = scalar_lea.vmem %s5, 192
      %v6421 = vld [vmem:[%s6420] sm:$0xf]
      %v6422 = vld [vmem:[%s6420 + $0x4] sm:$0xf]
      %v6423 = vld [vmem:[%s6420 + $0x8] sm:$0xf]
      %v6424 = vld [vmem:[%s6420 + $0xc] sm:$0xf]
      %v6425 = vld [vmem:[%s6420 + $0x10] sm:$0xf]
      %v6426 = vld [vmem:[%s6420 + $0x14] sm:$0xf]
      %v6427 = vld [vmem:[%s6420 + $0x18] sm:$0xf]
      %v6428 = vld [vmem:[%s6420 + $0x1c] sm:$0xf]
      %v6429 = vld [vmem:[%s6420 + $0x20] sm:$0xf]
      %v6430 = vld [vmem:[%s6420 + $0x24] sm:$0xf]
      %v6431 = vld [vmem:[%s6420 + $0x28] sm:$0xf]
      %v6432 = vld [vmem:[%s6420 + $0x2c] sm:$0xf]
      %v6433 = vld [vmem:[%s6420 + $0x30] sm:$0xf]
      %v6434 = vld [vmem:[%s6420 + $0x34] sm:$0xf]
      %v6435 = vld [vmem:[%s6420 + $0x38] sm:$0xf]
      %v6436 = vld [vmem:[%s6420 + $0x3c] sm:$0xf]
      %v6458 = vrot.slane %v6399, 1
      %v6459 = vrot.slane %v6400, 1
      %v6460 = vsel %vm2925, %v6458, %v6459
      %v6461 = vrot.slane %v6401, 1
      %v6462 = vsel %vm2925, %v6459, %v6461
      %v6463 = vrot.slane %v6402, 1
      %v6464 = vsel %vm2925, %v6461, %v6463
      %v6465 = vrot.slane %v6403, 1
      %v6466 = vsel %vm2925, %v6463, %v6465
      %v6467 = vrot.slane %v6404, 1
      %v6468 = vsel %vm2925, %v6465, %v6467
      %v6469 = vrot.slane %v6405, 1
      %v6470 = vsel %vm2925, %v6467, %v6469
      %v6471 = vrot.slane %v6406, 1
      %v6472 = vsel %vm2925, %v6469, %v6471
      %v6473 = vrot.slane %v6407, 1
      %v6474 = vsel %vm2925, %v6471, %v6473
      %v6475 = vrot.slane %v6408, 1
      %v6476 = vsel %vm2925, %v6473, %v6475
      %v6477 = vrot.slane %v6409, 1
      %v6478 = vsel %vm2925, %v6475, %v6477
      %v6479 = vrot.slane %v6410, 1
      %v6480 = vsel %vm2925, %v6477, %v6479
      %v6481 = vrot.slane %v6411, 1
      %v6482 = vsel %vm2925, %v6479, %v6481
      %v6483 = vrot.slane %v6412, 1
      %v6484 = vsel %vm2925, %v6481, %v6483
      %v6485 = vrot.slane %v6413, 1
      %v6486 = vsel %vm2925, %v6483, %v6485
      %v6487 = vrot.slane %v6414, 1
      %v6488 = vsel %vm2925, %v6485, %v6487
      %v6489 = vrot.slane %v6415, 1
      %v6490 = vsel %vm2925, %v6487, %v6489
      %v6491 = vrot.slane %v6416, 1
      %v6492 = vsel %vm2925, %v6489, %v6491
      %v6493 = vrot.slane %v6417, 1
      %v6494 = vsel %vm2925, %v6491, %v6493
      %v6495 = vrot.slane %v6418, 1
      %v6496 = vsel %vm2925, %v6493, %v6495
      %v6497 = vrot.slane %v6419, 1
      %v6498 = vsel %vm2925, %v6495, %v6497
      %v6536 = vunpack.c.l.b16 %v6421
      %v6537 = vunpack.c.l.b16 %v6422
      %v6538 = vunpack.c.l.b16 %v6423
      %v6539 = vunpack.c.l.b16 %v6424
      %v6540 = vunpack.c.l.b16 %v6425
      %v6541 = vunpack.c.l.b16 %v6426
      %v6542 = vunpack.c.l.b16 %v6427
      %v6543 = vunpack.c.l.b16 %v6428
      %v6544 = vunpack.c.l.b16 %v6429
      %v6545 = vunpack.c.l.b16 %v6430
      %v6546 = vunpack.c.l.b16 %v6431
      %v6547 = vunpack.c.l.b16 %v6432
      %v6548 = vunpack.c.l.b16 %v6433
      %v6549 = vunpack.c.l.b16 %v6434
      %v6550 = vunpack.c.l.b16 %v6435
      %v6551 = vunpack.c.l.b16 %v6436
      %v6552 = vpack.c.b16 %v6537, %v6536
      %v6553 = vpack.c.b16 %v6539, %v6538
      %v6554 = vpack.c.b16 %v6541, %v6540
      %v6555 = vpack.c.b16 %v6543, %v6542
      %v6556 = vpack.c.b16 %v6545, %v6544
      %v6557 = vpack.c.b16 %v6547, %v6546
      %v6558 = vpack.c.b16 %v6549, %v6548
      %v6559 = vpack.c.b16 %v6551, %v6550
      %6568 = vmatprep.subr.bf16.mxu0 0
      %6569 = vmatpush1.bf16.msra.mxu0 %v6552
      %6570 = vmatprep.subr.bf16.mxu0 0
      %6571 = vmatpush1.bf16.msra.mxu0 %v6553
      %6572 = vmatprep.subr.bf16.mxu0 0
      %6573 = vmatpush1.bf16.msra.mxu0 %v6554
      %6574 = vmatprep.subr.bf16.mxu0 0
      %6575 = vmatpush1.bf16.msra.mxu0 %v6555
      %6576 = vmatprep.subr.bf16.mxu0 0
      %6577 = vmatpush1.bf16.msra.mxu0 %v6556
      %6578 = vmatprep.subr.bf16.mxu0 0
      %6579 = vmatpush1.bf16.msra.mxu0 %v6557
      %6580 = vmatprep.subr.bf16.mxu0 0
      %6581 = vmatpush1.bf16.msra.mxu0 %v6558
      %6582 = vmatprep.subr.bf16.mxu0 0
      %6583 = vmatpush1.bf16.msra.mxu0 %v6559
      %6584 = vmatprep.subr.bf16.mxu0 0
      %6585 = vmatpush1.bf16.msra.mxu0 0
      %6586 = vmatprep.subr.bf16.mxu0 0
      %6587 = vmatpush1.bf16.msra.mxu0 0
      %6588 = vmatprep.subr.bf16.mxu0 0
      %6589 = vmatpush1.bf16.msra.mxu0 0
      %6590 = vmatprep.subr.bf16.mxu0 0
      %6591 = vmatpush1.bf16.msra.mxu0 0
      %6592 = vmatprep.subr.bf16.mxu0 0
      %6593 = vmatpush1.bf16.msra.mxu0 0
      %6594 = vmatprep.subr.bf16.mxu0 0
      %6595 = vmatpush1.bf16.msra.mxu0 0
      %6596 = vmatprep.subr.bf16.mxu0 0
      %6597 = vmatpush1.bf16.msra.mxu0 0
      %6598 = vmatprep.subr.bf16.mxu0 0
      %6599 = vmatpush1.bf16.msra.mxu0 0
      %6600 = vmatprep.mubr.bf16.mxu0 0
      %6601 = vmatmul.mubr.bf16.gmra.mrb[0].mxu0 %v6460
      %v6602 = vpop.f32.mrb[0].mxu0
      %v6603 = vadd.f32 0.0, %v6602
      %v6604 = vpop.f32.mrb[0].mxu0
      %v6605 = vpop.f32.mrb[0].mxu0
      %v6606 = vadd.f32 0.0, %v6605
      %v6607 = vpop.f32.mrb[0].mxu0
      %6608 = vmatprep.mubr.bf16.mxu0 0
      %6609 = vmatmul.mubr.bf16.gmra.mrb[0].mxu0 %v6462
      %v6610 = vpop.f32.mrb[0].mxu0
      %v6611 = vadd.f32 0.0, %v6610
      %v6612 = vpop.f32.mrb[0].mxu0
      %v6613 = vpop.f32.mrb[0].mxu0
      %v6614 = vadd.f32 0.0, %v6613
      %v6615 = vpop.f32.mrb[0].mxu0
      %6616 = vmatprep.mubr.bf16.mxu0 0
      %6617 = vmatmul.mubr.bf16.gmra.mrb[0].mxu0 %v6464
      %v6618 = vpop.f32.mrb[0].mxu0
      %v6619 = vadd.f32 0.0, %v6618
      %v6620 = vpop.f32.mrb[0].mxu0
      %v6621 = vpop.f32.mrb[0].mxu0
      %v6622 = vadd.f32 0.0, %v6621
      %v6623 = vpop.f32.mrb[0].mxu0
      %6624 = vmatprep.mubr.bf16.mxu0 0
      %6625 = vmatmul.mubr.bf16.gmra.mrb[0].mxu0 %v6466
      %v6626 = vpop.f32.mrb[0].mxu0
      %v6627 = vadd.f32 0.0, %v6626
      %v6628 = vpop.f32.mrb[0].mxu0
      %v6629 = vpop.f32.mrb[0].mxu0
      %v6630 = vadd.f32 0.0, %v6629
      %v6631 = vpop.f32.mrb[0].mxu0
      %6632 = vmatprep.mubr.bf16.mxu0 0
      %6633 = vmatmul.mubr.bf16.gmra.mrb[0].mxu0 %v6468
      %v6634 = vpop.f32.mrb[0].mxu0
      %v6635 = vadd.f32 0.0, %v6634
      %v6636 = vpop.f32.mrb[0].mxu0
      %v6637 = vpop.f32.mrb[0].mxu0
      %v6638 = vadd.f32 0.0, %v6637
      %v6639 = vpop.f32.mrb[0].mxu0
      %6640 = vmatprep.mubr.bf16.mxu0 0
      %6641 = vmatmul.mubr.bf16.gmra.mrb[0].mxu0 %v6470
      %v6642 = vpop.f32.mrb[0].mxu0
      %v6643 = vadd.f32 0.0, %v6642
      %v6644 = vpop.f32.mrb[0].mxu0
      %v6645 = vpop.f32.mrb[0].mxu0
      %v6646 = vadd.f32 0.0, %v6645
      %v6647 = vpop.f32.mrb[0].mxu0
      %6648 = vmatprep.mubr.bf16.mxu0 0
      %6649 = vmatmul.mubr.bf16.gmra.mrb[0].mxu0 %v6472
      %v6650 = vpop.f32.mrb[0].mxu0
      %v6651 = vadd.f32 0.0, %v6650
      %v6652 = vpop.f32.mrb[0].mxu0
      %v6653 = vpop.f32.mrb[0].mxu0
      %v6654 = vadd.f32 0.0, %v6653
      %v6655 = vpop.f32.mrb[0].mxu0
      %6656 = vmatprep.mubr.bf16.mxu0 0
      %6657 = vmatmul.mubr.bf16.gmra.mrb[0].mxu0 %v6474
      %v6658 = vpop.f32.mrb[0].mxu0
      %v6659 = vadd.f32 0.0, %v6658
      %v6660 = vpop.f32.mrb[0].mxu0
      %v6661 = vpop.f32.mrb[0].mxu0
      %v6662 = vadd.f32 0.0, %v6661
      %v6663 = vpop.f32.mrb[0].mxu0
      %6664 = vmatprep.mubr.bf16.mxu0 0
      %6665 = vmatmul.mubr.bf16.gmra.mrb[0].mxu0 %v6476
      %v6666 = vpop.f32.mrb[0].mxu0
      %v6667 = vadd.f32 0.0, %v6666
      %v6668 = vpop.f32.mrb[0].mxu0
      %v6669 = vpop.f32.mrb[0].mxu0
      %v6670 = vadd.f32 0.0, %v6669
      %v6671 = vpop.f32.mrb[0].mxu0
      %6672 = vmatprep.mubr.bf16.mxu0 0
      %6673 = vmatmul.mubr.bf16.gmra.mrb[0].mxu0 %v6478
      %v6674 = vpop.f32.mrb[0].mxu0
      %v6675 = vadd.f32 0.0, %v6674
      %v6676 = vpop.f32.mrb[0].mxu0
      %v6677 = vpop.f32.mrb[0].mxu0
      %v6678 = vadd.f32 0.0, %v6677
      %v6679 = vpop.f32.mrb[0].mxu0
      %6680 = vmatprep.mubr.bf16.mxu0 0
      %6681 = vmatmul.mubr.bf16.gmra.mrb[0].mxu0 %v6480
      %v6682 = vpop.f32.mrb[0].mxu0
      %v6683 = vadd.f32 0.0, %v6682
      %v6684 = vpop.f32.mrb[0].mxu0
      %v6685 = vpop.f32.mrb[0].mxu0
      %v6686 = vadd.f32 0.0, %v6685
      %v6687 = vpop.f32.mrb[0].mxu0
      %6688 = vmatprep.mubr.bf16.mxu0 0
      %6689 = vmatmul.mubr.bf16.gmra.mrb[0].mxu0 %v6482
      %v6690 = vpop.f32.mrb[0].mxu0
      %v6691 = vadd.f32 0.0, %v6690
      %v6692 = vpop.f32.mrb[0].mxu0
      %v6693 = vpop.f32.mrb[0].mxu0
      %v6694 = vadd.f32 0.0, %v6693
      %v6695 = vpop.f32.mrb[0].mxu0
      %6696 = vmatprep.mubr.bf16.mxu0 0
      %6697 = vmatmul.mubr.bf16.gmra.mrb[0].mxu0 %v6484
      %v6698 = vpop.f32.mrb[0].mxu0
      %v6699 = vadd.f32 0.0, %v6698
      %v6700 = vpop.f32.mrb[0].mxu0
      %v6701 = vpop.f32.mrb[0].mxu0
      %v6702 = vadd.f32 0.0, %v6701
      %v6703 = vpop.f32.mrb[0].mxu0
      %6704 = vmatprep.mubr.bf16.mxu0 0
      %6705 = vmatmul.mubr.bf16.gmra.mrb[0].mxu0 %v6486
      %v6706 = vpop.f32.mrb[0].mxu0
      %v6707 = vadd.f32 0.0, %v6706
      %v6708 = vpop.f32.mrb[0].mxu0
      %v6709 = vpop.f32.mrb[0].mxu0
      %v6710 = vadd.f32 0.0, %v6709
      %v6711 = vpop.f32.mrb[0].mxu0
      %6712 = vmatprep.mubr.bf16.mxu0 0
      %6713 = vmatmul.mubr.bf16.gmra.mrb[0].mxu0 %v6488
      %v6714 = vpop.f32.mrb[0].mxu0
      %v6715 = vadd.f32 0.0, %v6714
      %v6716 = vpop.f32.mrb[0].mxu0
      %v6717 = vpop.f32.mrb[0].mxu0
      %v6718 = vadd.f32 0.0, %v6717
      %v6719 = vpop.f32.mrb[0].mxu0
      %6720 = vmatprep.mubr.bf16.mxu0 0
      %6721 = vmatmul.mubr.bf16.gmra.mrb[0].mxu0 %v6490
      %v6722 = vpop.f32.mrb[0].mxu0
      %v6723 = vadd.f32 0.0, %v6722
      %v6724 = vpop.f32.mrb[0].mxu0
      %v6725 = vpop.f32.mrb[0].mxu0
      %v6726 = vadd.f32 0.0, %v6725
      %v6727 = vpop.f32.mrb[0].mxu0
      %6728 = vmatprep.mubr.bf16.mxu0 0
      %6729 = vmatmul.mubr.bf16.gmra.mrb[0].mxu0 %v6492
      %v6730 = vpop.f32.mrb[0].mxu0
      %v6731 = vadd.f32 0.0, %v6730
      %v6732 = vpop.f32.mrb[0].mxu0
      %v6733 = vpop.f32.mrb[0].mxu0
      %v6734 = vadd.f32 0.0, %v6733
      %v6735 = vpop.f32.mrb[0].mxu0
      %6736 = vmatprep.mubr.bf16.mxu0 0
      %6737 = vmatmul.mubr.bf16.gmra.mrb[0].mxu0 %v6494
      %v6738 = vpop.f32.mrb[0].mxu0
      %v6739 = vadd.f32 0.0, %v6738
      %v6740 = vpop.f32.mrb[0].mxu0
      %v6741 = vpop.f32.mrb[0].mxu0
      %v6742 = vadd.f32 0.0, %v6741
      %v6743 = vpop.f32.mrb[0].mxu0
      %6744 = vmatprep.mubr.bf16.mxu0 0
      %6745 = vmatmul.mubr.bf16.gmra.mrb[0].mxu0 %v6496
      %v6746 = vpop.f32.mrb[0].mxu0
      %v6747 = vadd.f32 0.0, %v6746
      %v6748 = vpop.f32.mrb[0].mxu0
      %v6749 = vpop.f32.mrb[0].mxu0
      %v6750 = vadd.f32 0.0, %v6749
      %v6751 = vpop.f32.mrb[0].mxu0
      %6752 = vmatprep.mubr.bf16.mxu0 0
      %6753 = vmatmul.mubr.bf16.gmra.mrb[0].mxu0 %v6498
      %v6754 = vpop.f32.mrb[0].mxu0
      %v6755 = vadd.f32 0.0, %v6754
      %v6756 = vpop.f32.mrb[0].mxu0
      %v6757 = vpop.f32.mrb[0].mxu0
      %v6758 = vadd.f32 0.0, %v6757
      %v6759 = vpop.f32.mrb[0].mxu0
      %6760 = vmatprep.mubr.bf16.mxu0 0
      %6761 = vmatmul.mubr.bf16.gmra.mrb[0].mxu0 %v6497
      %v6762 = vpop.f32.mrb[0].mxu0
      %v6763 = vadd.f32 0.0, %v6762
      %v6764 = vpop.f32.mrb[0].mxu0
      %v6765 = vpop.f32.mrb[0].mxu0
      %v6766 = vpop.f32.mrb[0].mxu0
      %6767 = vdwg.mxu0
      %v6768 = vadd.f32 %v6358, %v6603
      %v6769 = vadd.f32 %v6359, %v6606
      %v6770 = vadd.f32 %v6360, %v6611
      %v6771 = vadd.f32 %v6361, %v6614
      %v6772 = vadd.f32 %v6362, %v6619
      %v6773 = vadd.f32 %v6363, %v6622
      %v6774 = vadd.f32 %v6364, %v6627
      %v6775 = vadd.f32 %v6365, %v6630
      %v6776 = vadd.f32 %v6366, %v6635
      %v6777 = vadd.f32 %v6367, %v6638
      %v6778 = vadd.f32 %v6368, %v6643
      %v6779 = vadd.f32 %v6369, %v6646
      %v6780 = vadd.f32 %v6370, %v6651
      %v6781 = vadd.f32 %v6371, %v6654
      %v6782 = vadd.f32 %v6372, %v6659
      %v6783 = vadd.f32 %v6373, %v6662
      %v6784 = vadd.f32 %v6374, %v6667
      %v6785 = vadd.f32 %v6375, %v6670
      %v6786 = vadd.f32 %v6376, %v6675
      %v6787 = vadd.f32 %v6377, %v6678
      %v6788 = vadd.f32 %v6378, %v6683
      %v6789 = vadd.f32 %v6379, %v6686
      %v6790 = vadd.f32 %v6380, %v6691
      %v6791 = vadd.f32 %v6381, %v6694
      %v6792 = vadd.f32 %v6382, %v6699
      %v6793 = vadd.f32 %v6383, %v6702
      %v6794 = vadd.f32 %v6384, %v6707
      %v6795 = vadd.f32 %v6385, %v6710
      %v6796 = vadd.f32 %v6386, %v6715
      %v6797 = vadd.f32 %v6387, %v6718
      %v6798 = vadd.f32 %v6388, %v6723
      %v6799 = vadd.f32 %v6389, %v6726
      %v6800 = vadd.f32 %v6390, %v6731
      %v6801 = vadd.f32 %v6391, %v6734
      %v6802 = vadd.f32 %v6392, %v6739
      %v6803 = vadd.f32 %v6393, %v6742
      %v6804 = vadd.f32 %v6394, %v6747
      %v6805 = vadd.f32 %v6395, %v6750
      %v6806 = vadd.f32 %v6396, %v6755
      %v6807 = vadd.f32 %v6397, %v6758
      %v6808 = vadd.f32 %v6398, %v6763
      %v6809 = vld [vmem:[#allocation2 + $0xa8] sm:$0x3f]
      %s6810 = scalar_lea.vmem %s5, 256
      %v6811 = vld [vmem:[%s6810] sm:$0xf]
      %v6812 = vld [vmem:[%s6810 + $0x4] sm:$0xf]
      %v6813 = vld [vmem:[%s6810 + $0x8] sm:$0xf]
      %v6814 = vld [vmem:[%s6810 + $0xc] sm:$0xf]
      %v6815 = vld [vmem:[%s6810 + $0x10] sm:$0xf]
      %v6816 = vld [vmem:[%s6810 + $0x14] sm:$0xf]
      %v6817 = vld [vmem:[%s6810 + $0x18] sm:$0xf]
      %v6818 = vld [vmem:[%s6810 + $0x1c] sm:$0xf]
      %v6819 = vld [vmem:[%s6810 + $0x20] sm:$0xf]
      %v6820 = vld [vmem:[%s6810 + $0x24] sm:$0xf]
      %v6821 = vld [vmem:[%s6810 + $0x28] sm:$0xf]
      %v6822 = vld [vmem:[%s6810 + $0x2c] sm:$0xf]
      %v6823 = vld [vmem:[%s6810 + $0x30] sm:$0xf]
      %v6824 = vld [vmem:[%s6810 + $0x34] sm:$0xf]
      %v6825 = vld [vmem:[%s6810 + $0x38] sm:$0xf]
      %v6826 = vld [vmem:[%s6810 + $0x3c] sm:$0xf]
      %v6828 = vshrl.u32 %v6399, 16
      %v6830 = vrot.slane %v6828, 1
      %v6831 = vshll.u32 %v6399, 16
      %v6833 = vrot.slane %v6831, 2
      %v6834 = vor.u32 %v6830, %v6833
      %v6836 = vshrl.u32 %v6400, 16
      %v6838 = vrot.slane %v6836, 1
      %v6839 = vshll.u32 %v6400, 16
      %v6841 = vrot.slane %v6839, 2
      %v6842 = vor.u32 %v6838, %v6841
      %v6843 = vsel %vm3863, %v6834, %v6842
      %v6845 = vshrl.u32 %v6401, 16
      %v6847 = vrot.slane %v6845, 1
      %v6848 = vshll.u32 %v6401, 16
      %v6850 = vrot.slane %v6848, 2
      %v6851 = vor.u32 %v6847, %v6850
      %v6852 = vsel %vm3863, %v6842, %v6851
      %v6854 = vshrl.u32 %v6402, 16
      %v6856 = vrot.slane %v6854, 1
      %v6857 = vshll.u32 %v6402, 16
      %v6859 = vrot.slane %v6857, 2
      %v6860 = vor.u32 %v6856, %v6859
      %v6861 = vsel %vm3863, %v6851, %v6860
      %v6863 = vshrl.u32 %v6403, 16
      %v6865 = vrot.slane %v6863, 1
      %v6866 = vshll.u32 %v6403, 16
      %v6868 = vrot.slane %v6866, 2
      %v6869 = vor.u32 %v6865, %v6868
      %v6870 = vsel %vm3863, %v6860, %v6869
      %v6872 = vshrl.u32 %v6404, 16
      %v6874 = vrot.slane %v6872, 1
      %v6875 = vshll.u32 %v6404, 16
      %v6877 = vrot.slane %v6875, 2
      %v6878 = vor.u32 %v6874, %v6877
      %v6879 = vsel %vm3863, %v6869, %v6878
      %v6881 = vshrl.u32 %v6405, 16
      %v6883 = vrot.slane %v6881, 1
      %v6884 = vshll.u32 %v6405, 16
      %v6886 = vrot.slane %v6884, 2
      %v6887 = vor.u32 %v6883, %v6886
      %v6888 = vsel %vm3863, %v6878, %v6887
      %v6890 = vshrl.u32 %v6406, 16
      %v6892 = vrot.slane %v6890, 1
      %v6893 = vshll.u32 %v6406, 16
      %v6895 = vrot.slane %v6893, 2
      %v6896 = vor.u32 %v6892, %v6895
      %v6897 = vsel %vm3863, %v6887, %v6896
      %v6899 = vshrl.u32 %v6407, 16
      %v6901 = vrot.slane %v6899, 1
      %v6902 = vshll.u32 %v6407, 16
      %v6904 = vrot.slane %v6902, 2
      %v6905 = vor.u32 %v6901, %v6904
      %v6906 = vsel %vm3863, %v6896, %v6905
      %v6908 = vshrl.u32 %v6408, 16
      %v6910 = vrot.slane %v6908, 1
      %v6911 = vshll.u32 %v6408, 16
      %v6913 = vrot.slane %v6911, 2
      %v6914 = vor.u32 %v6910, %v6913
      %v6915 = vsel %vm3863, %v6905, %v6914
      %v6917 = vshrl.u32 %v6409, 16
      %v6919 = vrot.slane %v6917, 1
      %v6920 = vshll.u32 %v6409, 16
      %v6922 = vrot.slane %v6920, 2
      %v6923 = vor.u32 %v6919, %v6922
      %v6924 = vsel %vm3863, %v6914, %v6923
      %v6926 = vshrl.u32 %v6410, 16
      %v6928 = vrot.slane %v6926, 1
      %v6929 = vshll.u32 %v6410, 16
      %v6931 = vrot.slane %v6929, 2
      %v6932 = vor.u32 %v6928, %v6931
      %v6933 = vsel %vm3863, %v6923, %v6932
      %v6935 = vshrl.u32 %v6411, 16
      %v6937 = vrot.slane %v6935, 1
      %v6938 = vshll.u32 %v6411, 16
      %v6940 = vrot.slane %v6938, 2
      %v6941 = vor.u32 %v6937, %v6940
      %v6942 = vsel %vm3863, %v6932, %v6941
      %v6944 = vshrl.u32 %v6412, 16
      %v6946 = vrot.slane %v6944, 1
      %v6947 = vshll.u32 %v6412, 16
      %v6949 = vrot.slane %v6947, 2
      %v6950 = vor.u32 %v6946, %v6949
      %v6951 = vsel %vm3863, %v6941, %v6950
      %v6953 = vshrl.u32 %v6413, 16
      %v6955 = vrot.slane %v6953, 1
      %v6956 = vshll.u32 %v6413, 16
      %v6958 = vrot.slane %v6956, 2
      %v6959 = vor.u32 %v6955, %v6958
      %v6960 = vsel %vm3863, %v6950, %v6959
      %v6962 = vshrl.u32 %v6414, 16
      %v6964 = vrot.slane %v6962, 1
      %v6965 = vshll.u32 %v6414, 16
      %v6967 = vrot.slane %v6965, 2
      %v6968 = vor.u32 %v6964, %v6967
      %v6969 = vsel %vm3863, %v6959, %v6968
      %v6971 = vshrl.u32 %v6415, 16
      %v6973 = vrot.slane %v6971, 1
      %v6974 = vshll.u32 %v6415, 16
      %v6976 = vrot.slane %v6974, 2
      %v6977 = vor.u32 %v6973, %v6976
      %v6978 = vsel %vm3863, %v6968, %v6977
      %v6980 = vshrl.u32 %v6416, 16
      %v6982 = vrot.slane %v6980, 1
      %v6983 = vshll.u32 %v6416, 16
      %v6985 = vrot.slane %v6983, 2
      %v6986 = vor.u32 %v6982, %v6985
      %v6987 = vsel %vm3863, %v6977, %v6986
      %v6989 = vshrl.u32 %v6417, 16
      %v6991 = vrot.slane %v6989, 1
      %v6992 = vshll.u32 %v6417, 16
      %v6994 = vrot.slane %v6992, 2
      %v6995 = vor.u32 %v6991, %v6994
      %v6996 = vsel %vm3863, %v6986, %v6995
      %v6998 = vshrl.u32 %v6418, 16
      %v7000 = vrot.slane %v6998, 1
      %v7001 = vshll.u32 %v6418, 16
      %v7003 = vrot.slane %v7001, 2
      %v7004 = vor.u32 %v7000, %v7003
      %v7005 = vsel %vm3863, %v6995, %v7004
      %v7007 = vshrl.u32 %v6809, 16
      %v7009 = vrot.slane %v7007, 1
      %v7010 = vshll.u32 %v6809, 16
      %v7012 = vrot.slane %v7010, 2
      %v7013 = vor.u32 %v7009, %v7012
      %v7014 = vsel %vm3863, %v7004, %v7013
      %v7052 = vunpack.c.l.b16 %v6811
      %v7053 = vunpack.c.l.b16 %v6812
      %v7054 = vunpack.c.l.b16 %v6813
      %v7055 = vunpack.c.l.b16 %v6814
      %v7056 = vunpack.c.l.b16 %v6815
      %v7057 = vunpack.c.l.b16 %v6816
      %v7058 = vunpack.c.l.b16 %v6817
      %v7059 = vunpack.c.l.b16 %v6818
      %v7060 = vunpack.c.l.b16 %v6819
      %v7061 = vunpack.c.l.b16 %v6820
      %v7062 = vunpack.c.l.b16 %v6821
      %v7063 = vunpack.c.l.b16 %v6822
      %v7064 = vunpack.c.l.b16 %v6823
      %v7065 = vunpack.c.l.b16 %v6824
      %v7066 = vunpack.c.l.b16 %v6825
      %v7067 = vunpack.c.l.b16 %v6826
      %v7068 = vpack.c.b16 %v7053, %v7052
      %v7069 = vpack.c.b16 %v7055, %v7054
      %v7070 = vpack.c.b16 %v7057, %v7056
      %v7071 = vpack.c.b16 %v7059, %v7058
      %v7072 = vpack.c.b16 %v7061, %v7060
      %v7073 = vpack.c.b16 %v7063, %v7062
      %v7074 = vpack.c.b16 %v7065, %v7064
      %v7075 = vpack.c.b16 %v7067, %v7066
      %7084 = vmatprep.subr.bf16.mxu0 0
      %7085 = vmatpush1.bf16.msra.mxu0 %v7068
      %7086 = vmatprep.subr.bf16.mxu0 0
      %7087 = vmatpush1.bf16.msra.mxu0 %v7069
      %7088 = vmatprep.subr.bf16.mxu0 0
      %7089 = vmatpush1.bf16.msra.mxu0 %v7070
      %7090 = vmatprep.subr.bf16.mxu0 0
      %7091 = vmatpush1.bf16.msra.mxu0 %v7071
      %7092 = vmatprep.subr.bf16.mxu0 0
      %7093 = vmatpush1.bf16.msra.mxu0 %v7072
      %7094 = vmatprep.subr.bf16.mxu0 0
      %7095 = vmatpush1.bf16.msra.mxu0 %v7073
      %7096 = vmatprep.subr.bf16.mxu0 0
      %7097 = vmatpush1.bf16.msra.mxu0 %v7074
      %7098 = vmatprep.subr.bf16.mxu0 0
      %7099 = vmatpush1.bf16.msra.mxu0 %v7075
      %7100 = vmatprep.subr.bf16.mxu0 0
      %7101 = vmatpush1.bf16.msra.mxu0 0
      %7102 = vmatprep.subr.bf16.mxu0 0
      %7103 = vmatpush1.bf16.msra.mxu0 0
      %7104 = vmatprep.subr.bf16.mxu0 0
      %7105 = vmatpush1.bf16.msra.mxu0 0
      %7106 = vmatprep.subr.bf16.mxu0 0
      %7107 = vmatpush1.bf16.msra.mxu0 0
      %7108 = vmatprep.subr.bf16.mxu0 0
      %7109 = vmatpush1.bf16.msra.mxu0 0
      %7110 = vmatprep.subr.bf16.mxu0 0
      %7111 = vmatpush1.bf16.msra.mxu0 0
      %7112 = vmatprep.subr.bf16.mxu0 0
      %7113 = vmatpush1.bf16.msra.mxu0 0
      %7114 = vmatprep.subr.bf16.mxu0 0
      %7115 = vmatpush1.bf16.msra.mxu0 0
      %7116 = vmatprep.mubr.bf16.mxu0 0
      %7117 = vmatmul.mubr.bf16.gmra.mrb[0].mxu0 %v6843
      %v7118 = vpop.f32.mrb[0].mxu0
      %v7119 = vadd.f32 0.0, %v7118
      %v7120 = vpop.f32.mrb[0].mxu0
      %v7121 = vpop.f32.mrb[0].mxu0
      %v7122 = vadd.f32 0.0, %v7121
      %v7123 = vpop.f32.mrb[0].mxu0
      %7124 = vmatprep.mubr.bf16.mxu0 0
      %7125 = vmatmul.mubr.bf16.gmra.mrb[0].mxu0 %v6852
      %v7126 = vpop.f32.mrb[0].mxu0
      %v7127 = vadd.f32 0.0, %v7126
      %v7128 = vpop.f32.mrb[0].mxu0
      %v7129 = vpop.f32.mrb[0].mxu0
      %v7130 = vadd.f32 0.0, %v7129
      %v7131 = vpop.f32.mrb[0].mxu0
      %7132 = vmatprep.mubr.bf16.mxu0 0
      %7133 = vmatmul.mubr.bf16.gmra.mrb[0].mxu0 %v6861
      %v7134 = vpop.f32.mrb[0].mxu0
      %v7135 = vadd.f32 0.0, %v7134
      %v7136 = vpop.f32.mrb[0].mxu0
      %v7137 = vpop.f32.mrb[0].mxu0
      %v7138 = vadd.f32 0.0, %v7137
      %v7139 = vpop.f32.mrb[0].mxu0
      %7140 = vmatprep.mubr.bf16.mxu0 0
      %7141 = vmatmul.mubr.bf16.gmra.mrb[0].mxu0 %v6870
      %v7142 = vpop.f32.mrb[0].mxu0
      %v7143 = vadd.f32 0.0, %v7142
      %v7144 = vpop.f32.mrb[0].mxu0
      %v7145 = vpop.f32.mrb[0].mxu0
      %v7146 = vadd.f32 0.0, %v7145
      %v7147 = vpop.f32.mrb[0].mxu0
      %7148 = vmatprep.mubr.bf16.mxu0 0
      %7149 = vmatmul.mubr.bf16.gmra.mrb[0].mxu0 %v6879
      %v7150 = vpop.f32.mrb[0].mxu0
      %v7151 = vadd.f32 0.0, %v7150
      %v7152 = vpop.f32.mrb[0].mxu0
      %v7153 = vpop.f32.mrb[0].mxu0
      %v7154 = vadd.f32 0.0, %v7153
      %v7155 = vpop.f32.mrb[0].mxu0
      %7156 = vmatprep.mubr.bf16.mxu0 0
      %7157 = vmatmul.mubr.bf16.gmra.mrb[0].mxu0 %v6888
      %v7158 = vpop.f32.mrb[0].mxu0
      %v7159 = vadd.f32 0.0, %v7158
      %v7160 = vpop.f32.mrb[0].mxu0
      %v7161 = vpop.f32.mrb[0].mxu0
      %v7162 = vadd.f32 0.0, %v7161
      %v7163 = vpop.f32.mrb[0].mxu0
      %7164 = vmatprep.mubr.bf16.mxu0 0
      %7165 = vmatmul.mubr.bf16.gmra.mrb[0].mxu0 %v6897
      %v7166 = vpop.f32.mrb[0].mxu0
      %v7167 = vadd.f32 0.0, %v7166
      %v7168 = vpop.f32.mrb[0].mxu0
      %v7169 = vpop.f32.mrb[0].mxu0
      %v7170 = vadd.f32 0.0, %v7169
      %v7171 = vpop.f32.mrb[0].mxu0
      %7172 = vmatprep.mubr.bf16.mxu0 0
      %7173 = vmatmul.mubr.bf16.gmra.mrb[0].mxu0 %v6906
      %v7174 = vpop.f32.mrb[0].mxu0
      %v7175 = vadd.f32 0.0, %v7174
      %v7176 = vpop.f32.mrb[0].mxu0
      %v7177 = vpop.f32.mrb[0].mxu0
      %v7178 = vadd.f32 0.0, %v7177
      %v7179 = vpop.f32.mrb[0].mxu0
      %7180 = vmatprep.mubr.bf16.mxu0 0
      %7181 = vmatmul.mubr.bf16.gmra.mrb[0].mxu0 %v6915
      %v7182 = vpop.f32.mrb[0].mxu0
      %v7183 = vadd.f32 0.0, %v7182
      %v7184 = vpop.f32.mrb[0].mxu0
      %v7185 = vpop.f32.mrb[0].mxu0
      %v7186 = vadd.f32 0.0, %v7185
      %v7187 = vpop.f32.mrb[0].mxu0
      %7188 = vmatprep.mubr.bf16.mxu0 0
      %7189 = vmatmul.mubr.bf16.gmra.mrb[0].mxu0 %v6924
      %v7190 = vpop.f32.mrb[0].mxu0
      %v7191 = vadd.f32 0.0, %v7190
      %v7192 = vpop.f32.mrb[0].mxu0
      %v7193 = vpop.f32.mrb[0].mxu0
      %v7194 = vadd.f32 0.0, %v7193
      %v7195 = vpop.f32.mrb[0].mxu0
      %7196 = vmatprep.mubr.bf16.mxu0 0
      %7197 = vmatmul.mubr.bf16.gmra.mrb[0].mxu0 %v6933
      %v7198 = vpop.f32.mrb[0].mxu0
      %v7199 = vadd.f32 0.0, %v7198
      %v7200 = vpop.f32.mrb[0].mxu0
      %v7201 = vpop.f32.mrb[0].mxu0
      %v7202 = vadd.f32 0.0, %v7201
      %v7203 = vpop.f32.mrb[0].mxu0
      %7204 = vmatprep.mubr.bf16.mxu0 0
      %7205 = vmatmul.mubr.bf16.gmra.mrb[0].mxu0 %v6942
      %v7206 = vpop.f32.mrb[0].mxu0
      %v7207 = vadd.f32 0.0, %v7206
      %v7208 = vpop.f32.mrb[0].mxu0
      %v7209 = vpop.f32.mrb[0].mxu0
      %v7210 = vadd.f32 0.0, %v7209
      %v7211 = vpop.f32.mrb[0].mxu0
      %7212 = vmatprep.mubr.bf16.mxu0 0
      %7213 = vmatmul.mubr.bf16.gmra.mrb[0].mxu0 %v6951
      %v7214 = vpop.f32.mrb[0].mxu0
      %v7215 = vadd.f32 0.0, %v7214
      %v7216 = vpop.f32.mrb[0].mxu0
      %v7217 = vpop.f32.mrb[0].mxu0
      %v7218 = vadd.f32 0.0, %v7217
      %v7219 = vpop.f32.mrb[0].mxu0
      %7220 = vmatprep.mubr.bf16.mxu0 0
      %7221 = vmatmul.mubr.bf16.gmra.mrb[0].mxu0 %v6960
      %v7222 = vpop.f32.mrb[0].mxu0
      %v7223 = vadd.f32 0.0, %v7222
      %v7224 = vpop.f32.mrb[0].mxu0
      %v7225 = vpop.f32.mrb[0].mxu0
      %v7226 = vadd.f32 0.0, %v7225
      %v7227 = vpop.f32.mrb[0].mxu0
      %7228 = vmatprep.mubr.bf16.mxu0 0
      %7229 = vmatmul.mubr.bf16.gmra.mrb[0].mxu0 %v6969
      %v7230 = vpop.f32.mrb[0].mxu0
      %v7231 = vadd.f32 0.0, %v7230
      %v7232 = vpop.f32.mrb[0].mxu0
      %v7233 = vpop.f32.mrb[0].mxu0
      %v7234 = vadd.f32 0.0, %v7233
      %v7235 = vpop.f32.mrb[0].mxu0
      %7236 = vmatprep.mubr.bf16.mxu0 0
      %7237 = vmatmul.mubr.bf16.gmra.mrb[0].mxu0 %v6978
      %v7238 = vpop.f32.mrb[0].mxu0
      %v7239 = vadd.f32 0.0, %v7238
      %v7240 = vpop.f32.mrb[0].mxu0
      %v7241 = vpop.f32.mrb[0].mxu0
      %v7242 = vadd.f32 0.0, %v7241
      %v7243 = vpop.f32.mrb[0].mxu0
      %7244 = vmatprep.mubr.bf16.mxu0 0
      %7245 = vmatmul.mubr.bf16.gmra.mrb[0].mxu0 %v6987
      %v7246 = vpop.f32.mrb[0].mxu0
      %v7247 = vadd.f32 0.0, %v7246
      %v7248 = vpop.f32.mrb[0].mxu0
      %v7249 = vpop.f32.mrb[0].mxu0
      %v7250 = vadd.f32 0.0, %v7249
      %v7251 = vpop.f32.mrb[0].mxu0
      %7252 = vmatprep.mubr.bf16.mxu0 0
      %7253 = vmatmul.mubr.bf16.gmra.mrb[0].mxu0 %v6996
      %v7254 = vpop.f32.mrb[0].mxu0
      %v7255 = vadd.f32 0.0, %v7254
      %v7256 = vpop.f32.mrb[0].mxu0
      %v7257 = vpop.f32.mrb[0].mxu0
      %v7258 = vadd.f32 0.0, %v7257
      %v7259 = vpop.f32.mrb[0].mxu0
      %7260 = vmatprep.mubr.bf16.mxu0 0
      %7261 = vmatmul.mubr.bf16.gmra.mrb[0].mxu0 %v7005
      %v7262 = vpop.f32.mrb[0].mxu0
      %v7263 = vadd.f32 0.0, %v7262
      %v7264 = vpop.f32.mrb[0].mxu0
      %v7265 = vpop.f32.mrb[0].mxu0
      %v7266 = vadd.f32 0.0, %v7265
      %v7267 = vpop.f32.mrb[0].mxu0
      %7268 = vmatprep.mubr.bf16.mxu0 0
      %7269 = vmatmul.mubr.bf16.gmra.mrb[0].mxu0 %v7014
      %v7270 = vpop.f32.mrb[0].mxu0
      %v7271 = vadd.f32 0.0, %v7270
      %v7272 = vpop.f32.mrb[0].mxu0
      %v7273 = vpop.f32.mrb[0].mxu0
      %v7274 = vadd.f32 0.0, %v7273
      %v7275 = vpop.f32.mrb[0].mxu0
      %7276 = vmatprep.mubr.bf16.mxu0 0
      %7277 = vmatmul.mubr.bf16.gmra.mrb[0].mxu0 %v7013
      %v7278 = vpop.f32.mrb[0].mxu0
      %v7279 = vadd.f32 0.0, %v7278
      %v7280 = vpop.f32.mrb[0].mxu0
      %v7281 = vpop.f32.mrb[0].mxu0
      %v7282 = vpop.f32.mrb[0].mxu0
      %7283 = vdwg.mxu0
      %v7284 = vadd.f32 %v6768, %v7119
      %v7285 = vadd.f32 %v6769, %v7122
      %v7286 = vadd.f32 %v6770, %v7127
      %v7287 = vadd.f32 %v6771, %v7130
      %v7288 = vadd.f32 %v6772, %v7135
      %v7289 = vadd.f32 %v6773, %v7138
      %v7290 = vadd.f32 %v6774, %v7143
      %v7291 = vadd.f32 %v6775, %v7146
      %v7292 = vadd.f32 %v6776, %v7151
      %v7293 = vadd.f32 %v6777, %v7154
      %v7294 = vadd.f32 %v6778, %v7159
      %v7295 = vadd.f32 %v6779, %v7162
      %v7296 = vadd.f32 %v6780, %v7167
      %v7297 = vadd.f32 %v6781, %v7170
      %v7298 = vadd.f32 %v6782, %v7175
      %v7299 = vadd.f32 %v6783, %v7178
      %v7300 = vadd.f32 %v6784, %v7183
      %v7301 = vadd.f32 %v6785, %v7186
      %v7302 = vadd.f32 %v6786, %v7191
      %v7303 = vadd.f32 %v6787, %v7194
      %v7304 = vadd.f32 %v6788, %v7199
      %v7305 = vadd.f32 %v6789, %v7202
      %v7306 = vadd.f32 %v6790, %v7207
      %v7307 = vadd.f32 %v6791, %v7210
      %v7308 = vadd.f32 %v6792, %v7215
      %v7309 = vadd.f32 %v6793, %v7218
      %v7310 = vadd.f32 %v6794, %v7223
      %v7311 = vadd.f32 %v6795, %v7226
      %v7312 = vadd.f32 %v6796, %v7231
      %v7313 = vadd.f32 %v6797, %v7234
      %v7314 = vadd.f32 %v6798, %v7239
      %v7315 = vadd.f32 %v6799, %v7242
      %v7316 = vadd.f32 %v6800, %v7247
      %v7317 = vadd.f32 %v6801, %v7250
      %v7318 = vadd.f32 %v6802, %v7255
      %v7319 = vadd.f32 %v6803, %v7258
      %v7320 = vadd.f32 %v6804, %v7263
      %v7321 = vadd.f32 %v6805, %v7266
      %v7322 = vadd.f32 %v6806, %v7271
      %v7323 = vadd.f32 %v6807, %v7274
      %v7324 = vadd.f32 %v6808, %v7279
      %v7325 = vld [vmem:[#allocation2 + $0x8] sm:$0xfc]
      %s7326 = scalar_lea.vmem %s5, 320
      %v7327 = vld [vmem:[%s7326] sm:$0xf]
      %v7328 = vld [vmem:[%s7326 + $0x4] sm:$0xf]
      %v7329 = vld [vmem:[%s7326 + $0x8] sm:$0xf]
      %v7330 = vld [vmem:[%s7326 + $0xc] sm:$0xf]
      %v7331 = vld [vmem:[%s7326 + $0x10] sm:$0xf]
      %v7332 = vld [vmem:[%s7326 + $0x14] sm:$0xf]
      %v7333 = vld [vmem:[%s7326 + $0x18] sm:$0xf]
      %v7334 = vld [vmem:[%s7326 + $0x1c] sm:$0xf]
      %v7335 = vld [vmem:[%s7326 + $0x20] sm:$0xf]
      %v7336 = vld [vmem:[%s7326 + $0x24] sm:$0xf]
      %v7337 = vld [vmem:[%s7326 + $0x28] sm:$0xf]
      %v7338 = vld [vmem:[%s7326 + $0x2c] sm:$0xf]
      %v7339 = vld [vmem:[%s7326 + $0x30] sm:$0xf]
      %v7340 = vld [vmem:[%s7326 + $0x34] sm:$0xf]
      %v7341 = vld [vmem:[%s7326 + $0x38] sm:$0xf]
      %v7342 = vld [vmem:[%s7326 + $0x3c] sm:$0xf]
      %v7345 = vrot.slane %v7325, 2
      %v7346 = vrot.slane %v6400, 2
      %v7347 = vsel %vm4420, %v7345, %v7346
      %v7348 = vrot.slane %v6401, 2
      %v7349 = vsel %vm4420, %v7346, %v7348
      %v7350 = vrot.slane %v6402, 2
      %v7351 = vsel %vm4420, %v7348, %v7350
      %v7352 = vrot.slane %v6403, 2
      %v7353 = vsel %vm4420, %v7350, %v7352
      %v7354 = vrot.slane %v6404, 2
      %v7355 = vsel %vm4420, %v7352, %v7354
      %v7356 = vrot.slane %v6405, 2
      %v7357 = vsel %vm4420, %v7354, %v7356
      %v7358 = vrot.slane %v6406, 2
      %v7359 = vsel %vm4420, %v7356, %v7358
      %v7360 = vrot.slane %v6407, 2
      %v7361 = vsel %vm4420, %v7358, %v7360
      %v7362 = vrot.slane %v6408, 2
      %v7363 = vsel %vm4420, %v7360, %v7362
      %v7364 = vrot.slane %v6409, 2
      %v7365 = vsel %vm4420, %v7362, %v7364
      %v7366 = vrot.slane %v6410, 2
      %v7367 = vsel %vm4420, %v7364, %v7366
      %v7368 = vrot.slane %v6411, 2
      %v7369 = vsel %vm4420, %v7366, %v7368
      %v7370 = vrot.slane %v6412, 2
      %v7371 = vsel %vm4420, %v7368, %v7370
      %v7372 = vrot.slane %v6413, 2
      %v7373 = vsel %vm4420, %v7370, %v7372
      %v7374 = vrot.slane %v6414, 2
      %v7375 = vsel %vm4420, %v7372, %v7374
      %v7376 = vrot.slane %v6415, 2
      %v7377 = vsel %vm4420, %v7374, %v7376
      %v7378 = vrot.slane %v6416, 2
      %v7379 = vsel %vm4420, %v7376, %v7378
      %v7380 = vrot.slane %v6417, 2
      %v7381 = vsel %vm4420, %v7378, %v7380
      %v7382 = vrot.slane %v6418, 2
      %v7383 = vsel %vm4420, %v7380, %v7382
      %v7384 = vrot.slane %v6809, 2
      %v7385 = vsel %vm4420, %v7382, %v7384
      %v7423 = vunpack.c.l.b16 %v7327
      %v7424 = vunpack.c.l.b16 %v7328
      %v7425 = vunpack.c.l.b16 %v7329
      %v7426 = vunpack.c.l.b16 %v7330
      %v7427 = vunpack.c.l.b16 %v7331
      %v7428 = vunpack.c.l.b16 %v7332
      %v7429 = vunpack.c.l.b16 %v7333
      %v7430 = vunpack.c.l.b16 %v7334
      %v7431 = vunpack.c.l.b16 %v7335
      %v7432 = vunpack.c.l.b16 %v7336
      %v7433 = vunpack.c.l.b16 %v7337
      %v7434 = vunpack.c.l.b16 %v7338
      %v7435 = vunpack.c.l.b16 %v7339
      %v7436 = vunpack.c.l.b16 %v7340
      %v7437 = vunpack.c.l.b16 %v7341
      %v7438 = vunpack.c.l.b16 %v7342
      %v7439 = vpack.c.b16 %v7424, %v7423
      %v7440 = vpack.c.b16 %v7426, %v7425
      %v7441 = vpack.c.b16 %v7428, %v7427
      %v7442 = vpack.c.b16 %v7430, %v7429
      %v7443 = vpack.c.b16 %v7432, %v7431
      %v7444 = vpack.c.b16 %v7434, %v7433
      %v7445 = vpack.c.b16 %v7436, %v7435
      %v7446 = vpack.c.b16 %v7438, %v7437
      %7455 = vmatprep.subr.bf16.mxu0 0
      %7456 = vmatpush1.bf16.msra.mxu0 %v7439
      %7457 = vmatprep.subr.bf16.mxu0 0
      %7458 = vmatpush1.bf16.msra.mxu0 %v7440
      %7459 = vmatprep.subr.bf16.mxu0 0
      %7460 = vmatpush1.bf16.msra.mxu0 %v7441
      %7461 = vmatprep.subr.bf16.mxu0 0
      %7462 = vmatpush1.bf16.msra.mxu0 %v7442
      %7463 = vmatprep.subr.bf16.mxu0 0
      %7464 = vmatpush1.bf16.msra.mxu0 %v7443
      %7465 = vmatprep.subr.bf16.mxu0 0
      %7466 = vmatpush1.bf16.msra.mxu0 %v7444
      %7467 = vmatprep.subr.bf16.mxu0 0
      %7468 = vmatpush1.bf16.msra.mxu0 %v7445
      %7469 = vmatprep.subr.bf16.mxu0 0
      %7470 = vmatpush1.bf16.msra.mxu0 %v7446
      %7471 = vmatprep.subr.bf16.mxu0 0
      %7472 = vmatpush1.bf16.msra.mxu0 0
      %7473 = vmatprep.subr.bf16.mxu0 0
      %7474 = vmatpush1.bf16.msra.mxu0 0
      %7475 = vmatprep.subr.bf16.mxu0 0
      %7476 = vmatpush1.bf16.msra.mxu0 0
      %7477 = vmatprep.subr.bf16.mxu0 0
      %7478 = vmatpush1.bf16.msra.mxu0 0
      %7479 = vmatprep.subr.bf16.mxu0 0
      %7480 = vmatpush1.bf16.msra.mxu0 0
      %7481 = vmatprep.subr.bf16.mxu0 0
      %7482 = vmatpush1.bf16.msra.mxu0 0
      %7483 = vmatprep.subr.bf16.mxu0 0
      %7484 = vmatpush1.bf16.msra.mxu0 0
      %7485 = vmatprep.subr.bf16.mxu0 0
      %7486 = vmatpush1.bf16.msra.mxu0 0
      %7487 = vmatprep.mubr.bf16.mxu0 0
      %7488 = vmatmul.mubr.bf16.gmra.mrb[0].mxu0 %v7347
      %v7489 = vpop.f32.mrb[0].mxu0
      %v7490 = vadd.f32 0.0, %v7489
      %v7491 = vpop.f32.mrb[0].mxu0
      %v7492 = vpop.f32.mrb[0].mxu0
      %v7493 = vadd.f32 0.0, %v7492
      %v7494 = vpop.f32.mrb[0].mxu0
      %7495 = vmatprep.mubr.bf16.mxu0 0
      %7496 = vmatmul.mubr.bf16.gmra.mrb[0].mxu0 %v7349
      %v7497 = vpop.f32.mrb[0].mxu0
      %v7498 = vadd.f32 0.0, %v7497
      %v7499 = vpop.f32.mrb[0].mxu0
      %v7500 = vpop.f32.mrb[0].mxu0
      %v7501 = vadd.f32 0.0, %v7500
      %v7502 = vpop.f32.mrb[0].mxu0
      %7503 = vmatprep.mubr.bf16.mxu0 0
      %7504 = vmatmul.mubr.bf16.gmra.mrb[0].mxu0 %v7351
      %v7505 = vpop.f32.mrb[0].mxu0
      %v7506 = vadd.f32 0.0, %v7505
      %v7507 = vpop.f32.mrb[0].mxu0
      %v7508 = vpop.f32.mrb[0].mxu0
      %v7509 = vadd.f32 0.0, %v7508
      %v7510 = vpop.f32.mrb[0].mxu0
      %7511 = vmatprep.mubr.bf16.mxu0 0
      %7512 = vmatmul.mubr.bf16.gmra.mrb[0].mxu0 %v7353
      %v7513 = vpop.f32.mrb[0].mxu0
      %v7514 = vadd.f32 0.0, %v7513
      %v7515 = vpop.f32.mrb[0].mxu0
      %v7516 = vpop.f32.mrb[0].mxu0
      %v7517 = vadd.f32 0.0, %v7516
      %v7518 = vpop.f32.mrb[0].mxu0
      %7519 = vmatprep.mubr.bf16.mxu0 0
      %7520 = vmatmul.mubr.bf16.gmra.mrb[0].mxu0 %v7355
      %v7521 = vpop.f32.mrb[0].mxu0
      %v7522 = vadd.f32 0.0, %v7521
      %v7523 = vpop.f32.mrb[0].mxu0
      %v7524 = vpop.f32.mrb[0].mxu0
      %v7525 = vadd.f32 0.0, %v7524
      %v7526 = vpop.f32.mrb[0].mxu0
      %7527 = vmatprep.mubr.bf16.mxu0 0
      %7528 = vmatmul.mubr.bf16.gmra.mrb[0].mxu0 %v7357
      %v7529 = vpop.f32.mrb[0].mxu0
      %v7530 = vadd.f32 0.0, %v7529
      %v7531 = vpop.f32.mrb[0].mxu0
      %v7532 = vpop.f32.mrb[0].mxu0
      %v7533 = vadd.f32 0.0, %v7532
      %v7534 = vpop.f32.mrb[0].mxu0
      %7535 = vmatprep.mubr.bf16.mxu0 0
      %7536 = vmatmul.mubr.bf16.gmra.mrb[0].mxu0 %v7359
      %v7537 = vpop.f32.mrb[0].mxu0
      %v7538 = vadd.f32 0.0, %v7537
      %v7539 = vpop.f32.mrb[0].mxu0
      %v7540 = vpop.f32.mrb[0].mxu0
      %v7541 = vadd.f32 0.0, %v7540
      %v7542 = vpop.f32.mrb[0].mxu0
      %7543 = vmatprep.mubr.bf16.mxu0 0
      %7544 = vmatmul.mubr.bf16.gmra.mrb[0].mxu0 %v7361
      %v7545 = vpop.f32.mrb[0].mxu0
      %v7546 = vadd.f32 0.0, %v7545
      %v7547 = vpop.f32.mrb[0].mxu0
      %v7548 = vpop.f32.mrb[0].mxu0
      %v7549 = vadd.f32 0.0, %v7548
      %v7550 = vpop.f32.mrb[0].mxu0
      %7551 = vmatprep.mubr.bf16.mxu0 0
      %7552 = vmatmul.mubr.bf16.gmra.mrb[0].mxu0 %v7363
      %v7553 = vpop.f32.mrb[0].mxu0
      %v7554 = vadd.f32 0.0, %v7553
      %v7555 = vpop.f32.mrb[0].mxu0
      %v7556 = vpop.f32.mrb[0].mxu0
      %v7557 = vadd.f32 0.0, %v7556
      %v7558 = vpop.f32.mrb[0].mxu0
      %7559 = vmatprep.mubr.bf16.mxu0 0
      %7560 = vmatmul.mubr.bf16.gmra.mrb[0].mxu0 %v7365
      %v7561 = vpop.f32.mrb[0].mxu0
      %v7562 = vadd.f32 0.0, %v7561
      %v7563 = vpop.f32.mrb[0].mxu0
      %v7564 = vpop.f32.mrb[0].mxu0
      %v7565 = vadd.f32 0.0, %v7564
      %v7566 = vpop.f32.mrb[0].mxu0
      %7567 = vmatprep.mubr.bf16.mxu0 0
      %7568 = vmatmul.mubr.bf16.gmra.mrb[0].mxu0 %v7367
      %v7569 = vpop.f32.mrb[0].mxu0
      %v7570 = vadd.f32 0.0, %v7569
      %v7571 = vpop.f32.mrb[0].mxu0
      %v7572 = vpop.f32.mrb[0].mxu0
      %v7573 = vadd.f32 0.0, %v7572
      %v7574 = vpop.f32.mrb[0].mxu0
      %7575 = vmatprep.mubr.bf16.mxu0 0
      %7576 = vmatmul.mubr.bf16.gmra.mrb[0].mxu0 %v7369
      %v7577 = vpop.f32.mrb[0].mxu0
      %v7578 = vadd.f32 0.0, %v7577
      %v7579 = vpop.f32.mrb[0].mxu0
      %v7580 = vpop.f32.mrb[0].mxu0
      %v7581 = vadd.f32 0.0, %v7580
      %v7582 = vpop.f32.mrb[0].mxu0
      %7583 = vmatprep.mubr.bf16.mxu0 0
      %7584 = vmatmul.mubr.bf16.gmra.mrb[0].mxu0 %v7371
      %v7585 = vpop.f32.mrb[0].mxu0
      %v7586 = vadd.f32 0.0, %v7585
      %v7587 = vpop.f32.mrb[0].mxu0
      %v7588 = vpop.f32.mrb[0].mxu0
      %v7589 = vadd.f32 0.0, %v7588
      %v7590 = vpop.f32.mrb[0].mxu0
      %7591 = vmatprep.mubr.bf16.mxu0 0
      %7592 = vmatmul.mubr.bf16.gmra.mrb[0].mxu0 %v7373
      %v7593 = vpop.f32.mrb[0].mxu0
      %v7594 = vadd.f32 0.0, %v7593
      %v7595 = vpop.f32.mrb[0].mxu0
      %v7596 = vpop.f32.mrb[0].mxu0
      %v7597 = vadd.f32 0.0, %v7596
      %v7598 = vpop.f32.mrb[0].mxu0
      %7599 = vmatprep.mubr.bf16.mxu0 0
      %7600 = vmatmul.mubr.bf16.gmra.mrb[0].mxu0 %v7375
      %v7601 = vpop.f32.mrb[0].mxu0
      %v7602 = vadd.f32 0.0, %v7601
      %v7603 = vpop.f32.mrb[0].mxu0
      %v7604 = vpop.f32.mrb[0].mxu0
      %v7605 = vadd.f32 0.0, %v7604
      %v7606 = vpop.f32.mrb[0].mxu0
      %7607 = vmatprep.mubr.bf16.mxu0 0
      %7608 = vmatmul.mubr.bf16.gmra.mrb[0].mxu0 %v7377
      %v7609 = vpop.f32.mrb[0].mxu0
      %v7610 = vadd.f32 0.0, %v7609
      %v7611 = vpop.f32.mrb[0].mxu0
      %v7612 = vpop.f32.mrb[0].mxu0
      %v7613 = vadd.f32 0.0, %v7612
      %v7614 = vpop.f32.mrb[0].mxu0
      %7615 = vmatprep.mubr.bf16.mxu0 0
      %7616 = vmatmul.mubr.bf16.gmra.mrb[0].mxu0 %v7379
      %v7617 = vpop.f32.mrb[0].mxu0
      %v7618 = vadd.f32 0.0, %v7617
      %v7619 = vpop.f32.mrb[0].mxu0
      %v7620 = vpop.f32.mrb[0].mxu0
      %v7621 = vadd.f32 0.0, %v7620
      %v7622 = vpop.f32.mrb[0].mxu0
      %7623 = vmatprep.mubr.bf16.mxu0 0
      %7624 = vmatmul.mubr.bf16.gmra.mrb[0].mxu0 %v7381
      %v7625 = vpop.f32.mrb[0].mxu0
      %v7626 = vadd.f32 0.0, %v7625
      %v7627 = vpop.f32.mrb[0].mxu0
      %v7628 = vpop.f32.mrb[0].mxu0
      %v7629 = vadd.f32 0.0, %v7628
      %v7630 = vpop.f32.mrb[0].mxu0
      %7631 = vmatprep.mubr.bf16.mxu0 0
      %7632 = vmatmul.mubr.bf16.gmra.mrb[0].mxu0 %v7383
      %v7633 = vpop.f32.mrb[0].mxu0
      %v7634 = vadd.f32 0.0, %v7633
      %v7635 = vpop.f32.mrb[0].mxu0
      %v7636 = vpop.f32.mrb[0].mxu0
      %v7637 = vadd.f32 0.0, %v7636
      %v7638 = vpop.f32.mrb[0].mxu0
      %7639 = vmatprep.mubr.bf16.mxu0 0
      %7640 = vmatmul.mubr.bf16.gmra.mrb[0].mxu0 %v7385
      %v7641 = vpop.f32.mrb[0].mxu0
      %v7642 = vadd.f32 0.0, %v7641
      %v7643 = vpop.f32.mrb[0].mxu0
      %v7644 = vpop.f32.mrb[0].mxu0
      %v7645 = vadd.f32 0.0, %v7644
      %v7646 = vpop.f32.mrb[0].mxu0
      %7647 = vmatprep.mubr.bf16.mxu0 0
      %7648 = vmatmul.mubr.bf16.gmra.mrb[0].mxu0 %v7384
      %v7649 = vpop.f32.mrb[0].mxu0
      %v7650 = vadd.f32 0.0, %v7649
      %v7651 = vpop.f32.mrb[0].mxu0
      %v7652 = vpop.f32.mrb[0].mxu0
      %v7653 = vpop.f32.mrb[0].mxu0
      %7654 = vdwg.mxu0
      %v7655 = vadd.f32 %v7284, %v7490
      %v7656 = vadd.f32 %v7285, %v7493
      %v7657 = vadd.f32 %v7286, %v7498
      %v7658 = vadd.f32 %v7287, %v7501
      %v7659 = vadd.f32 %v7288, %v7506
      %v7660 = vadd.f32 %v7289, %v7509
      %v7661 = vadd.f32 %v7290, %v7514
      %v7662 = vadd.f32 %v7291, %v7517
      %v7663 = vadd.f32 %v7292, %v7522
      %v7664 = vadd.f32 %v7293, %v7525
      %v7665 = vadd.f32 %v7294, %v7530
      %v7666 = vadd.f32 %v7295, %v7533
      %v7667 = vadd.f32 %v7296, %v7538
      %v7668 = vadd.f32 %v7297, %v7541
      %v7669 = vadd.f32 %v7298, %v7546
      %v7670 = vadd.f32 %v7299, %v7549
      %v7671 = vadd.f32 %v7300, %v7554
      %v7672 = vadd.f32 %v7301, %v7557
      %v7673 = vadd.f32 %v7302, %v7562
      %v7674 = vadd.f32 %v7303, %v7565
      %v7675 = vadd.f32 %v7304, %v7570
      %v7676 = vadd.f32 %v7305, %v7573
      %v7677 = vadd.f32 %v7306, %v7578
      %v7678 = vadd.f32 %v7307, %v7581
      %v7679 = vadd.f32 %v7308, %v7586
      %v7680 = vadd.f32 %v7309, %v7589
      %v7681 = vadd.f32 %v7310, %v7594
      %v7682 = vadd.f32 %v7311, %v7597
      %v7683 = vadd.f32 %v7312, %v7602
      %v7684 = vadd.f32 %v7313, %v7605
      %v7685 = vadd.f32 %v7314, %v7610
      %v7686 = vadd.f32 %v7315, %v7613
      %v7687 = vadd.f32 %v7316, %v7618
      %v7688 = vadd.f32 %v7317, %v7621
      %v7689 = vadd.f32 %v7318, %v7626
      %v7690 = vadd.f32 %v7319, %v7629
      %v7691 = vadd.f32 %v7320, %v7634
      %v7692 = vadd.f32 %v7321, %v7637
      %v7693 = vadd.f32 %v7322, %v7642
      %v7694 = vadd.f32 %v7323, %v7645
      %v7695 = vadd.f32 %v7324, %v7650
      %v7696 = vld [vmem:[#allocation2 + $0x10] sm:$0xfc]
      %v7697 = vld [vmem:[#allocation2 + $0x18] sm:$0xff]
      %v7698 = vld [vmem:[#allocation2 + $0x20] sm:$0xff]
      %v7699 = vld [vmem:[#allocation2 + $0x28] sm:$0xff]
      %v7700 = vld [vmem:[#allocation2 + $0x30] sm:$0xff]
      %v7701 = vld [vmem:[#allocation2 + $0x38] sm:$0xff]
      %v7702 = vld [vmem:[#allocation2 + $0x40] sm:$0xff]
      %v7703 = vld [vmem:[#allocation2 + $0x48] sm:$0xff]
      %v7704 = vld [vmem:[#allocation2 + $0x50] sm:$0xff]
      %v7705 = vld [vmem:[#allocation2 + $0x58] sm:$0xff]
      %v7706 = vld [vmem:[#allocation2 + $0x60] sm:$0xff]
      %v7707 = vld [vmem:[#allocation2 + $0x68] sm:$0xff]
      %v7708 = vld [vmem:[#allocation2 + $0x70] sm:$0xff]
      %v7709 = vld [vmem:[#allocation2 + $0x78] sm:$0xff]
      %v7710 = vld [vmem:[#allocation2 + $0x80] sm:$0xff]
      %v7711 = vld [vmem:[#allocation2 + $0x88] sm:$0xff]
      %v7712 = vld [vmem:[#allocation2 + $0x90] sm:$0xff]
      %v7713 = vld [vmem:[#allocation2 + $0x98] sm:$0xff]
      %v7714 = vld [vmem:[#allocation2 + $0xa0] sm:$0xff]
      %v7715 = vld [vmem:[#allocation2 + $0xa8] sm:$0xff]
      %v7716 = vld [vmem:[#allocation2 + $0xb0] sm:$0x3f]
      %s7717 = scalar_lea.vmem %s5, 384
      %v7718 = vld [vmem:[%s7717] sm:$0xf]
      %v7719 = vld [vmem:[%s7717 + $0x4] sm:$0xf]
      %v7720 = vld [vmem:[%s7717 + $0x8] sm:$0xf]
      %v7721 = vld [vmem:[%s7717 + $0xc] sm:$0xf]
      %v7722 = vld [vmem:[%s7717 + $0x10] sm:$0xf]
      %v7723 = vld [vmem:[%s7717 + $0x14] sm:$0xf]
      %v7724 = vld [vmem:[%s7717 + $0x18] sm:$0xf]
      %v7725 = vld [vmem:[%s7717 + $0x1c] sm:$0xf]
      %v7726 = vld [vmem:[%s7717 + $0x20] sm:$0xf]
      %v7727 = vld [vmem:[%s7717 + $0x24] sm:$0xf]
      %v7728 = vld [vmem:[%s7717 + $0x28] sm:$0xf]
      %v7729 = vld [vmem:[%s7717 + $0x2c] sm:$0xf]
      %v7730 = vld [vmem:[%s7717 + $0x30] sm:$0xf]
      %v7731 = vld [vmem:[%s7717 + $0x34] sm:$0xf]
      %v7732 = vld [vmem:[%s7717 + $0x38] sm:$0xf]
      %v7733 = vld [vmem:[%s7717 + $0x3c] sm:$0xf]
      %v7755 = vrot.slane %v7696, 2
      %v7756 = vrot.slane %v7697, 2
      %v7757 = vsel %vm4420, %v7755, %v7756
      %v7758 = vrot.slane %v7698, 2
      %v7759 = vsel %vm4420, %v7756, %v7758
      %v7760 = vrot.slane %v7699, 2
      %v7761 = vsel %vm4420, %v7758, %v7760
      %v7762 = vrot.slane %v7700, 2
      %v7763 = vsel %vm4420, %v7760, %v7762
      %v7764 = vrot.slane %v7701, 2
      %v7765 = vsel %vm4420, %v7762, %v7764
      %v7766 = vrot.slane %v7702, 2
      %v7767 = vsel %vm4420, %v7764, %v7766
      %v7768 = vrot.slane %v7703, 2
      %v7769 = vsel %vm4420, %v7766, %v7768
      %v7770 = vrot.slane %v7704, 2
      %v7771 = vsel %vm4420, %v7768, %v7770
      %v7772 = vrot.slane %v7705, 2
      %v7773 = vsel %vm4420, %v7770, %v7772
      %v7774 = vrot.slane %v7706, 2
      %v7775 = vsel %vm4420, %v7772, %v7774
      %v7776 = vrot.slane %v7707, 2
      %v7777 = vsel %vm4420, %v7774, %v7776
      %v7778 = vrot.slane %v7708, 2
      %v7779 = vsel %vm4420, %v7776, %v7778
      %v7780 = vrot.slane %v7709, 2
      %v7781 = vsel %vm4420, %v7778, %v7780
      %v7782 = vrot.slane %v7710, 2
      %v7783 = vsel %vm4420, %v7780, %v7782
      %v7784 = vrot.slane %v7711, 2
      %v7785 = vsel %vm4420, %v7782, %v7784
      %v7786 = vrot.slane %v7712, 2
      %v7787 = vsel %vm4420, %v7784, %v7786
      %v7788 = vrot.slane %v7713, 2
      %v7789 = vsel %vm4420, %v7786, %v7788
      %v7790 = vrot.slane %v7714, 2
      %v7791 = vsel %vm4420, %v7788, %v7790
      %v7792 = vrot.slane %v7715, 2
      %v7793 = vsel %vm4420, %v7790, %v7792
      %v7794 = vrot.slane %v7716, 2
      %v7795 = vsel %vm4420, %v7792, %v7794
      %v7833 = vunpack.c.l.b16 %v7718
      %v7834 = vunpack.c.l.b16 %v7719
      %v7835 = vunpack.c.l.b16 %v7720
      %v7836 = vunpack.c.l.b16 %v7721
      %v7837 = vunpack.c.l.b16 %v7722
      %v7838 = vunpack.c.l.b16 %v7723
      %v7839 = vunpack.c.l.b16 %v7724
      %v7840 = vunpack.c.l.b16 %v7725
      %v7841 = vunpack.c.l.b16 %v7726
      %v7842 = vunpack.c.l.b16 %v7727
      %v7843 = vunpack.c.l.b16 %v7728
      %v7844 = vunpack.c.l.b16 %v7729
      %v7845 = vunpack.c.l.b16 %v7730
      %v7846 = vunpack.c.l.b16 %v7731
      %v7847 = vunpack.c.l.b16 %v7732
      %v7848 = vunpack.c.l.b16 %v7733
      %v7849 = vpack.c.b16 %v7834, %v7833
      %v7850 = vpack.c.b16 %v7836, %v7835
      %v7851 = vpack.c.b16 %v7838, %v7837
      %v7852 = vpack.c.b16 %v7840, %v7839
      %v7853 = vpack.c.b16 %v7842, %v7841
      %v7854 = vpack.c.b16 %v7844, %v7843
      %v7855 = vpack.c.b16 %v7846, %v7845
      %v7856 = vpack.c.b16 %v7848, %v7847
      %7865 = vmatprep.subr.bf16.mxu0 0
      %7866 = vmatpush1.bf16.msra.mxu0 %v7849
      %7867 = vmatprep.subr.bf16.mxu0 0
      %7868 = vmatpush1.bf16.msra.mxu0 %v7850
      %7869 = vmatprep.subr.bf16.mxu0 0
      %7870 = vmatpush1.bf16.msra.mxu0 %v7851
      %7871 = vmatprep.subr.bf16.mxu0 0
      %7872 = vmatpush1.bf16.msra.mxu0 %v7852
      %7873 = vmatprep.subr.bf16.mxu0 0
      %7874 = vmatpush1.bf16.msra.mxu0 %v7853
      %7875 = vmatprep.subr.bf16.mxu0 0
      %7876 = vmatpush1.bf16.msra.mxu0 %v7854
      %7877 = vmatprep.subr.bf16.mxu0 0
      %7878 = vmatpush1.bf16.msra.mxu0 %v7855
      %7879 = vmatprep.subr.bf16.mxu0 0
      %7880 = vmatpush1.bf16.msra.mxu0 %v7856
      %7881 = vmatprep.subr.bf16.mxu0 0
      %7882 = vmatpush1.bf16.msra.mxu0 0
      %7883 = vmatprep.subr.bf16.mxu0 0
      %7884 = vmatpush1.bf16.msra.mxu0 0
      %7885 = vmatprep.subr.bf16.mxu0 0
      %7886 = vmatpush1.bf16.msra.mxu0 0
      %7887 = vmatprep.subr.bf16.mxu0 0
      %7888 = vmatpush1.bf16.msra.mxu0 0
      %7889 = vmatprep.subr.bf16.mxu0 0
      %7890 = vmatpush1.bf16.msra.mxu0 0
      %7891 = vmatprep.subr.bf16.mxu0 0
      %7892 = vmatpush1.bf16.msra.mxu0 0
      %7893 = vmatprep.subr.bf16.mxu0 0
      %7894 = vmatpush1.bf16.msra.mxu0 0
      %7895 = vmatprep.subr.bf16.mxu0 0
      %7896 = vmatpush1.bf16.msra.mxu0 0
      %7897 = vmatprep.mubr.bf16.mxu0 0
      %7898 = vmatmul.mubr.bf16.gmra.mrb[0].mxu0 %v7757
      %v7899 = vpop.f32.mrb[0].mxu0
      %v7900 = vadd.f32 0.0, %v7899
      %v7901 = vpop.f32.mrb[0].mxu0
      %v7902 = vpop.f32.mrb[0].mxu0
      %v7903 = vadd.f32 0.0, %v7902
      %v7904 = vpop.f32.mrb[0].mxu0
      %7905 = vmatprep.mubr.bf16.mxu0 0
      %7906 = vmatmul.mubr.bf16.gmra.mrb[0].mxu0 %v7759
      %v7907 = vpop.f32.mrb[0].mxu0
      %v7908 = vadd.f32 0.0, %v7907
      %v7909 = vpop.f32.mrb[0].mxu0
      %v7910 = vpop.f32.mrb[0].mxu0
      %v7911 = vadd.f32 0.0, %v7910
      %v7912 = vpop.f32.mrb[0].mxu0
      %7913 = vmatprep.mubr.bf16.mxu0 0
      %7914 = vmatmul.mubr.bf16.gmra.mrb[0].mxu0 %v7761
      %v7915 = vpop.f32.mrb[0].mxu0
      %v7916 = vadd.f32 0.0, %v7915
      %v7917 = vpop.f32.mrb[0].mxu0
      %v7918 = vpop.f32.mrb[0].mxu0
      %v7919 = vadd.f32 0.0, %v7918
      %v7920 = vpop.f32.mrb[0].mxu0
      %7921 = vmatprep.mubr.bf16.mxu0 0
      %7922 = vmatmul.mubr.bf16.gmra.mrb[0].mxu0 %v7763
      %v7923 = vpop.f32.mrb[0].mxu0
      %v7924 = vadd.f32 0.0, %v7923
      %v7925 = vpop.f32.mrb[0].mxu0
      %v7926 = vpop.f32.mrb[0].mxu0
      %v7927 = vadd.f32 0.0, %v7926
      %v7928 = vpop.f32.mrb[0].mxu0
      %7929 = vmatprep.mubr.bf16.mxu0 0
      %7930 = vmatmul.mubr.bf16.gmra.mrb[0].mxu0 %v7765
      %v7931 = vpop.f32.mrb[0].mxu0
      %v7932 = vadd.f32 0.0, %v7931
      %v7933 = vpop.f32.mrb[0].mxu0
      %v7934 = vpop.f32.mrb[0].mxu0
      %v7935 = vadd.f32 0.0, %v7934
      %v7936 = vpop.f32.mrb[0].mxu0
      %7937 = vmatprep.mubr.bf16.mxu0 0
      %7938 = vmatmul.mubr.bf16.gmra.mrb[0].mxu0 %v7767
      %v7939 = vpop.f32.mrb[0].mxu0
      %v7940 = vadd.f32 0.0, %v7939
      %v7941 = vpop.f32.mrb[0].mxu0
      %v7942 = vpop.f32.mrb[0].mxu0
      %v7943 = vadd.f32 0.0, %v7942
      %v7944 = vpop.f32.mrb[0].mxu0
      %7945 = vmatprep.mubr.bf16.mxu0 0
      %7946 = vmatmul.mubr.bf16.gmra.mrb[0].mxu0 %v7769
      %v7947 = vpop.f32.mrb[0].mxu0
      %v7948 = vadd.f32 0.0, %v7947
      %v7949 = vpop.f32.mrb[0].mxu0
      %v7950 = vpop.f32.mrb[0].mxu0
      %v7951 = vadd.f32 0.0, %v7950
      %v7952 = vpop.f32.mrb[0].mxu0
      %7953 = vmatprep.mubr.bf16.mxu0 0
      %7954 = vmatmul.mubr.bf16.gmra.mrb[0].mxu0 %v7771
      %v7955 = vpop.f32.mrb[0].mxu0
      %v7956 = vadd.f32 0.0, %v7955
      %v7957 = vpop.f32.mrb[0].mxu0
      %v7958 = vpop.f32.mrb[0].mxu0
      %v7959 = vadd.f32 0.0, %v7958
      %v7960 = vpop.f32.mrb[0].mxu0
      %7961 = vmatprep.mubr.bf16.mxu0 0
      %7962 = vmatmul.mubr.bf16.gmra.mrb[0].mxu0 %v7773
      %v7963 = vpop.f32.mrb[0].mxu0
      %v7964 = vadd.f32 0.0, %v7963
      %v7965 = vpop.f32.mrb[0].mxu0
      %v7966 = vpop.f32.mrb[0].mxu0
      %v7967 = vadd.f32 0.0, %v7966
      %v7968 = vpop.f32.mrb[0].mxu0
      %7969 = vmatprep.mubr.bf16.mxu0 0
      %7970 = vmatmul.mubr.bf16.gmra.mrb[0].mxu0 %v7775
      %v7971 = vpop.f32.mrb[0].mxu0
      %v7972 = vadd.f32 0.0, %v7971
      %v7973 = vpop.f32.mrb[0].mxu0
      %v7974 = vpop.f32.mrb[0].mxu0
      %v7975 = vadd.f32 0.0, %v7974
      %v7976 = vpop.f32.mrb[0].mxu0
      %7977 = vmatprep.mubr.bf16.mxu0 0
      %7978 = vmatmul.mubr.bf16.gmra.mrb[0].mxu0 %v7777
      %v7979 = vpop.f32.mrb[0].mxu0
      %v7980 = vadd.f32 0.0, %v7979
      %v7981 = vpop.f32.mrb[0].mxu0
      %v7982 = vpop.f32.mrb[0].mxu0
      %v7983 = vadd.f32 0.0, %v7982
      %v7984 = vpop.f32.mrb[0].mxu0
      %7985 = vmatprep.mubr.bf16.mxu0 0
      %7986 = vmatmul.mubr.bf16.gmra.mrb[0].mxu0 %v7779
      %v7987 = vpop.f32.mrb[0].mxu0
      %v7988 = vadd.f32 0.0, %v7987
      %v7989 = vpop.f32.mrb[0].mxu0
      %v7990 = vpop.f32.mrb[0].mxu0
      %v7991 = vadd.f32 0.0, %v7990
      %v7992 = vpop.f32.mrb[0].mxu0
      %7993 = vmatprep.mubr.bf16.mxu0 0
      %7994 = vmatmul.mubr.bf16.gmra.mrb[0].mxu0 %v7781
      %v7995 = vpop.f32.mrb[0].mxu0
      %v7996 = vadd.f32 0.0, %v7995
      %v7997 = vpop.f32.mrb[0].mxu0
      %v7998 = vpop.f32.mrb[0].mxu0
      %v7999 = vadd.f32 0.0, %v7998
      %v8000 = vpop.f32.mrb[0].mxu0
      %8001 = vmatprep.mubr.bf16.mxu0 0
      %8002 = vmatmul.mubr.bf16.gmra.mrb[0].mxu0 %v7783
      %v8003 = vpop.f32.mrb[0].mxu0
      %v8004 = vadd.f32 0.0, %v8003
      %v8005 = vpop.f32.mrb[0].mxu0
      %v8006 = vpop.f32.mrb[0].mxu0
      %v8007 = vadd.f32 0.0, %v8006
      %v8008 = vpop.f32.mrb[0].mxu0
      %8009 = vmatprep.mubr.bf16.mxu0 0
      %8010 = vmatmul.mubr.bf16.gmra.mrb[0].mxu0 %v7785
      %v8011 = vpop.f32.mrb[0].mxu0
      %v8012 = vadd.f32 0.0, %v8011
      %v8013 = vpop.f32.mrb[0].mxu0
      %v8014 = vpop.f32.mrb[0].mxu0
      %v8015 = vadd.f32 0.0, %v8014
      %v8016 = vpop.f32.mrb[0].mxu0
      %8017 = vmatprep.mubr.bf16.mxu0 0
      %8018 = vmatmul.mubr.bf16.gmra.mrb[0].mxu0 %v7787
      %v8019 = vpop.f32.mrb[0].mxu0
      %v8020 = vadd.f32 0.0, %v8019
      %v8021 = vpop.f32.mrb[0].mxu0
      %v8022 = vpop.f32.mrb[0].mxu0
      %v8023 = vadd.f32 0.0, %v8022
      %v8024 = vpop.f32.mrb[0].mxu0
      %8025 = vmatprep.mubr.bf16.mxu0 0
      %8026 = vmatmul.mubr.bf16.gmra.mrb[0].mxu0 %v7789
      %v8027 = vpop.f32.mrb[0].mxu0
      %v8028 = vadd.f32 0.0, %v8027
      %v8029 = vpop.f32.mrb[0].mxu0
      %v8030 = vpop.f32.mrb[0].mxu0
      %v8031 = vadd.f32 0.0, %v8030
      %v8032 = vpop.f32.mrb[0].mxu0
      %8033 = vmatprep.mubr.bf16.mxu0 0
      %8034 = vmatmul.mubr.bf16.gmra.mrb[0].mxu0 %v7791
      %v8035 = vpop.f32.mrb[0].mxu0
      %v8036 = vadd.f32 0.0, %v8035
      %v8037 = vpop.f32.mrb[0].mxu0
      %v8038 = vpop.f32.mrb[0].mxu0
      %v8039 = vadd.f32 0.0, %v8038
      %v8040 = vpop.f32.mrb[0].mxu0
      %8041 = vmatprep.mubr.bf16.mxu0 0
      %8042 = vmatmul.mubr.bf16.gmra.mrb[0].mxu0 %v7793
      %v8043 = vpop.f32.mrb[0].mxu0
      %v8044 = vadd.f32 0.0, %v8043
      %v8045 = vpop.f32.mrb[0].mxu0
      %v8046 = vpop.f32.mrb[0].mxu0
      %v8047 = vadd.f32 0.0, %v8046
      %v8048 = vpop.f32.mrb[0].mxu0
      %8049 = vmatprep.mubr.bf16.mxu0 0
      %8050 = vmatmul.mubr.bf16.gmra.mrb[0].mxu0 %v7795
      %v8051 = vpop.f32.mrb[0].mxu0
      %v8052 = vadd.f32 0.0, %v8051
      %v8053 = vpop.f32.mrb[0].mxu0
      %v8054 = vpop.f32.mrb[0].mxu0
      %v8055 = vadd.f32 0.0, %v8054
      %v8056 = vpop.f32.mrb[0].mxu0
      %8057 = vmatprep.mubr.bf16.mxu0 0
      %8058 = vmatmul.mubr.bf16.gmra.mrb[0].mxu0 %v7794
      %v8059 = vpop.f32.mrb[0].mxu0
      %v8060 = vadd.f32 0.0, %v8059
      %v8061 = vpop.f32.mrb[0].mxu0
      %v8062 = vpop.f32.mrb[0].mxu0
      %v8063 = vpop.f32.mrb[0].mxu0
      %8064 = vdwg.mxu0
      %v8065 = vadd.f32 %v7655, %v7900
      %v8066 = vadd.f32 %v7656, %v7903
      %v8067 = vadd.f32 %v7657, %v7908
      %v8068 = vadd.f32 %v7658, %v7911
      %v8069 = vadd.f32 %v7659, %v7916
      %v8070 = vadd.f32 %v7660, %v7919
      %v8071 = vadd.f32 %v7661, %v7924
      %v8072 = vadd.f32 %v7662, %v7927
      %v8073 = vadd.f32 %v7663, %v7932
      %v8074 = vadd.f32 %v7664, %v7935
      %v8075 = vadd.f32 %v7665, %v7940
      %v8076 = vadd.f32 %v7666, %v7943
      %v8077 = vadd.f32 %v7667, %v7948
      %v8078 = vadd.f32 %v7668, %v7951
      %v8079 = vadd.f32 %v7669, %v7956
      %v8080 = vadd.f32 %v7670, %v7959
      %v8081 = vadd.f32 %v7671, %v7964
      %v8082 = vadd.f32 %v7672, %v7967
      %v8083 = vadd.f32 %v7673, %v7972
      %v8084 = vadd.f32 %v7674, %v7975
      %v8085 = vadd.f32 %v7675, %v7980
      %v8086 = vadd.f32 %v7676, %v7983
      %v8087 = vadd.f32 %v7677, %v7988
      %v8088 = vadd.f32 %v7678, %v7991
      %v8089 = vadd.f32 %v7679, %v7996
      %v8090 = vadd.f32 %v7680, %v7999
      %v8091 = vadd.f32 %v7681, %v8004
      %v8092 = vadd.f32 %v7682, %v8007
      %v8093 = vadd.f32 %v7683, %v8012
      %v8094 = vadd.f32 %v7684, %v8015
      %v8095 = vadd.f32 %v7685, %v8020
      %v8096 = vadd.f32 %v7686, %v8023
      %v8097 = vadd.f32 %v7687, %v8028
      %v8098 = vadd.f32 %v7688, %v8031
      %v8099 = vadd.f32 %v7689, %v8036
      %v8100 = vadd.f32 %v7690, %v8039
      %v8101 = vadd.f32 %v7691, %v8044
      %v8102 = vadd.f32 %v7692, %v8047
      %v8103 = vadd.f32 %v7693, %v8052
      %v8104 = vadd.f32 %v7694, %v8055
      %v8105 = vadd.f32 %v7695, %v8060
      %v8106 = vld [vmem:[#allocation2 + $0xb0] sm:$0x7f]
      %s8107 = scalar_lea.vmem %s5, 448
      %v8108 = vld [vmem:[%s8107] sm:$0xf]
      %v8109 = vld [vmem:[%s8107 + $0x4] sm:$0xf]
      %v8110 = vld [vmem:[%s8107 + $0x8] sm:$0xf]
      %v8111 = vld [vmem:[%s8107 + $0xc] sm:$0xf]
      %v8112 = vld [vmem:[%s8107 + $0x10] sm:$0xf]
      %v8113 = vld [vmem:[%s8107 + $0x14] sm:$0xf]
      %v8114 = vld [vmem:[%s8107 + $0x18] sm:$0xf]
      %v8115 = vld [vmem:[%s8107 + $0x1c] sm:$0xf]
      %v8116 = vld [vmem:[%s8107 + $0x20] sm:$0xf]
      %v8117 = vld [vmem:[%s8107 + $0x24] sm:$0xf]
      %v8118 = vld [vmem:[%s8107 + $0x28] sm:$0xf]
      %v8119 = vld [vmem:[%s8107 + $0x2c] sm:$0xf]
      %v8120 = vld [vmem:[%s8107 + $0x30] sm:$0xf]
      %v8121 = vld [vmem:[%s8107 + $0x34] sm:$0xf]
      %v8122 = vld [vmem:[%s8107 + $0x38] sm:$0xf]
      %v8123 = vld [vmem:[%s8107 + $0x3c] sm:$0xf]
      %vm8124 = vsmask.f32 5376
      %v8126 = vshrl.u32 %v7696, 16
      %v8128 = vrot.slane %v8126, 2
      %v8129 = vshll.u32 %v7696, 16
      %v8131 = vrot.slane %v8129, 3
      %v8132 = vor.u32 %v8128, %v8131
      %v8134 = vshrl.u32 %v7697, 16
      %v8136 = vrot.slane %v8134, 2
      %v8137 = vshll.u32 %v7697, 16
      %v8139 = vrot.slane %v8137, 3
      %v8140 = vor.u32 %v8136, %v8139
      %v8141 = vsel %vm8124, %v8132, %v8140
      %v8143 = vshrl.u32 %v7698, 16
      %v8145 = vrot.slane %v8143, 2
      %v8146 = vshll.u32 %v7698, 16
      %v8148 = vrot.slane %v8146, 3
      %v8149 = vor.u32 %v8145, %v8148
      %v8150 = vsel %vm8124, %v8140, %v8149
      %v8152 = vshrl.u32 %v7699, 16
      %v8154 = vrot.slane %v8152, 2
      %v8155 = vshll.u32 %v7699, 16
      %v8157 = vrot.slane %v8155, 3
      %v8158 = vor.u32 %v8154, %v8157
      %v8159 = vsel %vm8124, %v8149, %v8158
      %v8161 = vshrl.u32 %v7700, 16
      %v8163 = vrot.slane %v8161, 2
      %v8164 = vshll.u32 %v7700, 16
      %v8166 = vrot.slane %v8164, 3
      %v8167 = vor.u32 %v8163, %v8166
      %v8168 = vsel %vm8124, %v8158, %v8167
      %v8170 = vshrl.u32 %v7701, 16
      %v8172 = vrot.slane %v8170, 2
      %v8173 = vshll.u32 %v7701, 16
      %v8175 = vrot.slane %v8173, 3
      %v8176 = vor.u32 %v8172, %v8175
      %v8177 = vsel %vm8124, %v8167, %v8176
      %v8179 = vshrl.u32 %v7702, 16
      %v8181 = vrot.slane %v8179, 2
      %v8182 = vshll.u32 %v7702, 16
      %v8184 = vrot.slane %v8182, 3
      %v8185 = vor.u32 %v8181, %v8184
      %v8186 = vsel %vm8124, %v8176, %v8185
      %v8188 = vshrl.u32 %v7703, 16
      %v8190 = vrot.slane %v8188, 2
      %v8191 = vshll.u32 %v7703, 16
      %v8193 = vrot.slane %v8191, 3
      %v8194 = vor.u32 %v8190, %v8193
      %v8195 = vsel %vm8124, %v8185, %v8194
      %v8197 = vshrl.u32 %v7704, 16
      %v8199 = vrot.slane %v8197, 2
      %v8200 = vshll.u32 %v7704, 16
      %v8202 = vrot.slane %v8200, 3
      %v8203 = vor.u32 %v8199, %v8202
      %v8204 = vsel %vm8124, %v8194, %v8203
      %v8206 = vshrl.u32 %v7705, 16
      %v8208 = vrot.slane %v8206, 2
      %v8209 = vshll.u32 %v7705, 16
      %v8211 = vrot.slane %v8209, 3
      %v8212 = vor.u32 %v8208, %v8211
      %v8213 = vsel %vm8124, %v8203, %v8212
      %v8215 = vshrl.u32 %v7706, 16
      %v8217 = vrot.slane %v8215, 2
      %v8218 = vshll.u32 %v7706, 16
      %v8220 = vrot.slane %v8218, 3
      %v8221 = vor.u32 %v8217, %v8220
      %v8222 = vsel %vm8124, %v8212, %v8221
      %v8224 = vshrl.u32 %v7707, 16
      %v8226 = vrot.slane %v8224, 2
      %v8227 = vshll.u32 %v7707, 16
      %v8229 = vrot.slane %v8227, 3
      %v8230 = vor.u32 %v8226, %v8229
      %v8231 = vsel %vm8124, %v8221, %v8230
      %v8233 = vshrl.u32 %v7708, 16
      %v8235 = vrot.slane %v8233, 2
      %v8236 = vshll.u32 %v7708, 16
      %v8238 = vrot.slane %v8236, 3
      %v8239 = vor.u32 %v8235, %v8238
      %v8240 = vsel %vm8124, %v8230, %v8239
      %v8242 = vshrl.u32 %v7709, 16
      %v8244 = vrot.slane %v8242, 2
      %v8245 = vshll.u32 %v7709, 16
      %v8247 = vrot.slane %v8245, 3
      %v8248 = vor.u32 %v8244, %v8247
      %v8249 = vsel %vm8124, %v8239, %v8248
      %v8251 = vshrl.u32 %v7710, 16
      %v8253 = vrot.slane %v8251, 2
      %v8254 = vshll.u32 %v7710, 16
      %v8256 = vrot.slane %v8254, 3
      %v8257 = vor.u32 %v8253, %v8256
      %v8258 = vsel %vm8124, %v8248, %v8257
      %v8260 = vshrl.u32 %v7711, 16
      %v8262 = vrot.slane %v8260, 2
      %v8263 = vshll.u32 %v7711, 16
      %v8265 = vrot.slane %v8263, 3
      %v8266 = vor.u32 %v8262, %v8265
      %v8267 = vsel %vm8124, %v8257, %v8266
      %v8269 = vshrl.u32 %v7712, 16
      %v8271 = vrot.slane %v8269, 2
      %v8272 = vshll.u32 %v7712, 16
      %v8274 = vrot.slane %v8272, 3
      %v8275 = vor.u32 %v8271, %v8274
      %v8276 = vsel %vm8124, %v8266, %v8275
      %v8278 = vshrl.u32 %v7713, 16
      %v8280 = vrot.slane %v8278, 2
      %v8281 = vshll.u32 %v7713, 16
      %v8283 = vrot.slane %v8281, 3
      %v8284 = vor.u32 %v8280, %v8283
      %v8285 = vsel %vm8124, %v8275, %v8284
      %v8287 = vshrl.u32 %v7714, 16
      %v8289 = vrot.slane %v8287, 2
      %v8290 = vshll.u32 %v7714, 16
      %v8292 = vrot.slane %v8290, 3
      %v8293 = vor.u32 %v8289, %v8292
      %v8294 = vsel %vm8124, %v8284, %v8293
      %v8296 = vshrl.u32 %v7715, 16
      %v8298 = vrot.slane %v8296, 2
      %v8299 = vshll.u32 %v7715, 16
      %v8301 = vrot.slane %v8299, 3
      %v8302 = vor.u32 %v8298, %v8301
      %v8303 = vsel %vm8124, %v8293, %v8302
      %v8305 = vshrl.u32 %v8106, 16
      %v8307 = vrot.slane %v8305, 2
      %v8308 = vshll.u32 %v8106, 16
      %v8310 = vrot.slane %v8308, 3
      %v8311 = vor.u32 %v8307, %v8310
      %v8312 = vsel %vm8124, %v8302, %v8311
      %v8350 = vunpack.c.l.b16 %v8108
      %v8351 = vunpack.c.l.b16 %v8109
      %v8352 = vunpack.c.l.b16 %v8110
      %v8353 = vunpack.c.l.b16 %v8111
      %v8354 = vunpack.c.l.b16 %v8112
      %v8355 = vunpack.c.l.b16 %v8113
      %v8356 = vunpack.c.l.b16 %v8114
      %v8357 = vunpack.c.l.b16 %v8115
      %v8358 = vunpack.c.l.b16 %v8116
      %v8359 = vunpack.c.l.b16 %v8117
      %v8360 = vunpack.c.l.b16 %v8118
      %v8361 = vunpack.c.l.b16 %v8119
      %v8362 = vunpack.c.l.b16 %v8120
      %v8363 = vunpack.c.l.b16 %v8121
      %v8364 = vunpack.c.l.b16 %v8122
      %v8365 = vunpack.c.l.b16 %v8123
      %v8366 = vpack.c.b16 %v8351, %v8350
      %v8367 = vpack.c.b16 %v8353, %v8352
      %v8368 = vpack.c.b16 %v8355, %v8354
      %v8369 = vpack.c.b16 %v8357, %v8356
      %v8370 = vpack.c.b16 %v8359, %v8358
      %v8371 = vpack.c.b16 %v8361, %v8360
      %v8372 = vpack.c.b16 %v8363, %v8362
      %v8373 = vpack.c.b16 %v8365, %v8364
      %8382 = vmatprep.subr.bf16.mxu0 0
      %8383 = vmatpush1.bf16.msra.mxu0 %v8366
      %8384 = vmatprep.subr.bf16.mxu0 0
      %8385 = vmatpush1.bf16.msra.mxu0 %v8367
      %8386 = vmatprep.subr.bf16.mxu0 0
      %8387 = vmatpush1.bf16.msra.mxu0 %v8368
      %8388 = vmatprep.subr.bf16.mxu0 0
      %8389 = vmatpush1.bf16.msra.mxu0 %v8369
      %8390 = vmatprep.subr.bf16.mxu0 0
      %8391 = vmatpush1.bf16.msra.mxu0 %v8370
      %8392 = vmatprep.subr.bf16.mxu0 0
      %8393 = vmatpush1.bf16.msra.mxu0 %v8371
      %8394 = vmatprep.subr.bf16.mxu0 0
      %8395 = vmatpush1.bf16.msra.mxu0 %v8372
      %8396 = vmatprep.subr.bf16.mxu0 0
      %8397 = vmatpush1.bf16.msra.mxu0 %v8373
      %8398 = vmatprep.subr.bf16.mxu0 0
      %8399 = vmatpush1.bf16.msra.mxu0 0
      %8400 = vmatprep.subr.bf16.mxu0 0
      %8401 = vmatpush1.bf16.msra.mxu0 0
      %8402 = vmatprep.subr.bf16.mxu0 0
      %8403 = vmatpush1.bf16.msra.mxu0 0
      %8404 = vmatprep.subr.bf16.mxu0 0
      %8405 = vmatpush1.bf16.msra.mxu0 0
      %8406 = vmatprep.subr.bf16.mxu0 0
      %8407 = vmatpush1.bf16.msra.mxu0 0
      %8408 = vmatprep.subr.bf16.mxu0 0
      %8409 = vmatpush1.bf16.msra.mxu0 0
      %8410 = vmatprep.subr.bf16.mxu0 0
      %8411 = vmatpush1.bf16.msra.mxu0 0
      %8412 = vmatprep.subr.bf16.mxu0 0
      %8413 = vmatpush1.bf16.msra.mxu0 0
      %8414 = vmatprep.mubr.bf16.mxu0 0
      %8415 = vmatmul.mubr.bf16.gmra.mrb[0].mxu0 %v8141
      %v8416 = vpop.f32.mrb[0].mxu0
      %v8417 = vadd.f32 0.0, %v8416
      %v8418 = vpop.f32.mrb[0].mxu0
      %v8419 = vpop.f32.mrb[0].mxu0
      %v8420 = vadd.f32 0.0, %v8419
      %v8421 = vpop.f32.mrb[0].mxu0
      %8422 = vmatprep.mubr.bf16.mxu0 0
      %8423 = vmatmul.mubr.bf16.gmra.mrb[0].mxu0 %v8150
      %v8424 = vpop.f32.mrb[0].mxu0
      %v8425 = vadd.f32 0.0, %v8424
      %v8426 = vpop.f32.mrb[0].mxu0
      %v8427 = vpop.f32.mrb[0].mxu0
      %v8428 = vadd.f32 0.0, %v8427
      %v8429 = vpop.f32.mrb[0].mxu0
      %8430 = vmatprep.mubr.bf16.mxu0 0
      %8431 = vmatmul.mubr.bf16.gmra.mrb[0].mxu0 %v8159
      %v8432 = vpop.f32.mrb[0].mxu0
      %v8433 = vadd.f32 0.0, %v8432
      %v8434 = vpop.f32.mrb[0].mxu0
      %v8435 = vpop.f32.mrb[0].mxu0
      %v8436 = vadd.f32 0.0, %v8435
      %v8437 = vpop.f32.mrb[0].mxu0
      %8438 = vmatprep.mubr.bf16.mxu0 0
      %8439 = vmatmul.mubr.bf16.gmra.mrb[0].mxu0 %v8168
      %v8440 = vpop.f32.mrb[0].mxu0
      %v8441 = vadd.f32 0.0, %v8440
      %v8442 = vpop.f32.mrb[0].mxu0
      %v8443 = vpop.f32.mrb[0].mxu0
      %v8444 = vadd.f32 0.0, %v8443
      %v8445 = vpop.f32.mrb[0].mxu0
      %8446 = vmatprep.mubr.bf16.mxu0 0
      %8447 = vmatmul.mubr.bf16.gmra.mrb[0].mxu0 %v8177
      %v8448 = vpop.f32.mrb[0].mxu0
      %v8449 = vadd.f32 0.0, %v8448
      %v8450 = vpop.f32.mrb[0].mxu0
      %v8451 = vpop.f32.mrb[0].mxu0
      %v8452 = vadd.f32 0.0, %v8451
      %v8453 = vpop.f32.mrb[0].mxu0
      %8454 = vmatprep.mubr.bf16.mxu0 0
      %8455 = vmatmul.mubr.bf16.gmra.mrb[0].mxu0 %v8186
      %v8456 = vpop.f32.mrb[0].mxu0
      %v8457 = vadd.f32 0.0, %v8456
      %v8458 = vpop.f32.mrb[0].mxu0
      %v8459 = vpop.f32.mrb[0].mxu0
      %v8460 = vadd.f32 0.0, %v8459
      %v8461 = vpop.f32.mrb[0].mxu0
      %8462 = vmatprep.mubr.bf16.mxu0 0
      %8463 = vmatmul.mubr.bf16.gmra.mrb[0].mxu0 %v8195
      %v8464 = vpop.f32.mrb[0].mxu0
      %v8465 = vadd.f32 0.0, %v8464
      %v8466 = vpop.f32.mrb[0].mxu0
      %v8467 = vpop.f32.mrb[0].mxu0
      %v8468 = vadd.f32 0.0, %v8467
      %v8469 = vpop.f32.mrb[0].mxu0
      %8470 = vmatprep.mubr.bf16.mxu0 0
      %8471 = vmatmul.mubr.bf16.gmra.mrb[0].mxu0 %v8204
      %v8472 = vpop.f32.mrb[0].mxu0
      %v8473 = vadd.f32 0.0, %v8472
      %v8474 = vpop.f32.mrb[0].mxu0
      %v8475 = vpop.f32.mrb[0].mxu0
      %v8476 = vadd.f32 0.0, %v8475
      %v8477 = vpop.f32.mrb[0].mxu0
      %8478 = vmatprep.mubr.bf16.mxu0 0
      %8479 = vmatmul.mubr.bf16.gmra.mrb[0].mxu0 %v8213
      %v8480 = vpop.f32.mrb[0].mxu0
      %v8481 = vadd.f32 0.0, %v8480
      %v8482 = vpop.f32.mrb[0].mxu0
      %v8483 = vpop.f32.mrb[0].mxu0
      %v8484 = vadd.f32 0.0, %v8483
      %v8485 = vpop.f32.mrb[0].mxu0
      %8486 = vmatprep.mubr.bf16.mxu0 0
      %8487 = vmatmul.mubr.bf16.gmra.mrb[0].mxu0 %v8222
      %v8488 = vpop.f32.mrb[0].mxu0
      %v8489 = vadd.f32 0.0, %v8488
      %v8490 = vpop.f32.mrb[0].mxu0
      %v8491 = vpop.f32.mrb[0].mxu0
      %v8492 = vadd.f32 0.0, %v8491
      %v8493 = vpop.f32.mrb[0].mxu0
      %8494 = vmatprep.mubr.bf16.mxu0 0
      %8495 = vmatmul.mubr.bf16.gmra.mrb[0].mxu0 %v8231
      %v8496 = vpop.f32.mrb[0].mxu0
      %v8497 = vadd.f32 0.0, %v8496
      %v8498 = vpop.f32.mrb[0].mxu0
      %v8499 = vpop.f32.mrb[0].mxu0
      %v8500 = vadd.f32 0.0, %v8499
      %v8501 = vpop.f32.mrb[0].mxu0
      %8502 = vmatprep.mubr.bf16.mxu0 0
      %8503 = vmatmul.mubr.bf16.gmra.mrb[0].mxu0 %v8240
      %v8504 = vpop.f32.mrb[0].mxu0
      %v8505 = vadd.f32 0.0, %v8504
      %v8506 = vpop.f32.mrb[0].mxu0
      %v8507 = vpop.f32.mrb[0].mxu0
      %v8508 = vadd.f32 0.0, %v8507
      %v8509 = vpop.f32.mrb[0].mxu0
      %8510 = vmatprep.mubr.bf16.mxu0 0
      %8511 = vmatmul.mubr.bf16.gmra.mrb[0].mxu0 %v8249
      %v8512 = vpop.f32.mrb[0].mxu0
      %v8513 = vadd.f32 0.0, %v8512
      %v8514 = vpop.f32.mrb[0].mxu0
      %v8515 = vpop.f32.mrb[0].mxu0
      %v8516 = vadd.f32 0.0, %v8515
      %v8517 = vpop.f32.mrb[0].mxu0
      %8518 = vmatprep.mubr.bf16.mxu0 0
      %8519 = vmatmul.mubr.bf16.gmra.mrb[0].mxu0 %v8258
      %v8520 = vpop.f32.mrb[0].mxu0
      %v8521 = vadd.f32 0.0, %v8520
      %v8522 = vpop.f32.mrb[0].mxu0
      %v8523 = vpop.f32.mrb[0].mxu0
      %v8524 = vadd.f32 0.0, %v8523
      %v8525 = vpop.f32.mrb[0].mxu0
      %8526 = vmatprep.mubr.bf16.mxu0 0
      %8527 = vmatmul.mubr.bf16.gmra.mrb[0].mxu0 %v8267
      %v8528 = vpop.f32.mrb[0].mxu0
      %v8529 = vadd.f32 0.0, %v8528
      %v8530 = vpop.f32.mrb[0].mxu0
      %v8531 = vpop.f32.mrb[0].mxu0
      %v8532 = vadd.f32 0.0, %v8531
      %v8533 = vpop.f32.mrb[0].mxu0
      %8534 = vmatprep.mubr.bf16.mxu0 0
      %8535 = vmatmul.mubr.bf16.gmra.mrb[0].mxu0 %v8276
      %v8536 = vpop.f32.mrb[0].mxu0
      %v8537 = vadd.f32 0.0, %v8536
      %v8538 = vpop.f32.mrb[0].mxu0
      %v8539 = vpop.f32.mrb[0].mxu0
      %v8540 = vadd.f32 0.0, %v8539
      %v8541 = vpop.f32.mrb[0].mxu0
      %8542 = vmatprep.mubr.bf16.mxu0 0
      %8543 = vmatmul.mubr.bf16.gmra.mrb[0].mxu0 %v8285
      %v8544 = vpop.f32.mrb[0].mxu0
      %v8545 = vadd.f32 0.0, %v8544
      %v8546 = vpop.f32.mrb[0].mxu0
      %v8547 = vpop.f32.mrb[0].mxu0
      %v8548 = vadd.f32 0.0, %v8547
      %v8549 = vpop.f32.mrb[0].mxu0
      %8550 = vmatprep.mubr.bf16.mxu0 0
      %8551 = vmatmul.mubr.bf16.gmra.mrb[0].mxu0 %v8294
      %v8552 = vpop.f32.mrb[0].mxu0
      %v8553 = vadd.f32 0.0, %v8552
      %v8554 = vpop.f32.mrb[0].mxu0
      %v8555 = vpop.f32.mrb[0].mxu0
      %v8556 = vadd.f32 0.0, %v8555
      %v8557 = vpop.f32.mrb[0].mxu0
      %8558 = vmatprep.mubr.bf16.mxu0 0
      %8559 = vmatmul.mubr.bf16.gmra.mrb[0].mxu0 %v8303
      %v8560 = vpop.f32.mrb[0].mxu0
      %v8561 = vadd.f32 0.0, %v8560
      %v8562 = vpop.f32.mrb[0].mxu0
      %v8563 = vpop.f32.mrb[0].mxu0
      %v8564 = vadd.f32 0.0, %v8563
      %v8565 = vpop.f32.mrb[0].mxu0
      %8566 = vmatprep.mubr.bf16.mxu0 0
      %8567 = vmatmul.mubr.bf16.gmra.mrb[0].mxu0 %v8312
      %v8568 = vpop.f32.mrb[0].mxu0
      %v8569 = vadd.f32 0.0, %v8568
      %v8570 = vpop.f32.mrb[0].mxu0
      %v8571 = vpop.f32.mrb[0].mxu0
      %v8572 = vadd.f32 0.0, %v8571
      %v8573 = vpop.f32.mrb[0].mxu0
      %8574 = vmatprep.mubr.bf16.mxu0 0
      %8575 = vmatmul.mubr.bf16.gmra.mrb[0].mxu0 %v8311
      %v8576 = vpop.f32.mrb[0].mxu0
      %v8577 = vadd.f32 0.0, %v8576
      %v8578 = vpop.f32.mrb[0].mxu0
      %v8579 = vpop.f32.mrb[0].mxu0
      %v8580 = vpop.f32.mrb[0].mxu0
      %8581 = vdwg.mxu0
      %v8582 = vadd.f32 %v8065, %v8417
      %v8583 = vadd.f32 %v8066, %v8420
      %v8584 = vadd.f32 %v8067, %v8425
      %v8585 = vadd.f32 %v8068, %v8428
      %v8586 = vadd.f32 %v8069, %v8433
      %v8587 = vadd.f32 %v8070, %v8436
      %v8588 = vadd.f32 %v8071, %v8441
      %v8589 = vadd.f32 %v8072, %v8444
      %v8590 = vadd.f32 %v8073, %v8449
      %v8591 = vadd.f32 %v8074, %v8452
      %v8592 = vadd.f32 %v8075, %v8457
      %v8593 = vadd.f32 %v8076, %v8460
      %v8594 = vadd.f32 %v8077, %v8465
      %v8595 = vadd.f32 %v8078, %v8468
      %v8596 = vadd.f32 %v8079, %v8473
      %v8597 = vadd.f32 %v8080, %v8476
      %v8598 = vadd.f32 %v8081, %v8481
      %v8599 = vadd.f32 %v8082, %v8484
      %v8600 = vadd.f32 %v8083, %v8489
      %v8601 = vadd.f32 %v8084, %v8492
      %v8602 = vadd.f32 %v8085, %v8497
      %v8603 = vadd.f32 %v8086, %v8500
      %v8604 = vadd.f32 %v8087, %v8505
      %v8605 = vadd.f32 %v8088, %v8508
      %v8606 = vadd.f32 %v8089, %v8513
      %v8607 = vadd.f32 %v8090, %v8516
      %v8608 = vadd.f32 %v8091, %v8521
      %v8609 = vadd.f32 %v8092, %v8524
      %v8610 = vadd.f32 %v8093, %v8529
      %v8611 = vadd.f32 %v8094, %v8532
      %v8612 = vadd.f32 %v8095, %v8537
      %v8613 = vadd.f32 %v8096, %v8540
      %v8614 = vadd.f32 %v8097, %v8545
      %v8615 = vadd.f32 %v8098, %v8548
      %v8616 = vadd.f32 %v8099, %v8553
      %v8617 = vadd.f32 %v8100, %v8556
      %v8618 = vadd.f32 %v8101, %v8561
      %v8619 = vadd.f32 %v8102, %v8564
      %v8620 = vadd.f32 %v8103, %v8569
      %v8621 = vadd.f32 %v8104, %v8572
      %v8622 = vadd.f32 %v8105, %v8577
      %v8623 = vld [vmem:[#allocation2 + $0x10] sm:$0xf8]
      %s8624 = scalar_lea.vmem %s5, 512
      %v8625 = vld [vmem:[%s8624] sm:$0xf]
      %v8626 = vld [vmem:[%s8624 + $0x4] sm:$0xf]
      %v8627 = vld [vmem:[%s8624 + $0x8] sm:$0xf]
      %v8628 = vld [vmem:[%s8624 + $0xc] sm:$0xf]
      %v8629 = vld [vmem:[%s8624 + $0x10] sm:$0xf]
      %v8630 = vld [vmem:[%s8624 + $0x14] sm:$0xf]
      %v8631 = vld [vmem:[%s8624 + $0x18] sm:$0xf]
      %v8632 = vld [vmem:[%s8624 + $0x1c] sm:$0xf]
      %v8633 = vld [vmem:[%s8624 + $0x20] sm:$0xf]
      %v8634 = vld [vmem:[%s8624 + $0x24] sm:$0xf]
      %v8635 = vld [vmem:[%s8624 + $0x28] sm:$0xf]
      %v8636 = vld [vmem:[%s8624 + $0x2c] sm:$0xf]
      %v8637 = vld [vmem:[%s8624 + $0x30] sm:$0xf]
      %v8638 = vld [vmem:[%s8624 + $0x34] sm:$0xf]
      %v8639 = vld [vmem:[%s8624 + $0x38] sm:$0xf]
      %v8640 = vld [vmem:[%s8624 + $0x3c] sm:$0xf]
      %v8643 = vrot.slane %v8623, 3
      %v8644 = vrot.slane %v7697, 3
      %v8645 = vsel %vm1033, %v8643, %v8644
      %v8646 = vrot.slane %v7698, 3
      %v8647 = vsel %vm1033, %v8644, %v8646
      %v8648 = vrot.slane %v7699, 3
      %v8649 = vsel %vm1033, %v8646, %v8648
      %v8650 = vrot.slane %v7700, 3
      %v8651 = vsel %vm1033, %v8648, %v8650
      %v8652 = vrot.slane %v7701, 3
      %v8653 = vsel %vm1033, %v8650, %v8652
      %v8654 = vrot.slane %v7702, 3
      %v8655 = vsel %vm1033, %v8652, %v8654
      %v8656 = vrot.slane %v7703, 3
      %v8657 = vsel %vm1033, %v8654, %v8656
      %v8658 = vrot.slane %v7704, 3
      %v8659 = vsel %vm1033, %v8656, %v8658
      %v8660 = vrot.slane %v7705, 3
      %v8661 = vsel %vm1033, %v8658, %v8660
      %v8662 = vrot.slane %v7706, 3
      %v8663 = vsel %vm1033, %v8660, %v8662
      %v8664 = vrot.slane %v7707, 3
      %v8665 = vsel %vm1033, %v8662, %v8664
      %v8666 = vrot.slane %v7708, 3
      %v8667 = vsel %vm1033, %v8664, %v8666
      %v8668 = vrot.slane %v7709, 3
      %v8669 = vsel %vm1033, %v8666, %v8668
      %v8670 = vrot.slane %v7710, 3
      %v8671 = vsel %vm1033, %v8668, %v8670
      %v8672 = vrot.slane %v7711, 3
      %v8673 = vsel %vm1033, %v8670, %v8672
      %v8674 = vrot.slane %v7712, 3
      %v8675 = vsel %vm1033, %v8672, %v8674
      %v8676 = vrot.slane %v7713, 3
      %v8677 = vsel %vm1033, %v8674, %v8676
      %v8678 = vrot.slane %v7714, 3
      %v8679 = vsel %vm1033, %v8676, %v8678
      %v8680 = vrot.slane %v7715, 3
      %v8681 = vsel %vm1033, %v8678, %v8680
      %v8682 = vrot.slane %v8106, 3
      %v8683 = vsel %vm1033, %v8680, %v8682
      %v8721 = vunpack.c.l.b16 %v8625
      %v8722 = vunpack.c.l.b16 %v8626
      %v8723 = vunpack.c.l.b16 %v8627
      %v8724 = vunpack.c.l.b16 %v8628
      %v8725 = vunpack.c.l.b16 %v8629
      %v8726 = vunpack.c.l.b16 %v8630
      %v8727 = vunpack.c.l.b16 %v8631
      %v8728 = vunpack.c.l.b16 %v8632
      %v8729 = vunpack.c.l.b16 %v8633
      %v8730 = vunpack.c.l.b16 %v8634
      %v8731 = vunpack.c.l.b16 %v8635
      %v8732 = vunpack.c.l.b16 %v8636
      %v8733 = vunpack.c.l.b16 %v8637
      %v8734 = vunpack.c.l.b16 %v8638
      %v8735 = vunpack.c.l.b16 %v8639
      %v8736 = vunpack.c.l.b16 %v8640
      %v8737 = vpack.c.b16 %v8722, %v8721
      %v8738 = vpack.c.b16 %v8724, %v8723
      %v8739 = vpack.c.b16 %v8726, %v8725
      %v8740 = vpack.c.b16 %v8728, %v8727
      %v8741 = vpack.c.b16 %v8730, %v8729
      %v8742 = vpack.c.b16 %v8732, %v8731
      %v8743 = vpack.c.b16 %v8734, %v8733
      %v8744 = vpack.c.b16 %v8736, %v8735
      %8753 = vmatprep.subr.bf16.mxu0 0
      %8754 = vmatpush1.bf16.msra.mxu0 %v8737
      %8755 = vmatprep.subr.bf16.mxu0 0
      %8756 = vmatpush1.bf16.msra.mxu0 %v8738
      %8757 = vmatprep.subr.bf16.mxu0 0
      %8758 = vmatpush1.bf16.msra.mxu0 %v8739
      %8759 = vmatprep.subr.bf16.mxu0 0
      %8760 = vmatpush1.bf16.msra.mxu0 %v8740
      %8761 = vmatprep.subr.bf16.mxu0 0
      %8762 = vmatpush1.bf16.msra.mxu0 %v8741
      %8763 = vmatprep.subr.bf16.mxu0 0
      %8764 = vmatpush1.bf16.msra.mxu0 %v8742
      %8765 = vmatprep.subr.bf16.mxu0 0
      %8766 = vmatpush1.bf16.msra.mxu0 %v8743
      %8767 = vmatprep.subr.bf16.mxu0 0
      %8768 = vmatpush1.bf16.msra.mxu0 %v8744
      %8769 = vmatprep.subr.bf16.mxu0 0
      %8770 = vmatpush1.bf16.msra.mxu0 0
      %8771 = vmatprep.subr.bf16.mxu0 0
      %8772 = vmatpush1.bf16.msra.mxu0 0
      %8773 = vmatprep.subr.bf16.mxu0 0
      %8774 = vmatpush1.bf16.msra.mxu0 0
      %8775 = vmatprep.subr.bf16.mxu0 0
      %8776 = vmatpush1.bf16.msra.mxu0 0
      %8777 = vmatprep.subr.bf16.mxu0 0
      %8778 = vmatpush1.bf16.msra.mxu0 0
      %8779 = vmatprep.subr.bf16.mxu0 0
      %8780 = vmatpush1.bf16.msra.mxu0 0
      %8781 = vmatprep.subr.bf16.mxu0 0
      %8782 = vmatpush1.bf16.msra.mxu0 0
      %8783 = vmatprep.subr.bf16.mxu0 0
      %8784 = vmatpush1.bf16.msra.mxu0 0
      %8785 = vmatprep.mubr.bf16.mxu0 0
      %8786 = vmatmul.mubr.bf16.gmra.mrb[0].mxu0 %v8645
      %v8787 = vpop.f32.mrb[0].mxu0
      %v8788 = vadd.f32 0.0, %v8787
      %v8789 = vpop.f32.mrb[0].mxu0
      %v8790 = vpop.f32.mrb[0].mxu0
      %v8791 = vadd.f32 0.0, %v8790
      %v8792 = vpop.f32.mrb[0].mxu0
      %8793 = vmatprep.mubr.bf16.mxu0 0
      %8794 = vmatmul.mubr.bf16.gmra.mrb[0].mxu0 %v8647
      %v8795 = vpop.f32.mrb[0].mxu0
      %v8796 = vadd.f32 0.0, %v8795
      %v8797 = vpop.f32.mrb[0].mxu0
      %v8798 = vpop.f32.mrb[0].mxu0
      %v8799 = vadd.f32 0.0, %v8798
      %v8800 = vpop.f32.mrb[0].mxu0
      %8801 = vmatprep.mubr.bf16.mxu0 0
      %8802 = vmatmul.mubr.bf16.gmra.mrb[0].mxu0 %v8649
      %v8803 = vpop.f32.mrb[0].mxu0
      %v8804 = vadd.f32 0.0, %v8803
      %v8805 = vpop.f32.mrb[0].mxu0
      %v8806 = vpop.f32.mrb[0].mxu0
      %v8807 = vadd.f32 0.0, %v8806
      %v8808 = vpop.f32.mrb[0].mxu0
      %8809 = vmatprep.mubr.bf16.mxu0 0
      %8810 = vmatmul.mubr.bf16.gmra.mrb[0].mxu0 %v8651
      %v8811 = vpop.f32.mrb[0].mxu0
      %v8812 = vadd.f32 0.0, %v8811
      %v8813 = vpop.f32.mrb[0].mxu0
      %v8814 = vpop.f32.mrb[0].mxu0
      %v8815 = vadd.f32 0.0, %v8814
      %v8816 = vpop.f32.mrb[0].mxu0
      %8817 = vmatprep.mubr.bf16.mxu0 0
      %8818 = vmatmul.mubr.bf16.gmra.mrb[0].mxu0 %v8653
      %v8819 = vpop.f32.mrb[0].mxu0
      %v8820 = vadd.f32 0.0, %v8819
      %v8821 = vpop.f32.mrb[0].mxu0
      %v8822 = vpop.f32.mrb[0].mxu0
      %v8823 = vadd.f32 0.0, %v8822
      %v8824 = vpop.f32.mrb[0].mxu0
      %8825 = vmatprep.mubr.bf16.mxu0 0
      %8826 = vmatmul.mubr.bf16.gmra.mrb[0].mxu0 %v8655
      %v8827 = vpop.f32.mrb[0].mxu0
      %v8828 = vadd.f32 0.0, %v8827
      %v8829 = vpop.f32.mrb[0].mxu0
      %v8830 = vpop.f32.mrb[0].mxu0
      %v8831 = vadd.f32 0.0, %v8830
      %v8832 = vpop.f32.mrb[0].mxu0
      %8833 = vmatprep.mubr.bf16.mxu0 0
      %8834 = vmatmul.mubr.bf16.gmra.mrb[0].mxu0 %v8657
      %v8835 = vpop.f32.mrb[0].mxu0
      %v8836 = vadd.f32 0.0, %v8835
      %v8837 = vpop.f32.mrb[0].mxu0
      %v8838 = vpop.f32.mrb[0].mxu0
      %v8839 = vadd.f32 0.0, %v8838
      %v8840 = vpop.f32.mrb[0].mxu0
      %8841 = vmatprep.mubr.bf16.mxu0 0
      %8842 = vmatmul.mubr.bf16.gmra.mrb[0].mxu0 %v8659
      %v8843 = vpop.f32.mrb[0].mxu0
      %v8844 = vadd.f32 0.0, %v8843
      %v8845 = vpop.f32.mrb[0].mxu0
      %v8846 = vpop.f32.mrb[0].mxu0
      %v8847 = vadd.f32 0.0, %v8846
      %v8848 = vpop.f32.mrb[0].mxu0
      %8849 = vmatprep.mubr.bf16.mxu0 0
      %8850 = vmatmul.mubr.bf16.gmra.mrb[0].mxu0 %v8661
      %v8851 = vpop.f32.mrb[0].mxu0
      %v8852 = vadd.f32 0.0, %v8851
      %v8853 = vpop.f32.mrb[0].mxu0
      %v8854 = vpop.f32.mrb[0].mxu0
      %v8855 = vadd.f32 0.0, %v8854
      %v8856 = vpop.f32.mrb[0].mxu0
      %8857 = vmatprep.mubr.bf16.mxu0 0
      %8858 = vmatmul.mubr.bf16.gmra.mrb[0].mxu0 %v8663
      %v8859 = vpop.f32.mrb[0].mxu0
      %v8860 = vadd.f32 0.0, %v8859
      %v8861 = vpop.f32.mrb[0].mxu0
      %v8862 = vpop.f32.mrb[0].mxu0
      %v8863 = vadd.f32 0.0, %v8862
      %v8864 = vpop.f32.mrb[0].mxu0
      %8865 = vmatprep.mubr.bf16.mxu0 0
      %8866 = vmatmul.mubr.bf16.gmra.mrb[0].mxu0 %v8665
      %v8867 = vpop.f32.mrb[0].mxu0
      %v8868 = vadd.f32 0.0, %v8867
      %v8869 = vpop.f32.mrb[0].mxu0
      %v8870 = vpop.f32.mrb[0].mxu0
      %v8871 = vadd.f32 0.0, %v8870
      %v8872 = vpop.f32.mrb[0].mxu0
      %8873 = vmatprep.mubr.bf16.mxu0 0
      %8874 = vmatmul.mubr.bf16.gmra.mrb[0].mxu0 %v8667
      %v8875 = vpop.f32.mrb[0].mxu0
      %v8876 = vadd.f32 0.0, %v8875
      %v8877 = vpop.f32.mrb[0].mxu0
      %v8878 = vpop.f32.mrb[0].mxu0
      %v8879 = vadd.f32 0.0, %v8878
      %v8880 = vpop.f32.mrb[0].mxu0
      %8881 = vmatprep.mubr.bf16.mxu0 0
      %8882 = vmatmul.mubr.bf16.gmra.mrb[0].mxu0 %v8669
      %v8883 = vpop.f32.mrb[0].mxu0
      %v8884 = vadd.f32 0.0, %v8883
      %v8885 = vpop.f32.mrb[0].mxu0
      %v8886 = vpop.f32.mrb[0].mxu0
      %v8887 = vadd.f32 0.0, %v8886
      %v8888 = vpop.f32.mrb[0].mxu0
      %8889 = vmatprep.mubr.bf16.mxu0 0
      %8890 = vmatmul.mubr.bf16.gmra.mrb[0].mxu0 %v8671
      %v8891 = vpop.f32.mrb[0].mxu0
      %v8892 = vadd.f32 0.0, %v8891
      %v8893 = vpop.f32.mrb[0].mxu0
      %v8894 = vpop.f32.mrb[0].mxu0
      %v8895 = vadd.f32 0.0, %v8894
      %v8896 = vpop.f32.mrb[0].mxu0
      %8897 = vmatprep.mubr.bf16.mxu0 0
      %8898 = vmatmul.mubr.bf16.gmra.mrb[0].mxu0 %v8673
      %v8899 = vpop.f32.mrb[0].mxu0
      %v8900 = vadd.f32 0.0, %v8899
      %v8901 = vpop.f32.mrb[0].mxu0
      %v8902 = vpop.f32.mrb[0].mxu0
      %v8903 = vadd.f32 0.0, %v8902
      %v8904 = vpop.f32.mrb[0].mxu0
      %8905 = vmatprep.mubr.bf16.mxu0 0
      %8906 = vmatmul.mubr.bf16.gmra.mrb[0].mxu0 %v8675
      %v8907 = vpop.f32.mrb[0].mxu0
      %v8908 = vadd.f32 0.0, %v8907
      %v8909 = vpop.f32.mrb[0].mxu0
      %v8910 = vpop.f32.mrb[0].mxu0
      %v8911 = vadd.f32 0.0, %v8910
      %v8912 = vpop.f32.mrb[0].mxu0
      %8913 = vmatprep.mubr.bf16.mxu0 0
      %8914 = vmatmul.mubr.bf16.gmra.mrb[0].mxu0 %v8677
      %v8915 = vpop.f32.mrb[0].mxu0
      %v8916 = vadd.f32 0.0, %v8915
      %v8917 = vpop.f32.mrb[0].mxu0
      %v8918 = vpop.f32.mrb[0].mxu0
      %v8919 = vadd.f32 0.0, %v8918
      %v8920 = vpop.f32.mrb[0].mxu0
      %8921 = vmatprep.mubr.bf16.mxu0 0
      %8922 = vmatmul.mubr.bf16.gmra.mrb[0].mxu0 %v8679
      %v8923 = vpop.f32.mrb[0].mxu0
      %v8924 = vadd.f32 0.0, %v8923
      %v8925 = vpop.f32.mrb[0].mxu0
      %v8926 = vpop.f32.mrb[0].mxu0
      %v8927 = vadd.f32 0.0, %v8926
      %v8928 = vpop.f32.mrb[0].mxu0
      %8929 = vmatprep.mubr.bf16.mxu0 0
      %8930 = vmatmul.mubr.bf16.gmra.mrb[0].mxu0 %v8681
      %v8931 = vpop.f32.mrb[0].mxu0
      %v8932 = vadd.f32 0.0, %v8931
      %v8933 = vpop.f32.mrb[0].mxu0
      %v8934 = vpop.f32.mrb[0].mxu0
      %v8935 = vadd.f32 0.0, %v8934
      %v8936 = vpop.f32.mrb[0].mxu0
      %8937 = vmatprep.mubr.bf16.mxu0 0
      %8938 = vmatmul.mubr.bf16.gmra.mrb[0].mxu0 %v8683
      %v8939 = vpop.f32.mrb[0].mxu0
      %v8940 = vadd.f32 0.0, %v8939
      %v8941 = vpop.f32.mrb[0].mxu0
      %v8942 = vpop.f32.mrb[0].mxu0
      %v8943 = vadd.f32 0.0, %v8942
      %v8944 = vpop.f32.mrb[0].mxu0
      %8945 = vmatprep.mubr.bf16.mxu0 0
      %8946 = vmatmul.mubr.bf16.gmra.mrb[0].mxu0 %v8682
      %v8947 = vpop.f32.mrb[0].mxu0
      %v8948 = vadd.f32 0.0, %v8947
      %v8949 = vpop.f32.mrb[0].mxu0
      %v8950 = vpop.f32.mrb[0].mxu0
      %v8951 = vpop.f32.mrb[0].mxu0
      %8952 = vdwg.mxu0
      %v8953 = vadd.f32 %v8582, %v8788
      %v8954 = vadd.f32 %v8583, %v8791
      %v8955 = vadd.f32 %v8584, %v8796
      %v8956 = vadd.f32 %v8585, %v8799
      %v8957 = vadd.f32 %v8586, %v8804
      %v8958 = vadd.f32 %v8587, %v8807
      %v8959 = vadd.f32 %v8588, %v8812
      %v8960 = vadd.f32 %v8589, %v8815
      %v8961 = vadd.f32 %v8590, %v8820
      %v8962 = vadd.f32 %v8591, %v8823
      %v8963 = vadd.f32 %v8592, %v8828
      %v8964 = vadd.f32 %v8593, %v8831
      %v8965 = vadd.f32 %v8594, %v8836
      %v8966 = vadd.f32 %v8595, %v8839
      %v8967 = vadd.f32 %v8596, %v8844
      %v8968 = vadd.f32 %v8597, %v8847
      %v8969 = vadd.f32 %v8598, %v8852
      %v8970 = vadd.f32 %v8599, %v8855
      %v8971 = vadd.f32 %v8600, %v8860
      %v8972 = vadd.f32 %v8601, %v8863
      %v8973 = vadd.f32 %v8602, %v8868
      %v8974 = vadd.f32 %v8603, %v8871
      %v8975 = vadd.f32 %v8604, %v8876
      %v8976 = vadd.f32 %v8605, %v8879
      %v8977 = vadd.f32 %v8606, %v8884
      %v8978 = vadd.f32 %v8607, %v8887
      %v8979 = vadd.f32 %v8608, %v8892
      %v8980 = vadd.f32 %v8609, %v8895
      %v8981 = vadd.f32 %v8610, %v8900
      %v8982 = vadd.f32 %v8611, %v8903
      %v8983 = vadd.f32 %v8612, %v8908
      %v8984 = vadd.f32 %v8613, %v8911
      %v8985 = vadd.f32 %v8614, %v8916
      %v8986 = vadd.f32 %v8615, %v8919
      %v8987 = vadd.f32 %v8616, %v8924
      %v8988 = vadd.f32 %v8617, %v8927
      %v8989 = vadd.f32 %v8618, %v8932
      %v8990 = vadd.f32 %v8619, %v8935
      %v8991 = vadd.f32 %v8620, %v8940
      %v8992 = vadd.f32 %v8621, %v8943
      %v8993 = vadd.f32 %v8622, %v8948
      %v8994 = vld [vmem:[%s6] sm:$0x1]
      %v8996 = vlaneseq
      %v8997 = vshrl.u32 %v8996, 7
      %v8998 = vsub.s32 0, %v8997
      %v8999 = vrot.slane %v8994, %v8998
      %v9001 = vadd.f32 %v8953, %v8999
      %v9002 = vadd.f32 %v8954, %v8999
      %v9003 = vadd.f32 %v8955, %v8999
      %v9004 = vadd.f32 %v8956, %v8999
      %v9005 = vadd.f32 %v8957, %v8999
      %v9006 = vadd.f32 %v8958, %v8999
      %v9007 = vadd.f32 %v8959, %v8999
      %v9008 = vadd.f32 %v8960, %v8999
      %v9009 = vadd.f32 %v8961, %v8999
      %v9010 = vadd.f32 %v8962, %v8999
      %v9011 = vadd.f32 %v8963, %v8999
      %v9012 = vadd.f32 %v8964, %v8999
      %v9013 = vadd.f32 %v8965, %v8999
      %v9014 = vadd.f32 %v8966, %v8999
      %v9015 = vadd.f32 %v8967, %v8999
      %v9016 = vadd.f32 %v8968, %v8999
      %v9017 = vadd.f32 %v8969, %v8999
      %v9018 = vadd.f32 %v8970, %v8999
      %v9019 = vadd.f32 %v8971, %v8999
      %v9020 = vadd.f32 %v8972, %v8999
      %v9021 = vadd.f32 %v8973, %v8999
      %v9022 = vadd.f32 %v8974, %v8999
      %v9023 = vadd.f32 %v8975, %v8999
      %v9024 = vadd.f32 %v8976, %v8999
      %v9025 = vadd.f32 %v8977, %v8999
      %v9026 = vadd.f32 %v8978, %v8999
      %v9027 = vadd.f32 %v8979, %v8999
      %v9028 = vadd.f32 %v8980, %v8999
      %v9029 = vadd.f32 %v8981, %v8999
      %v9030 = vadd.f32 %v8982, %v8999
      %v9031 = vadd.f32 %v8983, %v8999
      %v9032 = vadd.f32 %v8984, %v8999
      %v9033 = vadd.f32 %v8985, %v8999
      %v9034 = vadd.f32 %v8986, %v8999
      %v9035 = vadd.f32 %v8987, %v8999
      %v9036 = vadd.f32 %v8988, %v8999
      %v9037 = vadd.f32 %v8989, %v8999
      %v9038 = vadd.f32 %v8990, %v8999
      %v9039 = vadd.f32 %v8991, %v8999
      %v9040 = vadd.f32 %v8992, %v8999
      %v9041 = vadd.f32 %v8993, %v8999
      %v9042 = vld [vmem:[%s347] sm:$0xf]
      %v9043 = vld [vmem:[%s347 + $0x4] sm:$0xf]
      %v9044 = vld [vmem:[%s347 + $0x8] sm:$0xf]
      %v9045 = vld [vmem:[%s347 + $0xc] sm:$0xf]
      %v9046 = vld [vmem:[%s347 + $0x10] sm:$0xf]
      %v9047 = vld [vmem:[%s347 + $0x14] sm:$0xf]
      %v9048 = vld [vmem:[%s347 + $0x18] sm:$0xf]
      %v9049 = vld [vmem:[%s347 + $0x1c] sm:$0xf]
      %v9050 = vld [vmem:[%s347 + $0x20] sm:$0xf]
      %v9051 = vld [vmem:[%s347 + $0x24] sm:$0xf]
      %v9052 = vld [vmem:[%s347 + $0x28] sm:$0xf]
      %v9053 = vld [vmem:[%s347 + $0x2c] sm:$0xf]
      %v9054 = vld [vmem:[%s347 + $0x30] sm:$0xf]
      %v9055 = vld [vmem:[%s347 + $0x34] sm:$0xf]
      %v9056 = vld [vmem:[%s347 + $0x38] sm:$0xf]
      %v9057 = vld [vmem:[%s347 + $0x3c] sm:$0xf]
      %v9058 = vld [vmem:[%s347 + $0x40] sm:$0xf]
      %v9059 = vld [vmem:[%s347 + $0x44] sm:$0xf]
      %v9060 = vld [vmem:[%s347 + $0x48] sm:$0xf]
      %v9061 = vld [vmem:[%s347 + $0x4c] sm:$0xf]
      %v9062 = vld [vmem:[%s347 + $0x50] sm:$0xf]
      %v9063 = vld [vmem:[%s347 + $0x54] sm:$0xf]
      %v9064 = vld [vmem:[%s347 + $0x58] sm:$0xf]
      %v9065 = vld [vmem:[%s347 + $0x5c] sm:$0xf]
      %v9066 = vld [vmem:[%s347 + $0x60] sm:$0xf]
      %v9067 = vld [vmem:[%s347 + $0x64] sm:$0xf]
      %v9068 = vld [vmem:[%s347 + $0x68] sm:$0xf]
      %v9069 = vld [vmem:[%s347 + $0x6c] sm:$0xf]
      %v9070 = vld [vmem:[%s347 + $0x70] sm:$0xf]
      %v9071 = vld [vmem:[%s347 + $0x74] sm:$0xf]
      %v9072 = vld [vmem:[%s347 + $0x78] sm:$0xf]
      %v9073 = vld [vmem:[%s347 + $0x7c] sm:$0xf]
      %v9074 = vld [vmem:[%s347 + $0x80] sm:$0xf]
      %v9075 = vld [vmem:[%s347 + $0x84] sm:$0xf]
      %v9076 = vld [vmem:[%s347 + $0x88] sm:$0xf]
      %v9077 = vld [vmem:[%s347 + $0x8c] sm:$0xf]
      %v9078 = vld [vmem:[%s347 + $0x90] sm:$0xf]
      %v9079 = vld [vmem:[%s347 + $0x94] sm:$0xf]
      %v9080 = vld [vmem:[%s347 + $0x98] sm:$0xf]
      %v9081 = vld [vmem:[%s347 + $0x9c] sm:$0xf]
      %v9082 = vld [vmem:[%s347 + $0xa0] sm:$0xf]
      %v9083 = vld [vmem:[%s7] sm:$0x3]
      %v9125 = vunpack.c.l.b16 %v9042
      %v9126 = vunpack.c.l.b16 %v9043
      %v9127 = vunpack.c.l.b16 %v9044
      %v9128 = vunpack.c.l.b16 %v9045
      %v9129 = vunpack.c.l.b16 %v9046
      %v9130 = vunpack.c.l.b16 %v9047
      %v9131 = vunpack.c.l.b16 %v9048
      %v9132 = vunpack.c.l.b16 %v9049
      %v9133 = vunpack.c.l.b16 %v9050
      %v9134 = vunpack.c.l.b16 %v9051
      %v9135 = vunpack.c.l.b16 %v9052
      %v9136 = vunpack.c.l.b16 %v9053
      %v9137 = vunpack.c.l.b16 %v9054
      %v9138 = vunpack.c.l.b16 %v9055
      %v9139 = vunpack.c.l.b16 %v9056
      %v9140 = vunpack.c.l.b16 %v9057
      %v9141 = vunpack.c.l.b16 %v9058
      %v9142 = vunpack.c.l.b16 %v9059
      %v9143 = vunpack.c.l.b16 %v9060
      %v9144 = vunpack.c.l.b16 %v9061
      %v9145 = vunpack.c.l.b16 %v9062
      %v9146 = vunpack.c.l.b16 %v9063
      %v9147 = vunpack.c.l.b16 %v9064
      %v9148 = vunpack.c.l.b16 %v9065
      %v9149 = vunpack.c.l.b16 %v9066
      %v9150 = vunpack.c.l.b16 %v9067
      %v9151 = vunpack.c.l.b16 %v9068
      %v9152 = vunpack.c.l.b16 %v9069
      %v9153 = vunpack.c.l.b16 %v9070
      %v9154 = vunpack.c.l.b16 %v9071
      %v9155 = vunpack.c.l.b16 %v9072
      %v9156 = vunpack.c.l.b16 %v9073
      %v9157 = vunpack.c.l.b16 %v9074
      %v9158 = vunpack.c.l.b16 %v9075
      %v9159 = vunpack.c.l.b16 %v9076
      %v9160 = vunpack.c.l.b16 %v9077
      %v9161 = vunpack.c.l.b16 %v9078
      %v9162 = vunpack.c.l.b16 %v9079
      %v9163 = vunpack.c.l.b16 %v9080
      %v9164 = vunpack.c.l.b16 %v9081
      %v9165 = vunpack.c.l.b16 %v9082
      %v9166 = vpack.c.b16 %v9126, %v9125
      %v9167 = vpack.c.b16 %v9128, %v9127
      %v9168 = vpack.c.b16 %v9130, %v9129
      %v9169 = vpack.c.b16 %v9132, %v9131
      %v9170 = vpack.c.b16 %v9134, %v9133
      %v9171 = vpack.c.b16 %v9136, %v9135
      %v9172 = vpack.c.b16 %v9138, %v9137
      %v9173 = vpack.c.b16 %v9140, %v9139
      %v9174 = vpack.c.b16 %v9142, %v9141
      %v9175 = vpack.c.b16 %v9144, %v9143
      %v9176 = vpack.c.b16 %v9146, %v9145
      %v9177 = vpack.c.b16 %v9148, %v9147
      %v9178 = vpack.c.b16 %v9150, %v9149
      %v9179 = vpack.c.b16 %v9152, %v9151
      %v9180 = vpack.c.b16 %v9154, %v9153
      %v9181 = vpack.c.b16 %v9156, %v9155
      %v9182 = vpack.c.b16 %v9158, %v9157
      %v9183 = vpack.c.b16 %v9160, %v9159
      %v9184 = vpack.c.b16 %v9162, %v9161
      %v9185 = vpack.c.b16 %v9164, %v9163
      %v9186 = vpack.c.b16 %v9165, %v9165
      %v9188 = vsel %vm739, %v9166, 0
      %v9191 = vsel %vm739, %v9167, 0
      %v9194 = vsel %vm739, %v9168, 0
      %v9197 = vsel %vm739, %v9169, 0
      %v9200 = vsel %vm739, %v9170, 0
      %v9203 = vsel %vm739, %v9171, 0
      %v9206 = vsel %vm739, %v9172, 0
      %v9209 = vsel %vm739, %v9173, 0
      %v9212 = vsel %vm739, %v9174, 0
      %v9215 = vsel %vm739, %v9175, 0
      %v9218 = vsel %vm739, %v9176, 0
      %v9221 = vsel %vm739, %v9177, 0
      %v9224 = vsel %vm739, %v9178, 0
      %v9227 = vsel %vm739, %v9179, 0
      %v9230 = vsel %vm739, %v9180, 0
      %v9233 = vsel %vm739, %v9181, 0
      %v9236 = vsel %vm739, %v9182, 0
      %v9239 = vsel %vm739, %v9183, 0
      %v9242 = vsel %vm739, %v9184, 0
      %v9245 = vsel %vm739, %v9185, 0
      %v9248 = vsel %vm739, %v9186, 0
      %v9251 = vsel %vm809, %v9083, 0
      %9253 = vmatprep.subr.bf16.mxu0 0
      %9254 = vmatpush1.bf16.msra.mxu0 %v9251
      %9255 = vmatprep.subr.bf16.mxu0 0
      %9256 = vmatpush1.bf16.msra.mxu0 0
      %9257 = vmatprep.subr.bf16.mxu0 0
      %9258 = vmatpush1.bf16.msra.mxu0 0
      %9259 = vmatprep.subr.bf16.mxu0 0
      %9260 = vmatpush1.bf16.msra.mxu0 0
      %9261 = vmatprep.subr.bf16.mxu0 0
      %9262 = vmatpush1.bf16.msra.mxu0 0
      %9263 = vmatprep.subr.bf16.mxu0 0
      %9264 = vmatpush1.bf16.msra.mxu0 0
      %9265 = vmatprep.subr.bf16.mxu0 0
      %9266 = vmatpush1.bf16.msra.mxu0 0
      %9267 = vmatprep.subr.bf16.mxu0 0
      %9268 = vmatpush1.bf16.msra.mxu0 0
      %9269 = vmatprep.subr.bf16.mxu0 0
      %9270 = vmatpush1.bf16.msra.mxu0 0
      %9271 = vmatprep.subr.bf16.mxu0 0
      %9272 = vmatpush1.bf16.msra.mxu0 0
      %9273 = vmatprep.subr.bf16.mxu0 0
      %9274 = vmatpush1.bf16.msra.mxu0 0
      %9275 = vmatprep.subr.bf16.mxu0 0
      %9276 = vmatpush1.bf16.msra.mxu0 0
      %9277 = vmatprep.subr.bf16.mxu0 0
      %9278 = vmatpush1.bf16.msra.mxu0 0
      %9279 = vmatprep.subr.bf16.mxu0 0
      %9280 = vmatpush1.bf16.msra.mxu0 0
      %9281 = vmatprep.subr.bf16.mxu0 0
      %9282 = vmatpush1.bf16.msra.mxu0 0
      %9283 = vmatprep.subr.bf16.mxu0 0
      %9284 = vmatpush1.bf16.msra.mxu0 0
      %9285 = vmatprep.mubr.bf16.mxu0 0
      %9286 = vmatmul.mubr.bf16.gmra.mrb[0].mxu0 %v9188
      %v9287 = vpop.f32.mrb[0].mxu0
      %v9288 = vadd.f32 0.0, %v9287
      %v9289 = vpop.f32.mrb[0].mxu0
      %v9290 = vpop.f32.mrb[0].mxu0
      %v9291 = vadd.f32 0.0, %v9290
      %v9292 = vpop.f32.mrb[0].mxu0
      %9293 = vmatprep.mubr.bf16.mxu0 0
      %9294 = vmatmul.mubr.bf16.gmra.mrb[0].mxu0 %v9191
      %v9295 = vpop.f32.mrb[0].mxu0
      %v9296 = vadd.f32 0.0, %v9295
      %v9297 = vpop.f32.mrb[0].mxu0
      %v9298 = vpop.f32.mrb[0].mxu0
      %v9299 = vadd.f32 0.0, %v9298
      %v9300 = vpop.f32.mrb[0].mxu0
      %9301 = vmatprep.mubr.bf16.mxu0 0
      %9302 = vmatmul.mubr.bf16.gmra.mrb[0].mxu0 %v9194
      %v9303 = vpop.f32.mrb[0].mxu0
      %v9304 = vadd.f32 0.0, %v9303
      %v9305 = vpop.f32.mrb[0].mxu0
      %v9306 = vpop.f32.mrb[0].mxu0
      %v9307 = vadd.f32 0.0, %v9306
      %v9308 = vpop.f32.mrb[0].mxu0
      %9309 = vmatprep.mubr.bf16.mxu0 0
      %9310 = vmatmul.mubr.bf16.gmra.mrb[0].mxu0 %v9197
      %v9311 = vpop.f32.mrb[0].mxu0
      %v9312 = vadd.f32 0.0, %v9311
      %v9313 = vpop.f32.mrb[0].mxu0
      %v9314 = vpop.f32.mrb[0].mxu0
      %v9315 = vadd.f32 0.0, %v9314
      %v9316 = vpop.f32.mrb[0].mxu0
      %9317 = vmatprep.mubr.bf16.mxu0 0
      %9318 = vmatmul.mubr.bf16.gmra.mrb[0].mxu0 %v9200
      %v9319 = vpop.f32.mrb[0].mxu0
      %v9320 = vadd.f32 0.0, %v9319
      %v9321 = vpop.f32.mrb[0].mxu0
      %v9322 = vpop.f32.mrb[0].mxu0
      %v9323 = vadd.f32 0.0, %v9322
      %v9324 = vpop.f32.mrb[0].mxu0
      %9325 = vmatprep.mubr.bf16.mxu0 0
      %9326 = vmatmul.mubr.bf16.gmra.mrb[0].mxu0 %v9203
      %v9327 = vpop.f32.mrb[0].mxu0
      %v9328 = vadd.f32 0.0, %v9327
      %v9329 = vpop.f32.mrb[0].mxu0
      %v9330 = vpop.f32.mrb[0].mxu0
      %v9331 = vadd.f32 0.0, %v9330
      %v9332 = vpop.f32.mrb[0].mxu0
      %9333 = vmatprep.mubr.bf16.mxu0 0
      %9334 = vmatmul.mubr.bf16.gmra.mrb[0].mxu0 %v9206
      %v9335 = vpop.f32.mrb[0].mxu0
      %v9336 = vadd.f32 0.0, %v9335
      %v9337 = vpop.f32.mrb[0].mxu0
      %v9338 = vpop.f32.mrb[0].mxu0
      %v9339 = vadd.f32 0.0, %v9338
      %v9340 = vpop.f32.mrb[0].mxu0
      %9341 = vmatprep.mubr.bf16.mxu0 0
      %9342 = vmatmul.mubr.bf16.gmra.mrb[0].mxu0 %v9209
      %v9343 = vpop.f32.mrb[0].mxu0
      %v9344 = vadd.f32 0.0, %v9343
      %v9345 = vpop.f32.mrb[0].mxu0
      %v9346 = vpop.f32.mrb[0].mxu0
      %v9347 = vadd.f32 0.0, %v9346
      %v9348 = vpop.f32.mrb[0].mxu0
      %9349 = vmatprep.mubr.bf16.mxu0 0
      %9350 = vmatmul.mubr.bf16.gmra.mrb[0].mxu0 %v9212
      %v9351 = vpop.f32.mrb[0].mxu0
      %v9352 = vadd.f32 0.0, %v9351
      %v9353 = vpop.f32.mrb[0].mxu0
      %v9354 = vpop.f32.mrb[0].mxu0
      %v9355 = vadd.f32 0.0, %v9354
      %v9356 = vpop.f32.mrb[0].mxu0
      %9357 = vmatprep.mubr.bf16.mxu0 0
      %9358 = vmatmul.mubr.bf16.gmra.mrb[0].mxu0 %v9215
      %v9359 = vpop.f32.mrb[0].mxu0
      %v9360 = vadd.f32 0.0, %v9359
      %v9361 = vpop.f32.mrb[0].mxu0
      %v9362 = vpop.f32.mrb[0].mxu0
      %v9363 = vadd.f32 0.0, %v9362
      %v9364 = vpop.f32.mrb[0].mxu0
      %9365 = vmatprep.mubr.bf16.mxu0 0
      %9366 = vmatmul.mubr.bf16.gmra.mrb[0].mxu0 %v9218
      %v9367 = vpop.f32.mrb[0].mxu0
      %v9368 = vadd.f32 0.0, %v9367
      %v9369 = vpop.f32.mrb[0].mxu0
      %v9370 = vpop.f32.mrb[0].mxu0
      %v9371 = vadd.f32 0.0, %v9370
      %v9372 = vpop.f32.mrb[0].mxu0
      %9373 = vmatprep.mubr.bf16.mxu0 0
      %9374 = vmatmul.mubr.bf16.gmra.mrb[0].mxu0 %v9221
      %v9375 = vpop.f32.mrb[0].mxu0
      %v9376 = vadd.f32 0.0, %v9375
      %v9377 = vpop.f32.mrb[0].mxu0
      %v9378 = vpop.f32.mrb[0].mxu0
      %v9379 = vadd.f32 0.0, %v9378
      %v9380 = vpop.f32.mrb[0].mxu0
      %9381 = vmatprep.mubr.bf16.mxu0 0
      %9382 = vmatmul.mubr.bf16.gmra.mrb[0].mxu0 %v9224
      %v9383 = vpop.f32.mrb[0].mxu0
      %v9384 = vadd.f32 0.0, %v9383
      %v9385 = vpop.f32.mrb[0].mxu0
      %v9386 = vpop.f32.mrb[0].mxu0
      %v9387 = vadd.f32 0.0, %v9386
      %v9388 = vpop.f32.mrb[0].mxu0
      %9389 = vmatprep.mubr.bf16.mxu0 0
      %9390 = vmatmul.mubr.bf16.gmra.mrb[0].mxu0 %v9227
      %v9391 = vpop.f32.mrb[0].mxu0
      %v9392 = vadd.f32 0.0, %v9391
      %v9393 = vpop.f32.mrb[0].mxu0
      %v9394 = vpop.f32.mrb[0].mxu0
      %v9395 = vadd.f32 0.0, %v9394
      %v9396 = vpop.f32.mrb[0].mxu0
      %9397 = vmatprep.mubr.bf16.mxu0 0
      %9398 = vmatmul.mubr.bf16.gmra.mrb[0].mxu0 %v9230
      %v9399 = vpop.f32.mrb[0].mxu0
      %v9400 = vadd.f32 0.0, %v9399
      %v9401 = vpop.f32.mrb[0].mxu0
      %v9402 = vpop.f32.mrb[0].mxu0
      %v9403 = vadd.f32 0.0, %v9402
      %v9404 = vpop.f32.mrb[0].mxu0
      %9405 = vmatprep.mubr.bf16.mxu0 0
      %9406 = vmatmul.mubr.bf16.gmra.mrb[0].mxu0 %v9233
      %v9407 = vpop.f32.mrb[0].mxu0
      %v9408 = vadd.f32 0.0, %v9407
      %v9409 = vpop.f32.mrb[0].mxu0
      %v9410 = vpop.f32.mrb[0].mxu0
      %v9411 = vadd.f32 0.0, %v9410
      %v9412 = vpop.f32.mrb[0].mxu0
      %9413 = vmatprep.mubr.bf16.mxu0 0
      %9414 = vmatmul.mubr.bf16.gmra.mrb[0].mxu0 %v9236
      %v9415 = vpop.f32.mrb[0].mxu0
      %v9416 = vadd.f32 0.0, %v9415
      %v9417 = vpop.f32.mrb[0].mxu0
      %v9418 = vpop.f32.mrb[0].mxu0
      %v9419 = vadd.f32 0.0, %v9418
      %v9420 = vpop.f32.mrb[0].mxu0
      %9421 = vmatprep.mubr.bf16.mxu0 0
      %9422 = vmatmul.mubr.bf16.gmra.mrb[0].mxu0 %v9239
      %v9423 = vpop.f32.mrb[0].mxu0
      %v9424 = vadd.f32 0.0, %v9423
      %v9425 = vpop.f32.mrb[0].mxu0
      %v9426 = vpop.f32.mrb[0].mxu0
      %v9427 = vadd.f32 0.0, %v9426
      %v9428 = vpop.f32.mrb[0].mxu0
      %9429 = vmatprep.mubr.bf16.mxu0 0
      %9430 = vmatmul.mubr.bf16.gmra.mrb[0].mxu0 %v9242
      %v9431 = vpop.f32.mrb[0].mxu0
      %v9432 = vadd.f32 0.0, %v9431
      %v9433 = vpop.f32.mrb[0].mxu0
      %v9434 = vpop.f32.mrb[0].mxu0
      %v9435 = vadd.f32 0.0, %v9434
      %v9436 = vpop.f32.mrb[0].mxu0
      %9437 = vmatprep.mubr.bf16.mxu0 0
      %9438 = vmatmul.mubr.bf16.gmra.mrb[0].mxu0 %v9245
      %v9439 = vpop.f32.mrb[0].mxu0
      %v9440 = vadd.f32 0.0, %v9439
      %v9441 = vpop.f32.mrb[0].mxu0
      %v9442 = vpop.f32.mrb[0].mxu0
      %v9443 = vadd.f32 0.0, %v9442
      %v9444 = vpop.f32.mrb[0].mxu0
      %9445 = vmatprep.mubr.bf16.mxu0 0
      %9446 = vmatmul.mubr.bf16.gmra.mrb[0].mxu0 %v9248
      %v9447 = vpop.f32.mrb[0].mxu0
      %v9448 = vadd.f32 0.0, %v9447
      %v9449 = vpop.f32.mrb[0].mxu0
      %v9450 = vpop.f32.mrb[0].mxu0
      %v9451 = vpop.f32.mrb[0].mxu0
      %9452 = vdwg.mxu0
      %v9453 = vadd.f32 %v9001, %v9288
      %v9454 = vadd.f32 %v9002, %v9291
      %v9455 = vadd.f32 %v9003, %v9296
      %v9456 = vadd.f32 %v9004, %v9299
      %v9457 = vadd.f32 %v9005, %v9304
      %v9458 = vadd.f32 %v9006, %v9307
      %v9459 = vadd.f32 %v9007, %v9312
      %v9460 = vadd.f32 %v9008, %v9315
      %v9461 = vadd.f32 %v9009, %v9320
      %v9462 = vadd.f32 %v9010, %v9323
      %v9463 = vadd.f32 %v9011, %v9328
      %v9464 = vadd.f32 %v9012, %v9331
      %v9465 = vadd.f32 %v9013, %v9336
      %v9466 = vadd.f32 %v9014, %v9339
      %v9467 = vadd.f32 %v9015, %v9344
      %v9468 = vadd.f32 %v9016, %v9347
      %v9469 = vadd.f32 %v9017, %v9352
      %v9470 = vadd.f32 %v9018, %v9355
      %v9471 = vadd.f32 %v9019, %v9360
      %v9472 = vadd.f32 %v9020, %v9363
      %v9473 = vadd.f32 %v9021, %v9368
      %v9474 = vadd.f32 %v9022, %v9371
      %v9475 = vadd.f32 %v9023, %v9376
      %v9476 = vadd.f32 %v9024, %v9379
      %v9477 = vadd.f32 %v9025, %v9384
      %v9478 = vadd.f32 %v9026, %v9387
      %v9479 = vadd.f32 %v9027, %v9392
      %v9480 = vadd.f32 %v9028, %v9395
      %v9481 = vadd.f32 %v9029, %v9400
      %v9482 = vadd.f32 %v9030, %v9403
      %v9483 = vadd.f32 %v9031, %v9408
      %v9484 = vadd.f32 %v9032, %v9411
      %v9485 = vadd.f32 %v9033, %v9416
      %v9486 = vadd.f32 %v9034, %v9419
      %v9487 = vadd.f32 %v9035, %v9424
      %v9488 = vadd.f32 %v9036, %v9427
      %v9489 = vadd.f32 %v9037, %v9432
      %v9490 = vadd.f32 %v9038, %v9435
      %v9491 = vadd.f32 %v9039, %v9440
      %v9492 = vadd.f32 %v9040, %v9443
      %v9493 = vadd.f32 %v9041, %v9448
      %v9494 = vld [vmem:[%s8] sm:$0x1]
      %v9496 = vlaneseq
      %v9497 = vshrl.u32 %v9496, 7
      %v9498 = vsub.s32 0, %v9497
      %v9499 = vrot.slane %v9494, %v9498
      %v9501 = vadd.f32 %v9453, %v9499
      %v9502 = vadd.f32 %v9454, %v9499
      %v9503 = vadd.f32 %v9455, %v9499
      %v9504 = vadd.f32 %v9456, %v9499
      %v9505 = vadd.f32 %v9457, %v9499
      %v9506 = vadd.f32 %v9458, %v9499
      %v9507 = vadd.f32 %v9459, %v9499
      %v9508 = vadd.f32 %v9460, %v9499
      %v9509 = vadd.f32 %v9461, %v9499
      %v9510 = vadd.f32 %v9462, %v9499
      %v9511 = vadd.f32 %v9463, %v9499
      %v9512 = vadd.f32 %v9464, %v9499
      %v9513 = vadd.f32 %v9465, %v9499
      %v9514 = vadd.f32 %v9466, %v9499
      %v9515 = vadd.f32 %v9467, %v9499
      %v9516 = vadd.f32 %v9468, %v9499
      %v9517 = vadd.f32 %v9469, %v9499
      %v9518 = vadd.f32 %v9470, %v9499
      %v9519 = vadd.f32 %v9471, %v9499
      %v9520 = vadd.f32 %v9472, %v9499
      %v9521 = vadd.f32 %v9473, %v9499
      %v9522 = vadd.f32 %v9474, %v9499
      %v9523 = vadd.f32 %v9475, %v9499
      %v9524 = vadd.f32 %v9476, %v9499
      %v9525 = vadd.f32 %v9477, %v9499
      %v9526 = vadd.f32 %v9478, %v9499
      %v9527 = vadd.f32 %v9479, %v9499
      %v9528 = vadd.f32 %v9480, %v9499
      %v9529 = vadd.f32 %v9481, %v9499
      %v9530 = vadd.f32 %v9482, %v9499
      %v9531 = vadd.f32 %v9483, %v9499
      %v9532 = vadd.f32 %v9484, %v9499
      %v9533 = vadd.f32 %v9485, %v9499
      %v9534 = vadd.f32 %v9486, %v9499
      %v9535 = vadd.f32 %v9487, %v9499
      %v9536 = vadd.f32 %v9488, %v9499
      %v9537 = vadd.f32 %v9489, %v9499
      %v9538 = vadd.f32 %v9490, %v9499
      %v9539 = vadd.f32 %v9491, %v9499
      %v9540 = vadd.f32 %v9492, %v9499
      %v9541 = vadd.f32 %v9493, %v9499
      %v9542 = vmax.f32 %v9501, 0.0
      %v9543 = vmax.f32 %v9502, 0.0
      %v9544 = vmax.f32 %v9503, 0.0
      %v9545 = vmax.f32 %v9504, 0.0
      %v9546 = vmax.f32 %v9505, 0.0
      %v9547 = vmax.f32 %v9506, 0.0
      %v9548 = vmax.f32 %v9507, 0.0
      %v9549 = vmax.f32 %v9508, 0.0
      %v9550 = vmax.f32 %v9509, 0.0
      %v9551 = vmax.f32 %v9510, 0.0
      %v9552 = vmax.f32 %v9511, 0.0
      %v9553 = vmax.f32 %v9512, 0.0
      %v9554 = vmax.f32 %v9513, 0.0
      %v9555 = vmax.f32 %v9514, 0.0
      %v9556 = vmax.f32 %v9515, 0.0
      %v9557 = vmax.f32 %v9516, 0.0
      %v9558 = vmax.f32 %v9517, 0.0
      %v9559 = vmax.f32 %v9518, 0.0
      %v9560 = vmax.f32 %v9519, 0.0
      %v9561 = vmax.f32 %v9520, 0.0
      %v9562 = vmax.f32 %v9521, 0.0
      %v9563 = vmax.f32 %v9522, 0.0
      %v9564 = vmax.f32 %v9523, 0.0
      %v9565 = vmax.f32 %v9524, 0.0
      %v9566 = vmax.f32 %v9525, 0.0
      %v9567 = vmax.f32 %v9526, 0.0
      %v9568 = vmax.f32 %v9527, 0.0
      %v9569 = vmax.f32 %v9528, 0.0
      %v9570 = vmax.f32 %v9529, 0.0
      %v9571 = vmax.f32 %v9530, 0.0
      %v9572 = vmax.f32 %v9531, 0.0
      %v9573 = vmax.f32 %v9532, 0.0
      %v9574 = vmax.f32 %v9533, 0.0
      %v9575 = vmax.f32 %v9534, 0.0
      %v9576 = vmax.f32 %v9535, 0.0
      %v9577 = vmax.f32 %v9536, 0.0
      %v9578 = vmax.f32 %v9537, 0.0
      %v9579 = vmax.f32 %v9538, 0.0
      %v9580 = vmax.f32 %v9539, 0.0
      %v9581 = vmax.f32 %v9540, 0.0
      %v9582 = vmax.f32 %v9541, 0.0
      %v9583 = vpack.c.bf16 %v9543, %v9542
      %v9584 = vpack.c.bf16 %v9545, %v9544
      %v9585 = vpack.c.bf16 %v9547, %v9546
      %v9586 = vpack.c.bf16 %v9549, %v9548
      %v9587 = vpack.c.bf16 %v9551, %v9550
      %v9588 = vpack.c.bf16 %v9553, %v9552
      %v9589 = vpack.c.bf16 %v9555, %v9554
      %v9590 = vpack.c.bf16 %v9557, %v9556
      %v9591 = vpack.c.bf16 %v9559, %v9558
      %v9592 = vpack.c.bf16 %v9561, %v9560
      %v9593 = vpack.c.bf16 %v9563, %v9562
      %v9594 = vpack.c.bf16 %v9565, %v9564
      %v9595 = vpack.c.bf16 %v9567, %v9566
      %v9596 = vpack.c.bf16 %v9569, %v9568
      %v9597 = vpack.c.bf16 %v9571, %v9570
      %v9598 = vpack.c.bf16 %v9573, %v9572
      %v9599 = vpack.c.bf16 %v9575, %v9574
      %v9600 = vpack.c.bf16 %v9577, %v9576
      %v9601 = vpack.c.bf16 %v9579, %v9578
      %v9602 = vpack.c.bf16 %v9581, %v9580
      %v9603 = vpack.c.bf16 %v9582, %v9582
      %v9625 = vunpack.c.l.b16 %v9583
      %v9626 = vunpack.c.h.b16 %v9583
      %v9627 = vunpack.c.l.b16 %v9584
      %v9628 = vunpack.c.h.b16 %v9584
      %v9629 = vunpack.c.l.b16 %v9585
      %v9630 = vunpack.c.h.b16 %v9585
      %v9631 = vunpack.c.l.b16 %v9586
      %v9632 = vunpack.c.h.b16 %v9586
      %v9633 = vunpack.c.l.b16 %v9587
      %v9634 = vunpack.c.h.b16 %v9587
      %v9635 = vunpack.c.l.b16 %v9588
      %v9636 = vunpack.c.h.b16 %v9588
      %v9637 = vunpack.c.l.b16 %v9589
      %v9638 = vunpack.c.h.b16 %v9589
      %v9639 = vunpack.c.l.b16 %v9590
      %v9640 = vunpack.c.h.b16 %v9590
      %v9641 = vunpack.c.l.b16 %v9591
      %v9642 = vunpack.c.h.b16 %v9591
      %v9643 = vunpack.c.l.b16 %v9592
      %v9644 = vunpack.c.h.b16 %v9592
      %v9645 = vunpack.c.l.b16 %v9593
      %v9646 = vunpack.c.h.b16 %v9593
      %v9647 = vunpack.c.l.b16 %v9594
      %v9648 = vunpack.c.h.b16 %v9594
      %v9649 = vunpack.c.l.b16 %v9595
      %v9650 = vunpack.c.h.b16 %v9595
      %v9651 = vunpack.c.l.b16 %v9596
      %v9652 = vunpack.c.h.b16 %v9596
      %v9653 = vunpack.c.l.b16 %v9597
      %v9654 = vunpack.c.h.b16 %v9597
      %v9655 = vunpack.c.l.b16 %v9598
      %v9656 = vunpack.c.h.b16 %v9598
      %v9657 = vunpack.c.l.b16 %v9599
      %v9658 = vunpack.c.h.b16 %v9599
      %v9659 = vunpack.c.l.b16 %v9600
      %v9660 = vunpack.c.h.b16 %v9600
      %v9661 = vunpack.c.l.b16 %v9601
      %v9662 = vunpack.c.h.b16 %v9601
      %v9663 = vunpack.c.l.b16 %v9602
      %v9664 = vunpack.c.h.b16 %v9602
      %v9665 = vunpack.c.l.b16 %v9603
      %v9666 = vpack.c.b16 %v9625, %v9625
      %v9667 = vpack.c.b16 %v9626, %v9626
      %v9668 = vpack.c.b16 %v9627, %v9627
      %v9669 = vpack.c.b16 %v9628, %v9628
      %v9670 = vpack.c.b16 %v9629, %v9629
      %v9671 = vpack.c.b16 %v9630, %v9630
      %v9672 = vpack.c.b16 %v9631, %v9631
      %v9673 = vpack.c.b16 %v9632, %v9632
      %v9674 = vpack.c.b16 %v9633, %v9633
      %v9675 = vpack.c.b16 %v9634, %v9634
      %v9676 = vpack.c.b16 %v9635, %v9635
      %v9677 = vpack.c.b16 %v9636, %v9636
      %v9678 = vpack.c.b16 %v9637, %v9637
      %v9679 = vpack.c.b16 %v9638, %v9638
      %v9680 = vpack.c.b16 %v9639, %v9639
      %v9681 = vpack.c.b16 %v9640, %v9640
      %v9682 = vpack.c.b16 %v9641, %v9641
      %v9683 = vpack.c.b16 %v9642, %v9642
      %v9684 = vpack.c.b16 %v9643, %v9643
      %v9685 = vpack.c.b16 %v9644, %v9644
      %v9686 = vpack.c.b16 %v9645, %v9645
      %v9687 = vpack.c.b16 %v9646, %v9646
      %v9688 = vpack.c.b16 %v9647, %v9647
      %v9689 = vpack.c.b16 %v9648, %v9648
      %v9690 = vpack.c.b16 %v9649, %v9649
      %v9691 = vpack.c.b16 %v9650, %v9650
      %v9692 = vpack.c.b16 %v9651, %v9651
      %v9693 = vpack.c.b16 %v9652, %v9652
      %v9694 = vpack.c.b16 %v9653, %v9653
      %v9695 = vpack.c.b16 %v9654, %v9654
      %v9696 = vpack.c.b16 %v9655, %v9655
      %v9697 = vpack.c.b16 %v9656, %v9656
      %v9698 = vpack.c.b16 %v9657, %v9657
      %v9699 = vpack.c.b16 %v9658, %v9658
      %v9700 = vpack.c.b16 %v9659, %v9659
      %v9701 = vpack.c.b16 %v9660, %v9660
      %v9702 = vpack.c.b16 %v9661, %v9661
      %v9703 = vpack.c.b16 %v9662, %v9662
      %v9704 = vpack.c.b16 %v9663, %v9663
      %v9705 = vpack.c.b16 %v9664, %v9664
      %v9706 = vpack.c.b16 %v9665, %v9665
      %9748 = vst [vmem:[%s352] sm:$0xf] %v9666
      %9749 = vst [vmem:[%s352 + $0x4] sm:$0xf] %v9667
      %9750 = vst [vmem:[%s352 + $0x8] sm:$0xf] %v9668
      %9751 = vst [vmem:[%s352 + $0xc] sm:$0xf] %v9669
      %9752 = vst [vmem:[%s352 + $0x10] sm:$0xf] %v9670
      %9753 = vst [vmem:[%s352 + $0x14] sm:$0xf] %v9671
      %9754 = vst [vmem:[%s352 + $0x18] sm:$0xf] %v9672
      %9755 = vst [vmem:[%s352 + $0x1c] sm:$0xf] %v9673
      %9756 = vst [vmem:[%s352 + $0x20] sm:$0xf] %v9674
      %9757 = vst [vmem:[%s352 + $0x24] sm:$0xf] %v9675
      %9758 = vst [vmem:[%s352 + $0x28] sm:$0xf] %v9676
      %9759 = vst [vmem:[%s352 + $0x2c] sm:$0xf] %v9677
      %9760 = vst [vmem:[%s352 + $0x30] sm:$0xf] %v9678
      %9761 = vst [vmem:[%s352 + $0x34] sm:$0xf] %v9679
      %9762 = vst [vmem:[%s352 + $0x38] sm:$0xf] %v9680
      %9763 = vst [vmem:[%s352 + $0x3c] sm:$0xf] %v9681
      %9764 = vst [vmem:[%s352 + $0x40] sm:$0xf] %v9682
      %9765 = vst [vmem:[%s352 + $0x44] sm:$0xf] %v9683
      %9766 = vst [vmem:[%s352 + $0x48] sm:$0xf] %v9684
      %9767 = vst [vmem:[%s352 + $0x4c] sm:$0xf] %v9685
      %9768 = vst [vmem:[%s352 + $0x50] sm:$0xf] %v9686
      %9769 = vst [vmem:[%s352 + $0x54] sm:$0xf] %v9687
      %9770 = vst [vmem:[%s352 + $0x58] sm:$0xf] %v9688
      %9771 = vst [vmem:[%s352 + $0x5c] sm:$0xf] %v9689
      %9772 = vst [vmem:[%s352 + $0x60] sm:$0xf] %v9690
      %9773 = vst [vmem:[%s352 + $0x64] sm:$0xf] %v9691
      %9774 = vst [vmem:[%s352 + $0x68] sm:$0xf] %v9692
      %9775 = vst [vmem:[%s352 + $0x6c] sm:$0xf] %v9693
      %9776 = vst [vmem:[%s352 + $0x70] sm:$0xf] %v9694
      %9777 = vst [vmem:[%s352 + $0x74] sm:$0xf] %v9695
      %9778 = vst [vmem:[%s352 + $0x78] sm:$0xf] %v9696
      %9779 = vst [vmem:[%s352 + $0x7c] sm:$0xf] %v9697
      %9780 = vst [vmem:[%s352 + $0x80] sm:$0xf] %v9698
      %9781 = vst [vmem:[%s352 + $0x84] sm:$0xf] %v9699
      %9782 = vst [vmem:[%s352 + $0x88] sm:$0xf] %v9700
      %9783 = vst [vmem:[%s352 + $0x8c] sm:$0xf] %v9701
      %9784 = vst [vmem:[%s352 + $0x90] sm:$0xf] %v9702
      %9785 = vst [vmem:[%s352 + $0x94] sm:$0xf] %v9703
      %9786 = vst [vmem:[%s352 + $0x98] sm:$0xf] %v9704
      %9787 = vst [vmem:[%s352 + $0x9c] sm:$0xf] %v9705
      %9788 = vst [vmem:[%s352 + $0xa0] sm:$0xf] %v9706
      %p9789 = scmp.lt.s32.totalorder %s20, 1
      %s9790 = scalar_select %p9789, %s20, 1
      %s9791 = smul.addr %s9790, 41
      %s9792 = smul.addr %s9791, 4
      %s9793 = scalar_lea.vmem %s9, %s9792
      // Predicated region
      $region57: #{basic_block_forward.1} parent=55 // pred_check
        %p9794 = pneg %p237
      $region58: #{basic_block_forward.1} parent=55 // pred_check_branch
        %9796 = sbr.rel (%p9794) target = $region60
      $region59: #{basic_block_forward.1} parent=55 // pred_region
        _
      $region60: #{basic_block_forward.1} parent=55 // pred_fallthru
        _
    $region56: #{basic_block_forward.1} parent=5 // pred_fallthru
      _
    %p9797 = scmp.le.s32.totalorder 2, %s15
    // Predicated region
    $region61: #{basic_block_forward.1} parent=5 // pred_check
      %p9798 = pneg %p9797
    $region62: #{basic_block_forward.1} parent=5 // pred_check_branch
      %9800 = sbr.rel (%p9798) target = $region64
    $region63: #{basic_block_forward.1} parent=5 // pred_region
      %s9801 = ssub.s32 %s15, 2
      // Predicated region
      $region65: #{basic_block_forward.1} parent=63 // pred_check
        %p9802 = pneg %p243
      $region66: #{basic_block_forward.1} parent=63 // pred_check_branch
        %9804 = sbr.rel (%p9802) target = $region68
      $region67: #{basic_block_forward.1} parent=63 // pred_region
        %p9805 = scmp.lt.s32.totalorder %s21, 1
        %s9806 = scalar_select %p9805, %s21, 1
        %s9807 = smul.addr %s9806, 41
        %s9808 = smul.addr %s9807, 4
        %s9809 = scalar_lea.vmem %s9, %s9808
      $region68: #{basic_block_forward.1} parent=63 // pred_fallthru
        _
    $region64: #{basic_block_forward.1} parent=5 // pred_fallthru
      _
  $region6: #{basic_block_forward.1} parent=0 // loop_footer
    %s19 = sadd.s32 1, %s15
  $region7: #{basic_block_forward.1} parent=0 // loop_footer_branch
    %14 = sbr.rel target = $region3
  $region8: #{basic_block_forward.1} parent=0 // loop_exit
    _

</llo_original>
